<compile_context>
chip_gen: v7x
topology: tpu7x:2x2x1
jax: 0.10.0
libtpu: 0.0.40
codegen_flags: <defaults>
</compile_context>

<pallas_src>
import jax
import jax.numpy as jnp
from jax import lax
from jax.experimental import pallas as pl
from jax.experimental.pallas import tpu as pltpu


def lenet_kernel(x_ref, w1_ref, b1_ref, w2_ref, b2_ref, wfc_ref, bfc_ref, out_ref):
    TB = x_ref.shape[0]
    x = x_ref[...]                                            # (TB, 28, 28) bf16

    # ---- conv1: 5 banded matmuls over kh; output lane = j*10 + cout ----------
    y1 = jnp.dot(x[:, 0:24, :].reshape(TB * 24, 28), w1_ref[0],
                 preferred_element_type=jnp.float32)
    for kh in range(1, 5):
        xk = x[:, kh:kh + 24, :].reshape(TB * 24, 28)
        y1 = y1 + jnp.dot(xk, w1_ref[kh], preferred_element_type=jnp.float32)
    y1 = jnp.maximum(y1 + b1_ref[...], 0.0).astype(jnp.bfloat16)  # bias+ReLU (f32) -> bf16
    y1 = y1.reshape(TB, 24, 240)

    # ---- pool1 (2x2): H via sublane pair-max, W via lane-offset pair-max -----
    y1 = y1.reshape(TB, 12, 2, 240)
    y1 = jnp.maximum(y1[:, :, 0, :], y1[:, :, 1, :])          # (TB, 12, 240)
    # useful lanes of h1: 20*jp + c  (jp = pooled W index, c = channel); the
    # in-between lanes are garbage and the conv2 band has zero rows for them.
    h1 = jnp.maximum(y1[:, :, :230], y1[:, :, 10:240])        # (TB, 12, 230) bf16

    # ---- conv2: 5 banded matmuls over kh; output lane = j*20 + cout ----------
    y2 = jnp.dot(h1[:, 0:8, :].reshape(TB * 8, 230), w2_ref[0],
                 preferred_element_type=jnp.float32)
    for kh in range(1, 5):
        hk = h1[:, kh:kh + 8, :].reshape(TB * 8, 230)
        y2 = y2 + jnp.dot(hk, w2_ref[kh], preferred_element_type=jnp.float32)
    y2 = jnp.maximum(y2 + b2_ref[...], 0.0).astype(jnp.bfloat16)
    y2 = y2.reshape(TB, 8, 160)

    # ---- pool2 (2x2) ----------------------------------------------------------
    y2 = y2.reshape(TB, 4, 2, 160)
    y2 = jnp.maximum(y2[:, :, 0, :], y2[:, :, 1, :])          # (TB, 4, 160)
    # useful lanes of h2: 40*jp + co; garbage lanes have zero FC weight rows.
    h2 = jnp.maximum(y2[:, :, :140], y2[:, :, 20:160])        # (TB, 4, 140) bf16

    # ---- FC: 4 accumulated matmuls (one per pooled row), lane-dense store ----
    acc = jnp.dot(h2[:, 0, :], wfc_ref[0], preferred_element_type=jnp.float32)
    for r in range(1, 4):
        acc = acc + jnp.dot(h2[:, r, :], wfc_ref[r], preferred_element_type=jnp.float32)
    out_ref[...] = acc + bfc_ref[...]                         # (TB, 128) f32


def _batch_tiling(batch):
    """Pad batch to a multiple of 8 and pick a tile (<=32) giving >=2 grid steps
    when possible (pipelining + both v7x TensorCores)."""
    bp = ((max(batch, 1) + 7) // 8) * 8
    if bp % 32 == 0 and bp >= 64:
        tb = 32
    elif bp % 16 == 0 and bp >= 32:
        tb = 16
    else:
        tb = 8
    return bp, tb


def _build_banded_weights(w1_pt, b1, w2_pt, b2, fc_w, fc_b):
    """One-time wrapper-side weight prep (tiny arrays, no activation traffic)."""
    # conv1 band: (5, 28, 240); [kh, w_in, j*10+o] = w1[o,0,kh,w_in-j] if 0<=w_in-j<=4.
    w1_k = w1_pt[:, 0, :, :]                                  # (o, kh, kw) = (10, 5, 5)
    w_in = jnp.arange(28)[:, None]
    jcol = jnp.arange(24)[None, :]
    kw = w_in - jcol                                          # (28, 24)
    valid = ((kw >= 0) & (kw <= 4)).astype(jnp.float32)
    band1 = w1_k[:, :, jnp.clip(kw, 0, 4)] * valid[None, None]   # (10, 5, 28, 24)
    w1b = jnp.transpose(band1, (1, 2, 3, 0)).reshape(5, 28, 240).astype(jnp.bfloat16)

    # conv2 band: (5, 230, 160); row 20*w + c (c<10 useful, c>=10 zero),
    # col j*20 + co; value = w2[co,c,kh,w-j] if 0<=w-j<=4.
    wcol = jnp.arange(12)[:, None]
    jcol2 = jnp.arange(8)[None, :]
    kw2 = wcol - jcol2                                        # (12, 8)
    valid2 = ((kw2 >= 0) & (kw2 <= 4)).astype(jnp.float32)
    g = w2_pt[:, :, :, jnp.clip(kw2, 0, 4)] * valid2[None, None, None]  # (co,c,kh,w,j)
    g = jnp.transpose(g, (2, 3, 1, 4, 0))                     # (kh, w, c, j, co)
    g = jnp.pad(g, ((0, 0), (0, 0), (0, 10), (0, 0), (0, 0)))  # c: 10 -> 20 (zero rows)
    w2b = g.reshape(5, 240, 160)[:, :230, :].astype(jnp.bfloat16)

    # FC: (4, 140, 128); [r, 40*jp+co, out] = fc_w[out, co*16 + r*4 + jp]
    # (PyTorch flatten order of (B,20,4,4) is c*16 + h*4 + w); zero rows for the
    # dilated garbage lanes, out padded 10 -> 128 for a lane-dense store.
    fcw = jnp.transpose(fc_w.reshape(10, 20, 4, 4), (2, 3, 1, 0))   # (h, w, c, out)
    fcw = jnp.pad(fcw, ((0, 0), (0, 0), (0, 20), (0, 118)))         # (4, 4, 40, 128)
    wfc = fcw.reshape(4, 160, 128)[:, :140, :].astype(jnp.bfloat16)

    b1v = jnp.tile(b1, 24).reshape(1, 240).astype(jnp.float32)      # lane j*10+o -> b1[o]
    b2v = jnp.tile(b2, 8).reshape(1, 160).astype(jnp.float32)       # lane j*20+co -> b2[co]
    bfcv = jnp.pad(fc_b, (0, 118)).reshape(1, 128).astype(jnp.float32)
    return w1b, b1v, w2b, b2v, wfc, bfcv


def lenet_pallas(x_nchw, w1_pt, b1, w2_pt, b2, fc_w, fc_b):
    """Wrapper: raw-image layout + banded-weight prep; all layer math in-kernel."""
    B = x_nchw.shape[0]
    x2d = x_nchw[:, 0, :, :].astype(jnp.bfloat16)             # (B, 28, 28), Cin=1

    bp, tb = _batch_tiling(B)
    if bp != B:
        x2d = jnp.pad(x2d, ((0, bp - B), (0, 0), (0, 0)))

    w1b, b1v, w2b, b2v, wfc, bfcv = _build_banded_weights(w1_pt, b1, w2_pt, b2, fc_w, fc_b)

    out = pl.pallas_call(
        lenet_kernel,
        out_shape=jax.ShapeDtypeStruct((bp, 128), jnp.float32),
        grid=(bp // tb,),
        in_specs=[
            pl.BlockSpec((tb, 28, 28), lambda i: (i, 0, 0)),  # batch-tiled raw images
            pl.BlockSpec((5, 28, 240), lambda i: (0, 0, 0)),  # weights stay resident
            pl.BlockSpec((1, 240), lambda i: (0, 0)),
            pl.BlockSpec((5, 230, 160), lambda i: (0, 0, 0)),
            pl.BlockSpec((1, 160), lambda i: (0, 0)),
            pl.BlockSpec((4, 140, 128), lambda i: (0, 0, 0)),
            pl.BlockSpec((1, 128), lambda i: (0, 0)),
        ],
        out_specs=pl.BlockSpec((tb, 128), lambda i: (i, 0)),
        compiler_params=pltpu.CompilerParams(
            dimension_semantics=("parallel",),
        ),
    )(x2d, w1b, b1v, w2b, b2v, wfc, bfcv)
    return out[:B, :10]


def lenet_reference(x, w1, b1, w2, b2, fc_w, fc_b):
    """Plain-JAX NCHW f32 reference matching the PyTorch forward exactly."""
    def conv(x, w, b):
        y = lax.conv_general_dilated(
            x, w, window_strides=(1, 1), padding='VALID',
            dimension_numbers=('NCHW', 'OIHW', 'NCHW'))
        return y + b.reshape(1, -1, 1, 1)

    def pool(x):
        return lax.reduce_window(x, jnp.array(-jnp.inf, x.dtype), lax.max,
                                 (1, 1, 2, 2), (1, 1, 2, 2), 'VALID')

    x = jnp.maximum(conv(x, w1, b1), 0.0)
    x = pool(x)
    x = jnp.maximum(conv(x, w2, b2), 0.0)
    x = pool(x)
    x = x.reshape(x.shape[0], -1)                 # (B, 320), NCHW flatten order
    return x @ fc_w.T + fc_b


if __name__ == "__main__":
    key = jax.random.PRNGKey(0)
    kx, k1, k2, k3, k4, k5, k6 = jax.random.split(key, 7)

    # Spatial size 28 is implied by fc(320): 28 -> 24 -> 12 -> 8 -> 4, 20*4*4 = 320.
    B = 2
    x = jax.random.normal(kx, (B, 1, 28, 28), jnp.float32)

    w1 = 0.1 * jax.random.normal(k1, (10, 1, 5, 5), jnp.float32)
    b1 = 0.05 * jax.random.normal(k2, (10,), jnp.float32)
    w2 = 0.1 * jax.random.normal(k3, (20, 10, 5, 5), jnp.float32)
    b2 = 0.05 * jax.random.normal(k4, (20,), jnp.float32)
    fc_w = 0.1 * jax.random.normal(k5, (10, 320), jnp.float32)
    fc_b = 0.05 * jax.random.normal(k6, (10,), jnp.float32)

    out = lenet_pallas(x, w1, b1, w2, b2, fc_w, fc_b)
    out = jax.block_until_ready(out)

    ref = jax.block_until_ready(lenet_reference(x, w1, b1, w2, b2, fc_w, fc_b))
    assert out.shape == (B, 10), out.shape
    # bf16 MXU operands -> slightly looser tolerance than pure-f32.
    assert jnp.allclose(out, ref, rtol=5e-2, atol=1e-1), (out, ref)

    print("KERNEL_OK")
</pallas_src>

<mosaic_0001>
module attributes {stable_mosaic.version = 11 : i64} {
  func.func @lenet_kernel(%arg0: i32, %arg1: memref<8x28x28xbf16, #tpu.memory_space<vmem>>, %arg2: memref<5x28x240xbf16, #tpu.memory_space<vmem>>, %arg3: memref<1x240xf32, #tpu.memory_space<vmem>>, %arg4: memref<5x230x160xbf16, #tpu.memory_space<vmem>>, %arg5: memref<1x160xf32, #tpu.memory_space<vmem>>, %arg6: memref<4x140x128xbf16, #tpu.memory_space<vmem>>, %arg7: memref<1x128xf32, #tpu.memory_space<vmem>>, %arg8: memref<8x128xf32, #tpu.memory_space<vmem>>) attributes {dimension_semantics = [#tpu.dimension_semantics<parallel>], iteration_bounds = array<i64: 1>, scalar_prefetch = 0 : i64, scratch_operands = 0 : i64, tpu.core_type = #tpu.core_type<tc>, window_params = [{transform_indices = @transform_0, window_bounds = array<i64: 8, 28, 28>}, {pipeline_mode = #tpu.pipeline_mode<synchronous>, transform_indices = @transform_1, window_bounds = array<i64: 5, 28, 240>}, {pipeline_mode = #tpu.pipeline_mode<synchronous>, transform_indices = @transform_2, window_bounds = array<i64: 1, 240>}, {pipeline_mode = #tpu.pipeline_mode<synchronous>, transform_indices = @transform_3, window_bounds = array<i64: 5, 230, 160>}, {pipeline_mode = #tpu.pipeline_mode<synchronous>, transform_indices = @transform_4, window_bounds = array<i64: 1, 160>}, {pipeline_mode = #tpu.pipeline_mode<synchronous>, transform_indices = @transform_5, window_bounds = array<i64: 4, 140, 128>}, {pipeline_mode = #tpu.pipeline_mode<synchronous>, transform_indices = @transform_6, window_bounds = array<i64: 1, 128>}, {transform_indices = @transform_7, window_bounds = array<i64: 8, 128>}]} {
    %c0 = arith.constant 0 : index
    %c0_0 = arith.constant 0 : index
    %c0_1 = arith.constant 0 : index
    %0 = vector.load %arg1[%c0, %c0_0, %c0_1] : memref<8x28x28xbf16, #tpu.memory_space<vmem>>, vector<8x28x28xbf16>
    %1 = vector.extract_strided_slice %0 {offsets = [0, 0, 0], sizes = [8, 24, 28], strides = [1, 1, 1]} : vector<8x28x28xbf16> to vector<8x24x28xbf16>
    %2 = vector.shape_cast %1 : vector<8x24x28xbf16> to vector<192x28xbf16>
    %c0_2 = arith.constant 0 : index
    %c0_3 = arith.constant 0 : index
    %c0_4 = arith.constant 0 : index
    %3 = vector.load %arg2[%c0_2, %c0_3, %c0_4] : memref<5x28x240xbf16, #tpu.memory_space<vmem>>, vector<1x28x240xbf16>
    %4 = vector.shape_cast %3 : vector<1x28x240xbf16> to vector<28x240xbf16>
    %cst = arith.constant dense<0.000000e+00> : vector<192x240xf32>
    %5 = tpu.matmul %2, %4, %cst {dimension_numbers = #tpu.dot_dimension_numbers<[1], [0], [0], [1], [0, 0, 1, 1], [], []>} : vector<192x28xbf16>, vector<28x240xbf16>, vector<192x240xf32> -> vector<192x240xf32>
    %6 = vector.extract_strided_slice %0 {offsets = [0, 1, 0], sizes = [8, 24, 28], strides = [1, 1, 1]} : vector<8x28x28xbf16> to vector<8x24x28xbf16>
    %7 = vector.shape_cast %6 : vector<8x24x28xbf16> to vector<192x28xbf16>
    %c1 = arith.constant 1 : index
    %c0_5 = arith.constant 0 : index
    %c0_6 = arith.constant 0 : index
    %8 = vector.load %arg2[%c1, %c0_5, %c0_6] : memref<5x28x240xbf16, #tpu.memory_space<vmem>>, vector<1x28x240xbf16>
    %9 = vector.shape_cast %8 : vector<1x28x240xbf16> to vector<28x240xbf16>
    %cst_7 = arith.constant dense<0.000000e+00> : vector<192x240xf32>
    %10 = tpu.matmul %7, %9, %cst_7 {dimension_numbers = #tpu.dot_dimension_numbers<[1], [0], [0], [1], [0, 0, 1, 1], [], []>} : vector<192x28xbf16>, vector<28x240xbf16>, vector<192x240xf32> -> vector<192x240xf32>
    %11 = arith.addf %5, %10 : vector<192x240xf32>
    %12 = vector.extract_strided_slice %0 {offsets = [0, 2, 0], sizes = [8, 24, 28], strides = [1, 1, 1]} : vector<8x28x28xbf16> to vector<8x24x28xbf16>
    %13 = vector.shape_cast %12 : vector<8x24x28xbf16> to vector<192x28xbf16>
    %c2 = arith.constant 2 : index
    %c0_8 = arith.constant 0 : index
    %c0_9 = arith.constant 0 : index
    %14 = vector.load %arg2[%c2, %c0_8, %c0_9] : memref<5x28x240xbf16, #tpu.memory_space<vmem>>, vector<1x28x240xbf16>
    %15 = vector.shape_cast %14 : vector<1x28x240xbf16> to vector<28x240xbf16>
    %cst_10 = arith.constant dense<0.000000e+00> : vector<192x240xf32>
    %16 = tpu.matmul %13, %15, %cst_10 {dimension_numbers = #tpu.dot_dimension_numbers<[1], [0], [0], [1], [0, 0, 1, 1], [], []>} : vector<192x28xbf16>, vector<28x240xbf16>, vector<192x240xf32> -> vector<192x240xf32>
    %17 = arith.addf %11, %16 : vector<192x240xf32>
    %18 = vector.extract_strided_slice %0 {offsets = [0, 3, 0], sizes = [8, 24, 28], strides = [1, 1, 1]} : vector<8x28x28xbf16> to vector<8x24x28xbf16>
    %19 = vector.shape_cast %18 : vector<8x24x28xbf16> to vector<192x28xbf16>
    %c3 = arith.constant 3 : index
    %c0_11 = arith.constant 0 : index
    %c0_12 = arith.constant 0 : index
    %20 = vector.load %arg2[%c3, %c0_11, %c0_12] : memref<5x28x240xbf16, #tpu.memory_space<vmem>>, vector<1x28x240xbf16>
    %21 = vector.shape_cast %20 : vector<1x28x240xbf16> to vector<28x240xbf16>
    %cst_13 = arith.constant dense<0.000000e+00> : vector<192x240xf32>
    %22 = tpu.matmul %19, %21, %cst_13 {dimension_numbers = #tpu.dot_dimension_numbers<[1], [0], [0], [1], [0, 0, 1, 1], [], []>} : vector<192x28xbf16>, vector<28x240xbf16>, vector<192x240xf32> -> vector<192x240xf32>
    %23 = arith.addf %17, %22 : vector<192x240xf32>
    %24 = vector.extract_strided_slice %0 {offsets = [0, 4, 0], sizes = [8, 24, 28], strides = [1, 1, 1]} : vector<8x28x28xbf16> to vector<8x24x28xbf16>
    %25 = vector.shape_cast %24 : vector<8x24x28xbf16> to vector<192x28xbf16>
    %c4 = arith.constant 4 : index
    %c0_14 = arith.constant 0 : index
    %c0_15 = arith.constant 0 : index
    %26 = vector.load %arg2[%c4, %c0_14, %c0_15] : memref<5x28x240xbf16, #tpu.memory_space<vmem>>, vector<1x28x240xbf16>
    %27 = vector.shape_cast %26 : vector<1x28x240xbf16> to vector<28x240xbf16>
    %cst_16 = arith.constant dense<0.000000e+00> : vector<192x240xf32>
    %28 = tpu.matmul %25, %27, %cst_16 {dimension_numbers = #tpu.dot_dimension_numbers<[1], [0], [0], [1], [0, 0, 1, 1], [], []>} : vector<192x28xbf16>, vector<28x240xbf16>, vector<192x240xf32> -> vector<192x240xf32>
    %29 = arith.addf %23, %28 : vector<192x240xf32>
    %c0_17 = arith.constant 0 : index
    %c0_18 = arith.constant 0 : index
    %30 = vector.load %arg3[%c0_17, %c0_18] : memref<1x240xf32, #tpu.memory_space<vmem>>, vector<1x240xf32>
    %31 = vector.broadcast %30 : vector<1x240xf32> to vector<192x240xf32>
    %32 = arith.addf %29, %31 : vector<192x240xf32>
    %cst_19 = arith.constant 0.000000e+00 : f32
    %33 = vector.broadcast %cst_19 : f32 to vector<192x240xf32>
    %34 = arith.maximumf %32, %33 : vector<192x240xf32>
    %35 = arith.truncf %34 : vector<192x240xf32> to vector<192x240xbf16>
    %36 = vector.shape_cast %35 : vector<192x240xbf16> to vector<8x24x240xbf16>
    %37 = vector.shape_cast %36 : vector<8x24x240xbf16> to vector<8x12x2x240xbf16>
    %38 = vector.extract_strided_slice %37 {offsets = [0, 0, 0, 0], sizes = [8, 12, 1, 240], strides = [1, 1, 1, 1]} : vector<8x12x2x240xbf16> to vector<8x12x1x240xbf16>
    %39 = vector.shape_cast %38 : vector<8x12x1x240xbf16> to vector<8x12x240xbf16>
    %40 = vector.extract_strided_slice %37 {offsets = [0, 0, 1, 0], sizes = [8, 12, 1, 240], strides = [1, 1, 1, 1]} : vector<8x12x2x240xbf16> to vector<8x12x1x240xbf16>
    %41 = vector.shape_cast %40 : vector<8x12x1x240xbf16> to vector<8x12x240xbf16>
    %42 = arith.maximumf %39, %41 : vector<8x12x240xbf16>
    %43 = vector.extract_strided_slice %42 {offsets = [0, 0, 0], sizes = [8, 12, 230], strides = [1, 1, 1]} : vector<8x12x240xbf16> to vector<8x12x230xbf16>
    %44 = vector.extract_strided_slice %42 {offsets = [0, 0, 10], sizes = [8, 12, 230], strides = [1, 1, 1]} : vector<8x12x240xbf16> to vector<8x12x230xbf16>
    %45 = arith.maximumf %43, %44 : vector<8x12x230xbf16>
    %46 = vector.extract_strided_slice %45 {offsets = [0, 0, 0], sizes = [8, 8, 230], strides = [1, 1, 1]} : vector<8x12x230xbf16> to vector<8x8x230xbf16>
    %47 = vector.shape_cast %46 : vector<8x8x230xbf16> to vector<64x230xbf16>
    %c0_20 = arith.constant 0 : index
    %c0_21 = arith.constant 0 : index
    %c0_22 = arith.constant 0 : index
    %48 = vector.load %arg4[%c0_20, %c0_21, %c0_22] : memref<5x230x160xbf16, #tpu.memory_space<vmem>>, vector<1x230x160xbf16>
    %49 = vector.shape_cast %48 : vector<1x230x160xbf16> to vector<230x160xbf16>
    %cst_23 = arith.constant dense<0.000000e+00> : vector<64x160xf32>
    %50 = tpu.matmul %47, %49, %cst_23 {dimension_numbers = #tpu.dot_dimension_numbers<[1], [0], [0], [1], [0, 0, 1, 1], [], []>} : vector<64x230xbf16>, vector<230x160xbf16>, vector<64x160xf32> -> vector<64x160xf32>
    %51 = vector.extract_strided_slice %45 {offsets = [0, 1, 0], sizes = [8, 8, 230], strides = [1, 1, 1]} : vector<8x12x230xbf16> to vector<8x8x230xbf16>
    %52 = vector.shape_cast %51 : vector<8x8x230xbf16> to vector<64x230xbf16>
    %c1_24 = arith.constant 1 : index
    %c0_25 = arith.constant 0 : index
    %c0_26 = arith.constant 0 : index
    %53 = vector.load %arg4[%c1_24, %c0_25, %c0_26] : memref<5x230x160xbf16, #tpu.memory_space<vmem>>, vector<1x230x160xbf16>
    %54 = vector.shape_cast %53 : vector<1x230x160xbf16> to vector<230x160xbf16>
    %cst_27 = arith.constant dense<0.000000e+00> : vector<64x160xf32>
    %55 = tpu.matmul %52, %54, %cst_27 {dimension_numbers = #tpu.dot_dimension_numbers<[1], [0], [0], [1], [0, 0, 1, 1], [], []>} : vector<64x230xbf16>, vector<230x160xbf16>, vector<64x160xf32> -> vector<64x160xf32>
    %56 = arith.addf %50, %55 : vector<64x160xf32>
    %57 = vector.extract_strided_slice %45 {offsets = [0, 2, 0], sizes = [8, 8, 230], strides = [1, 1, 1]} : vector<8x12x230xbf16> to vector<8x8x230xbf16>
    %58 = vector.shape_cast %57 : vector<8x8x230xbf16> to vector<64x230xbf16>
    %c2_28 = arith.constant 2 : index
    %c0_29 = arith.constant 0 : index
    %c0_30 = arith.constant 0 : index
    %59 = vector.load %arg4[%c2_28, %c0_29, %c0_30] : memref<5x230x160xbf16, #tpu.memory_space<vmem>>, vector<1x230x160xbf16>
    %60 = vector.shape_cast %59 : vector<1x230x160xbf16> to vector<230x160xbf16>
    %cst_31 = arith.constant dense<0.000000e+00> : vector<64x160xf32>
    %61 = tpu.matmul %58, %60, %cst_31 {dimension_numbers = #tpu.dot_dimension_numbers<[1], [0], [0], [1], [0, 0, 1, 1], [], []>} : vector<64x230xbf16>, vector<230x160xbf16>, vector<64x160xf32> -> vector<64x160xf32>
    %62 = arith.addf %56, %61 : vector<64x160xf32>
    %63 = vector.extract_strided_slice %45 {offsets = [0, 3, 0], sizes = [8, 8, 230], strides = [1, 1, 1]} : vector<8x12x230xbf16> to vector<8x8x230xbf16>
    %64 = vector.shape_cast %63 : vector<8x8x230xbf16> to vector<64x230xbf16>
    %c3_32 = arith.constant 3 : index
    %c0_33 = arith.constant 0 : index
    %c0_34 = arith.constant 0 : index
    %65 = vector.load %arg4[%c3_32, %c0_33, %c0_34] : memref<5x230x160xbf16, #tpu.memory_space<vmem>>, vector<1x230x160xbf16>
    %66 = vector.shape_cast %65 : vector<1x230x160xbf16> to vector<230x160xbf16>
    %cst_35 = arith.constant dense<0.000000e+00> : vector<64x160xf32>
    %67 = tpu.matmul %64, %66, %cst_35 {dimension_numbers = #tpu.dot_dimension_numbers<[1], [0], [0], [1], [0, 0, 1, 1], [], []>} : vector<64x230xbf16>, vector<230x160xbf16>, vector<64x160xf32> -> vector<64x160xf32>
    %68 = arith.addf %62, %67 : vector<64x160xf32>
    %69 = vector.extract_strided_slice %45 {offsets = [0, 4, 0], sizes = [8, 8, 230], strides = [1, 1, 1]} : vector<8x12x230xbf16> to vector<8x8x230xbf16>
    %70 = vector.shape_cast %69 : vector<8x8x230xbf16> to vector<64x230xbf16>
    %c4_36 = arith.constant 4 : index
    %c0_37 = arith.constant 0 : index
    %c0_38 = arith.constant 0 : index
    %71 = vector.load %arg4[%c4_36, %c0_37, %c0_38] : memref<5x230x160xbf16, #tpu.memory_space<vmem>>, vector<1x230x160xbf16>
    %72 = vector.shape_cast %71 : vector<1x230x160xbf16> to vector<230x160xbf16>
    %cst_39 = arith.constant dense<0.000000e+00> : vector<64x160xf32>
    %73 = tpu.matmul %70, %72, %cst_39 {dimension_numbers = #tpu.dot_dimension_numbers<[1], [0], [0], [1], [0, 0, 1, 1], [], []>} : vector<64x230xbf16>, vector<230x160xbf16>, vector<64x160xf32> -> vector<64x160xf32>
    %74 = arith.addf %68, %73 : vector<64x160xf32>
    %c0_40 = arith.constant 0 : index
    %c0_41 = arith.constant 0 : index
    %75 = vector.load %arg5[%c0_40, %c0_41] : memref<1x160xf32, #tpu.memory_space<vmem>>, vector<1x160xf32>
    %76 = vector.broadcast %75 : vector<1x160xf32> to vector<64x160xf32>
    %77 = arith.addf %74, %76 : vector<64x160xf32>
    %cst_42 = arith.constant 0.000000e+00 : f32
    %78 = vector.broadcast %cst_42 : f32 to vector<64x160xf32>
    %79 = arith.maximumf %77, %78 : vector<64x160xf32>
    %80 = arith.truncf %79 : vector<64x160xf32> to vector<64x160xbf16>
    %81 = vector.shape_cast %80 : vector<64x160xbf16> to vector<8x8x160xbf16>
    %82 = vector.shape_cast %81 : vector<8x8x160xbf16> to vector<8x4x2x160xbf16>
    %83 = vector.extract_strided_slice %82 {offsets = [0, 0, 0, 0], sizes = [8, 4, 1, 160], strides = [1, 1, 1, 1]} : vector<8x4x2x160xbf16> to vector<8x4x1x160xbf16>
    %84 = vector.shape_cast %83 : vector<8x4x1x160xbf16> to vector<8x4x160xbf16>
    %85 = vector.extract_strided_slice %82 {offsets = [0, 0, 1, 0], sizes = [8, 4, 1, 160], strides = [1, 1, 1, 1]} : vector<8x4x2x160xbf16> to vector<8x4x1x160xbf16>
    %86 = vector.shape_cast %85 : vector<8x4x1x160xbf16> to vector<8x4x160xbf16>
    %87 = arith.maximumf %84, %86 : vector<8x4x160xbf16>
    %88 = vector.extract_strided_slice %87 {offsets = [0, 0, 0], sizes = [8, 4, 140], strides = [1, 1, 1]} : vector<8x4x160xbf16> to vector<8x4x140xbf16>
    %89 = vector.extract_strided_slice %87 {offsets = [0, 0, 20], sizes = [8, 4, 140], strides = [1, 1, 1]} : vector<8x4x160xbf16> to vector<8x4x140xbf16>
    %90 = arith.maximumf %88, %89 : vector<8x4x140xbf16>
    %91 = vector.extract_strided_slice %90 {offsets = [0, 0, 0], sizes = [8, 1, 140], strides = [1, 1, 1]} : vector<8x4x140xbf16> to vector<8x1x140xbf16>
    %92 = vector.shape_cast %91 : vector<8x1x140xbf16> to vector<8x140xbf16>
    %c0_43 = arith.constant 0 : index
    %c0_44 = arith.constant 0 : index
    %c0_45 = arith.constant 0 : index
    %93 = vector.load %arg6[%c0_43, %c0_44, %c0_45] : memref<4x140x128xbf16, #tpu.memory_space<vmem>>, vector<1x140x128xbf16>
    %94 = vector.shape_cast %93 : vector<1x140x128xbf16> to vector<140x128xbf16>
    %cst_46 = arith.constant dense<0.000000e+00> : vector<8x128xf32>
    %95 = tpu.matmul %92, %94, %cst_46 {dimension_numbers = #tpu.dot_dimension_numbers<[1], [0], [0], [1], [0, 0, 1, 1], [], []>} : vector<8x140xbf16>, vector<140x128xbf16>, vector<8x128xf32> -> vector<8x128xf32>
    %96 = vector.extract_strided_slice %90 {offsets = [0, 1, 0], sizes = [8, 1, 140], strides = [1, 1, 1]} : vector<8x4x140xbf16> to vector<8x1x140xbf16>
    %97 = vector.shape_cast %96 : vector<8x1x140xbf16> to vector<8x140xbf16>
    %c1_47 = arith.constant 1 : index
    %c0_48 = arith.constant 0 : index
    %c0_49 = arith.constant 0 : index
    %98 = vector.load %arg6[%c1_47, %c0_48, %c0_49] : memref<4x140x128xbf16, #tpu.memory_space<vmem>>, vector<1x140x128xbf16>
    %99 = vector.shape_cast %98 : vector<1x140x128xbf16> to vector<140x128xbf16>
    %cst_50 = arith.constant dense<0.000000e+00> : vector<8x128xf32>
    %100 = tpu.matmul %97, %99, %cst_50 {dimension_numbers = #tpu.dot_dimension_numbers<[1], [0], [0], [1], [0, 0, 1, 1], [], []>} : vector<8x140xbf16>, vector<140x128xbf16>, vector<8x128xf32> -> vector<8x128xf32>
    %101 = arith.addf %95, %100 : vector<8x128xf32>
    %102 = vector.extract_strided_slice %90 {offsets = [0, 2, 0], sizes = [8, 1, 140], strides = [1, 1, 1]} : vector<8x4x140xbf16> to vector<8x1x140xbf16>
    %103 = vector.shape_cast %102 : vector<8x1x140xbf16> to vector<8x140xbf16>
    %c2_51 = arith.constant 2 : index
    %c0_52 = arith.constant 0 : index
    %c0_53 = arith.constant 0 : index
    %104 = vector.load %arg6[%c2_51, %c0_52, %c0_53] : memref<4x140x128xbf16, #tpu.memory_space<vmem>>, vector<1x140x128xbf16>
    %105 = vector.shape_cast %104 : vector<1x140x128xbf16> to vector<140x128xbf16>
    %cst_54 = arith.constant dense<0.000000e+00> : vector<8x128xf32>
    %106 = tpu.matmul %103, %105, %cst_54 {dimension_numbers = #tpu.dot_dimension_numbers<[1], [0], [0], [1], [0, 0, 1, 1], [], []>} : vector<8x140xbf16>, vector<140x128xbf16>, vector<8x128xf32> -> vector<8x128xf32>
    %107 = arith.addf %101, %106 : vector<8x128xf32>
    %108 = vector.extract_strided_slice %90 {offsets = [0, 3, 0], sizes = [8, 1, 140], strides = [1, 1, 1]} : vector<8x4x140xbf16> to vector<8x1x140xbf16>
    %109 = vector.shape_cast %108 : vector<8x1x140xbf16> to vector<8x140xbf16>
    %c3_55 = arith.constant 3 : index
    %c0_56 = arith.constant 0 : index
    %c0_57 = arith.constant 0 : index
    %110 = vector.load %arg6[%c3_55, %c0_56, %c0_57] : memref<4x140x128xbf16, #tpu.memory_space<vmem>>, vector<1x140x128xbf16>
    %111 = vector.shape_cast %110 : vector<1x140x128xbf16> to vector<140x128xbf16>
    %cst_58 = arith.constant dense<0.000000e+00> : vector<8x128xf32>
    %112 = tpu.matmul %109, %111, %cst_58 {dimension_numbers = #tpu.dot_dimension_numbers<[1], [0], [0], [1], [0, 0, 1, 1], [], []>} : vector<8x140xbf16>, vector<140x128xbf16>, vector<8x128xf32> -> vector<8x128xf32>
    %113 = arith.addf %107, %112 : vector<8x128xf32>
    %c0_59 = arith.constant 0 : index
    %c0_60 = arith.constant 0 : index
    %114 = vector.load %arg7[%c0_59, %c0_60] : memref<1x128xf32, #tpu.memory_space<vmem>>, vector<1x128xf32>
    %115 = vector.broadcast %114 : vector<1x128xf32> to vector<8x128xf32>
    %116 = arith.addf %113, %115 : vector<8x128xf32>
    %c0_61 = arith.constant 0 : index
    %c0_62 = arith.constant 0 : index
    %117 = vector.load %arg8[%c0_61, %c0_62] : memref<8x128xf32, #tpu.memory_space<vmem>>, vector<8x128xf32>
    tpu.vector_store %arg8[%c0_61, %c0_62], %116 {strides = array<i32>} : memref<8x128xf32, #tpu.memory_space<vmem>>, vector<8x128xf32>,
    return
  }
  func.func @transform_0(%arg0: i32) -> (i32, i32, i32) {
    %c0_i32 = arith.constant 0 : i32
    %c0_i32_0 = arith.constant 0 : i32
    %c0_i32_1 = arith.constant 0 : i32
    return %arg0, %c0_i32, %c0_i32_0 : i32, i32, i32
  }
  func.func @transform_1(%arg0: i32) -> (i32, i32, i32) {
    %c0_i32 = arith.constant 0 : i32
    %c0_i32_0 = arith.constant 0 : i32
    %c0_i32_1 = arith.constant 0 : i32
    %c0_i32_2 = arith.constant 0 : i32
    return %c0_i32, %c0_i32_0, %c0_i32_1 : i32, i32, i32
  }
  func.func @transform_2(%arg0: i32) -> (i32, i32) {
    %c0_i32 = arith.constant 0 : i32
    %c0_i32_0 = arith.constant 0 : i32
    %c0_i32_1 = arith.constant 0 : i32
    return %c0_i32, %c0_i32_0 : i32, i32
  }
  func.func @transform_3(%arg0: i32) -> (i32, i32, i32) {
    %c0_i32 = arith.constant 0 : i32
    %c0_i32_0 = arith.constant 0 : i32
    %c0_i32_1 = arith.constant 0 : i32
    %c0_i32_2 = arith.constant 0 : i32
    return %c0_i32, %c0_i32_0, %c0_i32_1 : i32, i32, i32
  }
  func.func @transform_4(%arg0: i32) -> (i32, i32) {
    %c0_i32 = arith.constant 0 : i32
    %c0_i32_0 = arith.constant 0 : i32
    %c0_i32_1 = arith.constant 0 : i32
    return %c0_i32, %c0_i32_0 : i32, i32
  }
  func.func @transform_5(%arg0: i32) -> (i32, i32, i32) {
    %c0_i32 = arith.constant 0 : i32
    %c0_i32_0 = arith.constant 0 : i32
    %c0_i32_1 = arith.constant 0 : i32
    %c0_i32_2 = arith.constant 0 : i32
    return %c0_i32, %c0_i32_0, %c0_i32_1 : i32, i32, i32
  }
  func.func @transform_6(%arg0: i32) -> (i32, i32) {
    %c0_i32 = arith.constant 0 : i32
    %c0_i32_0 = arith.constant 0 : i32
    %c0_i32_1 = arith.constant 0 : i32
    return %c0_i32, %c0_i32_0 : i32, i32
  }
  func.func @transform_7(%arg0: i32) -> (i32, i32) {
    %c0_i32 = arith.constant 0 : i32
    %c0_i32_0 = arith.constant 0 : i32
    return %arg0, %c0_i32 : i32, i32
  }
}

</mosaic_0001>

<llo_original>
// kernel: tpu_custom_call.1
$region0: #{tpu_custom_call.1}
  #allocation0 [shape = 'u32[]', space=smem, size = 0x4, offset = 0x4, fixed_abs, tag = 'smem constant byte address 0x4 - core index']
  #allocation1 [shape = 'u32[144,128]{1,0:T(1,128)}', space=vmem, size = 0x12000, scoped, tag = 'internal scratch']
  %s0 = inlined_call_operand.vmem [shape: bf16[8,28,28], index: 0, kind: input, shape index: {}]
  %s1 = inlined_call_operand.vmem [shape: bf16[5,28,240], index: 1, kind: input, shape index: {}]
  %s2 = inlined_call_operand.vmem [shape: f32[1,240], index: 2, kind: input, shape index: {}]
  %s3 = inlined_call_operand.vmem [shape: bf16[5,230,160], index: 3, kind: input, shape index: {}]
  %s4 = inlined_call_operand.vmem [shape: f32[1,160], index: 4, kind: input, shape index: {}]
  %s5 = inlined_call_operand.vmem [shape: bf16[4,140,128], index: 5, kind: input, shape index: {}]
  %s6 = inlined_call_operand.vmem [shape: f32[1,128], index: 6, kind: input, shape index: {}]
  %s7 = inlined_call_operand.hbm [shape: f32[8,128], index: 7, kind: output, shape index: {}]
  %s8 = sld [smem:[#allocation0]]
  $region38: #{tpu_custom_call.1} parent=0
    _
  %s10 = ssub.s32 1, %s8
  %s11 = scalar_select 0, %s10, %s8
  $region1: #{tpu_custom_call.1} parent=0
    #allocation2 [shape = 'u8[4096]{0}', space=vmem, size = 0x1000, scoped, tag = 'output window, operand 0, single buffered']
    #allocation3 [shape = 's32[1]{0}', space=sflag, size = 0x4, scoped, tag = 'scoped memory for tpu_custom_call.1']
    %12 = vsyncpa [#allocation3], 0
    // Predicated region
    $region2: #{tpu_custom_call.1} parent=1 // pred_check
      _
    $region3: #{tpu_custom_call.1} parent=1 // pred_check_branch
      %14 = sbr.rel (0) target = $region5
    $region4: #{tpu_custom_call.1} parent=1 // pred_region
      _
    $region5: #{tpu_custom_call.1} parent=1 // pred_fallthru
      _
    // Predicated region
    $region6: #{tpu_custom_call.1} parent=1 // pred_check
      _
    $region7: #{tpu_custom_call.1} parent=1 // pred_check_branch
      %16 = sbr.rel (0) target = $region9
    $region8: #{tpu_custom_call.1} parent=1 // pred_region
      _
    $region9: #{tpu_custom_call.1} parent=1 // pred_fallthru
      _
    // Predicated region
    $region10: #{tpu_custom_call.1} parent=1 // pred_check
      _
    $region11: #{tpu_custom_call.1} parent=1 // pred_check_branch
      %18 = sbr.rel (0) target = $region13
    $region12: #{tpu_custom_call.1} parent=1 // pred_region
      _
    $region13: #{tpu_custom_call.1} parent=1 // pred_fallthru
      _
    // Predicated region
    $region14: #{tpu_custom_call.1} parent=1 // pred_check
      _
    $region15: #{tpu_custom_call.1} parent=1 // pred_check_branch
      %20 = sbr.rel (0) target = $region17
    $region16: #{tpu_custom_call.1} parent=1 // pred_region
      _
    $region17: #{tpu_custom_call.1} parent=1 // pred_fallthru
      _
    // Predicated region
    $region18: #{tpu_custom_call.1} parent=1 // pred_check
      _
    $region19: #{tpu_custom_call.1} parent=1 // pred_check_branch
      %22 = sbr.rel (0) target = $region21
    $region20: #{tpu_custom_call.1} parent=1 // pred_region
      _
    $region21: #{tpu_custom_call.1} parent=1 // pred_fallthru
      _
    // Predicated region
    $region22: #{tpu_custom_call.1} parent=1 // pred_check
      _
    $region23: #{tpu_custom_call.1} parent=1 // pred_check_branch
      %24 = sbr.rel (0) target = $region25
    $region24: #{tpu_custom_call.1} parent=1 // pred_region
      _
    $region25: #{tpu_custom_call.1} parent=1 // pred_fallthru
      _
    // Predicated region
    $region26: #{tpu_custom_call.1} parent=1 // pred_check
      _
    $region27: #{tpu_custom_call.1} parent=1 // pred_check_branch
      %26 = sbr.rel (0) target = $region29
    $region28: #{tpu_custom_call.1} parent=1 // pred_region
      _
    $region29: #{tpu_custom_call.1} parent=1 // pred_fallthru
      _
    %v28 = vld [vmem:[%s0] sm:$0xf]
    %v29 = vld [vmem:[%s0 + $0x4] sm:$0xf]
    %v30 = vld [vmem:[%s0 + $0x8] sm:$0xf]
    %v31 = vld [vmem:[%s0 + $0xc] sm:$0x3]
    %v32 = vld [vmem:[%s0 + $0x10] sm:$0xf]
    %v33 = vld [vmem:[%s0 + $0x14] sm:$0xf]
    %v34 = vld [vmem:[%s0 + $0x18] sm:$0xf]
    %v35 = vld [vmem:[%s0 + $0x1c] sm:$0x3]
    %v36 = vld [vmem:[%s0 + $0x20] sm:$0xf]
    %v37 = vld [vmem:[%s0 + $0x24] sm:$0xf]
    %v38 = vld [vmem:[%s0 + $0x28] sm:$0xf]
    %v39 = vld [vmem:[%s0 + $0x2c] sm:$0x3]
    %v40 = vld [vmem:[%s0 + $0x30] sm:$0xf]
    %v41 = vld [vmem:[%s0 + $0x34] sm:$0xf]
    %v42 = vld [vmem:[%s0 + $0x38] sm:$0xf]
    %v43 = vld [vmem:[%s0 + $0x3c] sm:$0x3]
    %v44 = vld [vmem:[%s0 + $0x40] sm:$0xf]
    %v45 = vld [vmem:[%s0 + $0x44] sm:$0xf]
    %v46 = vld [vmem:[%s0 + $0x48] sm:$0xf]
    %v47 = vld [vmem:[%s0 + $0x4c] sm:$0x3]
    %v48 = vld [vmem:[%s0 + $0x50] sm:$0xf]
    %v49 = vld [vmem:[%s0 + $0x54] sm:$0xf]
    %v50 = vld [vmem:[%s0 + $0x58] sm:$0xf]
    %v51 = vld [vmem:[%s0 + $0x5c] sm:$0x3]
    %v52 = vld [vmem:[%s0 + $0x60] sm:$0xf]
    %v53 = vld [vmem:[%s0 + $0x64] sm:$0xf]
    %v54 = vld [vmem:[%s0 + $0x68] sm:$0xf]
    %v55 = vld [vmem:[%s0 + $0x6c] sm:$0x3]
    %v56 = vld [vmem:[%s0 + $0x70] sm:$0xf]
    %v57 = vld [vmem:[%s0 + $0x74] sm:$0xf]
    %v58 = vld [vmem:[%s0 + $0x78] sm:$0xf]
    %v59 = vld [vmem:[%s0 + $0x7c] sm:$0x3]
    %v60 = vld [vmem:[%s1] sm:$0xff]
    %v61 = vld [vmem:[%s1 + $0x8] sm:$0xff]
    %v62 = vld [vmem:[%s1 + $0x10] sm:$0xff]
    %v63 = vld [vmem:[%s1 + $0x18] sm:$0x33]
    %vm64 = vsmask.f32 3328
    %vm65 = vsmask.f32 7440
    %vm66 = vmor %vm64, %vm65
    %v68 = vshrl.u32 %v28, 16
    %v70 = vrot.slane %v68, 4
    %v71 = vshll.u32 %v28, 16
    %v73 = vrot.slane %v71, 5
    %v74 = vor.u32 %v70, %v73
    %v75 = vrot.slane %v74, 4
    %v77 = vshll.u32 %v29, 16
    %v79 = vrot.slane %v77, 5
    %v80 = vsel %vm66, %v75, %v79
    %v81 = vshrl.u32 %v29, 16
    %v83 = vrot.slane %v81, 4
    %v84 = vor.u32 %v83, %v79
    %v85 = vrot.slane %v84, 4
    %v87 = vshll.u32 %v30, 16
    %v89 = vrot.slane %v87, 5
    %v90 = vsel %vm66, %v85, %v89
    %v91 = vshrl.u32 %v30, 16
    %v93 = vrot.slane %v91, 4
    %v94 = vor.u32 %v93, %v89
    %v95 = vrot.slane %v94, 4
    %v97 = vshll.u32 %v31, 16
    %v99 = vrot.slane %v97, 5
    %v100 = vsel %vm66, %v95, %v99
    %v102 = vshrl.u32 %v32, 16
    %v104 = vrot.slane %v102, 4
    %v105 = vshll.u32 %v32, 16
    %v107 = vrot.slane %v105, 5
    %v108 = vor.u32 %v104, %v107
    %v109 = vrot.slane %v108, 4
    %v111 = vshll.u32 %v33, 16
    %v113 = vrot.slane %v111, 5
    %v114 = vsel %vm66, %v109, %v113
    %v115 = vshrl.u32 %v33, 16
    %v117 = vrot.slane %v115, 4
    %v118 = vor.u32 %v117, %v113
    %v119 = vrot.slane %v118, 4
    %v121 = vshll.u32 %v34, 16
    %v123 = vrot.slane %v121, 5
    %v124 = vsel %vm66, %v119, %v123
    %v125 = vshrl.u32 %v34, 16
    %v127 = vrot.slane %v125, 4
    %v128 = vor.u32 %v127, %v123
    %v129 = vrot.slane %v128, 4
    %v131 = vshll.u32 %v35, 16
    %v133 = vrot.slane %v131, 5
    %v134 = vsel %vm66, %v129, %v133
    %v136 = vshrl.u32 %v36, 16
    %v138 = vrot.slane %v136, 4
    %v139 = vshll.u32 %v36, 16
    %v141 = vrot.slane %v139, 5
    %v142 = vor.u32 %v138, %v141
    %v143 = vrot.slane %v142, 4
    %v145 = vshll.u32 %v37, 16
    %v147 = vrot.slane %v145, 5
    %v148 = vsel %vm66, %v143, %v147
    %v149 = vshrl.u32 %v37, 16
    %v151 = vrot.slane %v149, 4
    %v152 = vor.u32 %v151, %v147
    %v153 = vrot.slane %v152, 4
    %v155 = vshll.u32 %v38, 16
    %v157 = vrot.slane %v155, 5
    %v158 = vsel %vm66, %v153, %v157
    %v159 = vshrl.u32 %v38, 16
    %v161 = vrot.slane %v159, 4
    %v162 = vor.u32 %v161, %v157
    %v163 = vrot.slane %v162, 4
    %v165 = vshll.u32 %v39, 16
    %v167 = vrot.slane %v165, 5
    %v168 = vsel %vm66, %v163, %v167
    %v170 = vshrl.u32 %v40, 16
    %v172 = vrot.slane %v170, 4
    %v173 = vshll.u32 %v40, 16
    %v175 = vrot.slane %v173, 5
    %v176 = vor.u32 %v172, %v175
    %v177 = vrot.slane %v176, 4
    %v179 = vshll.u32 %v41, 16
    %v181 = vrot.slane %v179, 5
    %v182 = vsel %vm66, %v177, %v181
    %v183 = vshrl.u32 %v41, 16
    %v185 = vrot.slane %v183, 4
    %v186 = vor.u32 %v185, %v181
    %v187 = vrot.slane %v186, 4
    %v189 = vshll.u32 %v42, 16
    %v191 = vrot.slane %v189, 5
    %v192 = vsel %vm66, %v187, %v191
    %v193 = vshrl.u32 %v42, 16
    %v195 = vrot.slane %v193, 4
    %v196 = vor.u32 %v195, %v191
    %v197 = vrot.slane %v196, 4
    %v199 = vshll.u32 %v43, 16
    %v201 = vrot.slane %v199, 5
    %v202 = vsel %vm66, %v197, %v201
    %v204 = vshrl.u32 %v44, 16
    %v206 = vrot.slane %v204, 4
    %v207 = vshll.u32 %v44, 16
    %v209 = vrot.slane %v207, 5
    %v210 = vor.u32 %v206, %v209
    %v211 = vrot.slane %v210, 4
    %v213 = vshll.u32 %v45, 16
    %v215 = vrot.slane %v213, 5
    %v216 = vsel %vm66, %v211, %v215
    %v217 = vshrl.u32 %v45, 16
    %v219 = vrot.slane %v217, 4
    %v220 = vor.u32 %v219, %v215
    %v221 = vrot.slane %v220, 4
    %v223 = vshll.u32 %v46, 16
    %v225 = vrot.slane %v223, 5
    %v226 = vsel %vm66, %v221, %v225
    %v227 = vshrl.u32 %v46, 16
    %v229 = vrot.slane %v227, 4
    %v230 = vor.u32 %v229, %v225
    %v231 = vrot.slane %v230, 4
    %v233 = vshll.u32 %v47, 16
    %v235 = vrot.slane %v233, 5
    %v236 = vsel %vm66, %v231, %v235
    %v238 = vshrl.u32 %v48, 16
    %v240 = vrot.slane %v238, 4
    %v241 = vshll.u32 %v48, 16
    %v243 = vrot.slane %v241, 5
    %v244 = vor.u32 %v240, %v243
    %v245 = vrot.slane %v244, 4
    %v247 = vshll.u32 %v49, 16
    %v249 = vrot.slane %v247, 5
    %v250 = vsel %vm66, %v245, %v249
    %v251 = vshrl.u32 %v49, 16
    %v253 = vrot.slane %v251, 4
    %v254 = vor.u32 %v253, %v249
    %v255 = vrot.slane %v254, 4
    %v257 = vshll.u32 %v50, 16
    %v259 = vrot.slane %v257, 5
    %v260 = vsel %vm66, %v255, %v259
    %v261 = vshrl.u32 %v50, 16
    %v263 = vrot.slane %v261, 4
    %v264 = vor.u32 %v263, %v259
    %v265 = vrot.slane %v264, 4
    %v267 = vshll.u32 %v51, 16
    %v269 = vrot.slane %v267, 5
    %v270 = vsel %vm66, %v265, %v269
    %v272 = vshrl.u32 %v52, 16
    %v274 = vrot.slane %v272, 4
    %v275 = vshll.u32 %v52, 16
    %v277 = vrot.slane %v275, 5
    %v278 = vor.u32 %v274, %v277
    %v279 = vrot.slane %v278, 4
    %v281 = vshll.u32 %v53, 16
    %v283 = vrot.slane %v281, 5
    %v284 = vsel %vm66, %v279, %v283
    %v285 = vshrl.u32 %v53, 16
    %v287 = vrot.slane %v285, 4
    %v288 = vor.u32 %v287, %v283
    %v289 = vrot.slane %v288, 4
    %v291 = vshll.u32 %v54, 16
    %v293 = vrot.slane %v291, 5
    %v294 = vsel %vm66, %v289, %v293
    %v295 = vshrl.u32 %v54, 16
    %v297 = vrot.slane %v295, 4
    %v298 = vor.u32 %v297, %v293
    %v299 = vrot.slane %v298, 4
    %v301 = vshll.u32 %v55, 16
    %v303 = vrot.slane %v301, 5
    %v304 = vsel %vm66, %v299, %v303
    %v306 = vshrl.u32 %v56, 16
    %v308 = vrot.slane %v306, 4
    %v309 = vshll.u32 %v56, 16
    %v311 = vrot.slane %v309, 5
    %v312 = vor.u32 %v308, %v311
    %v313 = vrot.slane %v312, 4
    %v315 = vshll.u32 %v57, 16
    %v317 = vrot.slane %v315, 5
    %v318 = vsel %vm66, %v313, %v317
    %v319 = vshrl.u32 %v57, 16
    %v321 = vrot.slane %v319, 4
    %v322 = vor.u32 %v321, %v317
    %v323 = vrot.slane %v322, 4
    %v325 = vshll.u32 %v58, 16
    %v327 = vrot.slane %v325, 5
    %v328 = vsel %vm66, %v323, %v327
    %v329 = vshrl.u32 %v58, 16
    %v331 = vrot.slane %v329, 4
    %v332 = vor.u32 %v331, %v327
    %v333 = vrot.slane %v332, 4
    %v335 = vshll.u32 %v59, 16
    %v337 = vrot.slane %v335, 5
    %v338 = vsel %vm66, %v333, %v337
    %s339 = scalar_lea.vmem %s1, 32
    %v340 = vld [vmem:[%s339] sm:$0xff]
    %v341 = vld [vmem:[%s339 + $0x8] sm:$0xff]
    %v342 = vld [vmem:[%s339 + $0x10] sm:$0xff]
    %v343 = vld [vmem:[%s339 + $0x18] sm:$0x33]
    %v344 = vunpack.c.l.b16 %v80
    %v345 = vunpack.c.l.b16 %v90
    %v346 = vunpack.c.l.b16 %v100
    %v347 = vunpack.c.l.b16 %v114
    %v348 = vunpack.c.l.b16 %v124
    %v349 = vunpack.c.l.b16 %v134
    %v350 = vunpack.c.l.b16 %v148
    %v351 = vunpack.c.l.b16 %v158
    %v352 = vunpack.c.l.b16 %v168
    %v353 = vunpack.c.l.b16 %v182
    %v354 = vunpack.c.l.b16 %v192
    %v355 = vunpack.c.l.b16 %v202
    %v356 = vunpack.c.l.b16 %v216
    %v357 = vunpack.c.l.b16 %v226
    %v358 = vunpack.c.l.b16 %v236
    %v359 = vunpack.c.l.b16 %v250
    %v360 = vunpack.c.l.b16 %v260
    %v361 = vunpack.c.l.b16 %v270
    %v362 = vunpack.c.l.b16 %v284
    %v363 = vunpack.c.l.b16 %v294
    %v364 = vunpack.c.l.b16 %v304
    %v365 = vunpack.c.l.b16 %v318
    %v366 = vunpack.c.l.b16 %v328
    %v367 = vunpack.c.l.b16 %v338
    %v368 = vpack.c.b16 %v345, %v344
    %v369 = vpack.c.b16 %v347, %v346
    %v370 = vpack.c.b16 %v349, %v348
    %v371 = vpack.c.b16 %v351, %v350
    %v372 = vpack.c.b16 %v353, %v352
    %v373 = vpack.c.b16 %v355, %v354
    %v374 = vpack.c.b16 %v357, %v356
    %v375 = vpack.c.b16 %v359, %v358
    %v376 = vpack.c.b16 %v361, %v360
    %v377 = vpack.c.b16 %v363, %v362
    %v378 = vpack.c.b16 %v365, %v364
    %v379 = vpack.c.b16 %v367, %v366
    %v384 = vunpack.c.l.b16 %v340
    %v385 = vunpack.c.h.b16 %v340
    %v386 = vunpack.c.l.b16 %v341
    %v387 = vunpack.c.h.b16 %v341
    %v388 = vunpack.c.l.b16 %v342
    %v389 = vunpack.c.h.b16 %v342
    %v390 = vunpack.c.l.b16 %v343
    %v391 = vunpack.c.h.b16 %v343
    %v392 = vpack.c.b16 %v386, %v384
    %v393 = vpack.c.b16 %v387, %v385
    %v394 = vpack.c.b16 %v390, %v388
    %v395 = vpack.c.b16 %v391, %v389
    %vm398 = vcmask 228352
    %v400 = vsel %vm398, %v368, 0
    %v403 = vsel %vm398, %v369, 0
    %v406 = vsel %vm398, %v370, 0
    %v409 = vsel %vm398, %v371, 0
    %v412 = vsel %vm398, %v372, 0
    %v415 = vsel %vm398, %v373, 0
    %v418 = vsel %vm398, %v374, 0
    %v421 = vsel %vm398, %v375, 0
    %v424 = vsel %vm398, %v376, 0
    %v427 = vsel %vm398, %v377, 0
    %v430 = vsel %vm398, %v378, 0
    %v433 = vsel %vm398, %v379, 0
    %vm435 = vcmask 1045504
    %v437 = vsel %vm435, %v394, 0
    %v440 = vsel %vm435, %v395, 0
    %442 = vmatprep.subr.bf16.mxu0 %v393
    %443 = vmatpush1.bf16.msra.mxu0 %v392
    %444 = vmatprep.subr.bf16.mxu0 %v440
    %445 = vmatpush1.bf16.msra.mxu0 %v437
    %446 = vmatprep.subr.bf16.mxu0 0
    %447 = vmatpush1.bf16.msra.mxu0 0
    %448 = vmatprep.subr.bf16.mxu0 0
    %449 = vmatpush1.bf16.msra.mxu0 0
    %450 = vmatprep.subr.bf16.mxu0 0
    %451 = vmatpush1.bf16.msra.mxu0 0
    %452 = vmatprep.subr.bf16.mxu0 0
    %453 = vmatpush1.bf16.msra.mxu0 0
    %454 = vmatprep.subr.bf16.mxu0 0
    %455 = vmatpush1.bf16.msra.mxu0 0
    %456 = vmatprep.subr.bf16.mxu0 0
    %457 = vmatpush1.bf16.msra.mxu0 0
    %458 = vmatprep.subr.bf16.mxu0 0
    %459 = vmatpush1.bf16.msra.mxu0 0
    %460 = vmatprep.subr.bf16.mxu0 0
    %461 = vmatpush1.bf16.msra.mxu0 0
    %462 = vmatprep.subr.bf16.mxu0 0
    %463 = vmatpush1.bf16.msra.mxu0 0
    %464 = vmatprep.subr.bf16.mxu0 0
    %465 = vmatpush1.bf16.msra.mxu0 0
    %466 = vmatprep.subr.bf16.mxu0 0
    %467 = vmatpush1.bf16.msra.mxu0 0
    %468 = vmatprep.subr.bf16.mxu0 0
    %469 = vmatpush1.bf16.msra.mxu0 0
    %470 = vmatprep.subr.bf16.mxu0 0
    %471 = vmatpush1.bf16.msra.mxu0 0
    %472 = vmatprep.subr.bf16.mxu0 0
    %473 = vmatpush1.bf16.msra.mxu0 0
    %474 = vmatprep.mubr.bf16.mxu0 0
    %475 = vmatmul.mubr.bf16.gmra.mrb[0].mxu0 %v400
    %v476 = vpop.f32.mrb[0].mxu0
    %v477 = vadd.f32 0.0, %v476
    %v478 = vpop.f32.mrb[0].mxu0
    %v479 = vadd.f32 0.0, %v478
    %v480 = vpop.f32.mrb[0].mxu0
    %v481 = vadd.f32 0.0, %v480
    %v482 = vpop.f32.mrb[0].mxu0
    %v483 = vadd.f32 0.0, %v482
    %484 = vmatprep.mubr.bf16.mxu0 0
    %485 = vmatmul.mubr.bf16.gmra.mrb[0].mxu0 %v403
    %v486 = vpop.f32.mrb[0].mxu0
    %v487 = vadd.f32 0.0, %v486
    %v488 = vpop.f32.mrb[0].mxu0
    %v489 = vadd.f32 0.0, %v488
    %v490 = vpop.f32.mrb[0].mxu0
    %v491 = vadd.f32 0.0, %v490
    %v492 = vpop.f32.mrb[0].mxu0
    %v493 = vadd.f32 0.0, %v492
    %494 = vmatprep.mubr.bf16.mxu0 0
    %495 = vmatmul.mubr.bf16.gmra.mrb[0].mxu0 %v406
    %v496 = vpop.f32.mrb[0].mxu0
    %v497 = vadd.f32 0.0, %v496
    %v498 = vpop.f32.mrb[0].mxu0
    %v499 = vadd.f32 0.0, %v498
    %v500 = vpop.f32.mrb[0].mxu0
    %v501 = vadd.f32 0.0, %v500
    %v502 = vpop.f32.mrb[0].mxu0
    %v503 = vadd.f32 0.0, %v502
    %504 = vmatprep.mubr.bf16.mxu0 0
    %505 = vmatmul.mubr.bf16.gmra.mrb[0].mxu0 %v409
    %v506 = vpop.f32.mrb[0].mxu0
    %v507 = vadd.f32 0.0, %v506
    %v508 = vpop.f32.mrb[0].mxu0
    %v509 = vadd.f32 0.0, %v508
    %v510 = vpop.f32.mrb[0].mxu0
    %v511 = vadd.f32 0.0, %v510
    %v512 = vpop.f32.mrb[0].mxu0
    %v513 = vadd.f32 0.0, %v512
    %514 = vmatprep.mubr.bf16.mxu0 0
    %515 = vmatmul.mubr.bf16.gmra.mrb[0].mxu0 %v412
    %v516 = vpop.f32.mrb[0].mxu0
    %v517 = vadd.f32 0.0, %v516
    %v518 = vpop.f32.mrb[0].mxu0
    %v519 = vadd.f32 0.0, %v518
    %v520 = vpop.f32.mrb[0].mxu0
    %v521 = vadd.f32 0.0, %v520
    %v522 = vpop.f32.mrb[0].mxu0
    %v523 = vadd.f32 0.0, %v522
    %524 = vmatprep.mubr.bf16.mxu0 0
    %525 = vmatmul.mubr.bf16.gmra.mrb[0].mxu0 %v415
    %v526 = vpop.f32.mrb[0].mxu0
    %v527 = vadd.f32 0.0, %v526
    %v528 = vpop.f32.mrb[0].mxu0
    %v529 = vadd.f32 0.0, %v528
    %v530 = vpop.f32.mrb[0].mxu0
    %v531 = vadd.f32 0.0, %v530
    %v532 = vpop.f32.mrb[0].mxu0
    %v533 = vadd.f32 0.0, %v532
    %534 = vmatprep.mubr.bf16.mxu0 0
    %535 = vmatmul.mubr.bf16.gmra.mrb[0].mxu0 %v418
    %v536 = vpop.f32.mrb[0].mxu0
    %v537 = vadd.f32 0.0, %v536
    %v538 = vpop.f32.mrb[0].mxu0
    %v539 = vadd.f32 0.0, %v538
    %v540 = vpop.f32.mrb[0].mxu0
    %v541 = vadd.f32 0.0, %v540
    %v542 = vpop.f32.mrb[0].mxu0
    %v543 = vadd.f32 0.0, %v542
    %544 = vmatprep.mubr.bf16.mxu0 0
    %545 = vmatmul.mubr.bf16.gmra.mrb[0].mxu0 %v421
    %v546 = vpop.f32.mrb[0].mxu0
    %v547 = vadd.f32 0.0, %v546
    %v548 = vpop.f32.mrb[0].mxu0
    %v549 = vadd.f32 0.0, %v548
    %v550 = vpop.f32.mrb[0].mxu0
    %v551 = vadd.f32 0.0, %v550
    %v552 = vpop.f32.mrb[0].mxu0
    %v553 = vadd.f32 0.0, %v552
    %554 = vmatprep.mubr.bf16.mxu0 0
    %555 = vmatmul.mubr.bf16.gmra.mrb[0].mxu0 %v424
    %v556 = vpop.f32.mrb[0].mxu0
    %v557 = vadd.f32 0.0, %v556
    %v558 = vpop.f32.mrb[0].mxu0
    %v559 = vadd.f32 0.0, %v558
    %v560 = vpop.f32.mrb[0].mxu0
    %v561 = vadd.f32 0.0, %v560
    %v562 = vpop.f32.mrb[0].mxu0
    %v563 = vadd.f32 0.0, %v562
    %564 = vmatprep.mubr.bf16.mxu0 0
    %565 = vmatmul.mubr.bf16.gmra.mrb[0].mxu0 %v427
    %v566 = vpop.f32.mrb[0].mxu0
    %v567 = vadd.f32 0.0, %v566
    %v568 = vpop.f32.mrb[0].mxu0
    %v569 = vadd.f32 0.0, %v568
    %v570 = vpop.f32.mrb[0].mxu0
    %v571 = vadd.f32 0.0, %v570
    %v572 = vpop.f32.mrb[0].mxu0
    %v573 = vadd.f32 0.0, %v572
    %574 = vmatprep.mubr.bf16.mxu0 0
    %575 = vmatmul.mubr.bf16.gmra.mrb[0].mxu0 %v430
    %v576 = vpop.f32.mrb[0].mxu0
    %v577 = vadd.f32 0.0, %v576
    %v578 = vpop.f32.mrb[0].mxu0
    %v579 = vadd.f32 0.0, %v578
    %v580 = vpop.f32.mrb[0].mxu0
    %v581 = vadd.f32 0.0, %v580
    %v582 = vpop.f32.mrb[0].mxu0
    %v583 = vadd.f32 0.0, %v582
    %584 = vmatprep.mubr.bf16.mxu0 0
    %585 = vmatmul.mubr.bf16.gmra.mrb[0].mxu0 %v433
    %v586 = vpop.f32.mrb[0].mxu0
    %v587 = vadd.f32 0.0, %v586
    %v588 = vpop.f32.mrb[0].mxu0
    %v589 = vadd.f32 0.0, %v588
    %v590 = vpop.f32.mrb[0].mxu0
    %v591 = vadd.f32 0.0, %v590
    %v592 = vpop.f32.mrb[0].mxu0
    %v593 = vadd.f32 0.0, %v592
    %594 = vdwg.mxu0
    %v619 = vunpack.c.l.b16 %v28
    %v620 = vunpack.c.l.b16 %v29
    %v621 = vunpack.c.l.b16 %v30
    %v622 = vunpack.c.l.b16 %v32
    %v623 = vunpack.c.l.b16 %v33
    %v624 = vunpack.c.l.b16 %v34
    %v625 = vunpack.c.l.b16 %v36
    %v626 = vunpack.c.l.b16 %v37
    %v627 = vunpack.c.l.b16 %v38
    %v628 = vunpack.c.l.b16 %v40
    %v629 = vunpack.c.l.b16 %v41
    %v630 = vunpack.c.l.b16 %v42
    %v631 = vunpack.c.l.b16 %v44
    %v632 = vunpack.c.l.b16 %v45
    %v633 = vunpack.c.l.b16 %v46
    %v634 = vunpack.c.l.b16 %v48
    %v635 = vunpack.c.l.b16 %v49
    %v636 = vunpack.c.l.b16 %v50
    %v637 = vunpack.c.l.b16 %v52
    %v638 = vunpack.c.l.b16 %v53
    %v639 = vunpack.c.l.b16 %v54
    %v640 = vunpack.c.l.b16 %v56
    %v641 = vunpack.c.l.b16 %v57
    %v642 = vunpack.c.l.b16 %v58
    %v643 = vpack.c.b16 %v620, %v619
    %v644 = vpack.c.b16 %v622, %v621
    %v645 = vpack.c.b16 %v624, %v623
    %v646 = vpack.c.b16 %v626, %v625
    %v647 = vpack.c.b16 %v628, %v627
    %v648 = vpack.c.b16 %v630, %v629
    %v649 = vpack.c.b16 %v632, %v631
    %v650 = vpack.c.b16 %v634, %v633
    %v651 = vpack.c.b16 %v636, %v635
    %v652 = vpack.c.b16 %v638, %v637
    %v653 = vpack.c.b16 %v640, %v639
    %v654 = vpack.c.b16 %v642, %v641
    %v659 = vunpack.c.l.b16 %v60
    %v660 = vunpack.c.h.b16 %v60
    %v661 = vunpack.c.l.b16 %v61
    %v662 = vunpack.c.h.b16 %v61
    %v663 = vunpack.c.l.b16 %v62
    %v664 = vunpack.c.h.b16 %v62
    %v665 = vunpack.c.l.b16 %v63
    %v666 = vunpack.c.h.b16 %v63
    %v667 = vpack.c.b16 %v661, %v659
    %v668 = vpack.c.b16 %v662, %v660
    %v669 = vpack.c.b16 %v665, %v663
    %v670 = vpack.c.b16 %v666, %v664
    %v674 = vsel %vm398, %v643, 0
    %v677 = vsel %vm398, %v644, 0
    %v680 = vsel %vm398, %v645, 0
    %v683 = vsel %vm398, %v646, 0
    %v686 = vsel %vm398, %v647, 0
    %v689 = vsel %vm398, %v648, 0
    %v692 = vsel %vm398, %v649, 0
    %v695 = vsel %vm398, %v650, 0
    %v698 = vsel %vm398, %v651, 0
    %v701 = vsel %vm398, %v652, 0
    %v704 = vsel %vm398, %v653, 0
    %v707 = vsel %vm398, %v654, 0
    %v710 = vsel %vm435, %v669, 0
    %v713 = vsel %vm435, %v670, 0
    %715 = vmatprep.subr.bf16.mxu0 %v668
    %716 = vmatpush1.bf16.msra.mxu0 %v667
    %717 = vmatprep.subr.bf16.mxu0 %v713
    %718 = vmatpush1.bf16.msra.mxu0 %v710
    %719 = vmatprep.subr.bf16.mxu0 0
    %720 = vmatpush1.bf16.msra.mxu0 0
    %721 = vmatprep.subr.bf16.mxu0 0
    %722 = vmatpush1.bf16.msra.mxu0 0
    %723 = vmatprep.subr.bf16.mxu0 0
    %724 = vmatpush1.bf16.msra.mxu0 0
    %725 = vmatprep.subr.bf16.mxu0 0
    %726 = vmatpush1.bf16.msra.mxu0 0
    %727 = vmatprep.subr.bf16.mxu0 0
    %728 = vmatpush1.bf16.msra.mxu0 0
    %729 = vmatprep.subr.bf16.mxu0 0
    %730 = vmatpush1.bf16.msra.mxu0 0
    %731 = vmatprep.subr.bf16.mxu0 0
    %732 = vmatpush1.bf16.msra.mxu0 0
    %733 = vmatprep.subr.bf16.mxu0 0
    %734 = vmatpush1.bf16.msra.mxu0 0
    %735 = vmatprep.subr.bf16.mxu0 0
    %736 = vmatpush1.bf16.msra.mxu0 0
    %737 = vmatprep.subr.bf16.mxu0 0
    %738 = vmatpush1.bf16.msra.mxu0 0
    %739 = vmatprep.subr.bf16.mxu0 0
    %740 = vmatpush1.bf16.msra.mxu0 0
    %741 = vmatprep.subr.bf16.mxu0 0
    %742 = vmatpush1.bf16.msra.mxu0 0
    %743 = vmatprep.subr.bf16.mxu0 0
    %744 = vmatpush1.bf16.msra.mxu0 0
    %745 = vmatprep.subr.bf16.mxu0 0
    %746 = vmatpush1.bf16.msra.mxu0 0
    %747 = vmatprep.mubr.bf16.mxu0 0
    %748 = vmatmul.mubr.bf16.gmra.mrb[0].mxu0 %v674
    %v749 = vpop.f32.mrb[0].mxu0
    %v750 = vadd.f32 %v477, %v749
    %v751 = vpop.f32.mrb[0].mxu0
    %v752 = vadd.f32 %v479, %v751
    %v753 = vpop.f32.mrb[0].mxu0
    %v754 = vadd.f32 %v481, %v753
    %v755 = vpop.f32.mrb[0].mxu0
    %v756 = vadd.f32 %v483, %v755
    %757 = vmatprep.mubr.bf16.mxu0 0
    %758 = vmatmul.mubr.bf16.gmra.mrb[0].mxu0 %v677
    %v759 = vpop.f32.mrb[0].mxu0
    %v760 = vadd.f32 %v487, %v759
    %v761 = vpop.f32.mrb[0].mxu0
    %v762 = vadd.f32 %v489, %v761
    %v763 = vpop.f32.mrb[0].mxu0
    %v764 = vadd.f32 %v491, %v763
    %v765 = vpop.f32.mrb[0].mxu0
    %v766 = vadd.f32 %v493, %v765
    %767 = vmatprep.mubr.bf16.mxu0 0
    %768 = vmatmul.mubr.bf16.gmra.mrb[0].mxu0 %v680
    %v769 = vpop.f32.mrb[0].mxu0
    %v770 = vadd.f32 %v497, %v769
    %v771 = vpop.f32.mrb[0].mxu0
    %v772 = vadd.f32 %v499, %v771
    %v773 = vpop.f32.mrb[0].mxu0
    %v774 = vadd.f32 %v501, %v773
    %v775 = vpop.f32.mrb[0].mxu0
    %v776 = vadd.f32 %v503, %v775
    %777 = vmatprep.mubr.bf16.mxu0 0
    %778 = vmatmul.mubr.bf16.gmra.mrb[0].mxu0 %v683
    %v779 = vpop.f32.mrb[0].mxu0
    %v780 = vadd.f32 %v507, %v779
    %v781 = vpop.f32.mrb[0].mxu0
    %v782 = vadd.f32 %v509, %v781
    %v783 = vpop.f32.mrb[0].mxu0
    %v784 = vadd.f32 %v511, %v783
    %v785 = vpop.f32.mrb[0].mxu0
    %v786 = vadd.f32 %v513, %v785
    %787 = vmatprep.mubr.bf16.mxu0 0
    %788 = vmatmul.mubr.bf16.gmra.mrb[0].mxu0 %v686
    %v789 = vpop.f32.mrb[0].mxu0
    %v790 = vadd.f32 %v517, %v789
    %v791 = vpop.f32.mrb[0].mxu0
    %v792 = vadd.f32 %v519, %v791
    %v793 = vpop.f32.mrb[0].mxu0
    %v794 = vadd.f32 %v521, %v793
    %v795 = vpop.f32.mrb[0].mxu0
    %v796 = vadd.f32 %v523, %v795
    %797 = vmatprep.mubr.bf16.mxu0 0
    %798 = vmatmul.mubr.bf16.gmra.mrb[0].mxu0 %v689
    %v799 = vpop.f32.mrb[0].mxu0
    %v800 = vadd.f32 %v527, %v799
    %v801 = vpop.f32.mrb[0].mxu0
    %v802 = vadd.f32 %v529, %v801
    %v803 = vpop.f32.mrb[0].mxu0
    %v804 = vadd.f32 %v531, %v803
    %v805 = vpop.f32.mrb[0].mxu0
    %v806 = vadd.f32 %v533, %v805
    %807 = vmatprep.mubr.bf16.mxu0 0
    %808 = vmatmul.mubr.bf16.gmra.mrb[0].mxu0 %v692
    %v809 = vpop.f32.mrb[0].mxu0
    %v810 = vadd.f32 %v537, %v809
    %v811 = vpop.f32.mrb[0].mxu0
    %v812 = vadd.f32 %v539, %v811
    %v813 = vpop.f32.mrb[0].mxu0
    %v814 = vadd.f32 %v541, %v813
    %v815 = vpop.f32.mrb[0].mxu0
    %v816 = vadd.f32 %v543, %v815
    %817 = vmatprep.mubr.bf16.mxu0 0
    %818 = vmatmul.mubr.bf16.gmra.mrb[0].mxu0 %v695
    %v819 = vpop.f32.mrb[0].mxu0
    %v820 = vadd.f32 %v547, %v819
    %v821 = vpop.f32.mrb[0].mxu0
    %v822 = vadd.f32 %v549, %v821
    %v823 = vpop.f32.mrb[0].mxu0
    %v824 = vadd.f32 %v551, %v823
    %v825 = vpop.f32.mrb[0].mxu0
    %v826 = vadd.f32 %v553, %v825
    %827 = vmatprep.mubr.bf16.mxu0 0
    %828 = vmatmul.mubr.bf16.gmra.mrb[0].mxu0 %v698
    %v829 = vpop.f32.mrb[0].mxu0
    %v830 = vadd.f32 %v557, %v829
    %v831 = vpop.f32.mrb[0].mxu0
    %v832 = vadd.f32 %v559, %v831
    %v833 = vpop.f32.mrb[0].mxu0
    %v834 = vadd.f32 %v561, %v833
    %v835 = vpop.f32.mrb[0].mxu0
    %v836 = vadd.f32 %v563, %v835
    %837 = vmatprep.mubr.bf16.mxu0 0
    %838 = vmatmul.mubr.bf16.gmra.mrb[0].mxu0 %v701
    %v839 = vpop.f32.mrb[0].mxu0
    %v840 = vadd.f32 %v567, %v839
    %v841 = vpop.f32.mrb[0].mxu0
    %v842 = vadd.f32 %v569, %v841
    %v843 = vpop.f32.mrb[0].mxu0
    %v844 = vadd.f32 %v571, %v843
    %v845 = vpop.f32.mrb[0].mxu0
    %v846 = vadd.f32 %v573, %v845
    %847 = vmatprep.mubr.bf16.mxu0 0
    %848 = vmatmul.mubr.bf16.gmra.mrb[0].mxu0 %v704
    %v849 = vpop.f32.mrb[0].mxu0
    %v850 = vadd.f32 %v577, %v849
    %v851 = vpop.f32.mrb[0].mxu0
    %v852 = vadd.f32 %v579, %v851
    %v853 = vpop.f32.mrb[0].mxu0
    %v854 = vadd.f32 %v581, %v853
    %v855 = vpop.f32.mrb[0].mxu0
    %v856 = vadd.f32 %v583, %v855
    %857 = vmatprep.mubr.bf16.mxu0 0
    %858 = vmatmul.mubr.bf16.gmra.mrb[0].mxu0 %v707
    %v859 = vpop.f32.mrb[0].mxu0
    %v860 = vadd.f32 %v587, %v859
    %v861 = vpop.f32.mrb[0].mxu0
    %v862 = vadd.f32 %v589, %v861
    %v863 = vpop.f32.mrb[0].mxu0
    %v864 = vadd.f32 %v591, %v863
    %v865 = vpop.f32.mrb[0].mxu0
    %v866 = vadd.f32 %v593, %v865
    %867 = vdwg.mxu0
    %vm876 = vcmask 1042432
    %vm877 = vcmask 1046532
    %vm878 = vmor %vm876, %vm877
    %v879 = vrot.slane %v28, 5
    %v880 = vrot.slane %v879, 4
    %v881 = vrot.slane %v29, 5
    %v882 = vsel %vm878, %v880, %v881
    %v883 = vrot.slane %v881, 4
    %v884 = vrot.slane %v30, 5
    %v885 = vsel %vm878, %v883, %v884
    %v886 = vrot.slane %v884, 4
    %v887 = vrot.slane %v31, 5
    %v888 = vsel %vm878, %v886, %v887
    %v889 = vrot.slane %v32, 5
    %v890 = vrot.slane %v889, 4
    %v891 = vrot.slane %v33, 5
    %v892 = vsel %vm878, %v890, %v891
    %v893 = vrot.slane %v891, 4
    %v894 = vrot.slane %v34, 5
    %v895 = vsel %vm878, %v893, %v894
    %v896 = vrot.slane %v894, 4
    %v897 = vrot.slane %v35, 5
    %v898 = vsel %vm878, %v896, %v897
    %v899 = vrot.slane %v36, 5
    %v900 = vrot.slane %v899, 4
    %v901 = vrot.slane %v37, 5
    %v902 = vsel %vm878, %v900, %v901
    %v903 = vrot.slane %v901, 4
    %v904 = vrot.slane %v38, 5
    %v905 = vsel %vm878, %v903, %v904
    %v906 = vrot.slane %v904, 4
    %v907 = vrot.slane %v39, 5
    %v908 = vsel %vm878, %v906, %v907
    %v909 = vrot.slane %v40, 5
    %v910 = vrot.slane %v909, 4
    %v911 = vrot.slane %v41, 5
    %v912 = vsel %vm878, %v910, %v911
    %v913 = vrot.slane %v911, 4
    %v914 = vrot.slane %v42, 5
    %v915 = vsel %vm878, %v913, %v914
    %v916 = vrot.slane %v914, 4
    %v917 = vrot.slane %v43, 5
    %v918 = vsel %vm878, %v916, %v917
    %v919 = vrot.slane %v44, 5
    %v920 = vrot.slane %v919, 4
    %v921 = vrot.slane %v45, 5
    %v922 = vsel %vm878, %v920, %v921
    %v923 = vrot.slane %v921, 4
    %v924 = vrot.slane %v46, 5
    %v925 = vsel %vm878, %v923, %v924
    %v926 = vrot.slane %v924, 4
    %v927 = vrot.slane %v47, 5
    %v928 = vsel %vm878, %v926, %v927
    %v929 = vrot.slane %v48, 5
    %v930 = vrot.slane %v929, 4
    %v931 = vrot.slane %v49, 5
    %v932 = vsel %vm878, %v930, %v931
    %v933 = vrot.slane %v931, 4
    %v934 = vrot.slane %v50, 5
    %v935 = vsel %vm878, %v933, %v934
    %v936 = vrot.slane %v934, 4
    %v937 = vrot.slane %v51, 5
    %v938 = vsel %vm878, %v936, %v937
    %v939 = vrot.slane %v52, 5
    %v940 = vrot.slane %v939, 4
    %v941 = vrot.slane %v53, 5
    %v942 = vsel %vm878, %v940, %v941
    %v943 = vrot.slane %v941, 4
    %v944 = vrot.slane %v54, 5
    %v945 = vsel %vm878, %v943, %v944
    %v946 = vrot.slane %v944, 4
    %v947 = vrot.slane %v55, 5
    %v948 = vsel %vm878, %v946, %v947
    %v949 = vrot.slane %v56, 5
    %v950 = vrot.slane %v949, 4
    %v951 = vrot.slane %v57, 5
    %v952 = vsel %vm878, %v950, %v951
    %v953 = vrot.slane %v951, 4
    %v954 = vrot.slane %v58, 5
    %v955 = vsel %vm878, %v953, %v954
    %v956 = vrot.slane %v954, 4
    %v957 = vrot.slane %v59, 5
    %v958 = vsel %vm878, %v956, %v957
    %s959 = scalar_lea.vmem %s1, 64
    %v960 = vld [vmem:[%s959] sm:$0xff]
    %v961 = vld [vmem:[%s959 + $0x8] sm:$0xff]
    %v962 = vld [vmem:[%s959 + $0x10] sm:$0xff]
    %v963 = vld [vmem:[%s959 + $0x18] sm:$0x33]
    %v964 = vunpack.c.l.b16 %v882
    %v965 = vunpack.c.l.b16 %v885
    %v966 = vunpack.c.l.b16 %v888
    %v967 = vunpack.c.l.b16 %v892
    %v968 = vunpack.c.l.b16 %v895
    %v969 = vunpack.c.l.b16 %v898
    %v970 = vunpack.c.l.b16 %v902
    %v971 = vunpack.c.l.b16 %v905
    %v972 = vunpack.c.l.b16 %v908
    %v973 = vunpack.c.l.b16 %v912
    %v974 = vunpack.c.l.b16 %v915
    %v975 = vunpack.c.l.b16 %v918
    %v976 = vunpack.c.l.b16 %v922
    %v977 = vunpack.c.l.b16 %v925
    %v978 = vunpack.c.l.b16 %v928
    %v979 = vunpack.c.l.b16 %v932
    %v980 = vunpack.c.l.b16 %v935
    %v981 = vunpack.c.l.b16 %v938
    %v982 = vunpack.c.l.b16 %v942
    %v983 = vunpack.c.l.b16 %v945
    %v984 = vunpack.c.l.b16 %v948
    %v985 = vunpack.c.l.b16 %v952
    %v986 = vunpack.c.l.b16 %v955
    %v987 = vunpack.c.l.b16 %v958
    %v988 = vpack.c.b16 %v965, %v964
    %v989 = vpack.c.b16 %v967, %v966
    %v990 = vpack.c.b16 %v969, %v968
    %v991 = vpack.c.b16 %v971, %v970
    %v992 = vpack.c.b16 %v973, %v972
    %v993 = vpack.c.b16 %v975, %v974
    %v994 = vpack.c.b16 %v977, %v976
    %v995 = vpack.c.b16 %v979, %v978
    %v996 = vpack.c.b16 %v981, %v980
    %v997 = vpack.c.b16 %v983, %v982
    %v998 = vpack.c.b16 %v985, %v984
    %v999 = vpack.c.b16 %v987, %v986
    %v1004 = vunpack.c.l.b16 %v960
    %v1005 = vunpack.c.h.b16 %v960
    %v1006 = vunpack.c.l.b16 %v961
    %v1007 = vunpack.c.h.b16 %v961
    %v1008 = vunpack.c.l.b16 %v962
    %v1009 = vunpack.c.h.b16 %v962
    %v1010 = vunpack.c.l.b16 %v963
    %v1011 = vunpack.c.h.b16 %v963
    %v1012 = vpack.c.b16 %v1006, %v1004
    %v1013 = vpack.c.b16 %v1007, %v1005
    %v1014 = vpack.c.b16 %v1010, %v1008
    %v1015 = vpack.c.b16 %v1011, %v1009
    %v1019 = vsel %vm398, %v988, 0
    %v1022 = vsel %vm398, %v989, 0
    %v1025 = vsel %vm398, %v990, 0
    %v1028 = vsel %vm398, %v991, 0
    %v1031 = vsel %vm398, %v992, 0
    %v1034 = vsel %vm398, %v993, 0
    %v1037 = vsel %vm398, %v994, 0
    %v1040 = vsel %vm398, %v995, 0
    %v1043 = vsel %vm398, %v996, 0
    %v1046 = vsel %vm398, %v997, 0
    %v1049 = vsel %vm398, %v998, 0
    %v1052 = vsel %vm398, %v999, 0
    %v1055 = vsel %vm435, %v1014, 0
    %v1058 = vsel %vm435, %v1015, 0
    %1060 = vmatprep.subr.bf16.mxu0 %v1013
    %1061 = vmatpush1.bf16.msra.mxu0 %v1012
    %1062 = vmatprep.subr.bf16.mxu0 %v1058
    %1063 = vmatpush1.bf16.msra.mxu0 %v1055
    %1064 = vmatprep.subr.bf16.mxu0 0
    %1065 = vmatpush1.bf16.msra.mxu0 0
    %1066 = vmatprep.subr.bf16.mxu0 0
    %1067 = vmatpush1.bf16.msra.mxu0 0
    %1068 = vmatprep.subr.bf16.mxu0 0
    %1069 = vmatpush1.bf16.msra.mxu0 0
    %1070 = vmatprep.subr.bf16.mxu0 0
    %1071 = vmatpush1.bf16.msra.mxu0 0
    %1072 = vmatprep.subr.bf16.mxu0 0
    %1073 = vmatpush1.bf16.msra.mxu0 0
    %1074 = vmatprep.subr.bf16.mxu0 0
    %1075 = vmatpush1.bf16.msra.mxu0 0
    %1076 = vmatprep.subr.bf16.mxu0 0
    %1077 = vmatpush1.bf16.msra.mxu0 0
    %1078 = vmatprep.subr.bf16.mxu0 0
    %1079 = vmatpush1.bf16.msra.mxu0 0
    %1080 = vmatprep.subr.bf16.mxu0 0
    %1081 = vmatpush1.bf16.msra.mxu0 0
    %1082 = vmatprep.subr.bf16.mxu0 0
    %1083 = vmatpush1.bf16.msra.mxu0 0
    %1084 = vmatprep.subr.bf16.mxu0 0
    %1085 = vmatpush1.bf16.msra.mxu0 0
    %1086 = vmatprep.subr.bf16.mxu0 0
    %1087 = vmatpush1.bf16.msra.mxu0 0
    %1088 = vmatprep.subr.bf16.mxu0 0
    %1089 = vmatpush1.bf16.msra.mxu0 0
    %1090 = vmatprep.subr.bf16.mxu0 0
    %1091 = vmatpush1.bf16.msra.mxu0 0
    %1092 = vmatprep.mubr.bf16.mxu0 0
    %1093 = vmatmul.mubr.bf16.gmra.mrb[0].mxu0 %v1019
    %v1094 = vpop.f32.mrb[0].mxu0
    %v1095 = vadd.f32 0.0, %v1094
    %v1096 = vpop.f32.mrb[0].mxu0
    %v1097 = vadd.f32 0.0, %v1096
    %v1098 = vpop.f32.mrb[0].mxu0
    %v1099 = vadd.f32 0.0, %v1098
    %v1100 = vpop.f32.mrb[0].mxu0
    %v1101 = vadd.f32 0.0, %v1100
    %1102 = vmatprep.mubr.bf16.mxu0 0
    %1103 = vmatmul.mubr.bf16.gmra.mrb[0].mxu0 %v1022
    %v1104 = vpop.f32.mrb[0].mxu0
    %v1105 = vadd.f32 0.0, %v1104
    %v1106 = vpop.f32.mrb[0].mxu0
    %v1107 = vadd.f32 0.0, %v1106
    %v1108 = vpop.f32.mrb[0].mxu0
    %v1109 = vadd.f32 0.0, %v1108
    %v1110 = vpop.f32.mrb[0].mxu0
    %v1111 = vadd.f32 0.0, %v1110
    %1112 = vmatprep.mubr.bf16.mxu0 0
    %1113 = vmatmul.mubr.bf16.gmra.mrb[0].mxu0 %v1025
    %v1114 = vpop.f32.mrb[0].mxu0
    %v1115 = vadd.f32 0.0, %v1114
    %v1116 = vpop.f32.mrb[0].mxu0
    %v1117 = vadd.f32 0.0, %v1116
    %v1118 = vpop.f32.mrb[0].mxu0
    %v1119 = vadd.f32 0.0, %v1118
    %v1120 = vpop.f32.mrb[0].mxu0
    %v1121 = vadd.f32 0.0, %v1120
    %1122 = vmatprep.mubr.bf16.mxu0 0
    %1123 = vmatmul.mubr.bf16.gmra.mrb[0].mxu0 %v1028
    %v1124 = vpop.f32.mrb[0].mxu0
    %v1125 = vadd.f32 0.0, %v1124
    %v1126 = vpop.f32.mrb[0].mxu0
    %v1127 = vadd.f32 0.0, %v1126
    %v1128 = vpop.f32.mrb[0].mxu0
    %v1129 = vadd.f32 0.0, %v1128
    %v1130 = vpop.f32.mrb[0].mxu0
    %v1131 = vadd.f32 0.0, %v1130
    %1132 = vmatprep.mubr.bf16.mxu0 0
    %1133 = vmatmul.mubr.bf16.gmra.mrb[0].mxu0 %v1031
    %v1134 = vpop.f32.mrb[0].mxu0
    %v1135 = vadd.f32 0.0, %v1134
    %v1136 = vpop.f32.mrb[0].mxu0
    %v1137 = vadd.f32 0.0, %v1136
    %v1138 = vpop.f32.mrb[0].mxu0
    %v1139 = vadd.f32 0.0, %v1138
    %v1140 = vpop.f32.mrb[0].mxu0
    %v1141 = vadd.f32 0.0, %v1140
    %1142 = vmatprep.mubr.bf16.mxu0 0
    %1143 = vmatmul.mubr.bf16.gmra.mrb[0].mxu0 %v1034
    %v1144 = vpop.f32.mrb[0].mxu0
    %v1145 = vadd.f32 0.0, %v1144
    %v1146 = vpop.f32.mrb[0].mxu0
    %v1147 = vadd.f32 0.0, %v1146
    %v1148 = vpop.f32.mrb[0].mxu0
    %v1149 = vadd.f32 0.0, %v1148
    %v1150 = vpop.f32.mrb[0].mxu0
    %v1151 = vadd.f32 0.0, %v1150
    %1152 = vmatprep.mubr.bf16.mxu0 0
    %1153 = vmatmul.mubr.bf16.gmra.mrb[0].mxu0 %v1037
    %v1154 = vpop.f32.mrb[0].mxu0
    %v1155 = vadd.f32 0.0, %v1154
    %v1156 = vpop.f32.mrb[0].mxu0
    %v1157 = vadd.f32 0.0, %v1156
    %v1158 = vpop.f32.mrb[0].mxu0
    %v1159 = vadd.f32 0.0, %v1158
    %v1160 = vpop.f32.mrb[0].mxu0
    %v1161 = vadd.f32 0.0, %v1160
    %1162 = vmatprep.mubr.bf16.mxu0 0
    %1163 = vmatmul.mubr.bf16.gmra.mrb[0].mxu0 %v1040
    %v1164 = vpop.f32.mrb[0].mxu0
    %v1165 = vadd.f32 0.0, %v1164
    %v1166 = vpop.f32.mrb[0].mxu0
    %v1167 = vadd.f32 0.0, %v1166
    %v1168 = vpop.f32.mrb[0].mxu0
    %v1169 = vadd.f32 0.0, %v1168
    %v1170 = vpop.f32.mrb[0].mxu0
    %v1171 = vadd.f32 0.0, %v1170
    %1172 = vmatprep.mubr.bf16.mxu0 0
    %1173 = vmatmul.mubr.bf16.gmra.mrb[0].mxu0 %v1043
    %v1174 = vpop.f32.mrb[0].mxu0
    %v1175 = vadd.f32 0.0, %v1174
    %v1176 = vpop.f32.mrb[0].mxu0
    %v1177 = vadd.f32 0.0, %v1176
    %v1178 = vpop.f32.mrb[0].mxu0
    %v1179 = vadd.f32 0.0, %v1178
    %v1180 = vpop.f32.mrb[0].mxu0
    %v1181 = vadd.f32 0.0, %v1180
    %1182 = vmatprep.mubr.bf16.mxu0 0
    %1183 = vmatmul.mubr.bf16.gmra.mrb[0].mxu0 %v1046
    %v1184 = vpop.f32.mrb[0].mxu0
    %v1185 = vadd.f32 0.0, %v1184
    %v1186 = vpop.f32.mrb[0].mxu0
    %v1187 = vadd.f32 0.0, %v1186
    %v1188 = vpop.f32.mrb[0].mxu0
    %v1189 = vadd.f32 0.0, %v1188
    %v1190 = vpop.f32.mrb[0].mxu0
    %v1191 = vadd.f32 0.0, %v1190
    %1192 = vmatprep.mubr.bf16.mxu0 0
    %1193 = vmatmul.mubr.bf16.gmra.mrb[0].mxu0 %v1049
    %v1194 = vpop.f32.mrb[0].mxu0
    %v1195 = vadd.f32 0.0, %v1194
    %v1196 = vpop.f32.mrb[0].mxu0
    %v1197 = vadd.f32 0.0, %v1196
    %v1198 = vpop.f32.mrb[0].mxu0
    %v1199 = vadd.f32 0.0, %v1198
    %v1200 = vpop.f32.mrb[0].mxu0
    %v1201 = vadd.f32 0.0, %v1200
    %1202 = vmatprep.mubr.bf16.mxu0 0
    %1203 = vmatmul.mubr.bf16.gmra.mrb[0].mxu0 %v1052
    %v1204 = vpop.f32.mrb[0].mxu0
    %v1205 = vadd.f32 0.0, %v1204
    %v1206 = vpop.f32.mrb[0].mxu0
    %v1207 = vadd.f32 0.0, %v1206
    %v1208 = vpop.f32.mrb[0].mxu0
    %v1209 = vadd.f32 0.0, %v1208
    %v1210 = vpop.f32.mrb[0].mxu0
    %v1211 = vadd.f32 0.0, %v1210
    %1212 = vdwg.mxu0
    %v1213 = vadd.f32 %v750, %v1095
    %v1214 = vadd.f32 %v752, %v1097
    %v1215 = vadd.f32 %v754, %v1099
    %v1216 = vadd.f32 %v756, %v1101
    %v1217 = vadd.f32 %v760, %v1105
    %v1218 = vadd.f32 %v762, %v1107
    %v1219 = vadd.f32 %v764, %v1109
    %v1220 = vadd.f32 %v766, %v1111
    %v1221 = vadd.f32 %v770, %v1115
    %v1222 = vadd.f32 %v772, %v1117
    %v1223 = vadd.f32 %v774, %v1119
    %v1224 = vadd.f32 %v776, %v1121
    %v1225 = vadd.f32 %v780, %v1125
    %v1226 = vadd.f32 %v782, %v1127
    %v1227 = vadd.f32 %v784, %v1129
    %v1228 = vadd.f32 %v786, %v1131
    %v1229 = vadd.f32 %v790, %v1135
    %v1230 = vadd.f32 %v792, %v1137
    %v1231 = vadd.f32 %v794, %v1139
    %v1232 = vadd.f32 %v796, %v1141
    %v1233 = vadd.f32 %v800, %v1145
    %v1234 = vadd.f32 %v802, %v1147
    %v1235 = vadd.f32 %v804, %v1149
    %v1236 = vadd.f32 %v806, %v1151
    %v1237 = vadd.f32 %v810, %v1155
    %v1238 = vadd.f32 %v812, %v1157
    %v1239 = vadd.f32 %v814, %v1159
    %v1240 = vadd.f32 %v816, %v1161
    %v1241 = vadd.f32 %v820, %v1165
    %v1242 = vadd.f32 %v822, %v1167
    %v1243 = vadd.f32 %v824, %v1169
    %v1244 = vadd.f32 %v826, %v1171
    %v1245 = vadd.f32 %v830, %v1175
    %v1246 = vadd.f32 %v832, %v1177
    %v1247 = vadd.f32 %v834, %v1179
    %v1248 = vadd.f32 %v836, %v1181
    %v1249 = vadd.f32 %v840, %v1185
    %v1250 = vadd.f32 %v842, %v1187
    %v1251 = vadd.f32 %v844, %v1189
    %v1252 = vadd.f32 %v846, %v1191
    %v1253 = vadd.f32 %v850, %v1195
    %v1254 = vadd.f32 %v852, %v1197
    %v1255 = vadd.f32 %v854, %v1199
    %v1256 = vadd.f32 %v856, %v1201
    %v1257 = vadd.f32 %v860, %v1205
    %v1258 = vadd.f32 %v862, %v1207
    %v1259 = vadd.f32 %v864, %v1209
    %v1260 = vadd.f32 %v866, %v1211
    %vm1261 = vsmask.f32 2304
    %vm1262 = vsmask.f32 6416
    %vm1263 = vmor %vm1261, %vm1262
    %v1264 = vrot.slane %v68, 5
    %v1265 = vrot.slane %v71, 6
    %v1266 = vor.u32 %v1264, %v1265
    %v1267 = vrot.slane %v1266, 4
    %v1268 = vrot.slane %v81, 5
    %v1269 = vrot.slane %v77, 6
    %v1270 = vor.u32 %v1268, %v1269
    %v1271 = vsel %vm1263, %v1267, %v1270
    %v1272 = vrot.slane %v1270, 4
    %v1273 = vrot.slane %v91, 5
    %v1274 = vrot.slane %v87, 6
    %v1275 = vor.u32 %v1273, %v1274
    %v1276 = vsel %vm1263, %v1272, %v1275
    %v1277 = vrot.slane %v1275, 4
    %v1278 = vshrl.u32 %v31, 16
    %v1280 = vrot.slane %v1278, 5
    %v1281 = vrot.slane %v97, 6
    %v1282 = vor.u32 %v1280, %v1281
    %v1283 = vsel %vm1263, %v1277, %v1282
    %v1284 = vrot.slane %v102, 5
    %v1285 = vrot.slane %v105, 6
    %v1286 = vor.u32 %v1284, %v1285
    %v1287 = vrot.slane %v1286, 4
    %v1288 = vrot.slane %v115, 5
    %v1289 = vrot.slane %v111, 6
    %v1290 = vor.u32 %v1288, %v1289
    %v1291 = vsel %vm1263, %v1287, %v1290
    %v1292 = vrot.slane %v1290, 4
    %v1293 = vrot.slane %v125, 5
    %v1294 = vrot.slane %v121, 6
    %v1295 = vor.u32 %v1293, %v1294
    %v1296 = vsel %vm1263, %v1292, %v1295
    %v1297 = vrot.slane %v1295, 4
    %v1298 = vshrl.u32 %v35, 16
    %v1300 = vrot.slane %v1298, 5
    %v1301 = vrot.slane %v131, 6
    %v1302 = vor.u32 %v1300, %v1301
    %v1303 = vsel %vm1263, %v1297, %v1302
    %v1304 = vrot.slane %v136, 5
    %v1305 = vrot.slane %v139, 6
    %v1306 = vor.u32 %v1304, %v1305
    %v1307 = vrot.slane %v1306, 4
    %v1308 = vrot.slane %v149, 5
    %v1309 = vrot.slane %v145, 6
    %v1310 = vor.u32 %v1308, %v1309
    %v1311 = vsel %vm1263, %v1307, %v1310
    %v1312 = vrot.slane %v1310, 4
    %v1313 = vrot.slane %v159, 5
    %v1314 = vrot.slane %v155, 6
    %v1315 = vor.u32 %v1313, %v1314
    %v1316 = vsel %vm1263, %v1312, %v1315
    %v1317 = vrot.slane %v1315, 4
    %v1318 = vshrl.u32 %v39, 16
    %v1320 = vrot.slane %v1318, 5
    %v1321 = vrot.slane %v165, 6
    %v1322 = vor.u32 %v1320, %v1321
    %v1323 = vsel %vm1263, %v1317, %v1322
    %v1324 = vrot.slane %v170, 5
    %v1325 = vrot.slane %v173, 6
    %v1326 = vor.u32 %v1324, %v1325
    %v1327 = vrot.slane %v1326, 4
    %v1328 = vrot.slane %v183, 5
    %v1329 = vrot.slane %v179, 6
    %v1330 = vor.u32 %v1328, %v1329
    %v1331 = vsel %vm1263, %v1327, %v1330
    %v1332 = vrot.slane %v1330, 4
    %v1333 = vrot.slane %v193, 5
    %v1334 = vrot.slane %v189, 6
    %v1335 = vor.u32 %v1333, %v1334
    %v1336 = vsel %vm1263, %v1332, %v1335
    %v1337 = vrot.slane %v1335, 4
    %v1338 = vshrl.u32 %v43, 16
    %v1340 = vrot.slane %v1338, 5
    %v1341 = vrot.slane %v199, 6
    %v1342 = vor.u32 %v1340, %v1341
    %v1343 = vsel %vm1263, %v1337, %v1342
    %v1344 = vrot.slane %v204, 5
    %v1345 = vrot.slane %v207, 6
    %v1346 = vor.u32 %v1344, %v1345
    %v1347 = vrot.slane %v1346, 4
    %v1348 = vrot.slane %v217, 5
    %v1349 = vrot.slane %v213, 6
    %v1350 = vor.u32 %v1348, %v1349
    %v1351 = vsel %vm1263, %v1347, %v1350
    %v1352 = vrot.slane %v1350, 4
    %v1353 = vrot.slane %v227, 5
    %v1354 = vrot.slane %v223, 6
    %v1355 = vor.u32 %v1353, %v1354
    %v1356 = vsel %vm1263, %v1352, %v1355
    %v1357 = vrot.slane %v1355, 4
    %v1358 = vshrl.u32 %v47, 16
    %v1360 = vrot.slane %v1358, 5
    %v1361 = vrot.slane %v233, 6
    %v1362 = vor.u32 %v1360, %v1361
    %v1363 = vsel %vm1263, %v1357, %v1362
    %v1364 = vrot.slane %v238, 5
    %v1365 = vrot.slane %v241, 6
    %v1366 = vor.u32 %v1364, %v1365
    %v1367 = vrot.slane %v1366, 4
    %v1368 = vrot.slane %v251, 5
    %v1369 = vrot.slane %v247, 6
    %v1370 = vor.u32 %v1368, %v1369
    %v1371 = vsel %vm1263, %v1367, %v1370
    %v1372 = vrot.slane %v1370, 4
    %v1373 = vrot.slane %v261, 5
    %v1374 = vrot.slane %v257, 6
    %v1375 = vor.u32 %v1373, %v1374
    %v1376 = vsel %vm1263, %v1372, %v1375
    %v1377 = vrot.slane %v1375, 4
    %v1378 = vshrl.u32 %v51, 16
    %v1380 = vrot.slane %v1378, 5
    %v1381 = vrot.slane %v267, 6
    %v1382 = vor.u32 %v1380, %v1381
    %v1383 = vsel %vm1263, %v1377, %v1382
    %v1384 = vrot.slane %v272, 5
    %v1385 = vrot.slane %v275, 6
    %v1386 = vor.u32 %v1384, %v1385
    %v1387 = vrot.slane %v1386, 4
    %v1388 = vrot.slane %v285, 5
    %v1389 = vrot.slane %v281, 6
    %v1390 = vor.u32 %v1388, %v1389
    %v1391 = vsel %vm1263, %v1387, %v1390
    %v1392 = vrot.slane %v1390, 4
    %v1393 = vrot.slane %v295, 5
    %v1394 = vrot.slane %v291, 6
    %v1395 = vor.u32 %v1393, %v1394
    %v1396 = vsel %vm1263, %v1392, %v1395
    %v1397 = vrot.slane %v1395, 4
    %v1398 = vshrl.u32 %v55, 16
    %v1400 = vrot.slane %v1398, 5
    %v1401 = vrot.slane %v301, 6
    %v1402 = vor.u32 %v1400, %v1401
    %v1403 = vsel %vm1263, %v1397, %v1402
    %v1404 = vrot.slane %v306, 5
    %v1405 = vrot.slane %v309, 6
    %v1406 = vor.u32 %v1404, %v1405
    %v1407 = vrot.slane %v1406, 4
    %v1408 = vrot.slane %v319, 5
    %v1409 = vrot.slane %v315, 6
    %v1410 = vor.u32 %v1408, %v1409
    %v1411 = vsel %vm1263, %v1407, %v1410
    %v1412 = vrot.slane %v1410, 4
    %v1413 = vrot.slane %v329, 5
    %v1414 = vrot.slane %v325, 6
    %v1415 = vor.u32 %v1413, %v1414
    %v1416 = vsel %vm1263, %v1412, %v1415
    %v1417 = vrot.slane %v1415, 4
    %v1418 = vshrl.u32 %v59, 16
    %v1420 = vrot.slane %v1418, 5
    %v1421 = vrot.slane %v335, 6
    %v1422 = vor.u32 %v1420, %v1421
    %v1423 = vsel %vm1263, %v1417, %v1422
    %s1424 = scalar_lea.vmem %s1, 96
    %v1425 = vld [vmem:[%s1424] sm:$0xff]
    %v1426 = vld [vmem:[%s1424 + $0x8] sm:$0xff]
    %v1427 = vld [vmem:[%s1424 + $0x10] sm:$0xff]
    %v1428 = vld [vmem:[%s1424 + $0x18] sm:$0x33]
    %v1429 = vunpack.c.l.b16 %v1271
    %v1430 = vunpack.c.l.b16 %v1276
    %v1431 = vunpack.c.l.b16 %v1283
    %v1432 = vunpack.c.l.b16 %v1291
    %v1433 = vunpack.c.l.b16 %v1296
    %v1434 = vunpack.c.l.b16 %v1303
    %v1435 = vunpack.c.l.b16 %v1311
    %v1436 = vunpack.c.l.b16 %v1316
    %v1437 = vunpack.c.l.b16 %v1323
    %v1438 = vunpack.c.l.b16 %v1331
    %v1439 = vunpack.c.l.b16 %v1336
    %v1440 = vunpack.c.l.b16 %v1343
    %v1441 = vunpack.c.l.b16 %v1351
    %v1442 = vunpack.c.l.b16 %v1356
    %v1443 = vunpack.c.l.b16 %v1363
    %v1444 = vunpack.c.l.b16 %v1371
    %v1445 = vunpack.c.l.b16 %v1376
    %v1446 = vunpack.c.l.b16 %v1383
    %v1447 = vunpack.c.l.b16 %v1391
    %v1448 = vunpack.c.l.b16 %v1396
    %v1449 = vunpack.c.l.b16 %v1403
    %v1450 = vunpack.c.l.b16 %v1411
    %v1451 = vunpack.c.l.b16 %v1416
    %v1452 = vunpack.c.l.b16 %v1423
    %v1453 = vpack.c.b16 %v1430, %v1429
    %v1454 = vpack.c.b16 %v1432, %v1431
    %v1455 = vpack.c.b16 %v1434, %v1433
    %v1456 = vpack.c.b16 %v1436, %v1435
    %v1457 = vpack.c.b16 %v1438, %v1437
    %v1458 = vpack.c.b16 %v1440, %v1439
    %v1459 = vpack.c.b16 %v1442, %v1441
    %v1460 = vpack.c.b16 %v1444, %v1443
    %v1461 = vpack.c.b16 %v1446, %v1445
    %v1462 = vpack.c.b16 %v1448, %v1447
    %v1463 = vpack.c.b16 %v1450, %v1449
    %v1464 = vpack.c.b16 %v1452, %v1451
    %v1469 = vunpack.c.l.b16 %v1425
    %v1470 = vunpack.c.h.b16 %v1425
    %v1471 = vunpack.c.l.b16 %v1426
    %v1472 = vunpack.c.h.b16 %v1426
    %v1473 = vunpack.c.l.b16 %v1427
    %v1474 = vunpack.c.h.b16 %v1427
    %v1475 = vunpack.c.l.b16 %v1428
    %v1476 = vunpack.c.h.b16 %v1428
    %v1477 = vpack.c.b16 %v1471, %v1469
    %v1478 = vpack.c.b16 %v1472, %v1470
    %v1479 = vpack.c.b16 %v1475, %v1473
    %v1480 = vpack.c.b16 %v1476, %v1474
    %v1484 = vsel %vm398, %v1453, 0
    %v1487 = vsel %vm398, %v1454, 0
    %v1490 = vsel %vm398, %v1455, 0
    %v1493 = vsel %vm398, %v1456, 0
    %v1496 = vsel %vm398, %v1457, 0
    %v1499 = vsel %vm398, %v1458, 0
    %v1502 = vsel %vm398, %v1459, 0
    %v1505 = vsel %vm398, %v1460, 0
    %v1508 = vsel %vm398, %v1461, 0
    %v1511 = vsel %vm398, %v1462, 0
    %v1514 = vsel %vm398, %v1463, 0
    %v1517 = vsel %vm398, %v1464, 0
    %v1520 = vsel %vm435, %v1479, 0
    %v1523 = vsel %vm435, %v1480, 0
    %1525 = vmatprep.subr.bf16.mxu0 %v1478
    %1526 = vmatpush1.bf16.msra.mxu0 %v1477
    %1527 = vmatprep.subr.bf16.mxu0 %v1523
    %1528 = vmatpush1.bf16.msra.mxu0 %v1520
    %1529 = vmatprep.subr.bf16.mxu0 0
    %1530 = vmatpush1.bf16.msra.mxu0 0
    %1531 = vmatprep.subr.bf16.mxu0 0
    %1532 = vmatpush1.bf16.msra.mxu0 0
    %1533 = vmatprep.subr.bf16.mxu0 0
    %1534 = vmatpush1.bf16.msra.mxu0 0
    %1535 = vmatprep.subr.bf16.mxu0 0
    %1536 = vmatpush1.bf16.msra.mxu0 0
    %1537 = vmatprep.subr.bf16.mxu0 0
    %1538 = vmatpush1.bf16.msra.mxu0 0
    %1539 = vmatprep.subr.bf16.mxu0 0
    %1540 = vmatpush1.bf16.msra.mxu0 0
    %1541 = vmatprep.subr.bf16.mxu0 0
    %1542 = vmatpush1.bf16.msra.mxu0 0
    %1543 = vmatprep.subr.bf16.mxu0 0
    %1544 = vmatpush1.bf16.msra.mxu0 0
    %1545 = vmatprep.subr.bf16.mxu0 0
    %1546 = vmatpush1.bf16.msra.mxu0 0
    %1547 = vmatprep.subr.bf16.mxu0 0
    %1548 = vmatpush1.bf16.msra.mxu0 0
    %1549 = vmatprep.subr.bf16.mxu0 0
    %1550 = vmatpush1.bf16.msra.mxu0 0
    %1551 = vmatprep.subr.bf16.mxu0 0
    %1552 = vmatpush1.bf16.msra.mxu0 0
    %1553 = vmatprep.subr.bf16.mxu0 0
    %1554 = vmatpush1.bf16.msra.mxu0 0
    %1555 = vmatprep.subr.bf16.mxu0 0
    %1556 = vmatpush1.bf16.msra.mxu0 0
    %1557 = vmatprep.mubr.bf16.mxu0 0
    %1558 = vmatmul.mubr.bf16.gmra.mrb[0].mxu0 %v1484
    %v1559 = vpop.f32.mrb[0].mxu0
    %v1560 = vadd.f32 0.0, %v1559
    %v1561 = vpop.f32.mrb[0].mxu0
    %v1562 = vadd.f32 0.0, %v1561
    %v1563 = vpop.f32.mrb[0].mxu0
    %v1564 = vadd.f32 0.0, %v1563
    %v1565 = vpop.f32.mrb[0].mxu0
    %v1566 = vadd.f32 0.0, %v1565
    %1567 = vmatprep.mubr.bf16.mxu0 0
    %1568 = vmatmul.mubr.bf16.gmra.mrb[0].mxu0 %v1487
    %v1569 = vpop.f32.mrb[0].mxu0
    %v1570 = vadd.f32 0.0, %v1569
    %v1571 = vpop.f32.mrb[0].mxu0
    %v1572 = vadd.f32 0.0, %v1571
    %v1573 = vpop.f32.mrb[0].mxu0
    %v1574 = vadd.f32 0.0, %v1573
    %v1575 = vpop.f32.mrb[0].mxu0
    %v1576 = vadd.f32 0.0, %v1575
    %1577 = vmatprep.mubr.bf16.mxu0 0
    %1578 = vmatmul.mubr.bf16.gmra.mrb[0].mxu0 %v1490
    %v1579 = vpop.f32.mrb[0].mxu0
    %v1580 = vadd.f32 0.0, %v1579
    %v1581 = vpop.f32.mrb[0].mxu0
    %v1582 = vadd.f32 0.0, %v1581
    %v1583 = vpop.f32.mrb[0].mxu0
    %v1584 = vadd.f32 0.0, %v1583
    %v1585 = vpop.f32.mrb[0].mxu0
    %v1586 = vadd.f32 0.0, %v1585
    %1587 = vmatprep.mubr.bf16.mxu0 0
    %1588 = vmatmul.mubr.bf16.gmra.mrb[0].mxu0 %v1493
    %v1589 = vpop.f32.mrb[0].mxu0
    %v1590 = vadd.f32 0.0, %v1589
    %v1591 = vpop.f32.mrb[0].mxu0
    %v1592 = vadd.f32 0.0, %v1591
    %v1593 = vpop.f32.mrb[0].mxu0
    %v1594 = vadd.f32 0.0, %v1593
    %v1595 = vpop.f32.mrb[0].mxu0
    %v1596 = vadd.f32 0.0, %v1595
    %1597 = vmatprep.mubr.bf16.mxu0 0
    %1598 = vmatmul.mubr.bf16.gmra.mrb[0].mxu0 %v1496
    %v1599 = vpop.f32.mrb[0].mxu0
    %v1600 = vadd.f32 0.0, %v1599
    %v1601 = vpop.f32.mrb[0].mxu0
    %v1602 = vadd.f32 0.0, %v1601
    %v1603 = vpop.f32.mrb[0].mxu0
    %v1604 = vadd.f32 0.0, %v1603
    %v1605 = vpop.f32.mrb[0].mxu0
    %v1606 = vadd.f32 0.0, %v1605
    %1607 = vmatprep.mubr.bf16.mxu0 0
    %1608 = vmatmul.mubr.bf16.gmra.mrb[0].mxu0 %v1499
    %v1609 = vpop.f32.mrb[0].mxu0
    %v1610 = vadd.f32 0.0, %v1609
    %v1611 = vpop.f32.mrb[0].mxu0
    %v1612 = vadd.f32 0.0, %v1611
    %v1613 = vpop.f32.mrb[0].mxu0
    %v1614 = vadd.f32 0.0, %v1613
    %v1615 = vpop.f32.mrb[0].mxu0
    %v1616 = vadd.f32 0.0, %v1615
    %1617 = vmatprep.mubr.bf16.mxu0 0
    %1618 = vmatmul.mubr.bf16.gmra.mrb[0].mxu0 %v1502
    %v1619 = vpop.f32.mrb[0].mxu0
    %v1620 = vadd.f32 0.0, %v1619
    %v1621 = vpop.f32.mrb[0].mxu0
    %v1622 = vadd.f32 0.0, %v1621
    %v1623 = vpop.f32.mrb[0].mxu0
    %v1624 = vadd.f32 0.0, %v1623
    %v1625 = vpop.f32.mrb[0].mxu0
    %v1626 = vadd.f32 0.0, %v1625
    %1627 = vmatprep.mubr.bf16.mxu0 0
    %1628 = vmatmul.mubr.bf16.gmra.mrb[0].mxu0 %v1505
    %v1629 = vpop.f32.mrb[0].mxu0
    %v1630 = vadd.f32 0.0, %v1629
    %v1631 = vpop.f32.mrb[0].mxu0
    %v1632 = vadd.f32 0.0, %v1631
    %v1633 = vpop.f32.mrb[0].mxu0
    %v1634 = vadd.f32 0.0, %v1633
    %v1635 = vpop.f32.mrb[0].mxu0
    %v1636 = vadd.f32 0.0, %v1635
    %1637 = vmatprep.mubr.bf16.mxu0 0
    %1638 = vmatmul.mubr.bf16.gmra.mrb[0].mxu0 %v1508
    %v1639 = vpop.f32.mrb[0].mxu0
    %v1640 = vadd.f32 0.0, %v1639
    %v1641 = vpop.f32.mrb[0].mxu0
    %v1642 = vadd.f32 0.0, %v1641
    %v1643 = vpop.f32.mrb[0].mxu0
    %v1644 = vadd.f32 0.0, %v1643
    %v1645 = vpop.f32.mrb[0].mxu0
    %v1646 = vadd.f32 0.0, %v1645
    %1647 = vmatprep.mubr.bf16.mxu0 0
    %1648 = vmatmul.mubr.bf16.gmra.mrb[0].mxu0 %v1511
    %v1649 = vpop.f32.mrb[0].mxu0
    %v1650 = vadd.f32 0.0, %v1649
    %v1651 = vpop.f32.mrb[0].mxu0
    %v1652 = vadd.f32 0.0, %v1651
    %v1653 = vpop.f32.mrb[0].mxu0
    %v1654 = vadd.f32 0.0, %v1653
    %v1655 = vpop.f32.mrb[0].mxu0
    %v1656 = vadd.f32 0.0, %v1655
    %1657 = vmatprep.mubr.bf16.mxu0 0
    %1658 = vmatmul.mubr.bf16.gmra.mrb[0].mxu0 %v1514
    %v1659 = vpop.f32.mrb[0].mxu0
    %v1660 = vadd.f32 0.0, %v1659
    %v1661 = vpop.f32.mrb[0].mxu0
    %v1662 = vadd.f32 0.0, %v1661
    %v1663 = vpop.f32.mrb[0].mxu0
    %v1664 = vadd.f32 0.0, %v1663
    %v1665 = vpop.f32.mrb[0].mxu0
    %v1666 = vadd.f32 0.0, %v1665
    %1667 = vmatprep.mubr.bf16.mxu0 0
    %1668 = vmatmul.mubr.bf16.gmra.mrb[0].mxu0 %v1517
    %v1669 = vpop.f32.mrb[0].mxu0
    %v1670 = vadd.f32 0.0, %v1669
    %v1671 = vpop.f32.mrb[0].mxu0
    %v1672 = vadd.f32 0.0, %v1671
    %v1673 = vpop.f32.mrb[0].mxu0
    %v1674 = vadd.f32 0.0, %v1673
    %v1675 = vpop.f32.mrb[0].mxu0
    %v1676 = vadd.f32 0.0, %v1675
    %1677 = vdwg.mxu0
    %v1678 = vadd.f32 %v1213, %v1560
    %v1679 = vadd.f32 %v1214, %v1562
    %v1680 = vadd.f32 %v1215, %v1564
    %v1681 = vadd.f32 %v1216, %v1566
    %v1682 = vadd.f32 %v1217, %v1570
    %v1683 = vadd.f32 %v1218, %v1572
    %v1684 = vadd.f32 %v1219, %v1574
    %v1685 = vadd.f32 %v1220, %v1576
    %v1686 = vadd.f32 %v1221, %v1580
    %v1687 = vadd.f32 %v1222, %v1582
    %v1688 = vadd.f32 %v1223, %v1584
    %v1689 = vadd.f32 %v1224, %v1586
    %v1690 = vadd.f32 %v1225, %v1590
    %v1691 = vadd.f32 %v1226, %v1592
    %v1692 = vadd.f32 %v1227, %v1594
    %v1693 = vadd.f32 %v1228, %v1596
    %v1694 = vadd.f32 %v1229, %v1600
    %v1695 = vadd.f32 %v1230, %v1602
    %v1696 = vadd.f32 %v1231, %v1604
    %v1697 = vadd.f32 %v1232, %v1606
    %v1698 = vadd.f32 %v1233, %v1610
    %v1699 = vadd.f32 %v1234, %v1612
    %v1700 = vadd.f32 %v1235, %v1614
    %v1701 = vadd.f32 %v1236, %v1616
    %v1702 = vadd.f32 %v1237, %v1620
    %v1703 = vadd.f32 %v1238, %v1622
    %v1704 = vadd.f32 %v1239, %v1624
    %v1705 = vadd.f32 %v1240, %v1626
    %v1706 = vadd.f32 %v1241, %v1630
    %v1707 = vadd.f32 %v1242, %v1632
    %v1708 = vadd.f32 %v1243, %v1634
    %v1709 = vadd.f32 %v1244, %v1636
    %v1710 = vadd.f32 %v1245, %v1640
    %v1711 = vadd.f32 %v1246, %v1642
    %v1712 = vadd.f32 %v1247, %v1644
    %v1713 = vadd.f32 %v1248, %v1646
    %v1714 = vadd.f32 %v1249, %v1650
    %v1715 = vadd.f32 %v1250, %v1652
    %v1716 = vadd.f32 %v1251, %v1654
    %v1717 = vadd.f32 %v1252, %v1656
    %v1718 = vadd.f32 %v1253, %v1660
    %v1719 = vadd.f32 %v1254, %v1662
    %v1720 = vadd.f32 %v1255, %v1664
    %v1721 = vadd.f32 %v1256, %v1666
    %v1722 = vadd.f32 %v1257, %v1670
    %v1723 = vadd.f32 %v1258, %v1672
    %v1724 = vadd.f32 %v1259, %v1674
    %v1725 = vadd.f32 %v1260, %v1676
    %vm1726 = vcmask 1041408
    %vm1727 = vcmask 1045508
    %vm1728 = vmor %vm1726, %vm1727
    %v1729 = vrot.slane %v28, 6
    %v1730 = vrot.slane %v1729, 4
    %v1731 = vrot.slane %v29, 6
    %v1732 = vsel %vm1728, %v1730, %v1731
    %v1733 = vrot.slane %v1731, 4
    %v1734 = vrot.slane %v30, 6
    %v1735 = vsel %vm1728, %v1733, %v1734
    %v1736 = vrot.slane %v1734, 4
    %v1737 = vrot.slane %v31, 6
    %v1738 = vsel %vm1728, %v1736, %v1737
    %v1739 = vrot.slane %v32, 6
    %v1740 = vrot.slane %v1739, 4
    %v1741 = vrot.slane %v33, 6
    %v1742 = vsel %vm1728, %v1740, %v1741
    %v1743 = vrot.slane %v1741, 4
    %v1744 = vrot.slane %v34, 6
    %v1745 = vsel %vm1728, %v1743, %v1744
    %v1746 = vrot.slane %v1744, 4
    %v1747 = vrot.slane %v35, 6
    %v1748 = vsel %vm1728, %v1746, %v1747
    %v1749 = vrot.slane %v36, 6
    %v1750 = vrot.slane %v1749, 4
    %v1751 = vrot.slane %v37, 6
    %v1752 = vsel %vm1728, %v1750, %v1751
    %v1753 = vrot.slane %v1751, 4
    %v1754 = vrot.slane %v38, 6
    %v1755 = vsel %vm1728, %v1753, %v1754
    %v1756 = vrot.slane %v1754, 4
    %v1757 = vrot.slane %v39, 6
    %v1758 = vsel %vm1728, %v1756, %v1757
    %v1759 = vrot.slane %v40, 6
    %v1760 = vrot.slane %v1759, 4
    %v1761 = vrot.slane %v41, 6
    %v1762 = vsel %vm1728, %v1760, %v1761
    %v1763 = vrot.slane %v1761, 4
    %v1764 = vrot.slane %v42, 6
    %v1765 = vsel %vm1728, %v1763, %v1764
    %v1766 = vrot.slane %v1764, 4
    %v1767 = vrot.slane %v43, 6
    %v1768 = vsel %vm1728, %v1766, %v1767
    %v1769 = vrot.slane %v44, 6
    %v1770 = vrot.slane %v1769, 4
    %v1771 = vrot.slane %v45, 6
    %v1772 = vsel %vm1728, %v1770, %v1771
    %v1773 = vrot.slane %v1771, 4
    %v1774 = vrot.slane %v46, 6
    %v1775 = vsel %vm1728, %v1773, %v1774
    %v1776 = vrot.slane %v1774, 4
    %v1777 = vrot.slane %v47, 6
    %v1778 = vsel %vm1728, %v1776, %v1777
    %v1779 = vrot.slane %v48, 6
    %v1780 = vrot.slane %v1779, 4
    %v1781 = vrot.slane %v49, 6
    %v1782 = vsel %vm1728, %v1780, %v1781
    %v1783 = vrot.slane %v1781, 4
    %v1784 = vrot.slane %v50, 6
    %v1785 = vsel %vm1728, %v1783, %v1784
    %v1786 = vrot.slane %v1784, 4
    %v1787 = vrot.slane %v51, 6
    %v1788 = vsel %vm1728, %v1786, %v1787
    %v1789 = vrot.slane %v52, 6
    %v1790 = vrot.slane %v1789, 4
    %v1791 = vrot.slane %v53, 6
    %v1792 = vsel %vm1728, %v1790, %v1791
    %v1793 = vrot.slane %v1791, 4
    %v1794 = vrot.slane %v54, 6
    %v1795 = vsel %vm1728, %v1793, %v1794
    %v1796 = vrot.slane %v1794, 4
    %v1797 = vrot.slane %v55, 6
    %v1798 = vsel %vm1728, %v1796, %v1797
    %v1799 = vrot.slane %v56, 6
    %v1800 = vrot.slane %v1799, 4
    %v1801 = vrot.slane %v57, 6
    %v1802 = vsel %vm1728, %v1800, %v1801
    %v1803 = vrot.slane %v1801, 4
    %v1804 = vrot.slane %v58, 6
    %v1805 = vsel %vm1728, %v1803, %v1804
    %v1806 = vrot.slane %v1804, 4
    %v1807 = vrot.slane %v59, 6
    %v1808 = vsel %vm1728, %v1806, %v1807
    %s1809 = scalar_lea.vmem %s1, 128
    %v1810 = vld [vmem:[%s1809] sm:$0xff]
    %v1811 = vld [vmem:[%s1809 + $0x8] sm:$0xff]
    %v1812 = vld [vmem:[%s1809 + $0x10] sm:$0xff]
    %v1813 = vld [vmem:[%s1809 + $0x18] sm:$0x33]
    %v1814 = vunpack.c.l.b16 %v1732
    %v1815 = vunpack.c.l.b16 %v1735
    %v1816 = vunpack.c.l.b16 %v1738
    %v1817 = vunpack.c.l.b16 %v1742
    %v1818 = vunpack.c.l.b16 %v1745
    %v1819 = vunpack.c.l.b16 %v1748
    %v1820 = vunpack.c.l.b16 %v1752
    %v1821 = vunpack.c.l.b16 %v1755
    %v1822 = vunpack.c.l.b16 %v1758
    %v1823 = vunpack.c.l.b16 %v1762
    %v1824 = vunpack.c.l.b16 %v1765
    %v1825 = vunpack.c.l.b16 %v1768
    %v1826 = vunpack.c.l.b16 %v1772
    %v1827 = vunpack.c.l.b16 %v1775
    %v1828 = vunpack.c.l.b16 %v1778
    %v1829 = vunpack.c.l.b16 %v1782
    %v1830 = vunpack.c.l.b16 %v1785
    %v1831 = vunpack.c.l.b16 %v1788
    %v1832 = vunpack.c.l.b16 %v1792
    %v1833 = vunpack.c.l.b16 %v1795
    %v1834 = vunpack.c.l.b16 %v1798
    %v1835 = vunpack.c.l.b16 %v1802
    %v1836 = vunpack.c.l.b16 %v1805
    %v1837 = vunpack.c.l.b16 %v1808
    %v1838 = vpack.c.b16 %v1815, %v1814
    %v1839 = vpack.c.b16 %v1817, %v1816
    %v1840 = vpack.c.b16 %v1819, %v1818
    %v1841 = vpack.c.b16 %v1821, %v1820
    %v1842 = vpack.c.b16 %v1823, %v1822
    %v1843 = vpack.c.b16 %v1825, %v1824
    %v1844 = vpack.c.b16 %v1827, %v1826
    %v1845 = vpack.c.b16 %v1829, %v1828
    %v1846 = vpack.c.b16 %v1831, %v1830
    %v1847 = vpack.c.b16 %v1833, %v1832
    %v1848 = vpack.c.b16 %v1835, %v1834
    %v1849 = vpack.c.b16 %v1837, %v1836
    %v1854 = vunpack.c.l.b16 %v1810
    %v1855 = vunpack.c.h.b16 %v1810
    %v1856 = vunpack.c.l.b16 %v1811
    %v1857 = vunpack.c.h.b16 %v1811
    %v1858 = vunpack.c.l.b16 %v1812
    %v1859 = vunpack.c.h.b16 %v1812
    %v1860 = vunpack.c.l.b16 %v1813
    %v1861 = vunpack.c.h.b16 %v1813
    %v1862 = vpack.c.b16 %v1856, %v1854
    %v1863 = vpack.c.b16 %v1857, %v1855
    %v1864 = vpack.c.b16 %v1860, %v1858
    %v1865 = vpack.c.b16 %v1861, %v1859
    %v1869 = vsel %vm398, %v1838, 0
    %v1872 = vsel %vm398, %v1839, 0
    %v1875 = vsel %vm398, %v1840, 0
    %v1878 = vsel %vm398, %v1841, 0
    %v1881 = vsel %vm398, %v1842, 0
    %v1884 = vsel %vm398, %v1843, 0
    %v1887 = vsel %vm398, %v1844, 0
    %v1890 = vsel %vm398, %v1845, 0
    %v1893 = vsel %vm398, %v1846, 0
    %v1896 = vsel %vm398, %v1847, 0
    %v1899 = vsel %vm398, %v1848, 0
    %v1902 = vsel %vm398, %v1849, 0
    %v1905 = vsel %vm435, %v1864, 0
    %v1908 = vsel %vm435, %v1865, 0
    %1910 = vmatprep.subr.bf16.mxu0 %v1863
    %1911 = vmatpush1.bf16.msra.mxu0 %v1862
    %1912 = vmatprep.subr.bf16.mxu0 %v1908
    %1913 = vmatpush1.bf16.msra.mxu0 %v1905
    %1914 = vmatprep.subr.bf16.mxu0 0
    %1915 = vmatpush1.bf16.msra.mxu0 0
    %1916 = vmatprep.subr.bf16.mxu0 0
    %1917 = vmatpush1.bf16.msra.mxu0 0
    %1918 = vmatprep.subr.bf16.mxu0 0
    %1919 = vmatpush1.bf16.msra.mxu0 0
    %1920 = vmatprep.subr.bf16.mxu0 0
    %1921 = vmatpush1.bf16.msra.mxu0 0
    %1922 = vmatprep.subr.bf16.mxu0 0
    %1923 = vmatpush1.bf16.msra.mxu0 0
    %1924 = vmatprep.subr.bf16.mxu0 0
    %1925 = vmatpush1.bf16.msra.mxu0 0
    %1926 = vmatprep.subr.bf16.mxu0 0
    %1927 = vmatpush1.bf16.msra.mxu0 0
    %1928 = vmatprep.subr.bf16.mxu0 0
    %1929 = vmatpush1.bf16.msra.mxu0 0
    %1930 = vmatprep.subr.bf16.mxu0 0
    %1931 = vmatpush1.bf16.msra.mxu0 0
    %1932 = vmatprep.subr.bf16.mxu0 0
    %1933 = vmatpush1.bf16.msra.mxu0 0
    %1934 = vmatprep.subr.bf16.mxu0 0
    %1935 = vmatpush1.bf16.msra.mxu0 0
    %1936 = vmatprep.subr.bf16.mxu0 0
    %1937 = vmatpush1.bf16.msra.mxu0 0
    %1938 = vmatprep.subr.bf16.mxu0 0
    %1939 = vmatpush1.bf16.msra.mxu0 0
    %1940 = vmatprep.subr.bf16.mxu0 0
    %1941 = vmatpush1.bf16.msra.mxu0 0
    %1942 = vmatprep.mubr.bf16.mxu0 0
    %1943 = vmatmul.mubr.bf16.gmra.mrb[0].mxu0 %v1869
    %v1944 = vpop.f32.mrb[0].mxu0
    %v1945 = vadd.f32 0.0, %v1944
    %v1946 = vpop.f32.mrb[0].mxu0
    %v1947 = vadd.f32 0.0, %v1946
    %v1948 = vpop.f32.mrb[0].mxu0
    %v1949 = vadd.f32 0.0, %v1948
    %v1950 = vpop.f32.mrb[0].mxu0
    %v1951 = vadd.f32 0.0, %v1950
    %1952 = vmatprep.mubr.bf16.mxu0 0
    %1953 = vmatmul.mubr.bf16.gmra.mrb[0].mxu0 %v1872
    %v1954 = vpop.f32.mrb[0].mxu0
    %v1955 = vadd.f32 0.0, %v1954
    %v1956 = vpop.f32.mrb[0].mxu0
    %v1957 = vadd.f32 0.0, %v1956
    %v1958 = vpop.f32.mrb[0].mxu0
    %v1959 = vadd.f32 0.0, %v1958
    %v1960 = vpop.f32.mrb[0].mxu0
    %v1961 = vadd.f32 0.0, %v1960
    %1962 = vmatprep.mubr.bf16.mxu0 0
    %1963 = vmatmul.mubr.bf16.gmra.mrb[0].mxu0 %v1875
    %v1964 = vpop.f32.mrb[0].mxu0
    %v1965 = vadd.f32 0.0, %v1964
    %v1966 = vpop.f32.mrb[0].mxu0
    %v1967 = vadd.f32 0.0, %v1966
    %v1968 = vpop.f32.mrb[0].mxu0
    %v1969 = vadd.f32 0.0, %v1968
    %v1970 = vpop.f32.mrb[0].mxu0
    %v1971 = vadd.f32 0.0, %v1970
    %1972 = vmatprep.mubr.bf16.mxu0 0
    %1973 = vmatmul.mubr.bf16.gmra.mrb[0].mxu0 %v1878
    %v1974 = vpop.f32.mrb[0].mxu0
    %v1975 = vadd.f32 0.0, %v1974
    %v1976 = vpop.f32.mrb[0].mxu0
    %v1977 = vadd.f32 0.0, %v1976
    %v1978 = vpop.f32.mrb[0].mxu0
    %v1979 = vadd.f32 0.0, %v1978
    %v1980 = vpop.f32.mrb[0].mxu0
    %v1981 = vadd.f32 0.0, %v1980
    %1982 = vmatprep.mubr.bf16.mxu0 0
    %1983 = vmatmul.mubr.bf16.gmra.mrb[0].mxu0 %v1881
    %v1984 = vpop.f32.mrb[0].mxu0
    %v1985 = vadd.f32 0.0, %v1984
    %v1986 = vpop.f32.mrb[0].mxu0
    %v1987 = vadd.f32 0.0, %v1986
    %v1988 = vpop.f32.mrb[0].mxu0
    %v1989 = vadd.f32 0.0, %v1988
    %v1990 = vpop.f32.mrb[0].mxu0
    %v1991 = vadd.f32 0.0, %v1990
    %1992 = vmatprep.mubr.bf16.mxu0 0
    %1993 = vmatmul.mubr.bf16.gmra.mrb[0].mxu0 %v1884
    %v1994 = vpop.f32.mrb[0].mxu0
    %v1995 = vadd.f32 0.0, %v1994
    %v1996 = vpop.f32.mrb[0].mxu0
    %v1997 = vadd.f32 0.0, %v1996
    %v1998 = vpop.f32.mrb[0].mxu0
    %v1999 = vadd.f32 0.0, %v1998
    %v2000 = vpop.f32.mrb[0].mxu0
    %v2001 = vadd.f32 0.0, %v2000
    %2002 = vmatprep.mubr.bf16.mxu0 0
    %2003 = vmatmul.mubr.bf16.gmra.mrb[0].mxu0 %v1887
    %v2004 = vpop.f32.mrb[0].mxu0
    %v2005 = vadd.f32 0.0, %v2004
    %v2006 = vpop.f32.mrb[0].mxu0
    %v2007 = vadd.f32 0.0, %v2006
    %v2008 = vpop.f32.mrb[0].mxu0
    %v2009 = vadd.f32 0.0, %v2008
    %v2010 = vpop.f32.mrb[0].mxu0
    %v2011 = vadd.f32 0.0, %v2010
    %2012 = vmatprep.mubr.bf16.mxu0 0
    %2013 = vmatmul.mubr.bf16.gmra.mrb[0].mxu0 %v1890
    %v2014 = vpop.f32.mrb[0].mxu0
    %v2015 = vadd.f32 0.0, %v2014
    %v2016 = vpop.f32.mrb[0].mxu0
    %v2017 = vadd.f32 0.0, %v2016
    %v2018 = vpop.f32.mrb[0].mxu0
    %v2019 = vadd.f32 0.0, %v2018
    %v2020 = vpop.f32.mrb[0].mxu0
    %v2021 = vadd.f32 0.0, %v2020
    %2022 = vmatprep.mubr.bf16.mxu0 0
    %2023 = vmatmul.mubr.bf16.gmra.mrb[0].mxu0 %v1893
    %v2024 = vpop.f32.mrb[0].mxu0
    %v2025 = vadd.f32 0.0, %v2024
    %v2026 = vpop.f32.mrb[0].mxu0
    %v2027 = vadd.f32 0.0, %v2026
    %v2028 = vpop.f32.mrb[0].mxu0
    %v2029 = vadd.f32 0.0, %v2028
    %v2030 = vpop.f32.mrb[0].mxu0
    %v2031 = vadd.f32 0.0, %v2030
    %2032 = vmatprep.mubr.bf16.mxu0 0
    %2033 = vmatmul.mubr.bf16.gmra.mrb[0].mxu0 %v1896
    %v2034 = vpop.f32.mrb[0].mxu0
    %v2035 = vadd.f32 0.0, %v2034
    %v2036 = vpop.f32.mrb[0].mxu0
    %v2037 = vadd.f32 0.0, %v2036
    %v2038 = vpop.f32.mrb[0].mxu0
    %v2039 = vadd.f32 0.0, %v2038
    %v2040 = vpop.f32.mrb[0].mxu0
    %v2041 = vadd.f32 0.0, %v2040
    %2042 = vmatprep.mubr.bf16.mxu0 0
    %2043 = vmatmul.mubr.bf16.gmra.mrb[0].mxu0 %v1899
    %v2044 = vpop.f32.mrb[0].mxu0
    %v2045 = vadd.f32 0.0, %v2044
    %v2046 = vpop.f32.mrb[0].mxu0
    %v2047 = vadd.f32 0.0, %v2046
    %v2048 = vpop.f32.mrb[0].mxu0
    %v2049 = vadd.f32 0.0, %v2048
    %v2050 = vpop.f32.mrb[0].mxu0
    %v2051 = vadd.f32 0.0, %v2050
    %2052 = vmatprep.mubr.bf16.mxu0 0
    %2053 = vmatmul.mubr.bf16.gmra.mrb[0].mxu0 %v1902
    %v2054 = vpop.f32.mrb[0].mxu0
    %v2055 = vadd.f32 0.0, %v2054
    %v2056 = vpop.f32.mrb[0].mxu0
    %v2057 = vadd.f32 0.0, %v2056
    %v2058 = vpop.f32.mrb[0].mxu0
    %v2059 = vadd.f32 0.0, %v2058
    %v2060 = vpop.f32.mrb[0].mxu0
    %v2061 = vadd.f32 0.0, %v2060
    %2062 = vdwg.mxu0
    %v2063 = vadd.f32 %v1678, %v1945
    %v2064 = vadd.f32 %v1679, %v1947
    %v2065 = vadd.f32 %v1680, %v1949
    %v2066 = vadd.f32 %v1681, %v1951
    %v2067 = vadd.f32 %v1682, %v1955
    %v2068 = vadd.f32 %v1683, %v1957
    %v2069 = vadd.f32 %v1684, %v1959
    %v2070 = vadd.f32 %v1685, %v1961
    %v2071 = vadd.f32 %v1686, %v1965
    %v2072 = vadd.f32 %v1687, %v1967
    %v2073 = vadd.f32 %v1688, %v1969
    %v2074 = vadd.f32 %v1689, %v1971
    %v2075 = vadd.f32 %v1690, %v1975
    %v2076 = vadd.f32 %v1691, %v1977
    %v2077 = vadd.f32 %v1692, %v1979
    %v2078 = vadd.f32 %v1693, %v1981
    %v2079 = vadd.f32 %v1694, %v1985
    %v2080 = vadd.f32 %v1695, %v1987
    %v2081 = vadd.f32 %v1696, %v1989
    %v2082 = vadd.f32 %v1697, %v1991
    %v2083 = vadd.f32 %v1698, %v1995
    %v2084 = vadd.f32 %v1699, %v1997
    %v2085 = vadd.f32 %v1700, %v1999
    %v2086 = vadd.f32 %v1701, %v2001
    %v2087 = vadd.f32 %v1702, %v2005
    %v2088 = vadd.f32 %v1703, %v2007
    %v2089 = vadd.f32 %v1704, %v2009
    %v2090 = vadd.f32 %v1705, %v2011
    %v2091 = vadd.f32 %v1706, %v2015
    %v2092 = vadd.f32 %v1707, %v2017
    %v2093 = vadd.f32 %v1708, %v2019
    %v2094 = vadd.f32 %v1709, %v2021
    %v2095 = vadd.f32 %v1710, %v2025
    %v2096 = vadd.f32 %v1711, %v2027
    %v2097 = vadd.f32 %v1712, %v2029
    %v2098 = vadd.f32 %v1713, %v2031
    %v2099 = vadd.f32 %v1714, %v2035
    %v2100 = vadd.f32 %v1715, %v2037
    %v2101 = vadd.f32 %v1716, %v2039
    %v2102 = vadd.f32 %v1717, %v2041
    %v2103 = vadd.f32 %v1718, %v2045
    %v2104 = vadd.f32 %v1719, %v2047
    %v2105 = vadd.f32 %v1720, %v2049
    %v2106 = vadd.f32 %v1721, %v2051
    %v2107 = vadd.f32 %v1722, %v2055
    %v2108 = vadd.f32 %v1723, %v2057
    %v2109 = vadd.f32 %v1724, %v2059
    %v2110 = vadd.f32 %v1725, %v2061
    %v2111 = vld [vmem:[%s2] sm:$0x3]
    %v2113 = vlaneseq
    %v2114 = vshrl.u32 %v2113, 7
    %v2115 = vsub.s32 0, %v2114
    %v2116 = vrot.slane %v2111, %v2115
    %v2117 = vlaneseq
    %v2118 = vshrl.u32 %v2117, 7
    %v2119 = vsub.s32 1, %v2118
    %v2120 = vrot.slane %v2111, %v2119
    %v2123 = vadd.f32 %v2063, %v2116
    %v2124 = vadd.f32 %v2064, %v2120
    %v2125 = vadd.f32 %v2065, %v2116
    %v2126 = vadd.f32 %v2066, %v2120
    %v2127 = vadd.f32 %v2067, %v2116
    %v2128 = vadd.f32 %v2068, %v2120
    %v2129 = vadd.f32 %v2069, %v2116
    %v2130 = vadd.f32 %v2070, %v2120
    %v2131 = vadd.f32 %v2071, %v2116
    %v2132 = vadd.f32 %v2072, %v2120
    %v2133 = vadd.f32 %v2073, %v2116
    %v2134 = vadd.f32 %v2074, %v2120
    %v2135 = vadd.f32 %v2075, %v2116
    %v2136 = vadd.f32 %v2076, %v2120
    %v2137 = vadd.f32 %v2077, %v2116
    %v2138 = vadd.f32 %v2078, %v2120
    %v2139 = vadd.f32 %v2079, %v2116
    %v2140 = vadd.f32 %v2080, %v2120
    %v2141 = vadd.f32 %v2081, %v2116
    %v2142 = vadd.f32 %v2082, %v2120
    %v2143 = vadd.f32 %v2083, %v2116
    %v2144 = vadd.f32 %v2084, %v2120
    %v2145 = vadd.f32 %v2085, %v2116
    %v2146 = vadd.f32 %v2086, %v2120
    %v2147 = vadd.f32 %v2087, %v2116
    %v2148 = vadd.f32 %v2088, %v2120
    %v2149 = vadd.f32 %v2089, %v2116
    %v2150 = vadd.f32 %v2090, %v2120
    %v2151 = vadd.f32 %v2091, %v2116
    %v2152 = vadd.f32 %v2092, %v2120
    %v2153 = vadd.f32 %v2093, %v2116
    %v2154 = vadd.f32 %v2094, %v2120
    %v2155 = vadd.f32 %v2095, %v2116
    %v2156 = vadd.f32 %v2096, %v2120
    %v2157 = vadd.f32 %v2097, %v2116
    %v2158 = vadd.f32 %v2098, %v2120
    %v2159 = vadd.f32 %v2099, %v2116
    %v2160 = vadd.f32 %v2100, %v2120
    %v2161 = vadd.f32 %v2101, %v2116
    %v2162 = vadd.f32 %v2102, %v2120
    %v2163 = vadd.f32 %v2103, %v2116
    %v2164 = vadd.f32 %v2104, %v2120
    %v2165 = vadd.f32 %v2105, %v2116
    %v2166 = vadd.f32 %v2106, %v2120
    %v2167 = vadd.f32 %v2107, %v2116
    %v2168 = vadd.f32 %v2108, %v2120
    %v2169 = vadd.f32 %v2109, %v2116
    %v2170 = vadd.f32 %v2110, %v2120
    %v2171 = vmax.f32 %v2123, 0.0
    %v2172 = vmax.f32 %v2124, 0.0
    %v2173 = vmax.f32 %v2125, 0.0
    %v2174 = vmax.f32 %v2126, 0.0
    %v2175 = vmax.f32 %v2127, 0.0
    %v2176 = vmax.f32 %v2128, 0.0
    %v2177 = vmax.f32 %v2129, 0.0
    %v2178 = vmax.f32 %v2130, 0.0
    %v2179 = vmax.f32 %v2131, 0.0
    %v2180 = vmax.f32 %v2132, 0.0
    %v2181 = vmax.f32 %v2133, 0.0
    %v2182 = vmax.f32 %v2134, 0.0
    %v2183 = vmax.f32 %v2135, 0.0
    %v2184 = vmax.f32 %v2136, 0.0
    %v2185 = vmax.f32 %v2137, 0.0
    %v2186 = vmax.f32 %v2138, 0.0
    %v2187 = vmax.f32 %v2139, 0.0
    %v2188 = vmax.f32 %v2140, 0.0
    %v2189 = vmax.f32 %v2141, 0.0
    %v2190 = vmax.f32 %v2142, 0.0
    %v2191 = vmax.f32 %v2143, 0.0
    %v2192 = vmax.f32 %v2144, 0.0
    %v2193 = vmax.f32 %v2145, 0.0
    %v2194 = vmax.f32 %v2146, 0.0
    %v2195 = vmax.f32 %v2147, 0.0
    %v2196 = vmax.f32 %v2148, 0.0
    %v2197 = vmax.f32 %v2149, 0.0
    %v2198 = vmax.f32 %v2150, 0.0
    %v2199 = vmax.f32 %v2151, 0.0
    %v2200 = vmax.f32 %v2152, 0.0
    %v2201 = vmax.f32 %v2153, 0.0
    %v2202 = vmax.f32 %v2154, 0.0
    %v2203 = vmax.f32 %v2155, 0.0
    %v2204 = vmax.f32 %v2156, 0.0
    %v2205 = vmax.f32 %v2157, 0.0
    %v2206 = vmax.f32 %v2158, 0.0
    %v2207 = vmax.f32 %v2159, 0.0
    %v2208 = vmax.f32 %v2160, 0.0
    %v2209 = vmax.f32 %v2161, 0.0
    %v2210 = vmax.f32 %v2162, 0.0
    %v2211 = vmax.f32 %v2163, 0.0
    %v2212 = vmax.f32 %v2164, 0.0
    %v2213 = vmax.f32 %v2165, 0.0
    %v2214 = vmax.f32 %v2166, 0.0
    %v2215 = vmax.f32 %v2167, 0.0
    %v2216 = vmax.f32 %v2168, 0.0
    %v2217 = vmax.f32 %v2169, 0.0
    %v2218 = vmax.f32 %v2170, 0.0
    %v2219 = vpack.c.bf16 %v2173, %v2171
    %v2220 = vpack.c.bf16 %v2174, %v2172
    %v2221 = vpack.c.bf16 %v2177, %v2175
    %v2222 = vpack.c.bf16 %v2178, %v2176
    %v2223 = vpack.c.bf16 %v2181, %v2179
    %v2224 = vpack.c.bf16 %v2182, %v2180
    %v2225 = vpack.c.bf16 %v2185, %v2183
    %v2226 = vpack.c.bf16 %v2186, %v2184
    %v2227 = vpack.c.bf16 %v2189, %v2187
    %v2228 = vpack.c.bf16 %v2190, %v2188
    %v2229 = vpack.c.bf16 %v2193, %v2191
    %v2230 = vpack.c.bf16 %v2194, %v2192
    %v2231 = vpack.c.bf16 %v2197, %v2195
    %v2232 = vpack.c.bf16 %v2198, %v2196
    %v2233 = vpack.c.bf16 %v2201, %v2199
    %v2234 = vpack.c.bf16 %v2202, %v2200
    %v2235 = vpack.c.bf16 %v2205, %v2203
    %v2236 = vpack.c.bf16 %v2206, %v2204
    %v2237 = vpack.c.bf16 %v2209, %v2207
    %v2238 = vpack.c.bf16 %v2210, %v2208
    %v2239 = vpack.c.bf16 %v2213, %v2211
    %v2240 = vpack.c.bf16 %v2214, %v2212
    %v2241 = vpack.c.bf16 %v2217, %v2215
    %v2242 = vpack.c.bf16 %v2218, %v2216
    %v2267 = vcombine.low %v2219, %v2220
    %v2268 = vcombine.high %v2219, %v2220
    %v2270 = vunpack.c.l.s4 1966171168
    %v2271 = vunpack.c.0.s8 %v2270
    %v2272 = vlaneseq
    %v2273 = vshrl.u32 %v2272, 7
    %v2274 = vsub.s32 %v2271, %v2273
    %v2275 = vrot.slane %v2267, %v2274
    %v2277 = vunpack.c.l.s4 1966171168
    %v2278 = vunpack.c.0.s8 %v2277
    %v2279 = vlaneseq
    %v2280 = vshrl.u32 %v2279, 7
    %v2281 = vsub.s32 %v2278, %v2280
    %v2282 = vrot.slane %v2268, %v2281
    %v2283 = vcombine.high %v2275, %v2275
    %v2284 = vcombine.high %v2282, %v2282
    %v2286 = vunpack.c.l.s4 1966171168
    %v2287 = vunpack.c.0.s8 %v2286
    %v2288 = vlaneseq
    %v2289 = vshrl.u32 %v2288, 7
    %v2290 = vsub.s32 %v2287, %v2289
    %v2291 = vrot.slane %v2275, %v2290
    %v2293 = vunpack.c.l.s4 1966171168
    %v2294 = vunpack.c.0.s8 %v2293
    %v2295 = vlaneseq
    %v2296 = vshrl.u32 %v2295, 7
    %v2297 = vsub.s32 %v2294, %v2296
    %v2298 = vrot.slane %v2282, %v2297
    %v2300 = vunpack.c.l.s4 1966171168
    %v2301 = vunpack.c.0.s8 %v2300
    %v2302 = vlaneseq
    %v2303 = vshrl.u32 %v2302, 7
    %v2304 = vsub.s32 %v2301, %v2303
    %v2305 = vrot.slane %v2283, %v2304
    %v2307 = vunpack.c.l.s4 1966171168
    %v2308 = vunpack.c.0.s8 %v2307
    %v2309 = vlaneseq
    %v2310 = vshrl.u32 %v2309, 7
    %v2311 = vsub.s32 %v2308, %v2310
    %v2312 = vrot.slane %v2284, %v2311
    %v2313 = vcombine.high %v2291, %v2291
    %v2314 = vcombine.high %v2298, %v2298
    %v2315 = vcombine.high %v2305, %v2305
    %v2316 = vcombine.high %v2312, %v2312
    %v2317 = vcombine.low %v2221, %v2222
    %v2318 = vcombine.high %v2221, %v2222
    %v2320 = vunpack.c.l.s4 1966171168
    %v2321 = vunpack.c.0.s8 %v2320
    %v2322 = vlaneseq
    %v2323 = vshrl.u32 %v2322, 7
    %v2324 = vsub.s32 %v2321, %v2323
    %v2325 = vrot.slane %v2317, %v2324
    %v2327 = vunpack.c.l.s4 1966171168
    %v2328 = vunpack.c.0.s8 %v2327
    %v2329 = vlaneseq
    %v2330 = vshrl.u32 %v2329, 7
    %v2331 = vsub.s32 %v2328, %v2330
    %v2332 = vrot.slane %v2318, %v2331
    %v2333 = vcombine.high %v2325, %v2325
    %v2334 = vcombine.high %v2332, %v2332
    %v2336 = vunpack.c.l.s4 1966171168
    %v2337 = vunpack.c.0.s8 %v2336
    %v2338 = vlaneseq
    %v2339 = vshrl.u32 %v2338, 7
    %v2340 = vsub.s32 %v2337, %v2339
    %v2341 = vrot.slane %v2325, %v2340
    %v2343 = vunpack.c.l.s4 1966171168
    %v2344 = vunpack.c.0.s8 %v2343
    %v2345 = vlaneseq
    %v2346 = vshrl.u32 %v2345, 7
    %v2347 = vsub.s32 %v2344, %v2346
    %v2348 = vrot.slane %v2332, %v2347
    %v2350 = vunpack.c.l.s4 1966171168
    %v2351 = vunpack.c.0.s8 %v2350
    %v2352 = vlaneseq
    %v2353 = vshrl.u32 %v2352, 7
    %v2354 = vsub.s32 %v2351, %v2353
    %v2355 = vrot.slane %v2333, %v2354
    %v2357 = vunpack.c.l.s4 1966171168
    %v2358 = vunpack.c.0.s8 %v2357
    %v2359 = vlaneseq
    %v2360 = vshrl.u32 %v2359, 7
    %v2361 = vsub.s32 %v2358, %v2360
    %v2362 = vrot.slane %v2334, %v2361
    %v2363 = vcombine.high %v2341, %v2341
    %v2364 = vcombine.high %v2348, %v2348
    %v2365 = vcombine.high %v2355, %v2355
    %v2366 = vcombine.high %v2362, %v2362
    %v2367 = vcombine.low %v2223, %v2224
    %v2368 = vcombine.high %v2223, %v2224
    %v2370 = vunpack.c.l.s4 1966171168
    %v2371 = vunpack.c.0.s8 %v2370
    %v2372 = vlaneseq
    %v2373 = vshrl.u32 %v2372, 7
    %v2374 = vsub.s32 %v2371, %v2373
    %v2375 = vrot.slane %v2367, %v2374
    %v2377 = vunpack.c.l.s4 1966171168
    %v2378 = vunpack.c.0.s8 %v2377
    %v2379 = vlaneseq
    %v2380 = vshrl.u32 %v2379, 7
    %v2381 = vsub.s32 %v2378, %v2380
    %v2382 = vrot.slane %v2368, %v2381
    %v2383 = vcombine.high %v2375, %v2375
    %v2384 = vcombine.high %v2382, %v2382
    %v2386 = vunpack.c.l.s4 1966171168
    %v2387 = vunpack.c.0.s8 %v2386
    %v2388 = vlaneseq
    %v2389 = vshrl.u32 %v2388, 7
    %v2390 = vsub.s32 %v2387, %v2389
    %v2391 = vrot.slane %v2375, %v2390
    %v2393 = vunpack.c.l.s4 1966171168
    %v2394 = vunpack.c.0.s8 %v2393
    %v2395 = vlaneseq
    %v2396 = vshrl.u32 %v2395, 7
    %v2397 = vsub.s32 %v2394, %v2396
    %v2398 = vrot.slane %v2382, %v2397
    %v2400 = vunpack.c.l.s4 1966171168
    %v2401 = vunpack.c.0.s8 %v2400
    %v2402 = vlaneseq
    %v2403 = vshrl.u32 %v2402, 7
    %v2404 = vsub.s32 %v2401, %v2403
    %v2405 = vrot.slane %v2383, %v2404
    %v2407 = vunpack.c.l.s4 1966171168
    %v2408 = vunpack.c.0.s8 %v2407
    %v2409 = vlaneseq
    %v2410 = vshrl.u32 %v2409, 7
    %v2411 = vsub.s32 %v2408, %v2410
    %v2412 = vrot.slane %v2384, %v2411
    %v2413 = vcombine.high %v2391, %v2391
    %v2414 = vcombine.high %v2398, %v2398
    %v2415 = vcombine.high %v2405, %v2405
    %v2416 = vcombine.high %v2412, %v2412
    %v2417 = vcombine.low %v2225, %v2226
    %v2418 = vcombine.high %v2225, %v2226
    %v2420 = vunpack.c.l.s4 1966171168
    %v2421 = vunpack.c.0.s8 %v2420
    %v2422 = vlaneseq
    %v2423 = vshrl.u32 %v2422, 7
    %v2424 = vsub.s32 %v2421, %v2423
    %v2425 = vrot.slane %v2417, %v2424
    %v2427 = vunpack.c.l.s4 1966171168
    %v2428 = vunpack.c.0.s8 %v2427
    %v2429 = vlaneseq
    %v2430 = vshrl.u32 %v2429, 7
    %v2431 = vsub.s32 %v2428, %v2430
    %v2432 = vrot.slane %v2418, %v2431
    %v2433 = vcombine.high %v2425, %v2425
    %v2434 = vcombine.high %v2432, %v2432
    %v2436 = vunpack.c.l.s4 1966171168
    %v2437 = vunpack.c.0.s8 %v2436
    %v2438 = vlaneseq
    %v2439 = vshrl.u32 %v2438, 7
    %v2440 = vsub.s32 %v2437, %v2439
    %v2441 = vrot.slane %v2425, %v2440
    %v2443 = vunpack.c.l.s4 1966171168
    %v2444 = vunpack.c.0.s8 %v2443
    %v2445 = vlaneseq
    %v2446 = vshrl.u32 %v2445, 7
    %v2447 = vsub.s32 %v2444, %v2446
    %v2448 = vrot.slane %v2432, %v2447
    %v2450 = vunpack.c.l.s4 1966171168
    %v2451 = vunpack.c.0.s8 %v2450
    %v2452 = vlaneseq
    %v2453 = vshrl.u32 %v2452, 7
    %v2454 = vsub.s32 %v2451, %v2453
    %v2455 = vrot.slane %v2433, %v2454
    %v2457 = vunpack.c.l.s4 1966171168
    %v2458 = vunpack.c.0.s8 %v2457
    %v2459 = vlaneseq
    %v2460 = vshrl.u32 %v2459, 7
    %v2461 = vsub.s32 %v2458, %v2460
    %v2462 = vrot.slane %v2434, %v2461
    %v2463 = vcombine.high %v2441, %v2441
    %v2464 = vcombine.high %v2448, %v2448
    %v2465 = vcombine.high %v2455, %v2455
    %v2466 = vcombine.high %v2462, %v2462
    %v2467 = vcombine.low %v2227, %v2228
    %v2468 = vcombine.high %v2227, %v2228
    %v2470 = vunpack.c.l.s4 1966171168
    %v2471 = vunpack.c.0.s8 %v2470
    %v2472 = vlaneseq
    %v2473 = vshrl.u32 %v2472, 7
    %v2474 = vsub.s32 %v2471, %v2473
    %v2475 = vrot.slane %v2467, %v2474
    %v2477 = vunpack.c.l.s4 1966171168
    %v2478 = vunpack.c.0.s8 %v2477
    %v2479 = vlaneseq
    %v2480 = vshrl.u32 %v2479, 7
    %v2481 = vsub.s32 %v2478, %v2480
    %v2482 = vrot.slane %v2468, %v2481
    %v2483 = vcombine.high %v2475, %v2475
    %v2484 = vcombine.high %v2482, %v2482
    %v2486 = vunpack.c.l.s4 1966171168
    %v2487 = vunpack.c.0.s8 %v2486
    %v2488 = vlaneseq
    %v2489 = vshrl.u32 %v2488, 7
    %v2490 = vsub.s32 %v2487, %v2489
    %v2491 = vrot.slane %v2475, %v2490
    %v2493 = vunpack.c.l.s4 1966171168
    %v2494 = vunpack.c.0.s8 %v2493
    %v2495 = vlaneseq
    %v2496 = vshrl.u32 %v2495, 7
    %v2497 = vsub.s32 %v2494, %v2496
    %v2498 = vrot.slane %v2482, %v2497
    %v2500 = vunpack.c.l.s4 1966171168
    %v2501 = vunpack.c.0.s8 %v2500
    %v2502 = vlaneseq
    %v2503 = vshrl.u32 %v2502, 7
    %v2504 = vsub.s32 %v2501, %v2503
    %v2505 = vrot.slane %v2483, %v2504
    %v2507 = vunpack.c.l.s4 1966171168
    %v2508 = vunpack.c.0.s8 %v2507
    %v2509 = vlaneseq
    %v2510 = vshrl.u32 %v2509, 7
    %v2511 = vsub.s32 %v2508, %v2510
    %v2512 = vrot.slane %v2484, %v2511
    %v2513 = vcombine.high %v2491, %v2491
    %v2514 = vcombine.high %v2498, %v2498
    %v2515 = vcombine.high %v2505, %v2505
    %v2516 = vcombine.high %v2512, %v2512
    %v2517 = vcombine.low %v2229, %v2230
    %v2518 = vcombine.high %v2229, %v2230
    %v2520 = vunpack.c.l.s4 1966171168
    %v2521 = vunpack.c.0.s8 %v2520
    %v2522 = vlaneseq
    %v2523 = vshrl.u32 %v2522, 7
    %v2524 = vsub.s32 %v2521, %v2523
    %v2525 = vrot.slane %v2517, %v2524
    %v2527 = vunpack.c.l.s4 1966171168
    %v2528 = vunpack.c.0.s8 %v2527
    %v2529 = vlaneseq
    %v2530 = vshrl.u32 %v2529, 7
    %v2531 = vsub.s32 %v2528, %v2530
    %v2532 = vrot.slane %v2518, %v2531
    %v2533 = vcombine.high %v2525, %v2525
    %v2534 = vcombine.high %v2532, %v2532
    %v2536 = vunpack.c.l.s4 1966171168
    %v2537 = vunpack.c.0.s8 %v2536
    %v2538 = vlaneseq
    %v2539 = vshrl.u32 %v2538, 7
    %v2540 = vsub.s32 %v2537, %v2539
    %v2541 = vrot.slane %v2525, %v2540
    %v2543 = vunpack.c.l.s4 1966171168
    %v2544 = vunpack.c.0.s8 %v2543
    %v2545 = vlaneseq
    %v2546 = vshrl.u32 %v2545, 7
    %v2547 = vsub.s32 %v2544, %v2546
    %v2548 = vrot.slane %v2532, %v2547
    %v2550 = vunpack.c.l.s4 1966171168
    %v2551 = vunpack.c.0.s8 %v2550
    %v2552 = vlaneseq
    %v2553 = vshrl.u32 %v2552, 7
    %v2554 = vsub.s32 %v2551, %v2553
    %v2555 = vrot.slane %v2533, %v2554
    %v2557 = vunpack.c.l.s4 1966171168
    %v2558 = vunpack.c.0.s8 %v2557
    %v2559 = vlaneseq
    %v2560 = vshrl.u32 %v2559, 7
    %v2561 = vsub.s32 %v2558, %v2560
    %v2562 = vrot.slane %v2534, %v2561
    %v2563 = vcombine.high %v2541, %v2541
    %v2564 = vcombine.high %v2548, %v2548
    %v2565 = vcombine.high %v2555, %v2555
    %v2566 = vcombine.high %v2562, %v2562
    %v2567 = vcombine.low %v2231, %v2232
    %v2568 = vcombine.high %v2231, %v2232
    %v2570 = vunpack.c.l.s4 1966171168
    %v2571 = vunpack.c.0.s8 %v2570
    %v2572 = vlaneseq
    %v2573 = vshrl.u32 %v2572, 7
    %v2574 = vsub.s32 %v2571, %v2573
    %v2575 = vrot.slane %v2567, %v2574
    %v2577 = vunpack.c.l.s4 1966171168
    %v2578 = vunpack.c.0.s8 %v2577
    %v2579 = vlaneseq
    %v2580 = vshrl.u32 %v2579, 7
    %v2581 = vsub.s32 %v2578, %v2580
    %v2582 = vrot.slane %v2568, %v2581
    %v2583 = vcombine.high %v2575, %v2575
    %v2584 = vcombine.high %v2582, %v2582
    %v2586 = vunpack.c.l.s4 1966171168
    %v2587 = vunpack.c.0.s8 %v2586
    %v2588 = vlaneseq
    %v2589 = vshrl.u32 %v2588, 7
    %v2590 = vsub.s32 %v2587, %v2589
    %v2591 = vrot.slane %v2575, %v2590
    %v2593 = vunpack.c.l.s4 1966171168
    %v2594 = vunpack.c.0.s8 %v2593
    %v2595 = vlaneseq
    %v2596 = vshrl.u32 %v2595, 7
    %v2597 = vsub.s32 %v2594, %v2596
    %v2598 = vrot.slane %v2582, %v2597
    %v2600 = vunpack.c.l.s4 1966171168
    %v2601 = vunpack.c.0.s8 %v2600
    %v2602 = vlaneseq
    %v2603 = vshrl.u32 %v2602, 7
    %v2604 = vsub.s32 %v2601, %v2603
    %v2605 = vrot.slane %v2583, %v2604
    %v2607 = vunpack.c.l.s4 1966171168
    %v2608 = vunpack.c.0.s8 %v2607
    %v2609 = vlaneseq
    %v2610 = vshrl.u32 %v2609, 7
    %v2611 = vsub.s32 %v2608, %v2610
    %v2612 = vrot.slane %v2584, %v2611
    %v2613 = vcombine.high %v2591, %v2591
    %v2614 = vcombine.high %v2598, %v2598
    %v2615 = vcombine.high %v2605, %v2605
    %v2616 = vcombine.high %v2612, %v2612
    %v2617 = vcombine.low %v2233, %v2234
    %v2618 = vcombine.high %v2233, %v2234
    %v2620 = vunpack.c.l.s4 1966171168
    %v2621 = vunpack.c.0.s8 %v2620
    %v2622 = vlaneseq
    %v2623 = vshrl.u32 %v2622, 7
    %v2624 = vsub.s32 %v2621, %v2623
    %v2625 = vrot.slane %v2617, %v2624
    %v2627 = vunpack.c.l.s4 1966171168
    %v2628 = vunpack.c.0.s8 %v2627
    %v2629 = vlaneseq
    %v2630 = vshrl.u32 %v2629, 7
    %v2631 = vsub.s32 %v2628, %v2630
    %v2632 = vrot.slane %v2618, %v2631
    %v2633 = vcombine.high %v2625, %v2625
    %v2634 = vcombine.high %v2632, %v2632
    %v2636 = vunpack.c.l.s4 1966171168
    %v2637 = vunpack.c.0.s8 %v2636
    %v2638 = vlaneseq
    %v2639 = vshrl.u32 %v2638, 7
    %v2640 = vsub.s32 %v2637, %v2639
    %v2641 = vrot.slane %v2625, %v2640
    %v2643 = vunpack.c.l.s4 1966171168
    %v2644 = vunpack.c.0.s8 %v2643
    %v2645 = vlaneseq
    %v2646 = vshrl.u32 %v2645, 7
    %v2647 = vsub.s32 %v2644, %v2646
    %v2648 = vrot.slane %v2632, %v2647
    %v2650 = vunpack.c.l.s4 1966171168
    %v2651 = vunpack.c.0.s8 %v2650
    %v2652 = vlaneseq
    %v2653 = vshrl.u32 %v2652, 7
    %v2654 = vsub.s32 %v2651, %v2653
    %v2655 = vrot.slane %v2633, %v2654
    %v2657 = vunpack.c.l.s4 1966171168
    %v2658 = vunpack.c.0.s8 %v2657
    %v2659 = vlaneseq
    %v2660 = vshrl.u32 %v2659, 7
    %v2661 = vsub.s32 %v2658, %v2660
    %v2662 = vrot.slane %v2634, %v2661
    %v2663 = vcombine.high %v2641, %v2641
    %v2664 = vcombine.high %v2648, %v2648
    %v2665 = vcombine.high %v2655, %v2655
    %v2666 = vcombine.high %v2662, %v2662
    %v2667 = vcombine.low %v2235, %v2236
    %v2668 = vcombine.high %v2235, %v2236
    %v2670 = vunpack.c.l.s4 1966171168
    %v2671 = vunpack.c.0.s8 %v2670
    %v2672 = vlaneseq
    %v2673 = vshrl.u32 %v2672, 7
    %v2674 = vsub.s32 %v2671, %v2673
    %v2675 = vrot.slane %v2667, %v2674
    %v2677 = vunpack.c.l.s4 1966171168
    %v2678 = vunpack.c.0.s8 %v2677
    %v2679 = vlaneseq
    %v2680 = vshrl.u32 %v2679, 7
    %v2681 = vsub.s32 %v2678, %v2680
    %v2682 = vrot.slane %v2668, %v2681
    %v2683 = vcombine.high %v2675, %v2675
    %v2684 = vcombine.high %v2682, %v2682
    %v2686 = vunpack.c.l.s4 1966171168
    %v2687 = vunpack.c.0.s8 %v2686
    %v2688 = vlaneseq
    %v2689 = vshrl.u32 %v2688, 7
    %v2690 = vsub.s32 %v2687, %v2689
    %v2691 = vrot.slane %v2675, %v2690
    %v2693 = vunpack.c.l.s4 1966171168
    %v2694 = vunpack.c.0.s8 %v2693
    %v2695 = vlaneseq
    %v2696 = vshrl.u32 %v2695, 7
    %v2697 = vsub.s32 %v2694, %v2696
    %v2698 = vrot.slane %v2682, %v2697
    %v2700 = vunpack.c.l.s4 1966171168
    %v2701 = vunpack.c.0.s8 %v2700
    %v2702 = vlaneseq
    %v2703 = vshrl.u32 %v2702, 7
    %v2704 = vsub.s32 %v2701, %v2703
    %v2705 = vrot.slane %v2683, %v2704
    %v2707 = vunpack.c.l.s4 1966171168
    %v2708 = vunpack.c.0.s8 %v2707
    %v2709 = vlaneseq
    %v2710 = vshrl.u32 %v2709, 7
    %v2711 = vsub.s32 %v2708, %v2710
    %v2712 = vrot.slane %v2684, %v2711
    %v2713 = vcombine.high %v2691, %v2691
    %v2714 = vcombine.high %v2698, %v2698
    %v2715 = vcombine.high %v2705, %v2705
    %v2716 = vcombine.high %v2712, %v2712
    %v2717 = vcombine.low %v2237, %v2238
    %v2718 = vcombine.high %v2237, %v2238
    %v2720 = vunpack.c.l.s4 1966171168
    %v2721 = vunpack.c.0.s8 %v2720
    %v2722 = vlaneseq
    %v2723 = vshrl.u32 %v2722, 7
    %v2724 = vsub.s32 %v2721, %v2723
    %v2725 = vrot.slane %v2717, %v2724
    %v2727 = vunpack.c.l.s4 1966171168
    %v2728 = vunpack.c.0.s8 %v2727
    %v2729 = vlaneseq
    %v2730 = vshrl.u32 %v2729, 7
    %v2731 = vsub.s32 %v2728, %v2730
    %v2732 = vrot.slane %v2718, %v2731
    %v2733 = vcombine.high %v2725, %v2725
    %v2734 = vcombine.high %v2732, %v2732
    %v2736 = vunpack.c.l.s4 1966171168
    %v2737 = vunpack.c.0.s8 %v2736
    %v2738 = vlaneseq
    %v2739 = vshrl.u32 %v2738, 7
    %v2740 = vsub.s32 %v2737, %v2739
    %v2741 = vrot.slane %v2725, %v2740
    %v2743 = vunpack.c.l.s4 1966171168
    %v2744 = vunpack.c.0.s8 %v2743
    %v2745 = vlaneseq
    %v2746 = vshrl.u32 %v2745, 7
    %v2747 = vsub.s32 %v2744, %v2746
    %v2748 = vrot.slane %v2732, %v2747
    %v2750 = vunpack.c.l.s4 1966171168
    %v2751 = vunpack.c.0.s8 %v2750
    %v2752 = vlaneseq
    %v2753 = vshrl.u32 %v2752, 7
    %v2754 = vsub.s32 %v2751, %v2753
    %v2755 = vrot.slane %v2733, %v2754
    %v2757 = vunpack.c.l.s4 1966171168
    %v2758 = vunpack.c.0.s8 %v2757
    %v2759 = vlaneseq
    %v2760 = vshrl.u32 %v2759, 7
    %v2761 = vsub.s32 %v2758, %v2760
    %v2762 = vrot.slane %v2734, %v2761
    %v2763 = vcombine.high %v2741, %v2741
    %v2764 = vcombine.high %v2748, %v2748
    %v2765 = vcombine.high %v2755, %v2755
    %v2766 = vcombine.high %v2762, %v2762
    %v2767 = vcombine.low %v2239, %v2240
    %v2768 = vcombine.high %v2239, %v2240
    %v2770 = vunpack.c.l.s4 1966171168
    %v2771 = vunpack.c.0.s8 %v2770
    %v2772 = vlaneseq
    %v2773 = vshrl.u32 %v2772, 7
    %v2774 = vsub.s32 %v2771, %v2773
    %v2775 = vrot.slane %v2767, %v2774
    %v2777 = vunpack.c.l.s4 1966171168
    %v2778 = vunpack.c.0.s8 %v2777
    %v2779 = vlaneseq
    %v2780 = vshrl.u32 %v2779, 7
    %v2781 = vsub.s32 %v2778, %v2780
    %v2782 = vrot.slane %v2768, %v2781
    %v2783 = vcombine.high %v2775, %v2775
    %v2784 = vcombine.high %v2782, %v2782
    %v2786 = vunpack.c.l.s4 1966171168
    %v2787 = vunpack.c.0.s8 %v2786
    %v2788 = vlaneseq
    %v2789 = vshrl.u32 %v2788, 7
    %v2790 = vsub.s32 %v2787, %v2789
    %v2791 = vrot.slane %v2775, %v2790
    %v2793 = vunpack.c.l.s4 1966171168
    %v2794 = vunpack.c.0.s8 %v2793
    %v2795 = vlaneseq
    %v2796 = vshrl.u32 %v2795, 7
    %v2797 = vsub.s32 %v2794, %v2796
    %v2798 = vrot.slane %v2782, %v2797
    %v2800 = vunpack.c.l.s4 1966171168
    %v2801 = vunpack.c.0.s8 %v2800
    %v2802 = vlaneseq
    %v2803 = vshrl.u32 %v2802, 7
    %v2804 = vsub.s32 %v2801, %v2803
    %v2805 = vrot.slane %v2783, %v2804
    %v2807 = vunpack.c.l.s4 1966171168
    %v2808 = vunpack.c.0.s8 %v2807
    %v2809 = vlaneseq
    %v2810 = vshrl.u32 %v2809, 7
    %v2811 = vsub.s32 %v2808, %v2810
    %v2812 = vrot.slane %v2784, %v2811
    %v2813 = vcombine.high %v2791, %v2791
    %v2814 = vcombine.high %v2798, %v2798
    %v2815 = vcombine.high %v2805, %v2805
    %v2816 = vcombine.high %v2812, %v2812
    %v2817 = vcombine.low %v2241, %v2242
    %v2818 = vcombine.high %v2241, %v2242
    %v2820 = vunpack.c.l.s4 1966171168
    %v2821 = vunpack.c.0.s8 %v2820
    %v2822 = vlaneseq
    %v2823 = vshrl.u32 %v2822, 7
    %v2824 = vsub.s32 %v2821, %v2823
    %v2825 = vrot.slane %v2817, %v2824
    %v2827 = vunpack.c.l.s4 1966171168
    %v2828 = vunpack.c.0.s8 %v2827
    %v2829 = vlaneseq
    %v2830 = vshrl.u32 %v2829, 7
    %v2831 = vsub.s32 %v2828, %v2830
    %v2832 = vrot.slane %v2818, %v2831
    %v2833 = vcombine.high %v2825, %v2825
    %v2834 = vcombine.high %v2832, %v2832
    %v2836 = vunpack.c.l.s4 1966171168
    %v2837 = vunpack.c.0.s8 %v2836
    %v2838 = vlaneseq
    %v2839 = vshrl.u32 %v2838, 7
    %v2840 = vsub.s32 %v2837, %v2839
    %v2841 = vrot.slane %v2825, %v2840
    %v2843 = vunpack.c.l.s4 1966171168
    %v2844 = vunpack.c.0.s8 %v2843
    %v2845 = vlaneseq
    %v2846 = vshrl.u32 %v2845, 7
    %v2847 = vsub.s32 %v2844, %v2846
    %v2848 = vrot.slane %v2832, %v2847
    %v2850 = vunpack.c.l.s4 1966171168
    %v2851 = vunpack.c.0.s8 %v2850
    %v2852 = vlaneseq
    %v2853 = vshrl.u32 %v2852, 7
    %v2854 = vsub.s32 %v2851, %v2853
    %v2855 = vrot.slane %v2833, %v2854
    %v2857 = vunpack.c.l.s4 1966171168
    %v2858 = vunpack.c.0.s8 %v2857
    %v2859 = vlaneseq
    %v2860 = vshrl.u32 %v2859, 7
    %v2861 = vsub.s32 %v2858, %v2860
    %v2862 = vrot.slane %v2834, %v2861
    %v2863 = vcombine.high %v2841, %v2841
    %v2864 = vcombine.high %v2848, %v2848
    %v2865 = vcombine.high %v2855, %v2855
    %v2866 = vcombine.high %v2862, %v2862
    %v2964 = vshrl.u32 %v2291, 16
    %v2966 = vrot.slane %v2964, 7
    %v2967 = vrot.slane %v2966, 1
    %v2969 = vshrl.u32 %v2305, 16
    %v2971 = vrot.slane %v2969, 7
    %v2972 = vrot.slane %v2971, 1
    %v2974 = vshrl.u32 %v2313, 16
    %v2976 = vrot.slane %v2974, 7
    %v2977 = vrot.slane %v2976, 1
    %v2979 = vshrl.u32 %v2315, 16
    %v2981 = vrot.slane %v2979, 7
    %v2982 = vrot.slane %v2981, 1
    %v2984 = vshrl.u32 %v2298, 16
    %v2986 = vrot.slane %v2984, 7
    %v2987 = vrot.slane %v2986, 1
    %v2989 = vshrl.u32 %v2312, 16
    %v2991 = vrot.slane %v2989, 7
    %v2992 = vrot.slane %v2991, 1
    %v2994 = vshrl.u32 %v2314, 16
    %v2996 = vrot.slane %v2994, 7
    %v2997 = vrot.slane %v2996, 1
    %v2999 = vshrl.u32 %v2316, 16
    %v3001 = vrot.slane %v2999, 7
    %v3002 = vrot.slane %v3001, 1
    %v3004 = vshrl.u32 %v2341, 16
    %v3006 = vrot.slane %v3004, 7
    %v3007 = vrot.slane %v3006, 1
    %v3009 = vshrl.u32 %v2355, 16
    %v3011 = vrot.slane %v3009, 7
    %v3012 = vrot.slane %v3011, 1
    %v3014 = vshrl.u32 %v2363, 16
    %v3016 = vrot.slane %v3014, 7
    %v3017 = vrot.slane %v3016, 1
    %v3019 = vshrl.u32 %v2365, 16
    %v3021 = vrot.slane %v3019, 7
    %v3022 = vrot.slane %v3021, 1
    %v3024 = vshrl.u32 %v2348, 16
    %v3026 = vrot.slane %v3024, 7
    %v3027 = vrot.slane %v3026, 1
    %v3029 = vshrl.u32 %v2362, 16
    %v3031 = vrot.slane %v3029, 7
    %v3032 = vrot.slane %v3031, 1
    %v3034 = vshrl.u32 %v2364, 16
    %v3036 = vrot.slane %v3034, 7
    %v3037 = vrot.slane %v3036, 1
    %v3039 = vshrl.u32 %v2366, 16
    %v3041 = vrot.slane %v3039, 7
    %v3042 = vrot.slane %v3041, 1
    %v3044 = vshrl.u32 %v2391, 16
    %v3046 = vrot.slane %v3044, 7
    %v3047 = vrot.slane %v3046, 1
    %v3049 = vshrl.u32 %v2405, 16
    %v3051 = vrot.slane %v3049, 7
    %v3052 = vrot.slane %v3051, 1
    %v3054 = vshrl.u32 %v2413, 16
    %v3056 = vrot.slane %v3054, 7
    %v3057 = vrot.slane %v3056, 1
    %v3059 = vshrl.u32 %v2415, 16
    %v3061 = vrot.slane %v3059, 7
    %v3062 = vrot.slane %v3061, 1
    %v3064 = vshrl.u32 %v2398, 16
    %v3066 = vrot.slane %v3064, 7
    %v3067 = vrot.slane %v3066, 1
    %v3069 = vshrl.u32 %v2412, 16
    %v3071 = vrot.slane %v3069, 7
    %v3072 = vrot.slane %v3071, 1
    %v3074 = vshrl.u32 %v2414, 16
    %v3076 = vrot.slane %v3074, 7
    %v3077 = vrot.slane %v3076, 1
    %v3079 = vshrl.u32 %v2416, 16
    %v3081 = vrot.slane %v3079, 7
    %v3082 = vrot.slane %v3081, 1
    %v3084 = vshrl.u32 %v2441, 16
    %v3086 = vrot.slane %v3084, 7
    %v3087 = vrot.slane %v3086, 1
    %v3089 = vshrl.u32 %v2455, 16
    %v3091 = vrot.slane %v3089, 7
    %v3092 = vrot.slane %v3091, 1
    %v3094 = vshrl.u32 %v2463, 16
    %v3096 = vrot.slane %v3094, 7
    %v3097 = vrot.slane %v3096, 1
    %v3099 = vshrl.u32 %v2465, 16
    %v3101 = vrot.slane %v3099, 7
    %v3102 = vrot.slane %v3101, 1
    %v3104 = vshrl.u32 %v2448, 16
    %v3106 = vrot.slane %v3104, 7
    %v3107 = vrot.slane %v3106, 1
    %v3109 = vshrl.u32 %v2462, 16
    %v3111 = vrot.slane %v3109, 7
    %v3112 = vrot.slane %v3111, 1
    %v3114 = vshrl.u32 %v2464, 16
    %v3116 = vrot.slane %v3114, 7
    %v3117 = vrot.slane %v3116, 1
    %v3119 = vshrl.u32 %v2466, 16
    %v3121 = vrot.slane %v3119, 7
    %v3122 = vrot.slane %v3121, 1
    %v3124 = vshrl.u32 %v2491, 16
    %v3126 = vrot.slane %v3124, 7
    %v3127 = vrot.slane %v3126, 1
    %v3129 = vshrl.u32 %v2505, 16
    %v3131 = vrot.slane %v3129, 7
    %v3132 = vrot.slane %v3131, 1
    %v3134 = vshrl.u32 %v2513, 16
    %v3136 = vrot.slane %v3134, 7
    %v3137 = vrot.slane %v3136, 1
    %v3139 = vshrl.u32 %v2515, 16
    %v3141 = vrot.slane %v3139, 7
    %v3142 = vrot.slane %v3141, 1
    %v3144 = vshrl.u32 %v2498, 16
    %v3146 = vrot.slane %v3144, 7
    %v3147 = vrot.slane %v3146, 1
    %v3149 = vshrl.u32 %v2512, 16
    %v3151 = vrot.slane %v3149, 7
    %v3152 = vrot.slane %v3151, 1
    %v3154 = vshrl.u32 %v2514, 16
    %v3156 = vrot.slane %v3154, 7
    %v3157 = vrot.slane %v3156, 1
    %v3159 = vshrl.u32 %v2516, 16
    %v3161 = vrot.slane %v3159, 7
    %v3162 = vrot.slane %v3161, 1
    %v3164 = vshrl.u32 %v2541, 16
    %v3166 = vrot.slane %v3164, 7
    %v3167 = vrot.slane %v3166, 1
    %v3169 = vshrl.u32 %v2555, 16
    %v3171 = vrot.slane %v3169, 7
    %v3172 = vrot.slane %v3171, 1
    %v3174 = vshrl.u32 %v2563, 16
    %v3176 = vrot.slane %v3174, 7
    %v3177 = vrot.slane %v3176, 1
    %v3179 = vshrl.u32 %v2565, 16
    %v3181 = vrot.slane %v3179, 7
    %v3182 = vrot.slane %v3181, 1
    %v3184 = vshrl.u32 %v2548, 16
    %v3186 = vrot.slane %v3184, 7
    %v3187 = vrot.slane %v3186, 1
    %v3189 = vshrl.u32 %v2562, 16
    %v3191 = vrot.slane %v3189, 7
    %v3192 = vrot.slane %v3191, 1
    %v3194 = vshrl.u32 %v2564, 16
    %v3196 = vrot.slane %v3194, 7
    %v3197 = vrot.slane %v3196, 1
    %v3199 = vshrl.u32 %v2566, 16
    %v3201 = vrot.slane %v3199, 7
    %v3202 = vrot.slane %v3201, 1
    %v3204 = vshrl.u32 %v2591, 16
    %v3206 = vrot.slane %v3204, 7
    %v3207 = vrot.slane %v3206, 1
    %v3209 = vshrl.u32 %v2605, 16
    %v3211 = vrot.slane %v3209, 7
    %v3212 = vrot.slane %v3211, 1
    %v3214 = vshrl.u32 %v2613, 16
    %v3216 = vrot.slane %v3214, 7
    %v3217 = vrot.slane %v3216, 1
    %v3219 = vshrl.u32 %v2615, 16
    %v3221 = vrot.slane %v3219, 7
    %v3222 = vrot.slane %v3221, 1
    %v3224 = vshrl.u32 %v2598, 16
    %v3226 = vrot.slane %v3224, 7
    %v3227 = vrot.slane %v3226, 1
    %v3229 = vshrl.u32 %v2612, 16
    %v3231 = vrot.slane %v3229, 7
    %v3232 = vrot.slane %v3231, 1
    %v3234 = vshrl.u32 %v2614, 16
    %v3236 = vrot.slane %v3234, 7
    %v3237 = vrot.slane %v3236, 1
    %v3239 = vshrl.u32 %v2616, 16
    %v3241 = vrot.slane %v3239, 7
    %v3242 = vrot.slane %v3241, 1
    %v3244 = vshrl.u32 %v2641, 16
    %v3246 = vrot.slane %v3244, 7
    %v3247 = vrot.slane %v3246, 1
    %v3249 = vshrl.u32 %v2655, 16
    %v3251 = vrot.slane %v3249, 7
    %v3252 = vrot.slane %v3251, 1
    %v3254 = vshrl.u32 %v2663, 16
    %v3256 = vrot.slane %v3254, 7
    %v3257 = vrot.slane %v3256, 1
    %v3259 = vshrl.u32 %v2665, 16
    %v3261 = vrot.slane %v3259, 7
    %v3262 = vrot.slane %v3261, 1
    %v3264 = vshrl.u32 %v2648, 16
    %v3266 = vrot.slane %v3264, 7
    %v3267 = vrot.slane %v3266, 1
    %v3269 = vshrl.u32 %v2662, 16
    %v3271 = vrot.slane %v3269, 7
    %v3272 = vrot.slane %v3271, 1
    %v3274 = vshrl.u32 %v2664, 16
    %v3276 = vrot.slane %v3274, 7
    %v3277 = vrot.slane %v3276, 1
    %v3279 = vshrl.u32 %v2666, 16
    %v3281 = vrot.slane %v3279, 7
    %v3282 = vrot.slane %v3281, 1
    %v3284 = vshrl.u32 %v2691, 16
    %v3286 = vrot.slane %v3284, 7
    %v3287 = vrot.slane %v3286, 1
    %v3289 = vshrl.u32 %v2705, 16
    %v3291 = vrot.slane %v3289, 7
    %v3292 = vrot.slane %v3291, 1
    %v3294 = vshrl.u32 %v2713, 16
    %v3296 = vrot.slane %v3294, 7
    %v3297 = vrot.slane %v3296, 1
    %v3299 = vshrl.u32 %v2715, 16
    %v3301 = vrot.slane %v3299, 7
    %v3302 = vrot.slane %v3301, 1
    %v3304 = vshrl.u32 %v2698, 16
    %v3306 = vrot.slane %v3304, 7
    %v3307 = vrot.slane %v3306, 1
    %v3309 = vshrl.u32 %v2712, 16
    %v3311 = vrot.slane %v3309, 7
    %v3312 = vrot.slane %v3311, 1
    %v3314 = vshrl.u32 %v2714, 16
    %v3316 = vrot.slane %v3314, 7
    %v3317 = vrot.slane %v3316, 1
    %v3319 = vshrl.u32 %v2716, 16
    %v3321 = vrot.slane %v3319, 7
    %v3322 = vrot.slane %v3321, 1
    %v3324 = vshrl.u32 %v2741, 16
    %v3326 = vrot.slane %v3324, 7
    %v3327 = vrot.slane %v3326, 1
    %v3329 = vshrl.u32 %v2755, 16
    %v3331 = vrot.slane %v3329, 7
    %v3332 = vrot.slane %v3331, 1
    %v3334 = vshrl.u32 %v2763, 16
    %v3336 = vrot.slane %v3334, 7
    %v3337 = vrot.slane %v3336, 1
    %v3339 = vshrl.u32 %v2765, 16
    %v3341 = vrot.slane %v3339, 7
    %v3342 = vrot.slane %v3341, 1
    %v3344 = vshrl.u32 %v2748, 16
    %v3346 = vrot.slane %v3344, 7
    %v3347 = vrot.slane %v3346, 1
    %v3349 = vshrl.u32 %v2762, 16
    %v3351 = vrot.slane %v3349, 7
    %v3352 = vrot.slane %v3351, 1
    %v3354 = vshrl.u32 %v2764, 16
    %v3356 = vrot.slane %v3354, 7
    %v3357 = vrot.slane %v3356, 1
    %v3359 = vshrl.u32 %v2766, 16
    %v3361 = vrot.slane %v3359, 7
    %v3362 = vrot.slane %v3361, 1
    %v3364 = vshrl.u32 %v2791, 16
    %v3366 = vrot.slane %v3364, 7
    %v3367 = vrot.slane %v3366, 1
    %v3369 = vshrl.u32 %v2805, 16
    %v3371 = vrot.slane %v3369, 7
    %v3372 = vrot.slane %v3371, 1
    %v3374 = vshrl.u32 %v2813, 16
    %v3376 = vrot.slane %v3374, 7
    %v3377 = vrot.slane %v3376, 1
    %v3379 = vshrl.u32 %v2815, 16
    %v3381 = vrot.slane %v3379, 7
    %v3382 = vrot.slane %v3381, 1
    %v3384 = vshrl.u32 %v2798, 16
    %v3386 = vrot.slane %v3384, 7
    %v3387 = vrot.slane %v3386, 1
    %v3389 = vshrl.u32 %v2812, 16
    %v3391 = vrot.slane %v3389, 7
    %v3392 = vrot.slane %v3391, 1
    %v3394 = vshrl.u32 %v2814, 16
    %v3396 = vrot.slane %v3394, 7
    %v3397 = vrot.slane %v3396, 1
    %v3399 = vshrl.u32 %v2816, 16
    %v3401 = vrot.slane %v3399, 7
    %v3402 = vrot.slane %v3401, 1
    %v3404 = vshrl.u32 %v2841, 16
    %v3406 = vrot.slane %v3404, 7
    %v3407 = vrot.slane %v3406, 1
    %v3409 = vshrl.u32 %v2855, 16
    %v3411 = vrot.slane %v3409, 7
    %v3412 = vrot.slane %v3411, 1
    %v3414 = vshrl.u32 %v2863, 16
    %v3416 = vrot.slane %v3414, 7
    %v3417 = vrot.slane %v3416, 1
    %v3419 = vshrl.u32 %v2865, 16
    %v3421 = vrot.slane %v3419, 7
    %v3422 = vrot.slane %v3421, 1
    %v3424 = vshrl.u32 %v2848, 16
    %v3426 = vrot.slane %v3424, 7
    %v3427 = vrot.slane %v3426, 1
    %v3429 = vshrl.u32 %v2862, 16
    %v3431 = vrot.slane %v3429, 7
    %v3432 = vrot.slane %v3431, 1
    %v3434 = vshrl.u32 %v2864, 16
    %v3436 = vrot.slane %v3434, 7
    %v3437 = vrot.slane %v3436, 1
    %v3439 = vshrl.u32 %v2866, 16
    %v3441 = vrot.slane %v3439, 7
    %v3442 = vrot.slane %v3441, 1
    %v3539 = vmax.bf16 %v2291, %v2967
    %v3540 = vmax.bf16 %v2305, %v2972
    %v3541 = vmax.bf16 %v2313, %v2977
    %v3542 = vmax.bf16 %v2315, %v2982
    %v3543 = vmax.bf16 %v2298, %v2987
    %v3544 = vmax.bf16 %v2312, %v2992
    %v3545 = vmax.bf16 %v2314, %v2997
    %v3546 = vmax.bf16 %v2316, %v3002
    %v3547 = vmax.bf16 %v2341, %v3007
    %v3548 = vmax.bf16 %v2355, %v3012
    %v3549 = vmax.bf16 %v2363, %v3017
    %v3550 = vmax.bf16 %v2365, %v3022
    %v3551 = vmax.bf16 %v2348, %v3027
    %v3552 = vmax.bf16 %v2362, %v3032
    %v3553 = vmax.bf16 %v2364, %v3037
    %v3554 = vmax.bf16 %v2366, %v3042
    %v3555 = vmax.bf16 %v2391, %v3047
    %v3556 = vmax.bf16 %v2405, %v3052
    %v3557 = vmax.bf16 %v2413, %v3057
    %v3558 = vmax.bf16 %v2415, %v3062
    %v3559 = vmax.bf16 %v2398, %v3067
    %v3560 = vmax.bf16 %v2412, %v3072
    %v3561 = vmax.bf16 %v2414, %v3077
    %v3562 = vmax.bf16 %v2416, %v3082
    %v3563 = vmax.bf16 %v2441, %v3087
    %v3564 = vmax.bf16 %v2455, %v3092
    %v3565 = vmax.bf16 %v2463, %v3097
    %v3566 = vmax.bf16 %v2465, %v3102
    %v3567 = vmax.bf16 %v2448, %v3107
    %v3568 = vmax.bf16 %v2462, %v3112
    %v3569 = vmax.bf16 %v2464, %v3117
    %v3570 = vmax.bf16 %v2466, %v3122
    %v3571 = vmax.bf16 %v2491, %v3127
    %v3572 = vmax.bf16 %v2505, %v3132
    %v3573 = vmax.bf16 %v2513, %v3137
    %v3574 = vmax.bf16 %v2515, %v3142
    %v3575 = vmax.bf16 %v2498, %v3147
    %v3576 = vmax.bf16 %v2512, %v3152
    %v3577 = vmax.bf16 %v2514, %v3157
    %v3578 = vmax.bf16 %v2516, %v3162
    %v3579 = vmax.bf16 %v2541, %v3167
    %v3580 = vmax.bf16 %v2555, %v3172
    %v3581 = vmax.bf16 %v2563, %v3177
    %v3582 = vmax.bf16 %v2565, %v3182
    %v3583 = vmax.bf16 %v2548, %v3187
    %v3584 = vmax.bf16 %v2562, %v3192
    %v3585 = vmax.bf16 %v2564, %v3197
    %v3586 = vmax.bf16 %v2566, %v3202
    %v3587 = vmax.bf16 %v2591, %v3207
    %v3588 = vmax.bf16 %v2605, %v3212
    %v3589 = vmax.bf16 %v2613, %v3217
    %v3590 = vmax.bf16 %v2615, %v3222
    %v3591 = vmax.bf16 %v2598, %v3227
    %v3592 = vmax.bf16 %v2612, %v3232
    %v3593 = vmax.bf16 %v2614, %v3237
    %v3594 = vmax.bf16 %v2616, %v3242
    %v3595 = vmax.bf16 %v2641, %v3247
    %v3596 = vmax.bf16 %v2655, %v3252
    %v3597 = vmax.bf16 %v2663, %v3257
    %v3598 = vmax.bf16 %v2665, %v3262
    %v3599 = vmax.bf16 %v2648, %v3267
    %v3600 = vmax.bf16 %v2662, %v3272
    %v3601 = vmax.bf16 %v2664, %v3277
    %v3602 = vmax.bf16 %v2666, %v3282
    %v3603 = vmax.bf16 %v2691, %v3287
    %v3604 = vmax.bf16 %v2705, %v3292
    %v3605 = vmax.bf16 %v2713, %v3297
    %v3606 = vmax.bf16 %v2715, %v3302
    %v3607 = vmax.bf16 %v2698, %v3307
    %v3608 = vmax.bf16 %v2712, %v3312
    %v3609 = vmax.bf16 %v2714, %v3317
    %v3610 = vmax.bf16 %v2716, %v3322
    %v3611 = vmax.bf16 %v2741, %v3327
    %v3612 = vmax.bf16 %v2755, %v3332
    %v3613 = vmax.bf16 %v2763, %v3337
    %v3614 = vmax.bf16 %v2765, %v3342
    %v3615 = vmax.bf16 %v2748, %v3347
    %v3616 = vmax.bf16 %v2762, %v3352
    %v3617 = vmax.bf16 %v2764, %v3357
    %v3618 = vmax.bf16 %v2766, %v3362
    %v3619 = vmax.bf16 %v2791, %v3367
    %v3620 = vmax.bf16 %v2805, %v3372
    %v3621 = vmax.bf16 %v2813, %v3377
    %v3622 = vmax.bf16 %v2815, %v3382
    %v3623 = vmax.bf16 %v2798, %v3387
    %v3624 = vmax.bf16 %v2812, %v3392
    %v3625 = vmax.bf16 %v2814, %v3397
    %v3626 = vmax.bf16 %v2816, %v3402
    %v3627 = vmax.bf16 %v2841, %v3407
    %v3628 = vmax.bf16 %v2855, %v3412
    %v3629 = vmax.bf16 %v2863, %v3417
    %v3630 = vmax.bf16 %v2865, %v3422
    %v3631 = vmax.bf16 %v2848, %v3427
    %v3632 = vmax.bf16 %v2862, %v3432
    %v3633 = vmax.bf16 %v2864, %v3437
    %v3634 = vmax.bf16 %v2866, %v3442
    %3731 = vrot.lane.b32.xlu0 %v3539, 118
    %v3732 = vpop.permute.xlu0 %3731
    %3733 = vrot.lane.b32.xlu0 %v3540, 118
    %v3734 = vpop.permute.xlu0 %3733
    %3735 = vrot.lane.b32.xlu0 %v3541, 118
    %v3736 = vpop.permute.xlu0 %3735
    %3737 = vrot.lane.b32.xlu0 %v3542, 118
    %v3738 = vpop.permute.xlu0 %3737
    %3739 = vrot.lane.b32.xlu0 %v3543, 118
    %v3740 = vpop.permute.xlu0 %3739
    %3741 = vrot.lane.b32.xlu0 %v3544, 118
    %v3742 = vpop.permute.xlu0 %3741
    %3743 = vrot.lane.b32.xlu0 %v3545, 118
    %v3744 = vpop.permute.xlu0 %3743
    %3745 = vrot.lane.b32.xlu0 %v3546, 118
    %v3746 = vpop.permute.xlu0 %3745
    %3747 = vrot.lane.b32.xlu0 %v3547, 118
    %v3748 = vpop.permute.xlu0 %3747
    %3749 = vrot.lane.b32.xlu0 %v3548, 118
    %v3750 = vpop.permute.xlu0 %3749
    %3751 = vrot.lane.b32.xlu0 %v3549, 118
    %v3752 = vpop.permute.xlu0 %3751
    %3753 = vrot.lane.b32.xlu0 %v3550, 118
    %v3754 = vpop.permute.xlu0 %3753
    %3755 = vrot.lane.b32.xlu0 %v3551, 118
    %v3756 = vpop.permute.xlu0 %3755
    %3757 = vrot.lane.b32.xlu0 %v3552, 118
    %v3758 = vpop.permute.xlu0 %3757
    %3759 = vrot.lane.b32.xlu0 %v3553, 118
    %v3760 = vpop.permute.xlu0 %3759
    %3761 = vrot.lane.b32.xlu0 %v3554, 118
    %v3762 = vpop.permute.xlu0 %3761
    %3763 = vrot.lane.b32.xlu0 %v3555, 118
    %v3764 = vpop.permute.xlu0 %3763
    %3765 = vrot.lane.b32.xlu0 %v3556, 118
    %v3766 = vpop.permute.xlu0 %3765
    %3767 = vrot.lane.b32.xlu0 %v3557, 118
    %v3768 = vpop.permute.xlu0 %3767
    %3769 = vrot.lane.b32.xlu0 %v3558, 118
    %v3770 = vpop.permute.xlu0 %3769
    %3771 = vrot.lane.b32.xlu0 %v3559, 118
    %v3772 = vpop.permute.xlu0 %3771
    %3773 = vrot.lane.b32.xlu0 %v3560, 118
    %v3774 = vpop.permute.xlu0 %3773
    %3775 = vrot.lane.b32.xlu0 %v3561, 118
    %v3776 = vpop.permute.xlu0 %3775
    %3777 = vrot.lane.b32.xlu0 %v3562, 118
    %v3778 = vpop.permute.xlu0 %3777
    %3779 = vrot.lane.b32.xlu0 %v3563, 118
    %v3780 = vpop.permute.xlu0 %3779
    %3781 = vrot.lane.b32.xlu0 %v3564, 118
    %v3782 = vpop.permute.xlu0 %3781
    %3783 = vrot.lane.b32.xlu0 %v3565, 118
    %v3784 = vpop.permute.xlu0 %3783
    %3785 = vrot.lane.b32.xlu0 %v3566, 118
    %v3786 = vpop.permute.xlu0 %3785
    %3787 = vrot.lane.b32.xlu0 %v3567, 118
    %v3788 = vpop.permute.xlu0 %3787
    %3789 = vrot.lane.b32.xlu0 %v3568, 118
    %v3790 = vpop.permute.xlu0 %3789
    %3791 = vrot.lane.b32.xlu0 %v3569, 118
    %v3792 = vpop.permute.xlu0 %3791
    %3793 = vrot.lane.b32.xlu0 %v3570, 118
    %v3794 = vpop.permute.xlu0 %3793
    %3795 = vrot.lane.b32.xlu0 %v3571, 118
    %v3796 = vpop.permute.xlu0 %3795
    %3797 = vrot.lane.b32.xlu0 %v3572, 118
    %v3798 = vpop.permute.xlu0 %3797
    %3799 = vrot.lane.b32.xlu0 %v3573, 118
    %v3800 = vpop.permute.xlu0 %3799
    %3801 = vrot.lane.b32.xlu0 %v3574, 118
    %v3802 = vpop.permute.xlu0 %3801
    %3803 = vrot.lane.b32.xlu0 %v3575, 118
    %v3804 = vpop.permute.xlu0 %3803
    %3805 = vrot.lane.b32.xlu0 %v3576, 118
    %v3806 = vpop.permute.xlu0 %3805
    %3807 = vrot.lane.b32.xlu0 %v3577, 118
    %v3808 = vpop.permute.xlu0 %3807
    %3809 = vrot.lane.b32.xlu0 %v3578, 118
    %v3810 = vpop.permute.xlu0 %3809
    %3811 = vrot.lane.b32.xlu0 %v3579, 118
    %v3812 = vpop.permute.xlu0 %3811
    %3813 = vrot.lane.b32.xlu0 %v3580, 118
    %v3814 = vpop.permute.xlu0 %3813
    %3815 = vrot.lane.b32.xlu0 %v3581, 118
    %v3816 = vpop.permute.xlu0 %3815
    %3817 = vrot.lane.b32.xlu0 %v3582, 118
    %v3818 = vpop.permute.xlu0 %3817
    %3819 = vrot.lane.b32.xlu0 %v3583, 118
    %v3820 = vpop.permute.xlu0 %3819
    %3821 = vrot.lane.b32.xlu0 %v3584, 118
    %v3822 = vpop.permute.xlu0 %3821
    %3823 = vrot.lane.b32.xlu0 %v3585, 118
    %v3824 = vpop.permute.xlu0 %3823
    %3825 = vrot.lane.b32.xlu0 %v3586, 118
    %v3826 = vpop.permute.xlu0 %3825
    %3827 = vrot.lane.b32.xlu0 %v3587, 118
    %v3828 = vpop.permute.xlu0 %3827
    %3829 = vrot.lane.b32.xlu0 %v3588, 118
    %v3830 = vpop.permute.xlu0 %3829
    %3831 = vrot.lane.b32.xlu0 %v3589, 118
    %v3832 = vpop.permute.xlu0 %3831
    %3833 = vrot.lane.b32.xlu0 %v3590, 118
    %v3834 = vpop.permute.xlu0 %3833
    %3835 = vrot.lane.b32.xlu0 %v3591, 118
    %v3836 = vpop.permute.xlu0 %3835
    %3837 = vrot.lane.b32.xlu0 %v3592, 118
    %v3838 = vpop.permute.xlu0 %3837
    %3839 = vrot.lane.b32.xlu0 %v3593, 118
    %v3840 = vpop.permute.xlu0 %3839
    %3841 = vrot.lane.b32.xlu0 %v3594, 118
    %v3842 = vpop.permute.xlu0 %3841
    %3843 = vrot.lane.b32.xlu0 %v3595, 118
    %v3844 = vpop.permute.xlu0 %3843
    %3845 = vrot.lane.b32.xlu0 %v3596, 118
    %v3846 = vpop.permute.xlu0 %3845
    %3847 = vrot.lane.b32.xlu0 %v3597, 118
    %v3848 = vpop.permute.xlu0 %3847
    %3849 = vrot.lane.b32.xlu0 %v3598, 118
    %v3850 = vpop.permute.xlu0 %3849
    %3851 = vrot.lane.b32.xlu0 %v3599, 118
    %v3852 = vpop.permute.xlu0 %3851
    %3853 = vrot.lane.b32.xlu0 %v3600, 118
    %v3854 = vpop.permute.xlu0 %3853
    %3855 = vrot.lane.b32.xlu0 %v3601, 118
    %v3856 = vpop.permute.xlu0 %3855
    %3857 = vrot.lane.b32.xlu0 %v3602, 118
    %v3858 = vpop.permute.xlu0 %3857
    %3859 = vrot.lane.b32.xlu0 %v3603, 118
    %v3860 = vpop.permute.xlu0 %3859
    %3861 = vrot.lane.b32.xlu0 %v3604, 118
    %v3862 = vpop.permute.xlu0 %3861
    %3863 = vrot.lane.b32.xlu0 %v3605, 118
    %v3864 = vpop.permute.xlu0 %3863
    %3865 = vrot.lane.b32.xlu0 %v3606, 118
    %v3866 = vpop.permute.xlu0 %3865
    %3867 = vrot.lane.b32.xlu0 %v3607, 118
    %v3868 = vpop.permute.xlu0 %3867
    %3869 = vrot.lane.b32.xlu0 %v3608, 118
    %v3870 = vpop.permute.xlu0 %3869
    %3871 = vrot.lane.b32.xlu0 %v3609, 118
    %v3872 = vpop.permute.xlu0 %3871
    %3873 = vrot.lane.b32.xlu0 %v3610, 118
    %v3874 = vpop.permute.xlu0 %3873
    %3875 = vrot.lane.b32.xlu0 %v3611, 118
    %v3876 = vpop.permute.xlu0 %3875
    %3877 = vrot.lane.b32.xlu0 %v3612, 118
    %v3878 = vpop.permute.xlu0 %3877
    %3879 = vrot.lane.b32.xlu0 %v3613, 118
    %v3880 = vpop.permute.xlu0 %3879
    %3881 = vrot.lane.b32.xlu0 %v3614, 118
    %v3882 = vpop.permute.xlu0 %3881
    %3883 = vrot.lane.b32.xlu0 %v3615, 118
    %v3884 = vpop.permute.xlu0 %3883
    %3885 = vrot.lane.b32.xlu0 %v3616, 118
    %v3886 = vpop.permute.xlu0 %3885
    %3887 = vrot.lane.b32.xlu0 %v3617, 118
    %v3888 = vpop.permute.xlu0 %3887
    %3889 = vrot.lane.b32.xlu0 %v3618, 118
    %v3890 = vpop.permute.xlu0 %3889
    %3891 = vrot.lane.b32.xlu0 %v3619, 118
    %v3892 = vpop.permute.xlu0 %3891
    %3893 = vrot.lane.b32.xlu0 %v3620, 118
    %v3894 = vpop.permute.xlu0 %3893
    %3895 = vrot.lane.b32.xlu0 %v3621, 118
    %v3896 = vpop.permute.xlu0 %3895
    %3897 = vrot.lane.b32.xlu0 %v3622, 118
    %v3898 = vpop.permute.xlu0 %3897
    %3899 = vrot.lane.b32.xlu0 %v3623, 118
    %v3900 = vpop.permute.xlu0 %3899
    %3901 = vrot.lane.b32.xlu0 %v3624, 118
    %v3902 = vpop.permute.xlu0 %3901
    %3903 = vrot.lane.b32.xlu0 %v3625, 118
    %v3904 = vpop.permute.xlu0 %3903
    %3905 = vrot.lane.b32.xlu0 %v3626, 118
    %v3906 = vpop.permute.xlu0 %3905
    %3907 = vrot.lane.b32.xlu0 %v3627, 118
    %v3908 = vpop.permute.xlu0 %3907
    %3909 = vrot.lane.b32.xlu0 %v3628, 118
    %v3910 = vpop.permute.xlu0 %3909
    %3911 = vrot.lane.b32.xlu0 %v3629, 118
    %v3912 = vpop.permute.xlu0 %3911
    %3913 = vrot.lane.b32.xlu0 %v3630, 118
    %v3914 = vpop.permute.xlu0 %3913
    %3915 = vrot.lane.b32.xlu0 %v3631, 118
    %v3916 = vpop.permute.xlu0 %3915
    %3917 = vrot.lane.b32.xlu0 %v3632, 118
    %v3918 = vpop.permute.xlu0 %3917
    %3919 = vrot.lane.b32.xlu0 %v3633, 118
    %v3920 = vpop.permute.xlu0 %3919
    %3921 = vrot.lane.b32.xlu0 %v3634, 118
    %v3922 = vpop.permute.xlu0 %3921
    %v3923 = vrot.slane %v3732, 1
    %v3924 = vrot.slane %v3734, 1
    %v3925 = vrot.slane %v3736, 1
    %v3926 = vrot.slane %v3738, 1
    %v3927 = vrot.slane %v3740, 1
    %v3928 = vrot.slane %v3742, 1
    %v3929 = vrot.slane %v3744, 1
    %v3930 = vrot.slane %v3746, 1
    %v3931 = vrot.slane %v3748, 1
    %v3932 = vrot.slane %v3750, 1
    %v3933 = vrot.slane %v3752, 1
    %v3934 = vrot.slane %v3754, 1
    %v3935 = vrot.slane %v3756, 1
    %v3936 = vrot.slane %v3758, 1
    %v3937 = vrot.slane %v3760, 1
    %v3938 = vrot.slane %v3762, 1
    %v3939 = vrot.slane %v3764, 1
    %v3940 = vrot.slane %v3766, 1
    %v3941 = vrot.slane %v3768, 1
    %v3942 = vrot.slane %v3770, 1
    %v3943 = vrot.slane %v3772, 1
    %v3944 = vrot.slane %v3774, 1
    %v3945 = vrot.slane %v3776, 1
    %v3946 = vrot.slane %v3778, 1
    %v3947 = vrot.slane %v3780, 1
    %v3948 = vrot.slane %v3782, 1
    %v3949 = vrot.slane %v3784, 1
    %v3950 = vrot.slane %v3786, 1
    %v3951 = vrot.slane %v3788, 1
    %v3952 = vrot.slane %v3790, 1
    %v3953 = vrot.slane %v3792, 1
    %v3954 = vrot.slane %v3794, 1
    %v3955 = vrot.slane %v3796, 1
    %v3956 = vrot.slane %v3798, 1
    %v3957 = vrot.slane %v3800, 1
    %v3958 = vrot.slane %v3802, 1
    %v3959 = vrot.slane %v3804, 1
    %v3960 = vrot.slane %v3806, 1
    %v3961 = vrot.slane %v3808, 1
    %v3962 = vrot.slane %v3810, 1
    %v3963 = vrot.slane %v3812, 1
    %v3964 = vrot.slane %v3814, 1
    %v3965 = vrot.slane %v3816, 1
    %v3966 = vrot.slane %v3818, 1
    %v3967 = vrot.slane %v3820, 1
    %v3968 = vrot.slane %v3822, 1
    %v3969 = vrot.slane %v3824, 1
    %v3970 = vrot.slane %v3826, 1
    %v3971 = vrot.slane %v3828, 1
    %v3972 = vrot.slane %v3830, 1
    %v3973 = vrot.slane %v3832, 1
    %v3974 = vrot.slane %v3834, 1
    %v3975 = vrot.slane %v3836, 1
    %v3976 = vrot.slane %v3838, 1
    %v3977 = vrot.slane %v3840, 1
    %v3978 = vrot.slane %v3842, 1
    %v3979 = vrot.slane %v3844, 1
    %v3980 = vrot.slane %v3846, 1
    %v3981 = vrot.slane %v3848, 1
    %v3982 = vrot.slane %v3850, 1
    %v3983 = vrot.slane %v3852, 1
    %v3984 = vrot.slane %v3854, 1
    %v3985 = vrot.slane %v3856, 1
    %v3986 = vrot.slane %v3858, 1
    %v3987 = vrot.slane %v3860, 1
    %v3988 = vrot.slane %v3862, 1
    %v3989 = vrot.slane %v3864, 1
    %v3990 = vrot.slane %v3866, 1
    %v3991 = vrot.slane %v3868, 1
    %v3992 = vrot.slane %v3870, 1
    %v3993 = vrot.slane %v3872, 1
    %v3994 = vrot.slane %v3874, 1
    %v3995 = vrot.slane %v3876, 1
    %v3996 = vrot.slane %v3878, 1
    %v3997 = vrot.slane %v3880, 1
    %v3998 = vrot.slane %v3882, 1
    %v3999 = vrot.slane %v3884, 1
    %v4000 = vrot.slane %v3886, 1
    %v4001 = vrot.slane %v3888, 1
    %v4002 = vrot.slane %v3890, 1
    %v4003 = vrot.slane %v3892, 1
    %v4004 = vrot.slane %v3894, 1
    %v4005 = vrot.slane %v3896, 1
    %v4006 = vrot.slane %v3898, 1
    %v4007 = vrot.slane %v3900, 1
    %v4008 = vrot.slane %v3902, 1
    %v4009 = vrot.slane %v3904, 1
    %v4010 = vrot.slane %v3906, 1
    %v4011 = vrot.slane %v3908, 1
    %v4012 = vrot.slane %v3910, 1
    %v4013 = vrot.slane %v3912, 1
    %v4014 = vrot.slane %v3914, 1
    %v4015 = vrot.slane %v3916, 1
    %v4016 = vrot.slane %v3918, 1
    %v4017 = vrot.slane %v3920, 1
    %v4018 = vrot.slane %v3922, 1
    %vm4019 = vcmask 965632
    %v4020 = vsel %vm4019, %v3732, %v3923
    %v4021 = vsel %vm4019, %v3734, %v3924
    %v4022 = vsel %vm4019, %v3736, %v3925
    %v4023 = vsel %vm4019, %v3738, %v3926
    %v4024 = vsel %vm4019, %v3740, %v3927
    %v4025 = vsel %vm4019, %v3742, %v3928
    %v4026 = vsel %vm4019, %v3744, %v3929
    %v4027 = vsel %vm4019, %v3746, %v3930
    %v4028 = vsel %vm4019, %v3748, %v3931
    %v4029 = vsel %vm4019, %v3750, %v3932
    %v4030 = vsel %vm4019, %v3752, %v3933
    %v4031 = vsel %vm4019, %v3754, %v3934
    %v4032 = vsel %vm4019, %v3756, %v3935
    %v4033 = vsel %vm4019, %v3758, %v3936
    %v4034 = vsel %vm4019, %v3760, %v3937
    %v4035 = vsel %vm4019, %v3762, %v3938
    %v4036 = vsel %vm4019, %v3764, %v3939
    %v4037 = vsel %vm4019, %v3766, %v3940
    %v4038 = vsel %vm4019, %v3768, %v3941
    %v4039 = vsel %vm4019, %v3770, %v3942
    %v4040 = vsel %vm4019, %v3772, %v3943
    %v4041 = vsel %vm4019, %v3774, %v3944
    %v4042 = vsel %vm4019, %v3776, %v3945
    %v4043 = vsel %vm4019, %v3778, %v3946
    %v4044 = vsel %vm4019, %v3780, %v3947
    %v4045 = vsel %vm4019, %v3782, %v3948
    %v4046 = vsel %vm4019, %v3784, %v3949
    %v4047 = vsel %vm4019, %v3786, %v3950
    %v4048 = vsel %vm4019, %v3788, %v3951
    %v4049 = vsel %vm4019, %v3790, %v3952
    %v4050 = vsel %vm4019, %v3792, %v3953
    %v4051 = vsel %vm4019, %v3794, %v3954
    %v4052 = vsel %vm4019, %v3796, %v3955
    %v4053 = vsel %vm4019, %v3798, %v3956
    %v4054 = vsel %vm4019, %v3800, %v3957
    %v4055 = vsel %vm4019, %v3802, %v3958
    %v4056 = vsel %vm4019, %v3804, %v3959
    %v4057 = vsel %vm4019, %v3806, %v3960
    %v4058 = vsel %vm4019, %v3808, %v3961
    %v4059 = vsel %vm4019, %v3810, %v3962
    %v4060 = vsel %vm4019, %v3812, %v3963
    %v4061 = vsel %vm4019, %v3814, %v3964
    %v4062 = vsel %vm4019, %v3816, %v3965
    %v4063 = vsel %vm4019, %v3818, %v3966
    %v4064 = vsel %vm4019, %v3820, %v3967
    %v4065 = vsel %vm4019, %v3822, %v3968
    %v4066 = vsel %vm4019, %v3824, %v3969
    %v4067 = vsel %vm4019, %v3826, %v3970
    %v4068 = vsel %vm4019, %v3828, %v3971
    %v4069 = vsel %vm4019, %v3830, %v3972
    %v4070 = vsel %vm4019, %v3832, %v3973
    %v4071 = vsel %vm4019, %v3834, %v3974
    %v4072 = vsel %vm4019, %v3836, %v3975
    %v4073 = vsel %vm4019, %v3838, %v3976
    %v4074 = vsel %vm4019, %v3840, %v3977
    %v4075 = vsel %vm4019, %v3842, %v3978
    %v4076 = vsel %vm4019, %v3844, %v3979
    %v4077 = vsel %vm4019, %v3846, %v3980
    %v4078 = vsel %vm4019, %v3848, %v3981
    %v4079 = vsel %vm4019, %v3850, %v3982
    %v4080 = vsel %vm4019, %v3852, %v3983
    %v4081 = vsel %vm4019, %v3854, %v3984
    %v4082 = vsel %vm4019, %v3856, %v3985
    %v4083 = vsel %vm4019, %v3858, %v3986
    %v4084 = vsel %vm4019, %v3860, %v3987
    %v4085 = vsel %vm4019, %v3862, %v3988
    %v4086 = vsel %vm4019, %v3864, %v3989
    %v4087 = vsel %vm4019, %v3866, %v3990
    %v4088 = vsel %vm4019, %v3868, %v3991
    %v4089 = vsel %vm4019, %v3870, %v3992
    %v4090 = vsel %vm4019, %v3872, %v3993
    %v4091 = vsel %vm4019, %v3874, %v3994
    %v4092 = vsel %vm4019, %v3876, %v3995
    %v4093 = vsel %vm4019, %v3878, %v3996
    %v4094 = vsel %vm4019, %v3880, %v3997
    %v4095 = vsel %vm4019, %v3882, %v3998
    %v4096 = vsel %vm4019, %v3884, %v3999
    %v4097 = vsel %vm4019, %v3886, %v4000
    %v4098 = vsel %vm4019, %v3888, %v4001
    %v4099 = vsel %vm4019, %v3890, %v4002
    %v4100 = vsel %vm4019, %v3892, %v4003
    %v4101 = vsel %vm4019, %v3894, %v4004
    %v4102 = vsel %vm4019, %v3896, %v4005
    %v4103 = vsel %vm4019, %v3898, %v4006
    %v4104 = vsel %vm4019, %v3900, %v4007
    %v4105 = vsel %vm4019, %v3902, %v4008
    %v4106 = vsel %vm4019, %v3904, %v4009
    %v4107 = vsel %vm4019, %v3906, %v4010
    %v4108 = vsel %vm4019, %v3908, %v4011
    %v4109 = vsel %vm4019, %v3910, %v4012
    %v4110 = vsel %vm4019, %v3912, %v4013
    %v4111 = vsel %vm4019, %v3914, %v4014
    %v4112 = vsel %vm4019, %v3916, %v4015
    %v4113 = vsel %vm4019, %v3918, %v4016
    %v4114 = vsel %vm4019, %v3920, %v4017
    %v4115 = vsel %vm4019, %v3922, %v4018
    %v4212 = vmax.bf16 %v3539, %v4020
    %v4213 = vmax.bf16 %v3540, %v4021
    %v4214 = vmax.bf16 %v3541, %v4022
    %v4215 = vmax.bf16 %v3542, %v4023
    %v4216 = vmax.bf16 %v3543, %v4024
    %v4217 = vmax.bf16 %v3544, %v4025
    %v4218 = vmax.bf16 %v3545, %v4026
    %v4219 = vmax.bf16 %v3546, %v4027
    %v4220 = vmax.bf16 %v3547, %v4028
    %v4221 = vmax.bf16 %v3548, %v4029
    %v4222 = vmax.bf16 %v3549, %v4030
    %v4223 = vmax.bf16 %v3550, %v4031
    %v4224 = vmax.bf16 %v3551, %v4032
    %v4225 = vmax.bf16 %v3552, %v4033
    %v4226 = vmax.bf16 %v3553, %v4034
    %v4227 = vmax.bf16 %v3554, %v4035
    %v4228 = vmax.bf16 %v3555, %v4036
    %v4229 = vmax.bf16 %v3556, %v4037
    %v4230 = vmax.bf16 %v3557, %v4038
    %v4231 = vmax.bf16 %v3558, %v4039
    %v4232 = vmax.bf16 %v3559, %v4040
    %v4233 = vmax.bf16 %v3560, %v4041
    %v4234 = vmax.bf16 %v3561, %v4042
    %v4235 = vmax.bf16 %v3562, %v4043
    %v4236 = vmax.bf16 %v3563, %v4044
    %v4237 = vmax.bf16 %v3564, %v4045
    %v4238 = vmax.bf16 %v3565, %v4046
    %v4239 = vmax.bf16 %v3566, %v4047
    %v4240 = vmax.bf16 %v3567, %v4048
    %v4241 = vmax.bf16 %v3568, %v4049
    %v4242 = vmax.bf16 %v3569, %v4050
    %v4243 = vmax.bf16 %v3570, %v4051
    %v4244 = vmax.bf16 %v3571, %v4052
    %v4245 = vmax.bf16 %v3572, %v4053
    %v4246 = vmax.bf16 %v3573, %v4054
    %v4247 = vmax.bf16 %v3574, %v4055
    %v4248 = vmax.bf16 %v3575, %v4056
    %v4249 = vmax.bf16 %v3576, %v4057
    %v4250 = vmax.bf16 %v3577, %v4058
    %v4251 = vmax.bf16 %v3578, %v4059
    %v4252 = vmax.bf16 %v3579, %v4060
    %v4253 = vmax.bf16 %v3580, %v4061
    %v4254 = vmax.bf16 %v3581, %v4062
    %v4255 = vmax.bf16 %v3582, %v4063
    %v4256 = vmax.bf16 %v3583, %v4064
    %v4257 = vmax.bf16 %v3584, %v4065
    %v4258 = vmax.bf16 %v3585, %v4066
    %v4259 = vmax.bf16 %v3586, %v4067
    %v4260 = vmax.bf16 %v3587, %v4068
    %v4261 = vmax.bf16 %v3588, %v4069
    %v4262 = vmax.bf16 %v3589, %v4070
    %v4263 = vmax.bf16 %v3590, %v4071
    %v4264 = vmax.bf16 %v3591, %v4072
    %v4265 = vmax.bf16 %v3592, %v4073
    %v4266 = vmax.bf16 %v3593, %v4074
    %v4267 = vmax.bf16 %v3594, %v4075
    %v4268 = vmax.bf16 %v3595, %v4076
    %v4269 = vmax.bf16 %v3596, %v4077
    %v4270 = vmax.bf16 %v3597, %v4078
    %v4271 = vmax.bf16 %v3598, %v4079
    %v4272 = vmax.bf16 %v3599, %v4080
    %v4273 = vmax.bf16 %v3600, %v4081
    %v4274 = vmax.bf16 %v3601, %v4082
    %v4275 = vmax.bf16 %v3602, %v4083
    %v4276 = vmax.bf16 %v3603, %v4084
    %v4277 = vmax.bf16 %v3604, %v4085
    %v4278 = vmax.bf16 %v3605, %v4086
    %v4279 = vmax.bf16 %v3606, %v4087
    %v4280 = vmax.bf16 %v3607, %v4088
    %v4281 = vmax.bf16 %v3608, %v4089
    %v4282 = vmax.bf16 %v3609, %v4090
    %v4283 = vmax.bf16 %v3610, %v4091
    %v4284 = vmax.bf16 %v3611, %v4092
    %v4285 = vmax.bf16 %v3612, %v4093
    %v4286 = vmax.bf16 %v3613, %v4094
    %v4287 = vmax.bf16 %v3614, %v4095
    %v4288 = vmax.bf16 %v3615, %v4096
    %v4289 = vmax.bf16 %v3616, %v4097
    %v4290 = vmax.bf16 %v3617, %v4098
    %v4291 = vmax.bf16 %v3618, %v4099
    %v4292 = vmax.bf16 %v3619, %v4100
    %v4293 = vmax.bf16 %v3620, %v4101
    %v4294 = vmax.bf16 %v3621, %v4102
    %v4295 = vmax.bf16 %v3622, %v4103
    %v4296 = vmax.bf16 %v3623, %v4104
    %v4297 = vmax.bf16 %v3624, %v4105
    %v4298 = vmax.bf16 %v3625, %v4106
    %v4299 = vmax.bf16 %v3626, %v4107
    %v4300 = vmax.bf16 %v3627, %v4108
    %v4301 = vmax.bf16 %v3628, %v4109
    %v4302 = vmax.bf16 %v3629, %v4110
    %v4303 = vmax.bf16 %v3630, %v4111
    %v4304 = vmax.bf16 %v3631, %v4112
    %v4305 = vmax.bf16 %v3632, %v4113
    %v4306 = vmax.bf16 %v3633, %v4114
    %v4307 = vmax.bf16 %v3634, %v4115
    %v4308 = vld [vmem:[%s3] sm:$0xff]
    %v4309 = vld [vmem:[%s3 + $0x8] sm:$0xff]
    %v4310 = vld [vmem:[%s3 + $0x10] sm:$0xff]
    %v4311 = vld [vmem:[%s3 + $0x18] sm:$0xff]
    %v4312 = vld [vmem:[%s3 + $0x20] sm:$0xff]
    %v4313 = vld [vmem:[%s3 + $0x28] sm:$0xff]
    %v4314 = vld [vmem:[%s3 + $0x30] sm:$0xff]
    %v4315 = vld [vmem:[%s3 + $0x38] sm:$0xff]
    %v4316 = vld [vmem:[%s3 + $0x40] sm:$0xff]
    %v4317 = vld [vmem:[%s3 + $0x48] sm:$0xff]
    %v4318 = vld [vmem:[%s3 + $0x50] sm:$0xff]
    %v4319 = vld [vmem:[%s3 + $0x58] sm:$0xff]
    %v4320 = vld [vmem:[%s3 + $0x60] sm:$0xff]
    %v4321 = vld [vmem:[%s3 + $0x68] sm:$0xff]
    %v4322 = vld [vmem:[%s3 + $0x70] sm:$0xff]
    %v4323 = vld [vmem:[%s3 + $0x78] sm:$0xff]
    %v4324 = vld [vmem:[%s3 + $0x80] sm:$0xff]
    %v4325 = vld [vmem:[%s3 + $0x88] sm:$0xff]
    %v4326 = vld [vmem:[%s3 + $0x90] sm:$0xff]
    %v4327 = vld [vmem:[%s3 + $0x98] sm:$0xff]
    %v4328 = vld [vmem:[%s3 + $0xa0] sm:$0xff]
    %v4329 = vld [vmem:[%s3 + $0xa8] sm:$0xff]
    %v4330 = vld [vmem:[%s3 + $0xb0] sm:$0xff]
    %v4331 = vld [vmem:[%s3 + $0xb8] sm:$0xff]
    %v4332 = vld [vmem:[%s3 + $0xc0] sm:$0xff]
    %v4333 = vld [vmem:[%s3 + $0xc8] sm:$0xff]
    %v4334 = vld [vmem:[%s3 + $0xd0] sm:$0xff]
    %v4335 = vld [vmem:[%s3 + $0xd8] sm:$0xff]
    %v4336 = vld [vmem:[%s3 + $0xe0] sm:$0x77]
    %s4337 = scalar_lea.vmem %s3, 232
    %v4338 = vld [vmem:[%s4337] sm:$0xff]
    %v4339 = vld [vmem:[%s4337 + $0x8] sm:$0xff]
    %v4340 = vld [vmem:[%s4337 + $0x10] sm:$0xff]
    %v4341 = vld [vmem:[%s4337 + $0x18] sm:$0xff]
    %v4342 = vld [vmem:[%s4337 + $0x20] sm:$0xff]
    %v4343 = vld [vmem:[%s4337 + $0x28] sm:$0xff]
    %v4344 = vld [vmem:[%s4337 + $0x30] sm:$0xff]
    %v4345 = vld [vmem:[%s4337 + $0x38] sm:$0xff]
    %v4346 = vld [vmem:[%s4337 + $0x40] sm:$0xff]
    %v4347 = vld [vmem:[%s4337 + $0x48] sm:$0xff]
    %v4348 = vld [vmem:[%s4337 + $0x50] sm:$0xff]
    %v4349 = vld [vmem:[%s4337 + $0x58] sm:$0xff]
    %v4350 = vld [vmem:[%s4337 + $0x60] sm:$0xff]
    %v4351 = vld [vmem:[%s4337 + $0x68] sm:$0xff]
    %v4352 = vld [vmem:[%s4337 + $0x70] sm:$0xff]
    %v4353 = vld [vmem:[%s4337 + $0x78] sm:$0xff]
    %v4354 = vld [vmem:[%s4337 + $0x80] sm:$0xff]
    %v4355 = vld [vmem:[%s4337 + $0x88] sm:$0xff]
    %v4356 = vld [vmem:[%s4337 + $0x90] sm:$0xff]
    %v4357 = vld [vmem:[%s4337 + $0x98] sm:$0xff]
    %v4358 = vld [vmem:[%s4337 + $0xa0] sm:$0xff]
    %v4359 = vld [vmem:[%s4337 + $0xa8] sm:$0xff]
    %v4360 = vld [vmem:[%s4337 + $0xb0] sm:$0xff]
    %v4361 = vld [vmem:[%s4337 + $0xb8] sm:$0xff]
    %v4362 = vld [vmem:[%s4337 + $0xc0] sm:$0xff]
    %v4363 = vld [vmem:[%s4337 + $0xc8] sm:$0xff]
    %v4364 = vld [vmem:[%s4337 + $0xd0] sm:$0xff]
    %v4365 = vld [vmem:[%s4337 + $0xd8] sm:$0xff]
    %v4366 = vld [vmem:[%s4337 + $0xe0] sm:$0x77]
    %v4432 = vunpack.c.l.s4 1966171168
    %v4433 = vunpack.c.0.s8 %v4432
    %v4434 = vlaneseq
    %v4435 = vshrl.u32 %v4434, 7
    %v4436 = vsub.s32 %v4433, %v4435
    %v4437 = vrot.slane %v4213, %v4436
    %v4438 = vcombine.high %v4437, %v4437
    %v4440 = vunpack.c.l.s4 1966171168
    %v4441 = vunpack.c.0.s8 %v4440
    %v4442 = vlaneseq
    %v4443 = vshrl.u32 %v4442, 7
    %v4444 = vsub.s32 %v4441, %v4443
    %v4445 = vrot.slane %v4437, %v4444
    %v4447 = vunpack.c.l.s4 1966171168
    %v4448 = vunpack.c.0.s8 %v4447
    %v4449 = vlaneseq
    %v4450 = vshrl.u32 %v4449, 7
    %v4451 = vsub.s32 %v4448, %v4450
    %v4452 = vrot.slane %v4438, %v4451
    %v4454 = vunpack.c.l.s4 1966171168
    %v4455 = vunpack.c.0.s8 %v4454
    %v4456 = vlaneseq
    %v4457 = vshrl.u32 %v4456, 7
    %v4458 = vsub.s32 %v4455, %v4457
    %v4459 = vrot.slane %v4214, %v4458
    %v4460 = vcombine.high %v4459, %v4459
    %v4462 = vunpack.c.l.s4 1966171168
    %v4463 = vunpack.c.0.s8 %v4462
    %v4464 = vlaneseq
    %v4465 = vshrl.u32 %v4464, 7
    %v4466 = vsub.s32 %v4463, %v4465
    %v4467 = vrot.slane %v4459, %v4466
    %v4469 = vunpack.c.l.s4 1966171168
    %v4470 = vunpack.c.0.s8 %v4469
    %v4471 = vlaneseq
    %v4472 = vshrl.u32 %v4471, 7
    %v4473 = vsub.s32 %v4470, %v4472
    %v4474 = vrot.slane %v4460, %v4473
    %v4476 = vunpack.c.l.s4 1966171168
    %v4477 = vunpack.c.0.s8 %v4476
    %v4478 = vlaneseq
    %v4479 = vshrl.u32 %v4478, 7
    %v4480 = vsub.s32 %v4477, %v4479
    %v4481 = vrot.slane %v4215, %v4480
    %v4482 = vcombine.high %v4481, %v4481
    %v4484 = vunpack.c.l.s4 1966171168
    %v4485 = vunpack.c.0.s8 %v4484
    %v4486 = vlaneseq
    %v4487 = vshrl.u32 %v4486, 7
    %v4488 = vsub.s32 %v4485, %v4487
    %v4489 = vrot.slane %v4481, %v4488
    %v4491 = vunpack.c.l.s4 1966171168
    %v4492 = vunpack.c.0.s8 %v4491
    %v4493 = vlaneseq
    %v4494 = vshrl.u32 %v4493, 7
    %v4495 = vsub.s32 %v4492, %v4494
    %v4496 = vrot.slane %v4482, %v4495
    %v4498 = vunpack.c.l.s4 1966171168
    %v4499 = vunpack.c.0.s8 %v4498
    %v4500 = vlaneseq
    %v4501 = vshrl.u32 %v4500, 7
    %v4502 = vsub.s32 %v4499, %v4501
    %v4503 = vrot.slane %v4216, %v4502
    %v4504 = vcombine.high %v4503, %v4503
    %v4506 = vunpack.c.l.s4 1966171168
    %v4507 = vunpack.c.0.s8 %v4506
    %v4508 = vlaneseq
    %v4509 = vshrl.u32 %v4508, 7
    %v4510 = vsub.s32 %v4507, %v4509
    %v4511 = vrot.slane %v4503, %v4510
    %v4513 = vunpack.c.l.s4 1966171168
    %v4514 = vunpack.c.0.s8 %v4513
    %v4515 = vlaneseq
    %v4516 = vshrl.u32 %v4515, 7
    %v4517 = vsub.s32 %v4514, %v4516
    %v4518 = vrot.slane %v4504, %v4517
    %v4520 = vunpack.c.l.s4 1966171168
    %v4521 = vunpack.c.0.s8 %v4520
    %v4522 = vlaneseq
    %v4523 = vshrl.u32 %v4522, 7
    %v4524 = vsub.s32 %v4521, %v4523
    %v4525 = vrot.slane %v4217, %v4524
    %v4526 = vcombine.high %v4525, %v4525
    %v4528 = vunpack.c.l.s4 1966171168
    %v4529 = vunpack.c.0.s8 %v4528
    %v4530 = vlaneseq
    %v4531 = vshrl.u32 %v4530, 7
    %v4532 = vsub.s32 %v4529, %v4531
    %v4533 = vrot.slane %v4525, %v4532
    %v4535 = vunpack.c.l.s4 1966171168
    %v4536 = vunpack.c.0.s8 %v4535
    %v4537 = vlaneseq
    %v4538 = vshrl.u32 %v4537, 7
    %v4539 = vsub.s32 %v4536, %v4538
    %v4540 = vrot.slane %v4526, %v4539
    %v4542 = vunpack.c.l.s4 1966171168
    %v4543 = vunpack.c.0.s8 %v4542
    %v4544 = vlaneseq
    %v4545 = vshrl.u32 %v4544, 7
    %v4546 = vsub.s32 %v4543, %v4545
    %v4547 = vrot.slane %v4218, %v4546
    %v4548 = vcombine.high %v4547, %v4547
    %v4550 = vunpack.c.l.s4 1966171168
    %v4551 = vunpack.c.0.s8 %v4550
    %v4552 = vlaneseq
    %v4553 = vshrl.u32 %v4552, 7
    %v4554 = vsub.s32 %v4551, %v4553
    %v4555 = vrot.slane %v4547, %v4554
    %v4557 = vunpack.c.l.s4 1966171168
    %v4558 = vunpack.c.0.s8 %v4557
    %v4559 = vlaneseq
    %v4560 = vshrl.u32 %v4559, 7
    %v4561 = vsub.s32 %v4558, %v4560
    %v4562 = vrot.slane %v4548, %v4561
    %v4564 = vunpack.c.l.s4 1966171168
    %v4565 = vunpack.c.0.s8 %v4564
    %v4566 = vlaneseq
    %v4567 = vshrl.u32 %v4566, 7
    %v4568 = vsub.s32 %v4565, %v4567
    %v4569 = vrot.slane %v4219, %v4568
    %v4570 = vcombine.high %v4569, %v4569
    %v4572 = vunpack.c.l.s4 1966171168
    %v4573 = vunpack.c.0.s8 %v4572
    %v4574 = vlaneseq
    %v4575 = vshrl.u32 %v4574, 7
    %v4576 = vsub.s32 %v4573, %v4575
    %v4577 = vrot.slane %v4569, %v4576
    %v4579 = vunpack.c.l.s4 1966171168
    %v4580 = vunpack.c.0.s8 %v4579
    %v4581 = vlaneseq
    %v4582 = vshrl.u32 %v4581, 7
    %v4583 = vsub.s32 %v4580, %v4582
    %v4584 = vrot.slane %v4570, %v4583
    %v4586 = vunpack.c.l.s4 1966171168
    %v4587 = vunpack.c.0.s8 %v4586
    %v4588 = vlaneseq
    %v4589 = vshrl.u32 %v4588, 7
    %v4590 = vsub.s32 %v4587, %v4589
    %v4591 = vrot.slane %v4220, %v4590
    %v4592 = vcombine.high %v4591, %v4591
    %v4594 = vunpack.c.l.s4 1966171168
    %v4595 = vunpack.c.0.s8 %v4594
    %v4596 = vlaneseq
    %v4597 = vshrl.u32 %v4596, 7
    %v4598 = vsub.s32 %v4595, %v4597
    %v4599 = vrot.slane %v4591, %v4598
    %v4601 = vunpack.c.l.s4 1966171168
    %v4602 = vunpack.c.0.s8 %v4601
    %v4603 = vlaneseq
    %v4604 = vshrl.u32 %v4603, 7
    %v4605 = vsub.s32 %v4602, %v4604
    %v4606 = vrot.slane %v4592, %v4605
    %v4608 = vunpack.c.l.s4 1966171168
    %v4609 = vunpack.c.0.s8 %v4608
    %v4610 = vlaneseq
    %v4611 = vshrl.u32 %v4610, 7
    %v4612 = vsub.s32 %v4609, %v4611
    %v4613 = vrot.slane %v4225, %v4612
    %v4614 = vcombine.high %v4613, %v4613
    %v4616 = vunpack.c.l.s4 1966171168
    %v4617 = vunpack.c.0.s8 %v4616
    %v4618 = vlaneseq
    %v4619 = vshrl.u32 %v4618, 7
    %v4620 = vsub.s32 %v4617, %v4619
    %v4621 = vrot.slane %v4613, %v4620
    %v4623 = vunpack.c.l.s4 1966171168
    %v4624 = vunpack.c.0.s8 %v4623
    %v4625 = vlaneseq
    %v4626 = vshrl.u32 %v4625, 7
    %v4627 = vsub.s32 %v4624, %v4626
    %v4628 = vrot.slane %v4614, %v4627
    %v4630 = vunpack.c.l.s4 1966171168
    %v4631 = vunpack.c.0.s8 %v4630
    %v4632 = vlaneseq
    %v4633 = vshrl.u32 %v4632, 7
    %v4634 = vsub.s32 %v4631, %v4633
    %v4635 = vrot.slane %v4226, %v4634
    %v4636 = vcombine.high %v4635, %v4635
    %v4638 = vunpack.c.l.s4 1966171168
    %v4639 = vunpack.c.0.s8 %v4638
    %v4640 = vlaneseq
    %v4641 = vshrl.u32 %v4640, 7
    %v4642 = vsub.s32 %v4639, %v4641
    %v4643 = vrot.slane %v4635, %v4642
    %v4645 = vunpack.c.l.s4 1966171168
    %v4646 = vunpack.c.0.s8 %v4645
    %v4647 = vlaneseq
    %v4648 = vshrl.u32 %v4647, 7
    %v4649 = vsub.s32 %v4646, %v4648
    %v4650 = vrot.slane %v4636, %v4649
    %v4652 = vunpack.c.l.s4 1966171168
    %v4653 = vunpack.c.0.s8 %v4652
    %v4654 = vlaneseq
    %v4655 = vshrl.u32 %v4654, 7
    %v4656 = vsub.s32 %v4653, %v4655
    %v4657 = vrot.slane %v4227, %v4656
    %v4658 = vcombine.high %v4657, %v4657
    %v4660 = vunpack.c.l.s4 1966171168
    %v4661 = vunpack.c.0.s8 %v4660
    %v4662 = vlaneseq
    %v4663 = vshrl.u32 %v4662, 7
    %v4664 = vsub.s32 %v4661, %v4663
    %v4665 = vrot.slane %v4657, %v4664
    %v4667 = vunpack.c.l.s4 1966171168
    %v4668 = vunpack.c.0.s8 %v4667
    %v4669 = vlaneseq
    %v4670 = vshrl.u32 %v4669, 7
    %v4671 = vsub.s32 %v4668, %v4670
    %v4672 = vrot.slane %v4658, %v4671
    %v4674 = vunpack.c.l.s4 1966171168
    %v4675 = vunpack.c.0.s8 %v4674
    %v4676 = vlaneseq
    %v4677 = vshrl.u32 %v4676, 7
    %v4678 = vsub.s32 %v4675, %v4677
    %v4679 = vrot.slane %v4228, %v4678
    %v4680 = vcombine.high %v4679, %v4679
    %v4682 = vunpack.c.l.s4 1966171168
    %v4683 = vunpack.c.0.s8 %v4682
    %v4684 = vlaneseq
    %v4685 = vshrl.u32 %v4684, 7
    %v4686 = vsub.s32 %v4683, %v4685
    %v4687 = vrot.slane %v4679, %v4686
    %v4689 = vunpack.c.l.s4 1966171168
    %v4690 = vunpack.c.0.s8 %v4689
    %v4691 = vlaneseq
    %v4692 = vshrl.u32 %v4691, 7
    %v4693 = vsub.s32 %v4690, %v4692
    %v4694 = vrot.slane %v4680, %v4693
    %v4696 = vunpack.c.l.s4 1966171168
    %v4697 = vunpack.c.0.s8 %v4696
    %v4698 = vlaneseq
    %v4699 = vshrl.u32 %v4698, 7
    %v4700 = vsub.s32 %v4697, %v4699
    %v4701 = vrot.slane %v4229, %v4700
    %v4702 = vcombine.high %v4701, %v4701
    %v4704 = vunpack.c.l.s4 1966171168
    %v4705 = vunpack.c.0.s8 %v4704
    %v4706 = vlaneseq
    %v4707 = vshrl.u32 %v4706, 7
    %v4708 = vsub.s32 %v4705, %v4707
    %v4709 = vrot.slane %v4701, %v4708
    %v4711 = vunpack.c.l.s4 1966171168
    %v4712 = vunpack.c.0.s8 %v4711
    %v4713 = vlaneseq
    %v4714 = vshrl.u32 %v4713, 7
    %v4715 = vsub.s32 %v4712, %v4714
    %v4716 = vrot.slane %v4702, %v4715
    %v4718 = vunpack.c.l.s4 1966171168
    %v4719 = vunpack.c.0.s8 %v4718
    %v4720 = vlaneseq
    %v4721 = vshrl.u32 %v4720, 7
    %v4722 = vsub.s32 %v4719, %v4721
    %v4723 = vrot.slane %v4230, %v4722
    %v4724 = vcombine.high %v4723, %v4723
    %v4726 = vunpack.c.l.s4 1966171168
    %v4727 = vunpack.c.0.s8 %v4726
    %v4728 = vlaneseq
    %v4729 = vshrl.u32 %v4728, 7
    %v4730 = vsub.s32 %v4727, %v4729
    %v4731 = vrot.slane %v4723, %v4730
    %v4733 = vunpack.c.l.s4 1966171168
    %v4734 = vunpack.c.0.s8 %v4733
    %v4735 = vlaneseq
    %v4736 = vshrl.u32 %v4735, 7
    %v4737 = vsub.s32 %v4734, %v4736
    %v4738 = vrot.slane %v4724, %v4737
    %v4740 = vunpack.c.l.s4 1966171168
    %v4741 = vunpack.c.0.s8 %v4740
    %v4742 = vlaneseq
    %v4743 = vshrl.u32 %v4742, 7
    %v4744 = vsub.s32 %v4741, %v4743
    %v4745 = vrot.slane %v4231, %v4744
    %v4746 = vcombine.high %v4745, %v4745
    %v4748 = vunpack.c.l.s4 1966171168
    %v4749 = vunpack.c.0.s8 %v4748
    %v4750 = vlaneseq
    %v4751 = vshrl.u32 %v4750, 7
    %v4752 = vsub.s32 %v4749, %v4751
    %v4753 = vrot.slane %v4745, %v4752
    %v4755 = vunpack.c.l.s4 1966171168
    %v4756 = vunpack.c.0.s8 %v4755
    %v4757 = vlaneseq
    %v4758 = vshrl.u32 %v4757, 7
    %v4759 = vsub.s32 %v4756, %v4758
    %v4760 = vrot.slane %v4746, %v4759
    %v4762 = vunpack.c.l.s4 1966171168
    %v4763 = vunpack.c.0.s8 %v4762
    %v4764 = vlaneseq
    %v4765 = vshrl.u32 %v4764, 7
    %v4766 = vsub.s32 %v4763, %v4765
    %v4767 = vrot.slane %v4232, %v4766
    %v4768 = vcombine.high %v4767, %v4767
    %v4770 = vunpack.c.l.s4 1966171168
    %v4771 = vunpack.c.0.s8 %v4770
    %v4772 = vlaneseq
    %v4773 = vshrl.u32 %v4772, 7
    %v4774 = vsub.s32 %v4771, %v4773
    %v4775 = vrot.slane %v4767, %v4774
    %v4777 = vunpack.c.l.s4 1966171168
    %v4778 = vunpack.c.0.s8 %v4777
    %v4779 = vlaneseq
    %v4780 = vshrl.u32 %v4779, 7
    %v4781 = vsub.s32 %v4778, %v4780
    %v4782 = vrot.slane %v4768, %v4781
    %v4784 = vunpack.c.l.s4 1966171168
    %v4785 = vunpack.c.0.s8 %v4784
    %v4786 = vlaneseq
    %v4787 = vshrl.u32 %v4786, 7
    %v4788 = vsub.s32 %v4785, %v4787
    %v4789 = vrot.slane %v4237, %v4788
    %v4790 = vcombine.high %v4789, %v4789
    %v4792 = vunpack.c.l.s4 1966171168
    %v4793 = vunpack.c.0.s8 %v4792
    %v4794 = vlaneseq
    %v4795 = vshrl.u32 %v4794, 7
    %v4796 = vsub.s32 %v4793, %v4795
    %v4797 = vrot.slane %v4789, %v4796
    %v4799 = vunpack.c.l.s4 1966171168
    %v4800 = vunpack.c.0.s8 %v4799
    %v4801 = vlaneseq
    %v4802 = vshrl.u32 %v4801, 7
    %v4803 = vsub.s32 %v4800, %v4802
    %v4804 = vrot.slane %v4790, %v4803
    %v4806 = vunpack.c.l.s4 1966171168
    %v4807 = vunpack.c.0.s8 %v4806
    %v4808 = vlaneseq
    %v4809 = vshrl.u32 %v4808, 7
    %v4810 = vsub.s32 %v4807, %v4809
    %v4811 = vrot.slane %v4238, %v4810
    %v4812 = vcombine.high %v4811, %v4811
    %v4814 = vunpack.c.l.s4 1966171168
    %v4815 = vunpack.c.0.s8 %v4814
    %v4816 = vlaneseq
    %v4817 = vshrl.u32 %v4816, 7
    %v4818 = vsub.s32 %v4815, %v4817
    %v4819 = vrot.slane %v4811, %v4818
    %v4821 = vunpack.c.l.s4 1966171168
    %v4822 = vunpack.c.0.s8 %v4821
    %v4823 = vlaneseq
    %v4824 = vshrl.u32 %v4823, 7
    %v4825 = vsub.s32 %v4822, %v4824
    %v4826 = vrot.slane %v4812, %v4825
    %v4828 = vunpack.c.l.s4 1966171168
    %v4829 = vunpack.c.0.s8 %v4828
    %v4830 = vlaneseq
    %v4831 = vshrl.u32 %v4830, 7
    %v4832 = vsub.s32 %v4829, %v4831
    %v4833 = vrot.slane %v4239, %v4832
    %v4834 = vcombine.high %v4833, %v4833
    %v4836 = vunpack.c.l.s4 1966171168
    %v4837 = vunpack.c.0.s8 %v4836
    %v4838 = vlaneseq
    %v4839 = vshrl.u32 %v4838, 7
    %v4840 = vsub.s32 %v4837, %v4839
    %v4841 = vrot.slane %v4833, %v4840
    %v4843 = vunpack.c.l.s4 1966171168
    %v4844 = vunpack.c.0.s8 %v4843
    %v4845 = vlaneseq
    %v4846 = vshrl.u32 %v4845, 7
    %v4847 = vsub.s32 %v4844, %v4846
    %v4848 = vrot.slane %v4834, %v4847
    %v4850 = vunpack.c.l.s4 1966171168
    %v4851 = vunpack.c.0.s8 %v4850
    %v4852 = vlaneseq
    %v4853 = vshrl.u32 %v4852, 7
    %v4854 = vsub.s32 %v4851, %v4853
    %v4855 = vrot.slane %v4240, %v4854
    %v4856 = vcombine.high %v4855, %v4855
    %v4858 = vunpack.c.l.s4 1966171168
    %v4859 = vunpack.c.0.s8 %v4858
    %v4860 = vlaneseq
    %v4861 = vshrl.u32 %v4860, 7
    %v4862 = vsub.s32 %v4859, %v4861
    %v4863 = vrot.slane %v4855, %v4862
    %v4865 = vunpack.c.l.s4 1966171168
    %v4866 = vunpack.c.0.s8 %v4865
    %v4867 = vlaneseq
    %v4868 = vshrl.u32 %v4867, 7
    %v4869 = vsub.s32 %v4866, %v4868
    %v4870 = vrot.slane %v4856, %v4869
    %v4872 = vunpack.c.l.s4 1966171168
    %v4873 = vunpack.c.0.s8 %v4872
    %v4874 = vlaneseq
    %v4875 = vshrl.u32 %v4874, 7
    %v4876 = vsub.s32 %v4873, %v4875
    %v4877 = vrot.slane %v4241, %v4876
    %v4878 = vcombine.high %v4877, %v4877
    %v4880 = vunpack.c.l.s4 1966171168
    %v4881 = vunpack.c.0.s8 %v4880
    %v4882 = vlaneseq
    %v4883 = vshrl.u32 %v4882, 7
    %v4884 = vsub.s32 %v4881, %v4883
    %v4885 = vrot.slane %v4877, %v4884
    %v4887 = vunpack.c.l.s4 1966171168
    %v4888 = vunpack.c.0.s8 %v4887
    %v4889 = vlaneseq
    %v4890 = vshrl.u32 %v4889, 7
    %v4891 = vsub.s32 %v4888, %v4890
    %v4892 = vrot.slane %v4878, %v4891
    %v4894 = vunpack.c.l.s4 1966171168
    %v4895 = vunpack.c.0.s8 %v4894
    %v4896 = vlaneseq
    %v4897 = vshrl.u32 %v4896, 7
    %v4898 = vsub.s32 %v4895, %v4897
    %v4899 = vrot.slane %v4242, %v4898
    %v4900 = vcombine.high %v4899, %v4899
    %v4902 = vunpack.c.l.s4 1966171168
    %v4903 = vunpack.c.0.s8 %v4902
    %v4904 = vlaneseq
    %v4905 = vshrl.u32 %v4904, 7
    %v4906 = vsub.s32 %v4903, %v4905
    %v4907 = vrot.slane %v4899, %v4906
    %v4909 = vunpack.c.l.s4 1966171168
    %v4910 = vunpack.c.0.s8 %v4909
    %v4911 = vlaneseq
    %v4912 = vshrl.u32 %v4911, 7
    %v4913 = vsub.s32 %v4910, %v4912
    %v4914 = vrot.slane %v4900, %v4913
    %v4916 = vunpack.c.l.s4 1966171168
    %v4917 = vunpack.c.0.s8 %v4916
    %v4918 = vlaneseq
    %v4919 = vshrl.u32 %v4918, 7
    %v4920 = vsub.s32 %v4917, %v4919
    %v4921 = vrot.slane %v4243, %v4920
    %v4922 = vcombine.high %v4921, %v4921
    %v4924 = vunpack.c.l.s4 1966171168
    %v4925 = vunpack.c.0.s8 %v4924
    %v4926 = vlaneseq
    %v4927 = vshrl.u32 %v4926, 7
    %v4928 = vsub.s32 %v4925, %v4927
    %v4929 = vrot.slane %v4921, %v4928
    %v4931 = vunpack.c.l.s4 1966171168
    %v4932 = vunpack.c.0.s8 %v4931
    %v4933 = vlaneseq
    %v4934 = vshrl.u32 %v4933, 7
    %v4935 = vsub.s32 %v4932, %v4934
    %v4936 = vrot.slane %v4922, %v4935
    %v4938 = vunpack.c.l.s4 1966171168
    %v4939 = vunpack.c.0.s8 %v4938
    %v4940 = vlaneseq
    %v4941 = vshrl.u32 %v4940, 7
    %v4942 = vsub.s32 %v4939, %v4941
    %v4943 = vrot.slane %v4244, %v4942
    %v4944 = vcombine.high %v4943, %v4943
    %v4946 = vunpack.c.l.s4 1966171168
    %v4947 = vunpack.c.0.s8 %v4946
    %v4948 = vlaneseq
    %v4949 = vshrl.u32 %v4948, 7
    %v4950 = vsub.s32 %v4947, %v4949
    %v4951 = vrot.slane %v4943, %v4950
    %v4953 = vunpack.c.l.s4 1966171168
    %v4954 = vunpack.c.0.s8 %v4953
    %v4955 = vlaneseq
    %v4956 = vshrl.u32 %v4955, 7
    %v4957 = vsub.s32 %v4954, %v4956
    %v4958 = vrot.slane %v4944, %v4957
    %v4960 = vunpack.c.l.s4 1966171168
    %v4961 = vunpack.c.0.s8 %v4960
    %v4962 = vlaneseq
    %v4963 = vshrl.u32 %v4962, 7
    %v4964 = vsub.s32 %v4961, %v4963
    %v4965 = vrot.slane %v4249, %v4964
    %v4966 = vcombine.high %v4965, %v4965
    %v4968 = vunpack.c.l.s4 1966171168
    %v4969 = vunpack.c.0.s8 %v4968
    %v4970 = vlaneseq
    %v4971 = vshrl.u32 %v4970, 7
    %v4972 = vsub.s32 %v4969, %v4971
    %v4973 = vrot.slane %v4965, %v4972
    %v4975 = vunpack.c.l.s4 1966171168
    %v4976 = vunpack.c.0.s8 %v4975
    %v4977 = vlaneseq
    %v4978 = vshrl.u32 %v4977, 7
    %v4979 = vsub.s32 %v4976, %v4978
    %v4980 = vrot.slane %v4966, %v4979
    %v4982 = vunpack.c.l.s4 1966171168
    %v4983 = vunpack.c.0.s8 %v4982
    %v4984 = vlaneseq
    %v4985 = vshrl.u32 %v4984, 7
    %v4986 = vsub.s32 %v4983, %v4985
    %v4987 = vrot.slane %v4250, %v4986
    %v4988 = vcombine.high %v4987, %v4987
    %v4990 = vunpack.c.l.s4 1966171168
    %v4991 = vunpack.c.0.s8 %v4990
    %v4992 = vlaneseq
    %v4993 = vshrl.u32 %v4992, 7
    %v4994 = vsub.s32 %v4991, %v4993
    %v4995 = vrot.slane %v4987, %v4994
    %v4997 = vunpack.c.l.s4 1966171168
    %v4998 = vunpack.c.0.s8 %v4997
    %v4999 = vlaneseq
    %v5000 = vshrl.u32 %v4999, 7
    %v5001 = vsub.s32 %v4998, %v5000
    %v5002 = vrot.slane %v4988, %v5001
    %v5004 = vunpack.c.l.s4 1966171168
    %v5005 = vunpack.c.0.s8 %v5004
    %v5006 = vlaneseq
    %v5007 = vshrl.u32 %v5006, 7
    %v5008 = vsub.s32 %v5005, %v5007
    %v5009 = vrot.slane %v4251, %v5008
    %v5010 = vcombine.high %v5009, %v5009
    %v5012 = vunpack.c.l.s4 1966171168
    %v5013 = vunpack.c.0.s8 %v5012
    %v5014 = vlaneseq
    %v5015 = vshrl.u32 %v5014, 7
    %v5016 = vsub.s32 %v5013, %v5015
    %v5017 = vrot.slane %v5009, %v5016
    %v5019 = vunpack.c.l.s4 1966171168
    %v5020 = vunpack.c.0.s8 %v5019
    %v5021 = vlaneseq
    %v5022 = vshrl.u32 %v5021, 7
    %v5023 = vsub.s32 %v5020, %v5022
    %v5024 = vrot.slane %v5010, %v5023
    %v5026 = vunpack.c.l.s4 1966171168
    %v5027 = vunpack.c.0.s8 %v5026
    %v5028 = vlaneseq
    %v5029 = vshrl.u32 %v5028, 7
    %v5030 = vsub.s32 %v5027, %v5029
    %v5031 = vrot.slane %v4252, %v5030
    %v5032 = vcombine.high %v5031, %v5031
    %v5034 = vunpack.c.l.s4 1966171168
    %v5035 = vunpack.c.0.s8 %v5034
    %v5036 = vlaneseq
    %v5037 = vshrl.u32 %v5036, 7
    %v5038 = vsub.s32 %v5035, %v5037
    %v5039 = vrot.slane %v5031, %v5038
    %v5041 = vunpack.c.l.s4 1966171168
    %v5042 = vunpack.c.0.s8 %v5041
    %v5043 = vlaneseq
    %v5044 = vshrl.u32 %v5043, 7
    %v5045 = vsub.s32 %v5042, %v5044
    %v5046 = vrot.slane %v5032, %v5045
    %v5048 = vunpack.c.l.s4 1966171168
    %v5049 = vunpack.c.0.s8 %v5048
    %v5050 = vlaneseq
    %v5051 = vshrl.u32 %v5050, 7
    %v5052 = vsub.s32 %v5049, %v5051
    %v5053 = vrot.slane %v4253, %v5052
    %v5054 = vcombine.high %v5053, %v5053
    %v5056 = vunpack.c.l.s4 1966171168
    %v5057 = vunpack.c.0.s8 %v5056
    %v5058 = vlaneseq
    %v5059 = vshrl.u32 %v5058, 7
    %v5060 = vsub.s32 %v5057, %v5059
    %v5061 = vrot.slane %v5053, %v5060
    %v5063 = vunpack.c.l.s4 1966171168
    %v5064 = vunpack.c.0.s8 %v5063
    %v5065 = vlaneseq
    %v5066 = vshrl.u32 %v5065, 7
    %v5067 = vsub.s32 %v5064, %v5066
    %v5068 = vrot.slane %v5054, %v5067
    %v5070 = vunpack.c.l.s4 1966171168
    %v5071 = vunpack.c.0.s8 %v5070
    %v5072 = vlaneseq
    %v5073 = vshrl.u32 %v5072, 7
    %v5074 = vsub.s32 %v5071, %v5073
    %v5075 = vrot.slane %v4254, %v5074
    %v5076 = vcombine.high %v5075, %v5075
    %v5078 = vunpack.c.l.s4 1966171168
    %v5079 = vunpack.c.0.s8 %v5078
    %v5080 = vlaneseq
    %v5081 = vshrl.u32 %v5080, 7
    %v5082 = vsub.s32 %v5079, %v5081
    %v5083 = vrot.slane %v5075, %v5082
    %v5085 = vunpack.c.l.s4 1966171168
    %v5086 = vunpack.c.0.s8 %v5085
    %v5087 = vlaneseq
    %v5088 = vshrl.u32 %v5087, 7
    %v5089 = vsub.s32 %v5086, %v5088
    %v5090 = vrot.slane %v5076, %v5089
    %v5092 = vunpack.c.l.s4 1966171168
    %v5093 = vunpack.c.0.s8 %v5092
    %v5094 = vlaneseq
    %v5095 = vshrl.u32 %v5094, 7
    %v5096 = vsub.s32 %v5093, %v5095
    %v5097 = vrot.slane %v4255, %v5096
    %v5098 = vcombine.high %v5097, %v5097
    %v5100 = vunpack.c.l.s4 1966171168
    %v5101 = vunpack.c.0.s8 %v5100
    %v5102 = vlaneseq
    %v5103 = vshrl.u32 %v5102, 7
    %v5104 = vsub.s32 %v5101, %v5103
    %v5105 = vrot.slane %v5097, %v5104
    %v5107 = vunpack.c.l.s4 1966171168
    %v5108 = vunpack.c.0.s8 %v5107
    %v5109 = vlaneseq
    %v5110 = vshrl.u32 %v5109, 7
    %v5111 = vsub.s32 %v5108, %v5110
    %v5112 = vrot.slane %v5098, %v5111
    %v5114 = vunpack.c.l.s4 1966171168
    %v5115 = vunpack.c.0.s8 %v5114
    %v5116 = vlaneseq
    %v5117 = vshrl.u32 %v5116, 7
    %v5118 = vsub.s32 %v5115, %v5117
    %v5119 = vrot.slane %v4256, %v5118
    %v5120 = vcombine.high %v5119, %v5119
    %v5122 = vunpack.c.l.s4 1966171168
    %v5123 = vunpack.c.0.s8 %v5122
    %v5124 = vlaneseq
    %v5125 = vshrl.u32 %v5124, 7
    %v5126 = vsub.s32 %v5123, %v5125
    %v5127 = vrot.slane %v5119, %v5126
    %v5129 = vunpack.c.l.s4 1966171168
    %v5130 = vunpack.c.0.s8 %v5129
    %v5131 = vlaneseq
    %v5132 = vshrl.u32 %v5131, 7
    %v5133 = vsub.s32 %v5130, %v5132
    %v5134 = vrot.slane %v5120, %v5133
    %v5136 = vunpack.c.l.s4 1966171168
    %v5137 = vunpack.c.0.s8 %v5136
    %v5138 = vlaneseq
    %v5139 = vshrl.u32 %v5138, 7
    %v5140 = vsub.s32 %v5137, %v5139
    %v5141 = vrot.slane %v4261, %v5140
    %v5142 = vcombine.high %v5141, %v5141
    %v5144 = vunpack.c.l.s4 1966171168
    %v5145 = vunpack.c.0.s8 %v5144
    %v5146 = vlaneseq
    %v5147 = vshrl.u32 %v5146, 7
    %v5148 = vsub.s32 %v5145, %v5147
    %v5149 = vrot.slane %v5141, %v5148
    %v5151 = vunpack.c.l.s4 1966171168
    %v5152 = vunpack.c.0.s8 %v5151
    %v5153 = vlaneseq
    %v5154 = vshrl.u32 %v5153, 7
    %v5155 = vsub.s32 %v5152, %v5154
    %v5156 = vrot.slane %v5142, %v5155
    %v5158 = vunpack.c.l.s4 1966171168
    %v5159 = vunpack.c.0.s8 %v5158
    %v5160 = vlaneseq
    %v5161 = vshrl.u32 %v5160, 7
    %v5162 = vsub.s32 %v5159, %v5161
    %v5163 = vrot.slane %v4262, %v5162
    %v5164 = vcombine.high %v5163, %v5163
    %v5166 = vunpack.c.l.s4 1966171168
    %v5167 = vunpack.c.0.s8 %v5166
    %v5168 = vlaneseq
    %v5169 = vshrl.u32 %v5168, 7
    %v5170 = vsub.s32 %v5167, %v5169
    %v5171 = vrot.slane %v5163, %v5170
    %v5173 = vunpack.c.l.s4 1966171168
    %v5174 = vunpack.c.0.s8 %v5173
    %v5175 = vlaneseq
    %v5176 = vshrl.u32 %v5175, 7
    %v5177 = vsub.s32 %v5174, %v5176
    %v5178 = vrot.slane %v5164, %v5177
    %v5180 = vunpack.c.l.s4 1966171168
    %v5181 = vunpack.c.0.s8 %v5180
    %v5182 = vlaneseq
    %v5183 = vshrl.u32 %v5182, 7
    %v5184 = vsub.s32 %v5181, %v5183
    %v5185 = vrot.slane %v4263, %v5184
    %v5186 = vcombine.high %v5185, %v5185
    %v5188 = vunpack.c.l.s4 1966171168
    %v5189 = vunpack.c.0.s8 %v5188
    %v5190 = vlaneseq
    %v5191 = vshrl.u32 %v5190, 7
    %v5192 = vsub.s32 %v5189, %v5191
    %v5193 = vrot.slane %v5185, %v5192
    %v5195 = vunpack.c.l.s4 1966171168
    %v5196 = vunpack.c.0.s8 %v5195
    %v5197 = vlaneseq
    %v5198 = vshrl.u32 %v5197, 7
    %v5199 = vsub.s32 %v5196, %v5198
    %v5200 = vrot.slane %v5186, %v5199
    %v5202 = vunpack.c.l.s4 1966171168
    %v5203 = vunpack.c.0.s8 %v5202
    %v5204 = vlaneseq
    %v5205 = vshrl.u32 %v5204, 7
    %v5206 = vsub.s32 %v5203, %v5205
    %v5207 = vrot.slane %v4264, %v5206
    %v5208 = vcombine.high %v5207, %v5207
    %v5210 = vunpack.c.l.s4 1966171168
    %v5211 = vunpack.c.0.s8 %v5210
    %v5212 = vlaneseq
    %v5213 = vshrl.u32 %v5212, 7
    %v5214 = vsub.s32 %v5211, %v5213
    %v5215 = vrot.slane %v5207, %v5214
    %v5217 = vunpack.c.l.s4 1966171168
    %v5218 = vunpack.c.0.s8 %v5217
    %v5219 = vlaneseq
    %v5220 = vshrl.u32 %v5219, 7
    %v5221 = vsub.s32 %v5218, %v5220
    %v5222 = vrot.slane %v5208, %v5221
    %v5224 = vunpack.c.l.s4 1966171168
    %v5225 = vunpack.c.0.s8 %v5224
    %v5226 = vlaneseq
    %v5227 = vshrl.u32 %v5226, 7
    %v5228 = vsub.s32 %v5225, %v5227
    %v5229 = vrot.slane %v4265, %v5228
    %v5230 = vcombine.high %v5229, %v5229
    %v5232 = vunpack.c.l.s4 1966171168
    %v5233 = vunpack.c.0.s8 %v5232
    %v5234 = vlaneseq
    %v5235 = vshrl.u32 %v5234, 7
    %v5236 = vsub.s32 %v5233, %v5235
    %v5237 = vrot.slane %v5229, %v5236
    %v5239 = vunpack.c.l.s4 1966171168
    %v5240 = vunpack.c.0.s8 %v5239
    %v5241 = vlaneseq
    %v5242 = vshrl.u32 %v5241, 7
    %v5243 = vsub.s32 %v5240, %v5242
    %v5244 = vrot.slane %v5230, %v5243
    %v5246 = vunpack.c.l.s4 1966171168
    %v5247 = vunpack.c.0.s8 %v5246
    %v5248 = vlaneseq
    %v5249 = vshrl.u32 %v5248, 7
    %v5250 = vsub.s32 %v5247, %v5249
    %v5251 = vrot.slane %v4266, %v5250
    %v5252 = vcombine.high %v5251, %v5251
    %v5254 = vunpack.c.l.s4 1966171168
    %v5255 = vunpack.c.0.s8 %v5254
    %v5256 = vlaneseq
    %v5257 = vshrl.u32 %v5256, 7
    %v5258 = vsub.s32 %v5255, %v5257
    %v5259 = vrot.slane %v5251, %v5258
    %v5261 = vunpack.c.l.s4 1966171168
    %v5262 = vunpack.c.0.s8 %v5261
    %v5263 = vlaneseq
    %v5264 = vshrl.u32 %v5263, 7
    %v5265 = vsub.s32 %v5262, %v5264
    %v5266 = vrot.slane %v5252, %v5265
    %v5268 = vunpack.c.l.s4 1966171168
    %v5269 = vunpack.c.0.s8 %v5268
    %v5270 = vlaneseq
    %v5271 = vshrl.u32 %v5270, 7
    %v5272 = vsub.s32 %v5269, %v5271
    %v5273 = vrot.slane %v4267, %v5272
    %v5274 = vcombine.high %v5273, %v5273
    %v5276 = vunpack.c.l.s4 1966171168
    %v5277 = vunpack.c.0.s8 %v5276
    %v5278 = vlaneseq
    %v5279 = vshrl.u32 %v5278, 7
    %v5280 = vsub.s32 %v5277, %v5279
    %v5281 = vrot.slane %v5273, %v5280
    %v5283 = vunpack.c.l.s4 1966171168
    %v5284 = vunpack.c.0.s8 %v5283
    %v5285 = vlaneseq
    %v5286 = vshrl.u32 %v5285, 7
    %v5287 = vsub.s32 %v5284, %v5286
    %v5288 = vrot.slane %v5274, %v5287
    %v5290 = vunpack.c.l.s4 1966171168
    %v5291 = vunpack.c.0.s8 %v5290
    %v5292 = vlaneseq
    %v5293 = vshrl.u32 %v5292, 7
    %v5294 = vsub.s32 %v5291, %v5293
    %v5295 = vrot.slane %v4268, %v5294
    %v5296 = vcombine.high %v5295, %v5295
    %v5298 = vunpack.c.l.s4 1966171168
    %v5299 = vunpack.c.0.s8 %v5298
    %v5300 = vlaneseq
    %v5301 = vshrl.u32 %v5300, 7
    %v5302 = vsub.s32 %v5299, %v5301
    %v5303 = vrot.slane %v5295, %v5302
    %v5305 = vunpack.c.l.s4 1966171168
    %v5306 = vunpack.c.0.s8 %v5305
    %v5307 = vlaneseq
    %v5308 = vshrl.u32 %v5307, 7
    %v5309 = vsub.s32 %v5306, %v5308
    %v5310 = vrot.slane %v5296, %v5309
    %v5312 = vunpack.c.l.s4 1966171168
    %v5313 = vunpack.c.0.s8 %v5312
    %v5314 = vlaneseq
    %v5315 = vshrl.u32 %v5314, 7
    %v5316 = vsub.s32 %v5313, %v5315
    %v5317 = vrot.slane %v4273, %v5316
    %v5318 = vcombine.high %v5317, %v5317
    %v5320 = vunpack.c.l.s4 1966171168
    %v5321 = vunpack.c.0.s8 %v5320
    %v5322 = vlaneseq
    %v5323 = vshrl.u32 %v5322, 7
    %v5324 = vsub.s32 %v5321, %v5323
    %v5325 = vrot.slane %v5317, %v5324
    %v5327 = vunpack.c.l.s4 1966171168
    %v5328 = vunpack.c.0.s8 %v5327
    %v5329 = vlaneseq
    %v5330 = vshrl.u32 %v5329, 7
    %v5331 = vsub.s32 %v5328, %v5330
    %v5332 = vrot.slane %v5318, %v5331
    %v5334 = vunpack.c.l.s4 1966171168
    %v5335 = vunpack.c.0.s8 %v5334
    %v5336 = vlaneseq
    %v5337 = vshrl.u32 %v5336, 7
    %v5338 = vsub.s32 %v5335, %v5337
    %v5339 = vrot.slane %v4274, %v5338
    %v5340 = vcombine.high %v5339, %v5339
    %v5342 = vunpack.c.l.s4 1966171168
    %v5343 = vunpack.c.0.s8 %v5342
    %v5344 = vlaneseq
    %v5345 = vshrl.u32 %v5344, 7
    %v5346 = vsub.s32 %v5343, %v5345
    %v5347 = vrot.slane %v5339, %v5346
    %v5349 = vunpack.c.l.s4 1966171168
    %v5350 = vunpack.c.0.s8 %v5349
    %v5351 = vlaneseq
    %v5352 = vshrl.u32 %v5351, 7
    %v5353 = vsub.s32 %v5350, %v5352
    %v5354 = vrot.slane %v5340, %v5353
    %v5356 = vunpack.c.l.s4 1966171168
    %v5357 = vunpack.c.0.s8 %v5356
    %v5358 = vlaneseq
    %v5359 = vshrl.u32 %v5358, 7
    %v5360 = vsub.s32 %v5357, %v5359
    %v5361 = vrot.slane %v4275, %v5360
    %v5362 = vcombine.high %v5361, %v5361
    %v5364 = vunpack.c.l.s4 1966171168
    %v5365 = vunpack.c.0.s8 %v5364
    %v5366 = vlaneseq
    %v5367 = vshrl.u32 %v5366, 7
    %v5368 = vsub.s32 %v5365, %v5367
    %v5369 = vrot.slane %v5361, %v5368
    %v5371 = vunpack.c.l.s4 1966171168
    %v5372 = vunpack.c.0.s8 %v5371
    %v5373 = vlaneseq
    %v5374 = vshrl.u32 %v5373, 7
    %v5375 = vsub.s32 %v5372, %v5374
    %v5376 = vrot.slane %v5362, %v5375
    %v5378 = vunpack.c.l.s4 1966171168
    %v5379 = vunpack.c.0.s8 %v5378
    %v5380 = vlaneseq
    %v5381 = vshrl.u32 %v5380, 7
    %v5382 = vsub.s32 %v5379, %v5381
    %v5383 = vrot.slane %v4276, %v5382
    %v5384 = vcombine.high %v5383, %v5383
    %v5386 = vunpack.c.l.s4 1966171168
    %v5387 = vunpack.c.0.s8 %v5386
    %v5388 = vlaneseq
    %v5389 = vshrl.u32 %v5388, 7
    %v5390 = vsub.s32 %v5387, %v5389
    %v5391 = vrot.slane %v5383, %v5390
    %v5393 = vunpack.c.l.s4 1966171168
    %v5394 = vunpack.c.0.s8 %v5393
    %v5395 = vlaneseq
    %v5396 = vshrl.u32 %v5395, 7
    %v5397 = vsub.s32 %v5394, %v5396
    %v5398 = vrot.slane %v5384, %v5397
    %v5400 = vunpack.c.l.s4 1966171168
    %v5401 = vunpack.c.0.s8 %v5400
    %v5402 = vlaneseq
    %v5403 = vshrl.u32 %v5402, 7
    %v5404 = vsub.s32 %v5401, %v5403
    %v5405 = vrot.slane %v4277, %v5404
    %v5406 = vcombine.high %v5405, %v5405
    %v5408 = vunpack.c.l.s4 1966171168
    %v5409 = vunpack.c.0.s8 %v5408
    %v5410 = vlaneseq
    %v5411 = vshrl.u32 %v5410, 7
    %v5412 = vsub.s32 %v5409, %v5411
    %v5413 = vrot.slane %v5405, %v5412
    %v5415 = vunpack.c.l.s4 1966171168
    %v5416 = vunpack.c.0.s8 %v5415
    %v5417 = vlaneseq
    %v5418 = vshrl.u32 %v5417, 7
    %v5419 = vsub.s32 %v5416, %v5418
    %v5420 = vrot.slane %v5406, %v5419
    %v5422 = vunpack.c.l.s4 1966171168
    %v5423 = vunpack.c.0.s8 %v5422
    %v5424 = vlaneseq
    %v5425 = vshrl.u32 %v5424, 7
    %v5426 = vsub.s32 %v5423, %v5425
    %v5427 = vrot.slane %v4278, %v5426
    %v5428 = vcombine.high %v5427, %v5427
    %v5430 = vunpack.c.l.s4 1966171168
    %v5431 = vunpack.c.0.s8 %v5430
    %v5432 = vlaneseq
    %v5433 = vshrl.u32 %v5432, 7
    %v5434 = vsub.s32 %v5431, %v5433
    %v5435 = vrot.slane %v5427, %v5434
    %v5437 = vunpack.c.l.s4 1966171168
    %v5438 = vunpack.c.0.s8 %v5437
    %v5439 = vlaneseq
    %v5440 = vshrl.u32 %v5439, 7
    %v5441 = vsub.s32 %v5438, %v5440
    %v5442 = vrot.slane %v5428, %v5441
    %v5444 = vunpack.c.l.s4 1966171168
    %v5445 = vunpack.c.0.s8 %v5444
    %v5446 = vlaneseq
    %v5447 = vshrl.u32 %v5446, 7
    %v5448 = vsub.s32 %v5445, %v5447
    %v5449 = vrot.slane %v4279, %v5448
    %v5450 = vcombine.high %v5449, %v5449
    %v5452 = vunpack.c.l.s4 1966171168
    %v5453 = vunpack.c.0.s8 %v5452
    %v5454 = vlaneseq
    %v5455 = vshrl.u32 %v5454, 7
    %v5456 = vsub.s32 %v5453, %v5455
    %v5457 = vrot.slane %v5449, %v5456
    %v5459 = vunpack.c.l.s4 1966171168
    %v5460 = vunpack.c.0.s8 %v5459
    %v5461 = vlaneseq
    %v5462 = vshrl.u32 %v5461, 7
    %v5463 = vsub.s32 %v5460, %v5462
    %v5464 = vrot.slane %v5450, %v5463
    %v5466 = vunpack.c.l.s4 1966171168
    %v5467 = vunpack.c.0.s8 %v5466
    %v5468 = vlaneseq
    %v5469 = vshrl.u32 %v5468, 7
    %v5470 = vsub.s32 %v5467, %v5469
    %v5471 = vrot.slane %v4280, %v5470
    %v5472 = vcombine.high %v5471, %v5471
    %v5474 = vunpack.c.l.s4 1966171168
    %v5475 = vunpack.c.0.s8 %v5474
    %v5476 = vlaneseq
    %v5477 = vshrl.u32 %v5476, 7
    %v5478 = vsub.s32 %v5475, %v5477
    %v5479 = vrot.slane %v5471, %v5478
    %v5481 = vunpack.c.l.s4 1966171168
    %v5482 = vunpack.c.0.s8 %v5481
    %v5483 = vlaneseq
    %v5484 = vshrl.u32 %v5483, 7
    %v5485 = vsub.s32 %v5482, %v5484
    %v5486 = vrot.slane %v5472, %v5485
    %v5488 = vunpack.c.l.s4 1966171168
    %v5489 = vunpack.c.0.s8 %v5488
    %v5490 = vlaneseq
    %v5491 = vshrl.u32 %v5490, 7
    %v5492 = vsub.s32 %v5489, %v5491
    %v5493 = vrot.slane %v4285, %v5492
    %v5494 = vcombine.high %v5493, %v5493
    %v5496 = vunpack.c.l.s4 1966171168
    %v5497 = vunpack.c.0.s8 %v5496
    %v5498 = vlaneseq
    %v5499 = vshrl.u32 %v5498, 7
    %v5500 = vsub.s32 %v5497, %v5499
    %v5501 = vrot.slane %v5493, %v5500
    %v5503 = vunpack.c.l.s4 1966171168
    %v5504 = vunpack.c.0.s8 %v5503
    %v5505 = vlaneseq
    %v5506 = vshrl.u32 %v5505, 7
    %v5507 = vsub.s32 %v5504, %v5506
    %v5508 = vrot.slane %v5494, %v5507
    %v5510 = vunpack.c.l.s4 1966171168
    %v5511 = vunpack.c.0.s8 %v5510
    %v5512 = vlaneseq
    %v5513 = vshrl.u32 %v5512, 7
    %v5514 = vsub.s32 %v5511, %v5513
    %v5515 = vrot.slane %v4286, %v5514
    %v5516 = vcombine.high %v5515, %v5515
    %v5518 = vunpack.c.l.s4 1966171168
    %v5519 = vunpack.c.0.s8 %v5518
    %v5520 = vlaneseq
    %v5521 = vshrl.u32 %v5520, 7
    %v5522 = vsub.s32 %v5519, %v5521
    %v5523 = vrot.slane %v5515, %v5522
    %v5525 = vunpack.c.l.s4 1966171168
    %v5526 = vunpack.c.0.s8 %v5525
    %v5527 = vlaneseq
    %v5528 = vshrl.u32 %v5527, 7
    %v5529 = vsub.s32 %v5526, %v5528
    %v5530 = vrot.slane %v5516, %v5529
    %v5532 = vunpack.c.l.s4 1966171168
    %v5533 = vunpack.c.0.s8 %v5532
    %v5534 = vlaneseq
    %v5535 = vshrl.u32 %v5534, 7
    %v5536 = vsub.s32 %v5533, %v5535
    %v5537 = vrot.slane %v4287, %v5536
    %v5538 = vcombine.high %v5537, %v5537
    %v5540 = vunpack.c.l.s4 1966171168
    %v5541 = vunpack.c.0.s8 %v5540
    %v5542 = vlaneseq
    %v5543 = vshrl.u32 %v5542, 7
    %v5544 = vsub.s32 %v5541, %v5543
    %v5545 = vrot.slane %v5537, %v5544
    %v5547 = vunpack.c.l.s4 1966171168
    %v5548 = vunpack.c.0.s8 %v5547
    %v5549 = vlaneseq
    %v5550 = vshrl.u32 %v5549, 7
    %v5551 = vsub.s32 %v5548, %v5550
    %v5552 = vrot.slane %v5538, %v5551
    %v5554 = vunpack.c.l.s4 1966171168
    %v5555 = vunpack.c.0.s8 %v5554
    %v5556 = vlaneseq
    %v5557 = vshrl.u32 %v5556, 7
    %v5558 = vsub.s32 %v5555, %v5557
    %v5559 = vrot.slane %v4288, %v5558
    %v5560 = vcombine.high %v5559, %v5559
    %v5562 = vunpack.c.l.s4 1966171168
    %v5563 = vunpack.c.0.s8 %v5562
    %v5564 = vlaneseq
    %v5565 = vshrl.u32 %v5564, 7
    %v5566 = vsub.s32 %v5563, %v5565
    %v5567 = vrot.slane %v5559, %v5566
    %v5569 = vunpack.c.l.s4 1966171168
    %v5570 = vunpack.c.0.s8 %v5569
    %v5571 = vlaneseq
    %v5572 = vshrl.u32 %v5571, 7
    %v5573 = vsub.s32 %v5570, %v5572
    %v5574 = vrot.slane %v5560, %v5573
    %v5576 = vunpack.c.l.s4 1966171168
    %v5577 = vunpack.c.0.s8 %v5576
    %v5578 = vlaneseq
    %v5579 = vshrl.u32 %v5578, 7
    %v5580 = vsub.s32 %v5577, %v5579
    %v5581 = vrot.slane %v4289, %v5580
    %v5582 = vcombine.high %v5581, %v5581
    %v5584 = vunpack.c.l.s4 1966171168
    %v5585 = vunpack.c.0.s8 %v5584
    %v5586 = vlaneseq
    %v5587 = vshrl.u32 %v5586, 7
    %v5588 = vsub.s32 %v5585, %v5587
    %v5589 = vrot.slane %v5581, %v5588
    %v5591 = vunpack.c.l.s4 1966171168
    %v5592 = vunpack.c.0.s8 %v5591
    %v5593 = vlaneseq
    %v5594 = vshrl.u32 %v5593, 7
    %v5595 = vsub.s32 %v5592, %v5594
    %v5596 = vrot.slane %v5582, %v5595
    %v5598 = vunpack.c.l.s4 1966171168
    %v5599 = vunpack.c.0.s8 %v5598
    %v5600 = vlaneseq
    %v5601 = vshrl.u32 %v5600, 7
    %v5602 = vsub.s32 %v5599, %v5601
    %v5603 = vrot.slane %v4290, %v5602
    %v5604 = vcombine.high %v5603, %v5603
    %v5606 = vunpack.c.l.s4 1966171168
    %v5607 = vunpack.c.0.s8 %v5606
    %v5608 = vlaneseq
    %v5609 = vshrl.u32 %v5608, 7
    %v5610 = vsub.s32 %v5607, %v5609
    %v5611 = vrot.slane %v5603, %v5610
    %v5613 = vunpack.c.l.s4 1966171168
    %v5614 = vunpack.c.0.s8 %v5613
    %v5615 = vlaneseq
    %v5616 = vshrl.u32 %v5615, 7
    %v5617 = vsub.s32 %v5614, %v5616
    %v5618 = vrot.slane %v5604, %v5617
    %v5620 = vunpack.c.l.s4 1966171168
    %v5621 = vunpack.c.0.s8 %v5620
    %v5622 = vlaneseq
    %v5623 = vshrl.u32 %v5622, 7
    %v5624 = vsub.s32 %v5621, %v5623
    %v5625 = vrot.slane %v4291, %v5624
    %v5626 = vcombine.high %v5625, %v5625
    %v5628 = vunpack.c.l.s4 1966171168
    %v5629 = vunpack.c.0.s8 %v5628
    %v5630 = vlaneseq
    %v5631 = vshrl.u32 %v5630, 7
    %v5632 = vsub.s32 %v5629, %v5631
    %v5633 = vrot.slane %v5625, %v5632
    %v5635 = vunpack.c.l.s4 1966171168
    %v5636 = vunpack.c.0.s8 %v5635
    %v5637 = vlaneseq
    %v5638 = vshrl.u32 %v5637, 7
    %v5639 = vsub.s32 %v5636, %v5638
    %v5640 = vrot.slane %v5626, %v5639
    %v5642 = vunpack.c.l.s4 1966171168
    %v5643 = vunpack.c.0.s8 %v5642
    %v5644 = vlaneseq
    %v5645 = vshrl.u32 %v5644, 7
    %v5646 = vsub.s32 %v5643, %v5645
    %v5647 = vrot.slane %v4292, %v5646
    %v5648 = vcombine.high %v5647, %v5647
    %v5650 = vunpack.c.l.s4 1966171168
    %v5651 = vunpack.c.0.s8 %v5650
    %v5652 = vlaneseq
    %v5653 = vshrl.u32 %v5652, 7
    %v5654 = vsub.s32 %v5651, %v5653
    %v5655 = vrot.slane %v5647, %v5654
    %v5657 = vunpack.c.l.s4 1966171168
    %v5658 = vunpack.c.0.s8 %v5657
    %v5659 = vlaneseq
    %v5660 = vshrl.u32 %v5659, 7
    %v5661 = vsub.s32 %v5658, %v5660
    %v5662 = vrot.slane %v5648, %v5661
    %v5664 = vunpack.c.l.s4 1966171168
    %v5665 = vunpack.c.0.s8 %v5664
    %v5666 = vlaneseq
    %v5667 = vshrl.u32 %v5666, 7
    %v5668 = vsub.s32 %v5665, %v5667
    %v5669 = vrot.slane %v4297, %v5668
    %v5670 = vcombine.high %v5669, %v5669
    %v5672 = vunpack.c.l.s4 1966171168
    %v5673 = vunpack.c.0.s8 %v5672
    %v5674 = vlaneseq
    %v5675 = vshrl.u32 %v5674, 7
    %v5676 = vsub.s32 %v5673, %v5675
    %v5677 = vrot.slane %v5669, %v5676
    %v5679 = vunpack.c.l.s4 1966171168
    %v5680 = vunpack.c.0.s8 %v5679
    %v5681 = vlaneseq
    %v5682 = vshrl.u32 %v5681, 7
    %v5683 = vsub.s32 %v5680, %v5682
    %v5684 = vrot.slane %v5670, %v5683
    %v5686 = vunpack.c.l.s4 1966171168
    %v5687 = vunpack.c.0.s8 %v5686
    %v5688 = vlaneseq
    %v5689 = vshrl.u32 %v5688, 7
    %v5690 = vsub.s32 %v5687, %v5689
    %v5691 = vrot.slane %v4298, %v5690
    %v5692 = vcombine.high %v5691, %v5691
    %v5694 = vunpack.c.l.s4 1966171168
    %v5695 = vunpack.c.0.s8 %v5694
    %v5696 = vlaneseq
    %v5697 = vshrl.u32 %v5696, 7
    %v5698 = vsub.s32 %v5695, %v5697
    %v5699 = vrot.slane %v5691, %v5698
    %v5701 = vunpack.c.l.s4 1966171168
    %v5702 = vunpack.c.0.s8 %v5701
    %v5703 = vlaneseq
    %v5704 = vshrl.u32 %v5703, 7
    %v5705 = vsub.s32 %v5702, %v5704
    %v5706 = vrot.slane %v5692, %v5705
    %v5708 = vunpack.c.l.s4 1966171168
    %v5709 = vunpack.c.0.s8 %v5708
    %v5710 = vlaneseq
    %v5711 = vshrl.u32 %v5710, 7
    %v5712 = vsub.s32 %v5709, %v5711
    %v5713 = vrot.slane %v4299, %v5712
    %v5714 = vcombine.high %v5713, %v5713
    %v5716 = vunpack.c.l.s4 1966171168
    %v5717 = vunpack.c.0.s8 %v5716
    %v5718 = vlaneseq
    %v5719 = vshrl.u32 %v5718, 7
    %v5720 = vsub.s32 %v5717, %v5719
    %v5721 = vrot.slane %v5713, %v5720
    %v5723 = vunpack.c.l.s4 1966171168
    %v5724 = vunpack.c.0.s8 %v5723
    %v5725 = vlaneseq
    %v5726 = vshrl.u32 %v5725, 7
    %v5727 = vsub.s32 %v5724, %v5726
    %v5728 = vrot.slane %v5714, %v5727
    %v5730 = vunpack.c.l.s4 1966171168
    %v5731 = vunpack.c.0.s8 %v5730
    %v5732 = vlaneseq
    %v5733 = vshrl.u32 %v5732, 7
    %v5734 = vsub.s32 %v5731, %v5733
    %v5735 = vrot.slane %v4300, %v5734
    %v5736 = vcombine.high %v5735, %v5735
    %v5738 = vunpack.c.l.s4 1966171168
    %v5739 = vunpack.c.0.s8 %v5738
    %v5740 = vlaneseq
    %v5741 = vshrl.u32 %v5740, 7
    %v5742 = vsub.s32 %v5739, %v5741
    %v5743 = vrot.slane %v5735, %v5742
    %v5745 = vunpack.c.l.s4 1966171168
    %v5746 = vunpack.c.0.s8 %v5745
    %v5747 = vlaneseq
    %v5748 = vshrl.u32 %v5747, 7
    %v5749 = vsub.s32 %v5746, %v5748
    %v5750 = vrot.slane %v5736, %v5749
    %v5752 = vunpack.c.l.s4 1966171168
    %v5753 = vunpack.c.0.s8 %v5752
    %v5754 = vlaneseq
    %v5755 = vshrl.u32 %v5754, 7
    %v5756 = vsub.s32 %v5753, %v5755
    %v5757 = vrot.slane %v4301, %v5756
    %v5758 = vcombine.high %v5757, %v5757
    %v5760 = vunpack.c.l.s4 1966171168
    %v5761 = vunpack.c.0.s8 %v5760
    %v5762 = vlaneseq
    %v5763 = vshrl.u32 %v5762, 7
    %v5764 = vsub.s32 %v5761, %v5763
    %v5765 = vrot.slane %v5757, %v5764
    %v5767 = vunpack.c.l.s4 1966171168
    %v5768 = vunpack.c.0.s8 %v5767
    %v5769 = vlaneseq
    %v5770 = vshrl.u32 %v5769, 7
    %v5771 = vsub.s32 %v5768, %v5770
    %v5772 = vrot.slane %v5758, %v5771
    %v5774 = vunpack.c.l.s4 1966171168
    %v5775 = vunpack.c.0.s8 %v5774
    %v5776 = vlaneseq
    %v5777 = vshrl.u32 %v5776, 7
    %v5778 = vsub.s32 %v5775, %v5777
    %v5779 = vrot.slane %v4302, %v5778
    %v5780 = vcombine.high %v5779, %v5779
    %v5782 = vunpack.c.l.s4 1966171168
    %v5783 = vunpack.c.0.s8 %v5782
    %v5784 = vlaneseq
    %v5785 = vshrl.u32 %v5784, 7
    %v5786 = vsub.s32 %v5783, %v5785
    %v5787 = vrot.slane %v5779, %v5786
    %v5789 = vunpack.c.l.s4 1966171168
    %v5790 = vunpack.c.0.s8 %v5789
    %v5791 = vlaneseq
    %v5792 = vshrl.u32 %v5791, 7
    %v5793 = vsub.s32 %v5790, %v5792
    %v5794 = vrot.slane %v5780, %v5793
    %v5796 = vunpack.c.l.s4 1966171168
    %v5797 = vunpack.c.0.s8 %v5796
    %v5798 = vlaneseq
    %v5799 = vshrl.u32 %v5798, 7
    %v5800 = vsub.s32 %v5797, %v5799
    %v5801 = vrot.slane %v4303, %v5800
    %v5802 = vcombine.high %v5801, %v5801
    %v5804 = vunpack.c.l.s4 1966171168
    %v5805 = vunpack.c.0.s8 %v5804
    %v5806 = vlaneseq
    %v5807 = vshrl.u32 %v5806, 7
    %v5808 = vsub.s32 %v5805, %v5807
    %v5809 = vrot.slane %v5801, %v5808
    %v5811 = vunpack.c.l.s4 1966171168
    %v5812 = vunpack.c.0.s8 %v5811
    %v5813 = vlaneseq
    %v5814 = vshrl.u32 %v5813, 7
    %v5815 = vsub.s32 %v5812, %v5814
    %v5816 = vrot.slane %v5802, %v5815
    %v5818 = vunpack.c.l.s4 1966171168
    %v5819 = vunpack.c.0.s8 %v5818
    %v5820 = vlaneseq
    %v5821 = vshrl.u32 %v5820, 7
    %v5822 = vsub.s32 %v5819, %v5821
    %v5823 = vrot.slane %v4304, %v5822
    %v5824 = vcombine.high %v5823, %v5823
    %v5826 = vunpack.c.l.s4 1966171168
    %v5827 = vunpack.c.0.s8 %v5826
    %v5828 = vlaneseq
    %v5829 = vshrl.u32 %v5828, 7
    %v5830 = vsub.s32 %v5827, %v5829
    %v5831 = vrot.slane %v5823, %v5830
    %v5833 = vunpack.c.l.s4 1966171168
    %v5834 = vunpack.c.0.s8 %v5833
    %v5835 = vlaneseq
    %v5836 = vshrl.u32 %v5835, 7
    %v5837 = vsub.s32 %v5834, %v5836
    %v5838 = vrot.slane %v5824, %v5837
    %v5839 = vunpack.c.l.b16 %v4445
    %v5840 = vunpack.c.l.b16 %v4452
    %v5841 = vunpack.c.l.b16 %v4467
    %v5842 = vunpack.c.l.b16 %v4474
    %v5843 = vunpack.c.l.b16 %v4489
    %v5844 = vunpack.c.l.b16 %v4496
    %v5845 = vunpack.c.l.b16 %v4511
    %v5846 = vunpack.c.l.b16 %v4518
    %v5847 = vunpack.c.l.b16 %v4533
    %v5848 = vunpack.c.l.b16 %v4540
    %v5849 = vunpack.c.l.b16 %v4555
    %v5850 = vunpack.c.l.b16 %v4562
    %v5851 = vunpack.c.l.b16 %v4577
    %v5852 = vunpack.c.l.b16 %v4584
    %v5853 = vunpack.c.l.b16 %v4599
    %v5854 = vunpack.c.l.b16 %v4606
    %v5855 = vunpack.c.l.b16 %v4621
    %v5856 = vunpack.c.l.b16 %v4628
    %v5857 = vunpack.c.l.b16 %v4643
    %v5858 = vunpack.c.l.b16 %v4650
    %v5859 = vunpack.c.l.b16 %v4665
    %v5860 = vunpack.c.l.b16 %v4672
    %v5861 = vunpack.c.l.b16 %v4687
    %v5862 = vunpack.c.l.b16 %v4694
    %v5863 = vunpack.c.l.b16 %v4709
    %v5864 = vunpack.c.l.b16 %v4716
    %v5865 = vunpack.c.l.b16 %v4731
    %v5866 = vunpack.c.l.b16 %v4738
    %v5867 = vunpack.c.l.b16 %v4753
    %v5868 = vunpack.c.l.b16 %v4760
    %v5869 = vunpack.c.l.b16 %v4775
    %v5870 = vunpack.c.l.b16 %v4782
    %v5871 = vunpack.c.l.b16 %v4797
    %v5872 = vunpack.c.l.b16 %v4804
    %v5873 = vunpack.c.l.b16 %v4819
    %v5874 = vunpack.c.l.b16 %v4826
    %v5875 = vunpack.c.l.b16 %v4841
    %v5876 = vunpack.c.l.b16 %v4848
    %v5877 = vunpack.c.l.b16 %v4863
    %v5878 = vunpack.c.l.b16 %v4870
    %v5879 = vunpack.c.l.b16 %v4885
    %v5880 = vunpack.c.l.b16 %v4892
    %v5881 = vunpack.c.l.b16 %v4907
    %v5882 = vunpack.c.l.b16 %v4914
    %v5883 = vunpack.c.l.b16 %v4929
    %v5884 = vunpack.c.l.b16 %v4936
    %v5885 = vunpack.c.l.b16 %v4951
    %v5886 = vunpack.c.l.b16 %v4958
    %v5887 = vunpack.c.l.b16 %v4973
    %v5888 = vunpack.c.l.b16 %v4980
    %v5889 = vunpack.c.l.b16 %v4995
    %v5890 = vunpack.c.l.b16 %v5002
    %v5891 = vunpack.c.l.b16 %v5017
    %v5892 = vunpack.c.l.b16 %v5024
    %v5893 = vunpack.c.l.b16 %v5039
    %v5894 = vunpack.c.l.b16 %v5046
    %v5895 = vunpack.c.l.b16 %v5061
    %v5896 = vunpack.c.l.b16 %v5068
    %v5897 = vunpack.c.l.b16 %v5083
    %v5898 = vunpack.c.l.b16 %v5090
    %v5899 = vunpack.c.l.b16 %v5105
    %v5900 = vunpack.c.l.b16 %v5112
    %v5901 = vunpack.c.l.b16 %v5127
    %v5902 = vunpack.c.l.b16 %v5134
    %v5903 = vunpack.c.l.b16 %v5149
    %v5904 = vunpack.c.l.b16 %v5156
    %v5905 = vunpack.c.l.b16 %v5171
    %v5906 = vunpack.c.l.b16 %v5178
    %v5907 = vunpack.c.l.b16 %v5193
    %v5908 = vunpack.c.l.b16 %v5200
    %v5909 = vunpack.c.l.b16 %v5215
    %v5910 = vunpack.c.l.b16 %v5222
    %v5911 = vunpack.c.l.b16 %v5237
    %v5912 = vunpack.c.l.b16 %v5244
    %v5913 = vunpack.c.l.b16 %v5259
    %v5914 = vunpack.c.l.b16 %v5266
    %v5915 = vunpack.c.l.b16 %v5281
    %v5916 = vunpack.c.l.b16 %v5288
    %v5917 = vunpack.c.l.b16 %v5303
    %v5918 = vunpack.c.l.b16 %v5310
    %v5919 = vunpack.c.l.b16 %v5325
    %v5920 = vunpack.c.l.b16 %v5332
    %v5921 = vunpack.c.l.b16 %v5347
    %v5922 = vunpack.c.l.b16 %v5354
    %v5923 = vunpack.c.l.b16 %v5369
    %v5924 = vunpack.c.l.b16 %v5376
    %v5925 = vunpack.c.l.b16 %v5391
    %v5926 = vunpack.c.l.b16 %v5398
    %v5927 = vunpack.c.l.b16 %v5413
    %v5928 = vunpack.c.l.b16 %v5420
    %v5929 = vunpack.c.l.b16 %v5435
    %v5930 = vunpack.c.l.b16 %v5442
    %v5931 = vunpack.c.l.b16 %v5457
    %v5932 = vunpack.c.l.b16 %v5464
    %v5933 = vunpack.c.l.b16 %v5479
    %v5934 = vunpack.c.l.b16 %v5486
    %v5935 = vunpack.c.l.b16 %v5501
    %v5936 = vunpack.c.l.b16 %v5508
    %v5937 = vunpack.c.l.b16 %v5523
    %v5938 = vunpack.c.l.b16 %v5530
    %v5939 = vunpack.c.l.b16 %v5545
    %v5940 = vunpack.c.l.b16 %v5552
    %v5941 = vunpack.c.l.b16 %v5567
    %v5942 = vunpack.c.l.b16 %v5574
    %v5943 = vunpack.c.l.b16 %v5589
    %v5944 = vunpack.c.l.b16 %v5596
    %v5945 = vunpack.c.l.b16 %v5611
    %v5946 = vunpack.c.l.b16 %v5618
    %v5947 = vunpack.c.l.b16 %v5633
    %v5948 = vunpack.c.l.b16 %v5640
    %v5949 = vunpack.c.l.b16 %v5655
    %v5950 = vunpack.c.l.b16 %v5662
    %v5951 = vunpack.c.l.b16 %v5677
    %v5952 = vunpack.c.l.b16 %v5684
    %v5953 = vunpack.c.l.b16 %v5699
    %v5954 = vunpack.c.l.b16 %v5706
    %v5955 = vunpack.c.l.b16 %v5721
    %v5956 = vunpack.c.l.b16 %v5728
    %v5957 = vunpack.c.l.b16 %v5743
    %v5958 = vunpack.c.l.b16 %v5750
    %v5959 = vunpack.c.l.b16 %v5765
    %v5960 = vunpack.c.l.b16 %v5772
    %v5961 = vunpack.c.l.b16 %v5787
    %v5962 = vunpack.c.l.b16 %v5794
    %v5963 = vunpack.c.l.b16 %v5809
    %v5964 = vunpack.c.l.b16 %v5816
    %v5965 = vunpack.c.l.b16 %v5831
    %v5966 = vunpack.c.l.b16 %v5838
    %v5967 = vrot.slane %v5841, 7
    %vm5968 = vcmask 1041409
    %v5969 = vsel %vm5968, %v5967, %v5839
    %v5970 = vrot.slane %v5843, 6
    %vm5971 = vcmask 1042434
    %v5972 = vsel %vm5971, %v5970, %v5969
    %v5973 = vrot.slane %v5845, 5
    %vm5974 = vcmask 1043459
    %v5975 = vsel %vm5974, %v5973, %v5972
    %v5976 = vrot.slane %v5847, 4
    %vm5977 = vcmask 1044484
    %v5978 = vsel %vm5977, %v5976, %v5975
    %v5979 = vrot.slane %v5849, 3
    %vm5980 = vcmask 1045509
    %v5981 = vsel %vm5980, %v5979, %v5978
    %v5982 = vrot.slane %v5851, 2
    %vm5983 = vcmask 1046534
    %v5984 = vsel %vm5983, %v5982, %v5981
    %v5985 = vrot.slane %v5853, 1
    %vm5986 = vcmask 1047559
    %v5987 = vsel %vm5986, %v5985, %v5984
    %v5988 = vrot.slane %v5842, 7
    %v5989 = vsel %vm5968, %v5988, %v5840
    %v5990 = vrot.slane %v5844, 6
    %v5991 = vsel %vm5971, %v5990, %v5989
    %v5992 = vrot.slane %v5846, 5
    %v5993 = vsel %vm5974, %v5992, %v5991
    %v5994 = vrot.slane %v5848, 4
    %v5995 = vsel %vm5977, %v5994, %v5993
    %v5996 = vrot.slane %v5850, 3
    %v5997 = vsel %vm5980, %v5996, %v5995
    %v5998 = vrot.slane %v5852, 2
    %v5999 = vsel %vm5983, %v5998, %v5997
    %v6000 = vrot.slane %v5854, 1
    %v6001 = vsel %vm5986, %v6000, %v5999
    %v6002 = vrot.slane %v5857, 7
    %v6003 = vsel %vm5968, %v6002, %v5855
    %v6004 = vrot.slane %v5859, 6
    %v6005 = vsel %vm5971, %v6004, %v6003
    %v6006 = vrot.slane %v5861, 5
    %v6007 = vsel %vm5974, %v6006, %v6005
    %v6008 = vrot.slane %v5863, 4
    %v6009 = vsel %vm5977, %v6008, %v6007
    %v6010 = vrot.slane %v5865, 3
    %v6011 = vsel %vm5980, %v6010, %v6009
    %v6012 = vrot.slane %v5867, 2
    %v6013 = vsel %vm5983, %v6012, %v6011
    %v6014 = vrot.slane %v5869, 1
    %v6015 = vsel %vm5986, %v6014, %v6013
    %v6016 = vrot.slane %v5858, 7
    %v6017 = vsel %vm5968, %v6016, %v5856
    %v6018 = vrot.slane %v5860, 6
    %v6019 = vsel %vm5971, %v6018, %v6017
    %v6020 = vrot.slane %v5862, 5
    %v6021 = vsel %vm5974, %v6020, %v6019
    %v6022 = vrot.slane %v5864, 4
    %v6023 = vsel %vm5977, %v6022, %v6021
    %v6024 = vrot.slane %v5866, 3
    %v6025 = vsel %vm5980, %v6024, %v6023
    %v6026 = vrot.slane %v5868, 2
    %v6027 = vsel %vm5983, %v6026, %v6025
    %v6028 = vrot.slane %v5870, 1
    %v6029 = vsel %vm5986, %v6028, %v6027
    %v6030 = vrot.slane %v5873, 7
    %v6031 = vsel %vm5968, %v6030, %v5871
    %v6032 = vrot.slane %v5875, 6
    %v6033 = vsel %vm5971, %v6032, %v6031
    %v6034 = vrot.slane %v5877, 5
    %v6035 = vsel %vm5974, %v6034, %v6033
    %v6036 = vrot.slane %v5879, 4
    %v6037 = vsel %vm5977, %v6036, %v6035
    %v6038 = vrot.slane %v5881, 3
    %v6039 = vsel %vm5980, %v6038, %v6037
    %v6040 = vrot.slane %v5883, 2
    %v6041 = vsel %vm5983, %v6040, %v6039
    %v6042 = vrot.slane %v5885, 1
    %v6043 = vsel %vm5986, %v6042, %v6041
    %v6044 = vrot.slane %v5874, 7
    %v6045 = vsel %vm5968, %v6044, %v5872
    %v6046 = vrot.slane %v5876, 6
    %v6047 = vsel %vm5971, %v6046, %v6045
    %v6048 = vrot.slane %v5878, 5
    %v6049 = vsel %vm5974, %v6048, %v6047
    %v6050 = vrot.slane %v5880, 4
    %v6051 = vsel %vm5977, %v6050, %v6049
    %v6052 = vrot.slane %v5882, 3
    %v6053 = vsel %vm5980, %v6052, %v6051
    %v6054 = vrot.slane %v5884, 2
    %v6055 = vsel %vm5983, %v6054, %v6053
    %v6056 = vrot.slane %v5886, 1
    %v6057 = vsel %vm5986, %v6056, %v6055
    %v6058 = vrot.slane %v5889, 7
    %v6059 = vsel %vm5968, %v6058, %v5887
    %v6060 = vrot.slane %v5891, 6
    %v6061 = vsel %vm5971, %v6060, %v6059
    %v6062 = vrot.slane %v5893, 5
    %v6063 = vsel %vm5974, %v6062, %v6061
    %v6064 = vrot.slane %v5895, 4
    %v6065 = vsel %vm5977, %v6064, %v6063
    %v6066 = vrot.slane %v5897, 3
    %v6067 = vsel %vm5980, %v6066, %v6065
    %v6068 = vrot.slane %v5899, 2
    %v6069 = vsel %vm5983, %v6068, %v6067
    %v6070 = vrot.slane %v5901, 1
    %v6071 = vsel %vm5986, %v6070, %v6069
    %v6072 = vrot.slane %v5890, 7
    %v6073 = vsel %vm5968, %v6072, %v5888
    %v6074 = vrot.slane %v5892, 6
    %v6075 = vsel %vm5971, %v6074, %v6073
    %v6076 = vrot.slane %v5894, 5
    %v6077 = vsel %vm5974, %v6076, %v6075
    %v6078 = vrot.slane %v5896, 4
    %v6079 = vsel %vm5977, %v6078, %v6077
    %v6080 = vrot.slane %v5898, 3
    %v6081 = vsel %vm5980, %v6080, %v6079
    %v6082 = vrot.slane %v5900, 2
    %v6083 = vsel %vm5983, %v6082, %v6081
    %v6084 = vrot.slane %v5902, 1
    %v6085 = vsel %vm5986, %v6084, %v6083
    %v6086 = vrot.slane %v5905, 7
    %v6087 = vsel %vm5968, %v6086, %v5903
    %v6088 = vrot.slane %v5907, 6
    %v6089 = vsel %vm5971, %v6088, %v6087
    %v6090 = vrot.slane %v5909, 5
    %v6091 = vsel %vm5974, %v6090, %v6089
    %v6092 = vrot.slane %v5911, 4
    %v6093 = vsel %vm5977, %v6092, %v6091
    %v6094 = vrot.slane %v5913, 3
    %v6095 = vsel %vm5980, %v6094, %v6093
    %v6096 = vrot.slane %v5915, 2
    %v6097 = vsel %vm5983, %v6096, %v6095
    %v6098 = vrot.slane %v5917, 1
    %v6099 = vsel %vm5986, %v6098, %v6097
    %v6100 = vrot.slane %v5906, 7
    %v6101 = vsel %vm5968, %v6100, %v5904
    %v6102 = vrot.slane %v5908, 6
    %v6103 = vsel %vm5971, %v6102, %v6101
    %v6104 = vrot.slane %v5910, 5
    %v6105 = vsel %vm5974, %v6104, %v6103
    %v6106 = vrot.slane %v5912, 4
    %v6107 = vsel %vm5977, %v6106, %v6105
    %v6108 = vrot.slane %v5914, 3
    %v6109 = vsel %vm5980, %v6108, %v6107
    %v6110 = vrot.slane %v5916, 2
    %v6111 = vsel %vm5983, %v6110, %v6109
    %v6112 = vrot.slane %v5918, 1
    %v6113 = vsel %vm5986, %v6112, %v6111
    %v6114 = vrot.slane %v5921, 7
    %v6115 = vsel %vm5968, %v6114, %v5919
    %v6116 = vrot.slane %v5923, 6
    %v6117 = vsel %vm5971, %v6116, %v6115
    %v6118 = vrot.slane %v5925, 5
    %v6119 = vsel %vm5974, %v6118, %v6117
    %v6120 = vrot.slane %v5927, 4
    %v6121 = vsel %vm5977, %v6120, %v6119
    %v6122 = vrot.slane %v5929, 3
    %v6123 = vsel %vm5980, %v6122, %v6121
    %v6124 = vrot.slane %v5931, 2
    %v6125 = vsel %vm5983, %v6124, %v6123
    %v6126 = vrot.slane %v5933, 1
    %v6127 = vsel %vm5986, %v6126, %v6125
    %v6128 = vrot.slane %v5922, 7
    %v6129 = vsel %vm5968, %v6128, %v5920
    %v6130 = vrot.slane %v5924, 6
    %v6131 = vsel %vm5971, %v6130, %v6129
    %v6132 = vrot.slane %v5926, 5
    %v6133 = vsel %vm5974, %v6132, %v6131
    %v6134 = vrot.slane %v5928, 4
    %v6135 = vsel %vm5977, %v6134, %v6133
    %v6136 = vrot.slane %v5930, 3
    %v6137 = vsel %vm5980, %v6136, %v6135
    %v6138 = vrot.slane %v5932, 2
    %v6139 = vsel %vm5983, %v6138, %v6137
    %v6140 = vrot.slane %v5934, 1
    %v6141 = vsel %vm5986, %v6140, %v6139
    %v6142 = vrot.slane %v5937, 7
    %v6143 = vsel %vm5968, %v6142, %v5935
    %v6144 = vrot.slane %v5939, 6
    %v6145 = vsel %vm5971, %v6144, %v6143
    %v6146 = vrot.slane %v5941, 5
    %v6147 = vsel %vm5974, %v6146, %v6145
    %v6148 = vrot.slane %v5943, 4
    %v6149 = vsel %vm5977, %v6148, %v6147
    %v6150 = vrot.slane %v5945, 3
    %v6151 = vsel %vm5980, %v6150, %v6149
    %v6152 = vrot.slane %v5947, 2
    %v6153 = vsel %vm5983, %v6152, %v6151
    %v6154 = vrot.slane %v5949, 1
    %v6155 = vsel %vm5986, %v6154, %v6153
    %v6156 = vrot.slane %v5938, 7
    %v6157 = vsel %vm5968, %v6156, %v5936
    %v6158 = vrot.slane %v5940, 6
    %v6159 = vsel %vm5971, %v6158, %v6157
    %v6160 = vrot.slane %v5942, 5
    %v6161 = vsel %vm5974, %v6160, %v6159
    %v6162 = vrot.slane %v5944, 4
    %v6163 = vsel %vm5977, %v6162, %v6161
    %v6164 = vrot.slane %v5946, 3
    %v6165 = vsel %vm5980, %v6164, %v6163
    %v6166 = vrot.slane %v5948, 2
    %v6167 = vsel %vm5983, %v6166, %v6165
    %v6168 = vrot.slane %v5950, 1
    %v6169 = vsel %vm5986, %v6168, %v6167
    %v6170 = vrot.slane %v5953, 7
    %v6171 = vsel %vm5968, %v6170, %v5951
    %v6172 = vrot.slane %v5955, 6
    %v6173 = vsel %vm5971, %v6172, %v6171
    %v6174 = vrot.slane %v5957, 5
    %v6175 = vsel %vm5974, %v6174, %v6173
    %v6176 = vrot.slane %v5959, 4
    %v6177 = vsel %vm5977, %v6176, %v6175
    %v6178 = vrot.slane %v5961, 3
    %v6179 = vsel %vm5980, %v6178, %v6177
    %v6180 = vrot.slane %v5963, 2
    %v6181 = vsel %vm5983, %v6180, %v6179
    %v6182 = vrot.slane %v5965, 1
    %v6183 = vsel %vm5986, %v6182, %v6181
    %v6184 = vrot.slane %v5954, 7
    %v6185 = vsel %vm5968, %v6184, %v5952
    %v6186 = vrot.slane %v5956, 6
    %v6187 = vsel %vm5971, %v6186, %v6185
    %v6188 = vrot.slane %v5958, 5
    %v6189 = vsel %vm5974, %v6188, %v6187
    %v6190 = vrot.slane %v5960, 4
    %v6191 = vsel %vm5977, %v6190, %v6189
    %v6192 = vrot.slane %v5962, 3
    %v6193 = vsel %vm5980, %v6192, %v6191
    %v6194 = vrot.slane %v5964, 2
    %v6195 = vsel %vm5983, %v6194, %v6193
    %v6196 = vrot.slane %v5966, 1
    %v6197 = vsel %vm5986, %v6196, %v6195
    %v6198 = vpack.c.b16 %v6015, %v5987
    %v6199 = vpack.c.b16 %v6029, %v6001
    %v6200 = vpack.c.b16 %v6071, %v6043
    %v6201 = vpack.c.b16 %v6085, %v6057
    %v6202 = vpack.c.b16 %v6127, %v6099
    %v6203 = vpack.c.b16 %v6141, %v6113
    %v6204 = vpack.c.b16 %v6183, %v6155
    %v6205 = vpack.c.b16 %v6197, %v6169
    %v6239 = vunpack.c.l.b16 %v4338
    %v6240 = vunpack.c.h.b16 %v4338
    %v6241 = vunpack.c.l.b16 %v4339
    %v6242 = vunpack.c.h.b16 %v4339
    %v6243 = vunpack.c.l.b16 %v4340
    %v6244 = vunpack.c.h.b16 %v4340
    %v6245 = vunpack.c.l.b16 %v4341
    %v6246 = vunpack.c.h.b16 %v4341
    %v6247 = vunpack.c.l.b16 %v4342
    %v6248 = vunpack.c.h.b16 %v4342
    %v6249 = vunpack.c.l.b16 %v4343
    %v6250 = vunpack.c.h.b16 %v4343
    %v6251 = vunpack.c.l.b16 %v4344
    %v6252 = vunpack.c.h.b16 %v4344
    %v6253 = vunpack.c.l.b16 %v4345
    %v6254 = vunpack.c.h.b16 %v4345
    %v6255 = vunpack.c.l.b16 %v4346
    %v6256 = vunpack.c.h.b16 %v4346
    %v6257 = vunpack.c.l.b16 %v4347
    %v6258 = vunpack.c.h.b16 %v4347
    %v6259 = vunpack.c.l.b16 %v4348
    %v6260 = vunpack.c.h.b16 %v4348
    %v6261 = vunpack.c.l.b16 %v4349
    %v6262 = vunpack.c.h.b16 %v4349
    %v6263 = vunpack.c.l.b16 %v4350
    %v6264 = vunpack.c.h.b16 %v4350
    %v6265 = vunpack.c.l.b16 %v4351
    %v6266 = vunpack.c.h.b16 %v4351
    %v6267 = vunpack.c.l.b16 %v4352
    %v6268 = vunpack.c.h.b16 %v4352
    %v6269 = vunpack.c.l.b16 %v4353
    %v6270 = vunpack.c.h.b16 %v4353
    %v6271 = vunpack.c.l.b16 %v4354
    %v6272 = vunpack.c.h.b16 %v4354
    %v6273 = vunpack.c.l.b16 %v4355
    %v6274 = vunpack.c.h.b16 %v4355
    %v6275 = vunpack.c.l.b16 %v4356
    %v6276 = vunpack.c.h.b16 %v4356
    %v6277 = vunpack.c.l.b16 %v4357
    %v6278 = vunpack.c.h.b16 %v4357
    %v6279 = vunpack.c.l.b16 %v4358
    %v6280 = vunpack.c.h.b16 %v4358
    %v6281 = vunpack.c.l.b16 %v4359
    %v6282 = vunpack.c.h.b16 %v4359
    %v6283 = vunpack.c.l.b16 %v4360
    %v6284 = vunpack.c.h.b16 %v4360
    %v6285 = vunpack.c.l.b16 %v4361
    %v6286 = vunpack.c.h.b16 %v4361
    %v6287 = vunpack.c.l.b16 %v4362
    %v6288 = vunpack.c.h.b16 %v4362
    %v6289 = vunpack.c.l.b16 %v4363
    %v6290 = vunpack.c.h.b16 %v4363
    %v6291 = vunpack.c.l.b16 %v4364
    %v6292 = vunpack.c.h.b16 %v4364
    %v6293 = vunpack.c.l.b16 %v4365
    %v6294 = vunpack.c.h.b16 %v4365
    %v6295 = vunpack.c.l.b16 %v4366
    %v6296 = vunpack.c.h.b16 %v4366
    %v6297 = vpack.c.b16 %v6241, %v6239
    %v6298 = vpack.c.b16 %v6242, %v6240
    %v6299 = vpack.c.b16 %v6245, %v6243
    %v6300 = vpack.c.b16 %v6246, %v6244
    %v6301 = vpack.c.b16 %v6249, %v6247
    %v6302 = vpack.c.b16 %v6250, %v6248
    %v6303 = vpack.c.b16 %v6253, %v6251
    %v6304 = vpack.c.b16 %v6254, %v6252
    %v6305 = vpack.c.b16 %v6257, %v6255
    %v6306 = vpack.c.b16 %v6258, %v6256
    %v6307 = vpack.c.b16 %v6261, %v6259
    %v6308 = vpack.c.b16 %v6262, %v6260
    %v6309 = vpack.c.b16 %v6265, %v6263
    %v6310 = vpack.c.b16 %v6266, %v6264
    %v6311 = vpack.c.b16 %v6269, %v6267
    %v6312 = vpack.c.b16 %v6270, %v6268
    %v6313 = vpack.c.b16 %v6273, %v6271
    %v6314 = vpack.c.b16 %v6274, %v6272
    %v6315 = vpack.c.b16 %v6277, %v6275
    %v6316 = vpack.c.b16 %v6278, %v6276
    %v6317 = vpack.c.b16 %v6281, %v6279
    %v6318 = vpack.c.b16 %v6282, %v6280
    %v6319 = vpack.c.b16 %v6285, %v6283
    %v6320 = vpack.c.b16 %v6286, %v6284
    %v6321 = vpack.c.b16 %v6289, %v6287
    %v6322 = vpack.c.b16 %v6290, %v6288
    %v6323 = vpack.c.b16 %v6293, %v6291
    %v6324 = vpack.c.b16 %v6294, %v6292
    %v6325 = vpack.c.b16 %v6295, %v6295
    %v6326 = vpack.c.b16 %v6296, %v6296
    %vm6355 = vcmask 834560
    %v6357 = vsel %vm6355, %v6199, 0
    %v6360 = vsel %vm6355, %v6201, 0
    %v6363 = vsel %vm6355, %v6203, 0
    %v6366 = vsel %vm6355, %v6205, 0
    %vm6368 = vcmask 1042432
    %v6370 = vsel %vm6368, %v6325, 0
    %v6373 = vsel %vm6368, %v6326, 0
    %6375 = vmatprep.subr.bf16.mxu0 %v6298
    %6376 = vmatpush1.bf16.msra.mxu0 %v6297
    %6377 = vmatprep.subr.bf16.mxu0 %v6300
    %6378 = vmatpush1.bf16.msra.mxu0 %v6299
    %6379 = vmatprep.subr.bf16.mxu0 %v6302
    %6380 = vmatpush1.bf16.msra.mxu0 %v6301
    %6381 = vmatprep.subr.bf16.mxu0 %v6304
    %6382 = vmatpush1.bf16.msra.mxu0 %v6303
    %6383 = vmatprep.subr.bf16.mxu0 %v6306
    %6384 = vmatpush1.bf16.msra.mxu0 %v6305
    %6385 = vmatprep.subr.bf16.mxu0 %v6308
    %6386 = vmatpush1.bf16.msra.mxu0 %v6307
    %6387 = vmatprep.subr.bf16.mxu0 %v6310
    %6388 = vmatpush1.bf16.msra.mxu0 %v6309
    %6389 = vmatprep.subr.bf16.mxu0 %v6312
    %6390 = vmatpush1.bf16.msra.mxu0 %v6311
    %6391 = vmatprep.subr.bf16.mxu0 %v6314
    %6392 = vmatpush1.bf16.msra.mxu0 %v6313
    %6393 = vmatprep.subr.bf16.mxu0 %v6316
    %6394 = vmatpush1.bf16.msra.mxu0 %v6315
    %6395 = vmatprep.subr.bf16.mxu0 %v6318
    %6396 = vmatpush1.bf16.msra.mxu0 %v6317
    %6397 = vmatprep.subr.bf16.mxu0 %v6320
    %6398 = vmatpush1.bf16.msra.mxu0 %v6319
    %6399 = vmatprep.subr.bf16.mxu0 %v6322
    %6400 = vmatpush1.bf16.msra.mxu0 %v6321
    %6401 = vmatprep.subr.bf16.mxu0 %v6324
    %6402 = vmatpush1.bf16.msra.mxu0 %v6323
    %6403 = vmatprep.subr.bf16.mxu0 %v6373
    %6404 = vmatpush1.bf16.msra.mxu0 %v6370
    %6405 = vmatprep.subr.bf16.mxu0 0
    %6406 = vmatpush1.bf16.msra.mxu0 0
    %6407 = vmatprep.mubr.bf16.mxu0 %v6357
    %6408 = vmatmul.mubr.bf16.gmra.mrb[0].mxu0 %v6198
    %v6409 = vpop.f32.mrb[0].mxu0
    %v6410 = vadd.f32 0.0, %v6409
    %v6411 = vpop.f32.mrb[0].mxu0
    %v6412 = vadd.f32 0.0, %v6411
    %v6413 = vpop.f32.mrb[0].mxu0
    %v6414 = vadd.f32 0.0, %v6413
    %v6415 = vpop.f32.mrb[0].mxu0
    %v6416 = vadd.f32 0.0, %v6415
    %6417 = vmatprep.mubr.bf16.mxu0 %v6360
    %6418 = vmatmul.mubr.bf16.gmra.mrb[0].mxu0 %v6200
    %v6419 = vpop.f32.mrb[0].mxu0
    %v6420 = vadd.f32 0.0, %v6419
    %v6421 = vpop.f32.mrb[0].mxu0
    %v6422 = vadd.f32 0.0, %v6421
    %v6423 = vpop.f32.mrb[0].mxu0
    %v6424 = vadd.f32 0.0, %v6423
    %v6425 = vpop.f32.mrb[0].mxu0
    %v6426 = vadd.f32 0.0, %v6425
    %6427 = vmatprep.mubr.bf16.mxu0 %v6363
    %6428 = vmatmul.mubr.bf16.gmra.mrb[0].mxu0 %v6202
    %v6429 = vpop.f32.mrb[0].mxu0
    %v6430 = vadd.f32 0.0, %v6429
    %v6431 = vpop.f32.mrb[0].mxu0
    %v6432 = vadd.f32 0.0, %v6431
    %v6433 = vpop.f32.mrb[0].mxu0
    %v6434 = vadd.f32 0.0, %v6433
    %v6435 = vpop.f32.mrb[0].mxu0
    %v6436 = vadd.f32 0.0, %v6435
    %6437 = vmatprep.mubr.bf16.mxu0 %v6366
    %6438 = vmatmul.mubr.bf16.gmra.mrb[0].mxu0 %v6204
    %v6439 = vpop.f32.mrb[0].mxu0
    %v6440 = vadd.f32 0.0, %v6439
    %v6441 = vpop.f32.mrb[0].mxu0
    %v6442 = vadd.f32 0.0, %v6441
    %v6443 = vpop.f32.mrb[0].mxu0
    %v6444 = vadd.f32 0.0, %v6443
    %v6445 = vpop.f32.mrb[0].mxu0
    %v6446 = vadd.f32 0.0, %v6445
    %6447 = vdwg.mxu0
    %v6457 = vunpack.c.l.s4 1966171168
    %v6458 = vunpack.c.0.s8 %v6457
    %v6459 = vlaneseq
    %v6460 = vshrl.u32 %v6459, 7
    %v6461 = vsub.s32 %v6458, %v6460
    %v6462 = vrot.slane %v4212, %v6461
    %v6463 = vcombine.high %v6462, %v6462
    %v6465 = vunpack.c.l.s4 1966171168
    %v6466 = vunpack.c.0.s8 %v6465
    %v6467 = vlaneseq
    %v6468 = vshrl.u32 %v6467, 7
    %v6469 = vsub.s32 %v6466, %v6468
    %v6470 = vrot.slane %v6462, %v6469
    %v6472 = vunpack.c.l.s4 1966171168
    %v6473 = vunpack.c.0.s8 %v6472
    %v6474 = vlaneseq
    %v6475 = vshrl.u32 %v6474, 7
    %v6476 = vsub.s32 %v6473, %v6475
    %v6477 = vrot.slane %v6463, %v6476
    %v6479 = vunpack.c.l.s4 1966171168
    %v6480 = vunpack.c.0.s8 %v6479
    %v6481 = vlaneseq
    %v6482 = vshrl.u32 %v6481, 7
    %v6483 = vsub.s32 %v6480, %v6482
    %v6484 = vrot.slane %v4224, %v6483
    %v6485 = vcombine.high %v6484, %v6484
    %v6487 = vunpack.c.l.s4 1966171168
    %v6488 = vunpack.c.0.s8 %v6487
    %v6489 = vlaneseq
    %v6490 = vshrl.u32 %v6489, 7
    %v6491 = vsub.s32 %v6488, %v6490
    %v6492 = vrot.slane %v6484, %v6491
    %v6494 = vunpack.c.l.s4 1966171168
    %v6495 = vunpack.c.0.s8 %v6494
    %v6496 = vlaneseq
    %v6497 = vshrl.u32 %v6496, 7
    %v6498 = vsub.s32 %v6495, %v6497
    %v6499 = vrot.slane %v6485, %v6498
    %v6501 = vunpack.c.l.s4 1966171168
    %v6502 = vunpack.c.0.s8 %v6501
    %v6503 = vlaneseq
    %v6504 = vshrl.u32 %v6503, 7
    %v6505 = vsub.s32 %v6502, %v6504
    %v6506 = vrot.slane %v4236, %v6505
    %v6507 = vcombine.high %v6506, %v6506
    %v6509 = vunpack.c.l.s4 1966171168
    %v6510 = vunpack.c.0.s8 %v6509
    %v6511 = vlaneseq
    %v6512 = vshrl.u32 %v6511, 7
    %v6513 = vsub.s32 %v6510, %v6512
    %v6514 = vrot.slane %v6506, %v6513
    %v6516 = vunpack.c.l.s4 1966171168
    %v6517 = vunpack.c.0.s8 %v6516
    %v6518 = vlaneseq
    %v6519 = vshrl.u32 %v6518, 7
    %v6520 = vsub.s32 %v6517, %v6519
    %v6521 = vrot.slane %v6507, %v6520
    %v6523 = vunpack.c.l.s4 1966171168
    %v6524 = vunpack.c.0.s8 %v6523
    %v6525 = vlaneseq
    %v6526 = vshrl.u32 %v6525, 7
    %v6527 = vsub.s32 %v6524, %v6526
    %v6528 = vrot.slane %v4248, %v6527
    %v6529 = vcombine.high %v6528, %v6528
    %v6531 = vunpack.c.l.s4 1966171168
    %v6532 = vunpack.c.0.s8 %v6531
    %v6533 = vlaneseq
    %v6534 = vshrl.u32 %v6533, 7
    %v6535 = vsub.s32 %v6532, %v6534
    %v6536 = vrot.slane %v6528, %v6535
    %v6538 = vunpack.c.l.s4 1966171168
    %v6539 = vunpack.c.0.s8 %v6538
    %v6540 = vlaneseq
    %v6541 = vshrl.u32 %v6540, 7
    %v6542 = vsub.s32 %v6539, %v6541
    %v6543 = vrot.slane %v6529, %v6542
    %v6545 = vunpack.c.l.s4 1966171168
    %v6546 = vunpack.c.0.s8 %v6545
    %v6547 = vlaneseq
    %v6548 = vshrl.u32 %v6547, 7
    %v6549 = vsub.s32 %v6546, %v6548
    %v6550 = vrot.slane %v4260, %v6549
    %v6551 = vcombine.high %v6550, %v6550
    %v6553 = vunpack.c.l.s4 1966171168
    %v6554 = vunpack.c.0.s8 %v6553
    %v6555 = vlaneseq
    %v6556 = vshrl.u32 %v6555, 7
    %v6557 = vsub.s32 %v6554, %v6556
    %v6558 = vrot.slane %v6550, %v6557
    %v6560 = vunpack.c.l.s4 1966171168
    %v6561 = vunpack.c.0.s8 %v6560
    %v6562 = vlaneseq
    %v6563 = vshrl.u32 %v6562, 7
    %v6564 = vsub.s32 %v6561, %v6563
    %v6565 = vrot.slane %v6551, %v6564
    %v6567 = vunpack.c.l.s4 1966171168
    %v6568 = vunpack.c.0.s8 %v6567
    %v6569 = vlaneseq
    %v6570 = vshrl.u32 %v6569, 7
    %v6571 = vsub.s32 %v6568, %v6570
    %v6572 = vrot.slane %v4272, %v6571
    %v6573 = vcombine.high %v6572, %v6572
    %v6575 = vunpack.c.l.s4 1966171168
    %v6576 = vunpack.c.0.s8 %v6575
    %v6577 = vlaneseq
    %v6578 = vshrl.u32 %v6577, 7
    %v6579 = vsub.s32 %v6576, %v6578
    %v6580 = vrot.slane %v6572, %v6579
    %v6582 = vunpack.c.l.s4 1966171168
    %v6583 = vunpack.c.0.s8 %v6582
    %v6584 = vlaneseq
    %v6585 = vshrl.u32 %v6584, 7
    %v6586 = vsub.s32 %v6583, %v6585
    %v6587 = vrot.slane %v6573, %v6586
    %v6589 = vunpack.c.l.s4 1966171168
    %v6590 = vunpack.c.0.s8 %v6589
    %v6591 = vlaneseq
    %v6592 = vshrl.u32 %v6591, 7
    %v6593 = vsub.s32 %v6590, %v6592
    %v6594 = vrot.slane %v4284, %v6593
    %v6595 = vcombine.high %v6594, %v6594
    %v6597 = vunpack.c.l.s4 1966171168
    %v6598 = vunpack.c.0.s8 %v6597
    %v6599 = vlaneseq
    %v6600 = vshrl.u32 %v6599, 7
    %v6601 = vsub.s32 %v6598, %v6600
    %v6602 = vrot.slane %v6594, %v6601
    %v6604 = vunpack.c.l.s4 1966171168
    %v6605 = vunpack.c.0.s8 %v6604
    %v6606 = vlaneseq
    %v6607 = vshrl.u32 %v6606, 7
    %v6608 = vsub.s32 %v6605, %v6607
    %v6609 = vrot.slane %v6595, %v6608
    %v6611 = vunpack.c.l.s4 1966171168
    %v6612 = vunpack.c.0.s8 %v6611
    %v6613 = vlaneseq
    %v6614 = vshrl.u32 %v6613, 7
    %v6615 = vsub.s32 %v6612, %v6614
    %v6616 = vrot.slane %v4296, %v6615
    %v6617 = vcombine.high %v6616, %v6616
    %v6619 = vunpack.c.l.s4 1966171168
    %v6620 = vunpack.c.0.s8 %v6619
    %v6621 = vlaneseq
    %v6622 = vshrl.u32 %v6621, 7
    %v6623 = vsub.s32 %v6620, %v6622
    %v6624 = vrot.slane %v6616, %v6623
    %v6626 = vunpack.c.l.s4 1966171168
    %v6627 = vunpack.c.0.s8 %v6626
    %v6628 = vlaneseq
    %v6629 = vshrl.u32 %v6628, 7
    %v6630 = vsub.s32 %v6627, %v6629
    %v6631 = vrot.slane %v6617, %v6630
    %v6632 = vunpack.c.l.b16 %v6470
    %v6633 = vunpack.c.l.b16 %v6477
    %v6634 = vunpack.c.l.b16 %v6492
    %v6635 = vunpack.c.l.b16 %v6499
    %v6636 = vunpack.c.l.b16 %v6514
    %v6637 = vunpack.c.l.b16 %v6521
    %v6638 = vunpack.c.l.b16 %v6536
    %v6639 = vunpack.c.l.b16 %v6543
    %v6640 = vunpack.c.l.b16 %v6558
    %v6641 = vunpack.c.l.b16 %v6565
    %v6642 = vunpack.c.l.b16 %v6580
    %v6643 = vunpack.c.l.b16 %v6587
    %v6644 = vunpack.c.l.b16 %v6602
    %v6645 = vunpack.c.l.b16 %v6609
    %v6646 = vunpack.c.l.b16 %v6624
    %v6647 = vunpack.c.l.b16 %v6631
    %v6648 = vrot.slane %v5839, 7
    %v6649 = vsel %vm5968, %v6648, %v6632
    %v6650 = vrot.slane %v5841, 6
    %v6651 = vsel %vm5971, %v6650, %v6649
    %v6652 = vrot.slane %v5843, 5
    %v6653 = vsel %vm5974, %v6652, %v6651
    %v6654 = vrot.slane %v5845, 4
    %v6655 = vsel %vm5977, %v6654, %v6653
    %v6656 = vrot.slane %v5847, 3
    %v6657 = vsel %vm5980, %v6656, %v6655
    %v6658 = vrot.slane %v5849, 2
    %v6659 = vsel %vm5983, %v6658, %v6657
    %v6660 = vrot.slane %v5851, 1
    %v6661 = vsel %vm5986, %v6660, %v6659
    %v6662 = vrot.slane %v5840, 7
    %v6663 = vsel %vm5968, %v6662, %v6633
    %v6664 = vrot.slane %v5842, 6
    %v6665 = vsel %vm5971, %v6664, %v6663
    %v6666 = vrot.slane %v5844, 5
    %v6667 = vsel %vm5974, %v6666, %v6665
    %v6668 = vrot.slane %v5846, 4
    %v6669 = vsel %vm5977, %v6668, %v6667
    %v6670 = vrot.slane %v5848, 3
    %v6671 = vsel %vm5980, %v6670, %v6669
    %v6672 = vrot.slane %v5850, 2
    %v6673 = vsel %vm5983, %v6672, %v6671
    %v6674 = vrot.slane %v5852, 1
    %v6675 = vsel %vm5986, %v6674, %v6673
    %v6676 = vrot.slane %v5855, 7
    %v6677 = vsel %vm5968, %v6676, %v6634
    %v6678 = vrot.slane %v5857, 6
    %v6679 = vsel %vm5971, %v6678, %v6677
    %v6680 = vrot.slane %v5859, 5
    %v6681 = vsel %vm5974, %v6680, %v6679
    %v6682 = vrot.slane %v5861, 4
    %v6683 = vsel %vm5977, %v6682, %v6681
    %v6684 = vrot.slane %v5863, 3
    %v6685 = vsel %vm5980, %v6684, %v6683
    %v6686 = vrot.slane %v5865, 2
    %v6687 = vsel %vm5983, %v6686, %v6685
    %v6688 = vrot.slane %v5867, 1
    %v6689 = vsel %vm5986, %v6688, %v6687
    %v6690 = vrot.slane %v5856, 7
    %v6691 = vsel %vm5968, %v6690, %v6635
    %v6692 = vrot.slane %v5858, 6
    %v6693 = vsel %vm5971, %v6692, %v6691
    %v6694 = vrot.slane %v5860, 5
    %v6695 = vsel %vm5974, %v6694, %v6693
    %v6696 = vrot.slane %v5862, 4
    %v6697 = vsel %vm5977, %v6696, %v6695
    %v6698 = vrot.slane %v5864, 3
    %v6699 = vsel %vm5980, %v6698, %v6697
    %v6700 = vrot.slane %v5866, 2
    %v6701 = vsel %vm5983, %v6700, %v6699
    %v6702 = vrot.slane %v5868, 1
    %v6703 = vsel %vm5986, %v6702, %v6701
    %v6704 = vrot.slane %v5871, 7
    %v6705 = vsel %vm5968, %v6704, %v6636
    %v6706 = vrot.slane %v5873, 6
    %v6707 = vsel %vm5971, %v6706, %v6705
    %v6708 = vrot.slane %v5875, 5
    %v6709 = vsel %vm5974, %v6708, %v6707
    %v6710 = vrot.slane %v5877, 4
    %v6711 = vsel %vm5977, %v6710, %v6709
    %v6712 = vrot.slane %v5879, 3
    %v6713 = vsel %vm5980, %v6712, %v6711
    %v6714 = vrot.slane %v5881, 2
    %v6715 = vsel %vm5983, %v6714, %v6713
    %v6716 = vrot.slane %v5883, 1
    %v6717 = vsel %vm5986, %v6716, %v6715
    %v6718 = vrot.slane %v5872, 7
    %v6719 = vsel %vm5968, %v6718, %v6637
    %v6720 = vrot.slane %v5874, 6
    %v6721 = vsel %vm5971, %v6720, %v6719
    %v6722 = vrot.slane %v5876, 5
    %v6723 = vsel %vm5974, %v6722, %v6721
    %v6724 = vrot.slane %v5878, 4
    %v6725 = vsel %vm5977, %v6724, %v6723
    %v6726 = vrot.slane %v5880, 3
    %v6727 = vsel %vm5980, %v6726, %v6725
    %v6728 = vrot.slane %v5882, 2
    %v6729 = vsel %vm5983, %v6728, %v6727
    %v6730 = vrot.slane %v5884, 1
    %v6731 = vsel %vm5986, %v6730, %v6729
    %v6732 = vrot.slane %v5887, 7
    %v6733 = vsel %vm5968, %v6732, %v6638
    %v6734 = vrot.slane %v5889, 6
    %v6735 = vsel %vm5971, %v6734, %v6733
    %v6736 = vrot.slane %v5891, 5
    %v6737 = vsel %vm5974, %v6736, %v6735
    %v6738 = vrot.slane %v5893, 4
    %v6739 = vsel %vm5977, %v6738, %v6737
    %v6740 = vrot.slane %v5895, 3
    %v6741 = vsel %vm5980, %v6740, %v6739
    %v6742 = vrot.slane %v5897, 2
    %v6743 = vsel %vm5983, %v6742, %v6741
    %v6744 = vrot.slane %v5899, 1
    %v6745 = vsel %vm5986, %v6744, %v6743
    %v6746 = vrot.slane %v5888, 7
    %v6747 = vsel %vm5968, %v6746, %v6639
    %v6748 = vrot.slane %v5890, 6
    %v6749 = vsel %vm5971, %v6748, %v6747
    %v6750 = vrot.slane %v5892, 5
    %v6751 = vsel %vm5974, %v6750, %v6749
    %v6752 = vrot.slane %v5894, 4
    %v6753 = vsel %vm5977, %v6752, %v6751
    %v6754 = vrot.slane %v5896, 3
    %v6755 = vsel %vm5980, %v6754, %v6753
    %v6756 = vrot.slane %v5898, 2
    %v6757 = vsel %vm5983, %v6756, %v6755
    %v6758 = vrot.slane %v5900, 1
    %v6759 = vsel %vm5986, %v6758, %v6757
    %v6760 = vrot.slane %v5903, 7
    %v6761 = vsel %vm5968, %v6760, %v6640
    %v6762 = vrot.slane %v5905, 6
    %v6763 = vsel %vm5971, %v6762, %v6761
    %v6764 = vrot.slane %v5907, 5
    %v6765 = vsel %vm5974, %v6764, %v6763
    %v6766 = vrot.slane %v5909, 4
    %v6767 = vsel %vm5977, %v6766, %v6765
    %v6768 = vrot.slane %v5911, 3
    %v6769 = vsel %vm5980, %v6768, %v6767
    %v6770 = vrot.slane %v5913, 2
    %v6771 = vsel %vm5983, %v6770, %v6769
    %v6772 = vrot.slane %v5915, 1
    %v6773 = vsel %vm5986, %v6772, %v6771
    %v6774 = vrot.slane %v5904, 7
    %v6775 = vsel %vm5968, %v6774, %v6641
    %v6776 = vrot.slane %v5906, 6
    %v6777 = vsel %vm5971, %v6776, %v6775
    %v6778 = vrot.slane %v5908, 5
    %v6779 = vsel %vm5974, %v6778, %v6777
    %v6780 = vrot.slane %v5910, 4
    %v6781 = vsel %vm5977, %v6780, %v6779
    %v6782 = vrot.slane %v5912, 3
    %v6783 = vsel %vm5980, %v6782, %v6781
    %v6784 = vrot.slane %v5914, 2
    %v6785 = vsel %vm5983, %v6784, %v6783
    %v6786 = vrot.slane %v5916, 1
    %v6787 = vsel %vm5986, %v6786, %v6785
    %v6788 = vrot.slane %v5919, 7
    %v6789 = vsel %vm5968, %v6788, %v6642
    %v6790 = vrot.slane %v5921, 6
    %v6791 = vsel %vm5971, %v6790, %v6789
    %v6792 = vrot.slane %v5923, 5
    %v6793 = vsel %vm5974, %v6792, %v6791
    %v6794 = vrot.slane %v5925, 4
    %v6795 = vsel %vm5977, %v6794, %v6793
    %v6796 = vrot.slane %v5927, 3
    %v6797 = vsel %vm5980, %v6796, %v6795
    %v6798 = vrot.slane %v5929, 2
    %v6799 = vsel %vm5983, %v6798, %v6797
    %v6800 = vrot.slane %v5931, 1
    %v6801 = vsel %vm5986, %v6800, %v6799
    %v6802 = vrot.slane %v5920, 7
    %v6803 = vsel %vm5968, %v6802, %v6643
    %v6804 = vrot.slane %v5922, 6
    %v6805 = vsel %vm5971, %v6804, %v6803
    %v6806 = vrot.slane %v5924, 5
    %v6807 = vsel %vm5974, %v6806, %v6805
    %v6808 = vrot.slane %v5926, 4
    %v6809 = vsel %vm5977, %v6808, %v6807
    %v6810 = vrot.slane %v5928, 3
    %v6811 = vsel %vm5980, %v6810, %v6809
    %v6812 = vrot.slane %v5930, 2
    %v6813 = vsel %vm5983, %v6812, %v6811
    %v6814 = vrot.slane %v5932, 1
    %v6815 = vsel %vm5986, %v6814, %v6813
    %v6816 = vrot.slane %v5935, 7
    %v6817 = vsel %vm5968, %v6816, %v6644
    %v6818 = vrot.slane %v5937, 6
    %v6819 = vsel %vm5971, %v6818, %v6817
    %v6820 = vrot.slane %v5939, 5
    %v6821 = vsel %vm5974, %v6820, %v6819
    %v6822 = vrot.slane %v5941, 4
    %v6823 = vsel %vm5977, %v6822, %v6821
    %v6824 = vrot.slane %v5943, 3
    %v6825 = vsel %vm5980, %v6824, %v6823
    %v6826 = vrot.slane %v5945, 2
    %v6827 = vsel %vm5983, %v6826, %v6825
    %v6828 = vrot.slane %v5947, 1
    %v6829 = vsel %vm5986, %v6828, %v6827
    %v6830 = vrot.slane %v5936, 7
    %v6831 = vsel %vm5968, %v6830, %v6645
    %v6832 = vrot.slane %v5938, 6
    %v6833 = vsel %vm5971, %v6832, %v6831
    %v6834 = vrot.slane %v5940, 5
    %v6835 = vsel %vm5974, %v6834, %v6833
    %v6836 = vrot.slane %v5942, 4
    %v6837 = vsel %vm5977, %v6836, %v6835
    %v6838 = vrot.slane %v5944, 3
    %v6839 = vsel %vm5980, %v6838, %v6837
    %v6840 = vrot.slane %v5946, 2
    %v6841 = vsel %vm5983, %v6840, %v6839
    %v6842 = vrot.slane %v5948, 1
    %v6843 = vsel %vm5986, %v6842, %v6841
    %v6844 = vrot.slane %v5951, 7
    %v6845 = vsel %vm5968, %v6844, %v6646
    %v6846 = vrot.slane %v5953, 6
    %v6847 = vsel %vm5971, %v6846, %v6845
    %v6848 = vrot.slane %v5955, 5
    %v6849 = vsel %vm5974, %v6848, %v6847
    %v6850 = vrot.slane %v5957, 4
    %v6851 = vsel %vm5977, %v6850, %v6849
    %v6852 = vrot.slane %v5959, 3
    %v6853 = vsel %vm5980, %v6852, %v6851
    %v6854 = vrot.slane %v5961, 2
    %v6855 = vsel %vm5983, %v6854, %v6853
    %v6856 = vrot.slane %v5963, 1
    %v6857 = vsel %vm5986, %v6856, %v6855
    %v6858 = vrot.slane %v5952, 7
    %v6859 = vsel %vm5968, %v6858, %v6647
    %v6860 = vrot.slane %v5954, 6
    %v6861 = vsel %vm5971, %v6860, %v6859
    %v6862 = vrot.slane %v5956, 5
    %v6863 = vsel %vm5974, %v6862, %v6861
    %v6864 = vrot.slane %v5958, 4
    %v6865 = vsel %vm5977, %v6864, %v6863
    %v6866 = vrot.slane %v5960, 3
    %v6867 = vsel %vm5980, %v6866, %v6865
    %v6868 = vrot.slane %v5962, 2
    %v6869 = vsel %vm5983, %v6868, %v6867
    %v6870 = vrot.slane %v5964, 1
    %v6871 = vsel %vm5986, %v6870, %v6869
    %v6872 = vpack.c.b16 %v6689, %v6661
    %v6873 = vpack.c.b16 %v6703, %v6675
    %v6874 = vpack.c.b16 %v6745, %v6717
    %v6875 = vpack.c.b16 %v6759, %v6731
    %v6876 = vpack.c.b16 %v6801, %v6773
    %v6877 = vpack.c.b16 %v6815, %v6787
    %v6878 = vpack.c.b16 %v6857, %v6829
    %v6879 = vpack.c.b16 %v6871, %v6843
    %v6913 = vunpack.c.l.b16 %v4308
    %v6914 = vunpack.c.h.b16 %v4308
    %v6915 = vunpack.c.l.b16 %v4309
    %v6916 = vunpack.c.h.b16 %v4309
    %v6917 = vunpack.c.l.b16 %v4310
    %v6918 = vunpack.c.h.b16 %v4310
    %v6919 = vunpack.c.l.b16 %v4311
    %v6920 = vunpack.c.h.b16 %v4311
    %v6921 = vunpack.c.l.b16 %v4312
    %v6922 = vunpack.c.h.b16 %v4312
    %v6923 = vunpack.c.l.b16 %v4313
    %v6924 = vunpack.c.h.b16 %v4313
    %v6925 = vunpack.c.l.b16 %v4314
    %v6926 = vunpack.c.h.b16 %v4314
    %v6927 = vunpack.c.l.b16 %v4315
    %v6928 = vunpack.c.h.b16 %v4315
    %v6929 = vunpack.c.l.b16 %v4316
    %v6930 = vunpack.c.h.b16 %v4316
    %v6931 = vunpack.c.l.b16 %v4317
    %v6932 = vunpack.c.h.b16 %v4317
    %v6933 = vunpack.c.l.b16 %v4318
    %v6934 = vunpack.c.h.b16 %v4318
    %v6935 = vunpack.c.l.b16 %v4319
    %v6936 = vunpack.c.h.b16 %v4319
    %v6937 = vunpack.c.l.b16 %v4320
    %v6938 = vunpack.c.h.b16 %v4320
    %v6939 = vunpack.c.l.b16 %v4321
    %v6940 = vunpack.c.h.b16 %v4321
    %v6941 = vunpack.c.l.b16 %v4322
    %v6942 = vunpack.c.h.b16 %v4322
    %v6943 = vunpack.c.l.b16 %v4323
    %v6944 = vunpack.c.h.b16 %v4323
    %v6945 = vunpack.c.l.b16 %v4324
    %v6946 = vunpack.c.h.b16 %v4324
    %v6947 = vunpack.c.l.b16 %v4325
    %v6948 = vunpack.c.h.b16 %v4325
    %v6949 = vunpack.c.l.b16 %v4326
    %v6950 = vunpack.c.h.b16 %v4326
    %v6951 = vunpack.c.l.b16 %v4327
    %v6952 = vunpack.c.h.b16 %v4327
    %v6953 = vunpack.c.l.b16 %v4328
    %v6954 = vunpack.c.h.b16 %v4328
    %v6955 = vunpack.c.l.b16 %v4329
    %v6956 = vunpack.c.h.b16 %v4329
    %v6957 = vunpack.c.l.b16 %v4330
    %v6958 = vunpack.c.h.b16 %v4330
    %v6959 = vunpack.c.l.b16 %v4331
    %v6960 = vunpack.c.h.b16 %v4331
    %v6961 = vunpack.c.l.b16 %v4332
    %v6962 = vunpack.c.h.b16 %v4332
    %v6963 = vunpack.c.l.b16 %v4333
    %v6964 = vunpack.c.h.b16 %v4333
    %v6965 = vunpack.c.l.b16 %v4334
    %v6966 = vunpack.c.h.b16 %v4334
    %v6967 = vunpack.c.l.b16 %v4335
    %v6968 = vunpack.c.h.b16 %v4335
    %v6969 = vunpack.c.l.b16 %v4336
    %v6970 = vunpack.c.h.b16 %v4336
    %v6971 = vpack.c.b16 %v6915, %v6913
    %v6972 = vpack.c.b16 %v6916, %v6914
    %v6973 = vpack.c.b16 %v6919, %v6917
    %v6974 = vpack.c.b16 %v6920, %v6918
    %v6975 = vpack.c.b16 %v6923, %v6921
    %v6976 = vpack.c.b16 %v6924, %v6922
    %v6977 = vpack.c.b16 %v6927, %v6925
    %v6978 = vpack.c.b16 %v6928, %v6926
    %v6979 = vpack.c.b16 %v6931, %v6929
    %v6980 = vpack.c.b16 %v6932, %v6930
    %v6981 = vpack.c.b16 %v6935, %v6933
    %v6982 = vpack.c.b16 %v6936, %v6934
    %v6983 = vpack.c.b16 %v6939, %v6937
    %v6984 = vpack.c.b16 %v6940, %v6938
    %v6985 = vpack.c.b16 %v6943, %v6941
    %v6986 = vpack.c.b16 %v6944, %v6942
    %v6987 = vpack.c.b16 %v6947, %v6945
    %v6988 = vpack.c.b16 %v6948, %v6946
    %v6989 = vpack.c.b16 %v6951, %v6949
    %v6990 = vpack.c.b16 %v6952, %v6950
    %v6991 = vpack.c.b16 %v6955, %v6953
    %v6992 = vpack.c.b16 %v6956, %v6954
    %v6993 = vpack.c.b16 %v6959, %v6957
    %v6994 = vpack.c.b16 %v6960, %v6958
    %v6995 = vpack.c.b16 %v6963, %v6961
    %v6996 = vpack.c.b16 %v6964, %v6962
    %v6997 = vpack.c.b16 %v6967, %v6965
    %v6998 = vpack.c.b16 %v6968, %v6966
    %v6999 = vpack.c.b16 %v6969, %v6969
    %v7000 = vpack.c.b16 %v6970, %v6970
    %v7030 = vsel %vm6355, %v6873, 0
    %v7033 = vsel %vm6355, %v6875, 0
    %v7036 = vsel %vm6355, %v6877, 0
    %v7039 = vsel %vm6355, %v6879, 0
    %v7042 = vsel %vm6368, %v6999, 0
    %v7045 = vsel %vm6368, %v7000, 0
    %7047 = vmatprep.subr.bf16.mxu0 %v6972
    %7048 = vmatpush1.bf16.msra.mxu0 %v6971
    %7049 = vmatprep.subr.bf16.mxu0 %v6974
    %7050 = vmatpush1.bf16.msra.mxu0 %v6973
    %7051 = vmatprep.subr.bf16.mxu0 %v6976
    %7052 = vmatpush1.bf16.msra.mxu0 %v6975
    %7053 = vmatprep.subr.bf16.mxu0 %v6978
    %7054 = vmatpush1.bf16.msra.mxu0 %v6977
    %7055 = vmatprep.subr.bf16.mxu0 %v6980
    %7056 = vmatpush1.bf16.msra.mxu0 %v6979
    %7057 = vmatprep.subr.bf16.mxu0 %v6982
    %7058 = vmatpush1.bf16.msra.mxu0 %v6981
    %7059 = vmatprep.subr.bf16.mxu0 %v6984
    %7060 = vmatpush1.bf16.msra.mxu0 %v6983
    %7061 = vmatprep.subr.bf16.mxu0 %v6986
    %7062 = vmatpush1.bf16.msra.mxu0 %v6985
    %7063 = vmatprep.subr.bf16.mxu0 %v6988
    %7064 = vmatpush1.bf16.msra.mxu0 %v6987
    %7065 = vmatprep.subr.bf16.mxu0 %v6990
    %7066 = vmatpush1.bf16.msra.mxu0 %v6989
    %7067 = vmatprep.subr.bf16.mxu0 %v6992
    %7068 = vmatpush1.bf16.msra.mxu0 %v6991
    %7069 = vmatprep.subr.bf16.mxu0 %v6994
    %7070 = vmatpush1.bf16.msra.mxu0 %v6993
    %7071 = vmatprep.subr.bf16.mxu0 %v6996
    %7072 = vmatpush1.bf16.msra.mxu0 %v6995
    %7073 = vmatprep.subr.bf16.mxu0 %v6998
    %7074 = vmatpush1.bf16.msra.mxu0 %v6997
    %7075 = vmatprep.subr.bf16.mxu0 %v7045
    %7076 = vmatpush1.bf16.msra.mxu0 %v7042
    %7077 = vmatprep.subr.bf16.mxu0 0
    %7078 = vmatpush1.bf16.msra.mxu0 0
    %7079 = vmatprep.mubr.bf16.mxu0 %v7030
    %7080 = vmatmul.mubr.bf16.gmra.mrb[0].mxu0 %v6872
    %v7081 = vpop.f32.mrb[0].mxu0
    %v7082 = vadd.f32 %v6410, %v7081
    %v7083 = vpop.f32.mrb[0].mxu0
    %v7084 = vadd.f32 %v6412, %v7083
    %v7085 = vpop.f32.mrb[0].mxu0
    %v7086 = vadd.f32 %v6414, %v7085
    %v7087 = vpop.f32.mrb[0].mxu0
    %v7088 = vadd.f32 %v6416, %v7087
    %7089 = vmatprep.mubr.bf16.mxu0 %v7033
    %7090 = vmatmul.mubr.bf16.gmra.mrb[0].mxu0 %v6874
    %v7091 = vpop.f32.mrb[0].mxu0
    %v7092 = vadd.f32 %v6420, %v7091
    %v7093 = vpop.f32.mrb[0].mxu0
    %v7094 = vadd.f32 %v6422, %v7093
    %v7095 = vpop.f32.mrb[0].mxu0
    %v7096 = vadd.f32 %v6424, %v7095
    %v7097 = vpop.f32.mrb[0].mxu0
    %v7098 = vadd.f32 %v6426, %v7097
    %7099 = vmatprep.mubr.bf16.mxu0 %v7036
    %7100 = vmatmul.mubr.bf16.gmra.mrb[0].mxu0 %v6876
    %v7101 = vpop.f32.mrb[0].mxu0
    %v7102 = vadd.f32 %v6430, %v7101
    %v7103 = vpop.f32.mrb[0].mxu0
    %v7104 = vadd.f32 %v6432, %v7103
    %v7105 = vpop.f32.mrb[0].mxu0
    %v7106 = vadd.f32 %v6434, %v7105
    %v7107 = vpop.f32.mrb[0].mxu0
    %v7108 = vadd.f32 %v6436, %v7107
    %7109 = vmatprep.mubr.bf16.mxu0 %v7039
    %7110 = vmatmul.mubr.bf16.gmra.mrb[0].mxu0 %v6878
    %v7111 = vpop.f32.mrb[0].mxu0
    %v7112 = vadd.f32 %v6440, %v7111
    %v7113 = vpop.f32.mrb[0].mxu0
    %v7114 = vadd.f32 %v6442, %v7113
    %v7115 = vpop.f32.mrb[0].mxu0
    %v7116 = vadd.f32 %v6444, %v7115
    %v7117 = vpop.f32.mrb[0].mxu0
    %v7118 = vadd.f32 %v6446, %v7117
    %7119 = vdwg.mxu0
    %s7120 = scalar_lea.vmem %s3, 464
    %v7121 = vld [vmem:[%s7120] sm:$0xff]
    %v7122 = vld [vmem:[%s7120 + $0x8] sm:$0xff]
    %v7123 = vld [vmem:[%s7120 + $0x10] sm:$0xff]
    %v7124 = vld [vmem:[%s7120 + $0x18] sm:$0xff]
    %v7125 = vld [vmem:[%s7120 + $0x20] sm:$0xff]
    %v7126 = vld [vmem:[%s7120 + $0x28] sm:$0xff]
    %v7127 = vld [vmem:[%s7120 + $0x30] sm:$0xff]
    %v7128 = vld [vmem:[%s7120 + $0x38] sm:$0xff]
    %v7129 = vld [vmem:[%s7120 + $0x40] sm:$0xff]
    %v7130 = vld [vmem:[%s7120 + $0x48] sm:$0xff]
    %v7131 = vld [vmem:[%s7120 + $0x50] sm:$0xff]
    %v7132 = vld [vmem:[%s7120 + $0x58] sm:$0xff]
    %v7133 = vld [vmem:[%s7120 + $0x60] sm:$0xff]
    %v7134 = vld [vmem:[%s7120 + $0x68] sm:$0xff]
    %v7135 = vld [vmem:[%s7120 + $0x70] sm:$0xff]
    %v7136 = vld [vmem:[%s7120 + $0x78] sm:$0xff]
    %v7137 = vld [vmem:[%s7120 + $0x80] sm:$0xff]
    %v7138 = vld [vmem:[%s7120 + $0x88] sm:$0xff]
    %v7139 = vld [vmem:[%s7120 + $0x90] sm:$0xff]
    %v7140 = vld [vmem:[%s7120 + $0x98] sm:$0xff]
    %v7141 = vld [vmem:[%s7120 + $0xa0] sm:$0xff]
    %v7142 = vld [vmem:[%s7120 + $0xa8] sm:$0xff]
    %v7143 = vld [vmem:[%s7120 + $0xb0] sm:$0xff]
    %v7144 = vld [vmem:[%s7120 + $0xb8] sm:$0xff]
    %v7145 = vld [vmem:[%s7120 + $0xc0] sm:$0xff]
    %v7146 = vld [vmem:[%s7120 + $0xc8] sm:$0xff]
    %v7147 = vld [vmem:[%s7120 + $0xd0] sm:$0xff]
    %v7148 = vld [vmem:[%s7120 + $0xd8] sm:$0xff]
    %v7149 = vld [vmem:[%s7120 + $0xe0] sm:$0x77]
    %v7159 = vunpack.c.l.s4 1966171168
    %v7160 = vunpack.c.0.s8 %v7159
    %v7161 = vlaneseq
    %v7162 = vshrl.u32 %v7161, 7
    %v7163 = vsub.s32 %v7160, %v7162
    %v7164 = vrot.slane %v4221, %v7163
    %v7165 = vcombine.high %v7164, %v7164
    %v7167 = vunpack.c.l.s4 1966171168
    %v7168 = vunpack.c.0.s8 %v7167
    %v7169 = vlaneseq
    %v7170 = vshrl.u32 %v7169, 7
    %v7171 = vsub.s32 %v7168, %v7170
    %v7172 = vrot.slane %v7164, %v7171
    %v7174 = vunpack.c.l.s4 1966171168
    %v7175 = vunpack.c.0.s8 %v7174
    %v7176 = vlaneseq
    %v7177 = vshrl.u32 %v7176, 7
    %v7178 = vsub.s32 %v7175, %v7177
    %v7179 = vrot.slane %v7165, %v7178
    %v7181 = vunpack.c.l.s4 1966171168
    %v7182 = vunpack.c.0.s8 %v7181
    %v7183 = vlaneseq
    %v7184 = vshrl.u32 %v7183, 7
    %v7185 = vsub.s32 %v7182, %v7184
    %v7186 = vrot.slane %v4233, %v7185
    %v7187 = vcombine.high %v7186, %v7186
    %v7189 = vunpack.c.l.s4 1966171168
    %v7190 = vunpack.c.0.s8 %v7189
    %v7191 = vlaneseq
    %v7192 = vshrl.u32 %v7191, 7
    %v7193 = vsub.s32 %v7190, %v7192
    %v7194 = vrot.slane %v7186, %v7193
    %v7196 = vunpack.c.l.s4 1966171168
    %v7197 = vunpack.c.0.s8 %v7196
    %v7198 = vlaneseq
    %v7199 = vshrl.u32 %v7198, 7
    %v7200 = vsub.s32 %v7197, %v7199
    %v7201 = vrot.slane %v7187, %v7200
    %v7203 = vunpack.c.l.s4 1966171168
    %v7204 = vunpack.c.0.s8 %v7203
    %v7205 = vlaneseq
    %v7206 = vshrl.u32 %v7205, 7
    %v7207 = vsub.s32 %v7204, %v7206
    %v7208 = vrot.slane %v4245, %v7207
    %v7209 = vcombine.high %v7208, %v7208
    %v7211 = vunpack.c.l.s4 1966171168
    %v7212 = vunpack.c.0.s8 %v7211
    %v7213 = vlaneseq
    %v7214 = vshrl.u32 %v7213, 7
    %v7215 = vsub.s32 %v7212, %v7214
    %v7216 = vrot.slane %v7208, %v7215
    %v7218 = vunpack.c.l.s4 1966171168
    %v7219 = vunpack.c.0.s8 %v7218
    %v7220 = vlaneseq
    %v7221 = vshrl.u32 %v7220, 7
    %v7222 = vsub.s32 %v7219, %v7221
    %v7223 = vrot.slane %v7209, %v7222
    %v7225 = vunpack.c.l.s4 1966171168
    %v7226 = vunpack.c.0.s8 %v7225
    %v7227 = vlaneseq
    %v7228 = vshrl.u32 %v7227, 7
    %v7229 = vsub.s32 %v7226, %v7228
    %v7230 = vrot.slane %v4257, %v7229
    %v7231 = vcombine.high %v7230, %v7230
    %v7233 = vunpack.c.l.s4 1966171168
    %v7234 = vunpack.c.0.s8 %v7233
    %v7235 = vlaneseq
    %v7236 = vshrl.u32 %v7235, 7
    %v7237 = vsub.s32 %v7234, %v7236
    %v7238 = vrot.slane %v7230, %v7237
    %v7240 = vunpack.c.l.s4 1966171168
    %v7241 = vunpack.c.0.s8 %v7240
    %v7242 = vlaneseq
    %v7243 = vshrl.u32 %v7242, 7
    %v7244 = vsub.s32 %v7241, %v7243
    %v7245 = vrot.slane %v7231, %v7244
    %v7247 = vunpack.c.l.s4 1966171168
    %v7248 = vunpack.c.0.s8 %v7247
    %v7249 = vlaneseq
    %v7250 = vshrl.u32 %v7249, 7
    %v7251 = vsub.s32 %v7248, %v7250
    %v7252 = vrot.slane %v4269, %v7251
    %v7253 = vcombine.high %v7252, %v7252
    %v7255 = vunpack.c.l.s4 1966171168
    %v7256 = vunpack.c.0.s8 %v7255
    %v7257 = vlaneseq
    %v7258 = vshrl.u32 %v7257, 7
    %v7259 = vsub.s32 %v7256, %v7258
    %v7260 = vrot.slane %v7252, %v7259
    %v7262 = vunpack.c.l.s4 1966171168
    %v7263 = vunpack.c.0.s8 %v7262
    %v7264 = vlaneseq
    %v7265 = vshrl.u32 %v7264, 7
    %v7266 = vsub.s32 %v7263, %v7265
    %v7267 = vrot.slane %v7253, %v7266
    %v7269 = vunpack.c.l.s4 1966171168
    %v7270 = vunpack.c.0.s8 %v7269
    %v7271 = vlaneseq
    %v7272 = vshrl.u32 %v7271, 7
    %v7273 = vsub.s32 %v7270, %v7272
    %v7274 = vrot.slane %v4281, %v7273
    %v7275 = vcombine.high %v7274, %v7274
    %v7277 = vunpack.c.l.s4 1966171168
    %v7278 = vunpack.c.0.s8 %v7277
    %v7279 = vlaneseq
    %v7280 = vshrl.u32 %v7279, 7
    %v7281 = vsub.s32 %v7278, %v7280
    %v7282 = vrot.slane %v7274, %v7281
    %v7284 = vunpack.c.l.s4 1966171168
    %v7285 = vunpack.c.0.s8 %v7284
    %v7286 = vlaneseq
    %v7287 = vshrl.u32 %v7286, 7
    %v7288 = vsub.s32 %v7285, %v7287
    %v7289 = vrot.slane %v7275, %v7288
    %v7291 = vunpack.c.l.s4 1966171168
    %v7292 = vunpack.c.0.s8 %v7291
    %v7293 = vlaneseq
    %v7294 = vshrl.u32 %v7293, 7
    %v7295 = vsub.s32 %v7292, %v7294
    %v7296 = vrot.slane %v4293, %v7295
    %v7297 = vcombine.high %v7296, %v7296
    %v7299 = vunpack.c.l.s4 1966171168
    %v7300 = vunpack.c.0.s8 %v7299
    %v7301 = vlaneseq
    %v7302 = vshrl.u32 %v7301, 7
    %v7303 = vsub.s32 %v7300, %v7302
    %v7304 = vrot.slane %v7296, %v7303
    %v7306 = vunpack.c.l.s4 1966171168
    %v7307 = vunpack.c.0.s8 %v7306
    %v7308 = vlaneseq
    %v7309 = vshrl.u32 %v7308, 7
    %v7310 = vsub.s32 %v7307, %v7309
    %v7311 = vrot.slane %v7297, %v7310
    %v7313 = vunpack.c.l.s4 1966171168
    %v7314 = vunpack.c.0.s8 %v7313
    %v7315 = vlaneseq
    %v7316 = vshrl.u32 %v7315, 7
    %v7317 = vsub.s32 %v7314, %v7316
    %v7318 = vrot.slane %v4305, %v7317
    %v7319 = vcombine.high %v7318, %v7318
    %v7321 = vunpack.c.l.s4 1966171168
    %v7322 = vunpack.c.0.s8 %v7321
    %v7323 = vlaneseq
    %v7324 = vshrl.u32 %v7323, 7
    %v7325 = vsub.s32 %v7322, %v7324
    %v7326 = vrot.slane %v7318, %v7325
    %v7328 = vunpack.c.l.s4 1966171168
    %v7329 = vunpack.c.0.s8 %v7328
    %v7330 = vlaneseq
    %v7331 = vshrl.u32 %v7330, 7
    %v7332 = vsub.s32 %v7329, %v7331
    %v7333 = vrot.slane %v7319, %v7332
    %v7334 = vunpack.c.l.b16 %v7172
    %v7335 = vunpack.c.l.b16 %v7179
    %v7336 = vunpack.c.l.b16 %v7194
    %v7337 = vunpack.c.l.b16 %v7201
    %v7338 = vunpack.c.l.b16 %v7216
    %v7339 = vunpack.c.l.b16 %v7223
    %v7340 = vunpack.c.l.b16 %v7238
    %v7341 = vunpack.c.l.b16 %v7245
    %v7342 = vunpack.c.l.b16 %v7260
    %v7343 = vunpack.c.l.b16 %v7267
    %v7344 = vunpack.c.l.b16 %v7282
    %v7345 = vunpack.c.l.b16 %v7289
    %v7346 = vunpack.c.l.b16 %v7304
    %v7347 = vunpack.c.l.b16 %v7311
    %v7348 = vunpack.c.l.b16 %v7326
    %v7349 = vunpack.c.l.b16 %v7333
    %v7350 = vrot.slane %v5843, 7
    %v7351 = vsel %vm5968, %v7350, %v5841
    %v7352 = vrot.slane %v5845, 6
    %v7353 = vsel %vm5971, %v7352, %v7351
    %v7354 = vrot.slane %v5847, 5
    %v7355 = vsel %vm5974, %v7354, %v7353
    %v7356 = vrot.slane %v5849, 4
    %v7357 = vsel %vm5977, %v7356, %v7355
    %v7358 = vrot.slane %v5851, 3
    %v7359 = vsel %vm5980, %v7358, %v7357
    %v7360 = vrot.slane %v5853, 2
    %v7361 = vsel %vm5983, %v7360, %v7359
    %v7362 = vrot.slane %v7334, 1
    %v7363 = vsel %vm5986, %v7362, %v7361
    %v7364 = vrot.slane %v5844, 7
    %v7365 = vsel %vm5968, %v7364, %v5842
    %v7366 = vrot.slane %v5846, 6
    %v7367 = vsel %vm5971, %v7366, %v7365
    %v7368 = vrot.slane %v5848, 5
    %v7369 = vsel %vm5974, %v7368, %v7367
    %v7370 = vrot.slane %v5850, 4
    %v7371 = vsel %vm5977, %v7370, %v7369
    %v7372 = vrot.slane %v5852, 3
    %v7373 = vsel %vm5980, %v7372, %v7371
    %v7374 = vrot.slane %v5854, 2
    %v7375 = vsel %vm5983, %v7374, %v7373
    %v7376 = vrot.slane %v7335, 1
    %v7377 = vsel %vm5986, %v7376, %v7375
    %v7378 = vrot.slane %v5859, 7
    %v7379 = vsel %vm5968, %v7378, %v5857
    %v7380 = vrot.slane %v5861, 6
    %v7381 = vsel %vm5971, %v7380, %v7379
    %v7382 = vrot.slane %v5863, 5
    %v7383 = vsel %vm5974, %v7382, %v7381
    %v7384 = vrot.slane %v5865, 4
    %v7385 = vsel %vm5977, %v7384, %v7383
    %v7386 = vrot.slane %v5867, 3
    %v7387 = vsel %vm5980, %v7386, %v7385
    %v7388 = vrot.slane %v5869, 2
    %v7389 = vsel %vm5983, %v7388, %v7387
    %v7390 = vrot.slane %v7336, 1
    %v7391 = vsel %vm5986, %v7390, %v7389
    %v7392 = vrot.slane %v5860, 7
    %v7393 = vsel %vm5968, %v7392, %v5858
    %v7394 = vrot.slane %v5862, 6
    %v7395 = vsel %vm5971, %v7394, %v7393
    %v7396 = vrot.slane %v5864, 5
    %v7397 = vsel %vm5974, %v7396, %v7395
    %v7398 = vrot.slane %v5866, 4
    %v7399 = vsel %vm5977, %v7398, %v7397
    %v7400 = vrot.slane %v5868, 3
    %v7401 = vsel %vm5980, %v7400, %v7399
    %v7402 = vrot.slane %v5870, 2
    %v7403 = vsel %vm5983, %v7402, %v7401
    %v7404 = vrot.slane %v7337, 1
    %v7405 = vsel %vm5986, %v7404, %v7403
    %v7406 = vrot.slane %v5875, 7
    %v7407 = vsel %vm5968, %v7406, %v5873
    %v7408 = vrot.slane %v5877, 6
    %v7409 = vsel %vm5971, %v7408, %v7407
    %v7410 = vrot.slane %v5879, 5
    %v7411 = vsel %vm5974, %v7410, %v7409
    %v7412 = vrot.slane %v5881, 4
    %v7413 = vsel %vm5977, %v7412, %v7411
    %v7414 = vrot.slane %v5883, 3
    %v7415 = vsel %vm5980, %v7414, %v7413
    %v7416 = vrot.slane %v5885, 2
    %v7417 = vsel %vm5983, %v7416, %v7415
    %v7418 = vrot.slane %v7338, 1
    %v7419 = vsel %vm5986, %v7418, %v7417
    %v7420 = vrot.slane %v5876, 7
    %v7421 = vsel %vm5968, %v7420, %v5874
    %v7422 = vrot.slane %v5878, 6
    %v7423 = vsel %vm5971, %v7422, %v7421
    %v7424 = vrot.slane %v5880, 5
    %v7425 = vsel %vm5974, %v7424, %v7423
    %v7426 = vrot.slane %v5882, 4
    %v7427 = vsel %vm5977, %v7426, %v7425
    %v7428 = vrot.slane %v5884, 3
    %v7429 = vsel %vm5980, %v7428, %v7427
    %v7430 = vrot.slane %v5886, 2
    %v7431 = vsel %vm5983, %v7430, %v7429
    %v7432 = vrot.slane %v7339, 1
    %v7433 = vsel %vm5986, %v7432, %v7431
    %v7434 = vrot.slane %v5891, 7
    %v7435 = vsel %vm5968, %v7434, %v5889
    %v7436 = vrot.slane %v5893, 6
    %v7437 = vsel %vm5971, %v7436, %v7435
    %v7438 = vrot.slane %v5895, 5
    %v7439 = vsel %vm5974, %v7438, %v7437
    %v7440 = vrot.slane %v5897, 4
    %v7441 = vsel %vm5977, %v7440, %v7439
    %v7442 = vrot.slane %v5899, 3
    %v7443 = vsel %vm5980, %v7442, %v7441
    %v7444 = vrot.slane %v5901, 2
    %v7445 = vsel %vm5983, %v7444, %v7443
    %v7446 = vrot.slane %v7340, 1
    %v7447 = vsel %vm5986, %v7446, %v7445
    %v7448 = vrot.slane %v5892, 7
    %v7449 = vsel %vm5968, %v7448, %v5890
    %v7450 = vrot.slane %v5894, 6
    %v7451 = vsel %vm5971, %v7450, %v7449
    %v7452 = vrot.slane %v5896, 5
    %v7453 = vsel %vm5974, %v7452, %v7451
    %v7454 = vrot.slane %v5898, 4
    %v7455 = vsel %vm5977, %v7454, %v7453
    %v7456 = vrot.slane %v5900, 3
    %v7457 = vsel %vm5980, %v7456, %v7455
    %v7458 = vrot.slane %v5902, 2
    %v7459 = vsel %vm5983, %v7458, %v7457
    %v7460 = vrot.slane %v7341, 1
    %v7461 = vsel %vm5986, %v7460, %v7459
    %v7462 = vrot.slane %v5907, 7
    %v7463 = vsel %vm5968, %v7462, %v5905
    %v7464 = vrot.slane %v5909, 6
    %v7465 = vsel %vm5971, %v7464, %v7463
    %v7466 = vrot.slane %v5911, 5
    %v7467 = vsel %vm5974, %v7466, %v7465
    %v7468 = vrot.slane %v5913, 4
    %v7469 = vsel %vm5977, %v7468, %v7467
    %v7470 = vrot.slane %v5915, 3
    %v7471 = vsel %vm5980, %v7470, %v7469
    %v7472 = vrot.slane %v5917, 2
    %v7473 = vsel %vm5983, %v7472, %v7471
    %v7474 = vrot.slane %v7342, 1
    %v7475 = vsel %vm5986, %v7474, %v7473
    %v7476 = vrot.slane %v5908, 7
    %v7477 = vsel %vm5968, %v7476, %v5906
    %v7478 = vrot.slane %v5910, 6
    %v7479 = vsel %vm5971, %v7478, %v7477
    %v7480 = vrot.slane %v5912, 5
    %v7481 = vsel %vm5974, %v7480, %v7479
    %v7482 = vrot.slane %v5914, 4
    %v7483 = vsel %vm5977, %v7482, %v7481
    %v7484 = vrot.slane %v5916, 3
    %v7485 = vsel %vm5980, %v7484, %v7483
    %v7486 = vrot.slane %v5918, 2
    %v7487 = vsel %vm5983, %v7486, %v7485
    %v7488 = vrot.slane %v7343, 1
    %v7489 = vsel %vm5986, %v7488, %v7487
    %v7490 = vrot.slane %v5923, 7
    %v7491 = vsel %vm5968, %v7490, %v5921
    %v7492 = vrot.slane %v5925, 6
    %v7493 = vsel %vm5971, %v7492, %v7491
    %v7494 = vrot.slane %v5927, 5
    %v7495 = vsel %vm5974, %v7494, %v7493
    %v7496 = vrot.slane %v5929, 4
    %v7497 = vsel %vm5977, %v7496, %v7495
    %v7498 = vrot.slane %v5931, 3
    %v7499 = vsel %vm5980, %v7498, %v7497
    %v7500 = vrot.slane %v5933, 2
    %v7501 = vsel %vm5983, %v7500, %v7499
    %v7502 = vrot.slane %v7344, 1
    %v7503 = vsel %vm5986, %v7502, %v7501
    %v7504 = vrot.slane %v5924, 7
    %v7505 = vsel %vm5968, %v7504, %v5922
    %v7506 = vrot.slane %v5926, 6
    %v7507 = vsel %vm5971, %v7506, %v7505
    %v7508 = vrot.slane %v5928, 5
    %v7509 = vsel %vm5974, %v7508, %v7507
    %v7510 = vrot.slane %v5930, 4
    %v7511 = vsel %vm5977, %v7510, %v7509
    %v7512 = vrot.slane %v5932, 3
    %v7513 = vsel %vm5980, %v7512, %v7511
    %v7514 = vrot.slane %v5934, 2
    %v7515 = vsel %vm5983, %v7514, %v7513
    %v7516 = vrot.slane %v7345, 1
    %v7517 = vsel %vm5986, %v7516, %v7515
    %v7518 = vrot.slane %v5939, 7
    %v7519 = vsel %vm5968, %v7518, %v5937
    %v7520 = vrot.slane %v5941, 6
    %v7521 = vsel %vm5971, %v7520, %v7519
    %v7522 = vrot.slane %v5943, 5
    %v7523 = vsel %vm5974, %v7522, %v7521
    %v7524 = vrot.slane %v5945, 4
    %v7525 = vsel %vm5977, %v7524, %v7523
    %v7526 = vrot.slane %v5947, 3
    %v7527 = vsel %vm5980, %v7526, %v7525
    %v7528 = vrot.slane %v5949, 2
    %v7529 = vsel %vm5983, %v7528, %v7527
    %v7530 = vrot.slane %v7346, 1
    %v7531 = vsel %vm5986, %v7530, %v7529
    %v7532 = vrot.slane %v5940, 7
    %v7533 = vsel %vm5968, %v7532, %v5938
    %v7534 = vrot.slane %v5942, 6
    %v7535 = vsel %vm5971, %v7534, %v7533
    %v7536 = vrot.slane %v5944, 5
    %v7537 = vsel %vm5974, %v7536, %v7535
    %v7538 = vrot.slane %v5946, 4
    %v7539 = vsel %vm5977, %v7538, %v7537
    %v7540 = vrot.slane %v5948, 3
    %v7541 = vsel %vm5980, %v7540, %v7539
    %v7542 = vrot.slane %v5950, 2
    %v7543 = vsel %vm5983, %v7542, %v7541
    %v7544 = vrot.slane %v7347, 1
    %v7545 = vsel %vm5986, %v7544, %v7543
    %v7546 = vrot.slane %v5955, 7
    %v7547 = vsel %vm5968, %v7546, %v5953
    %v7548 = vrot.slane %v5957, 6
    %v7549 = vsel %vm5971, %v7548, %v7547
    %v7550 = vrot.slane %v5959, 5
    %v7551 = vsel %vm5974, %v7550, %v7549
    %v7552 = vrot.slane %v5961, 4
    %v7553 = vsel %vm5977, %v7552, %v7551
    %v7554 = vrot.slane %v5963, 3
    %v7555 = vsel %vm5980, %v7554, %v7553
    %v7556 = vrot.slane %v5965, 2
    %v7557 = vsel %vm5983, %v7556, %v7555
    %v7558 = vrot.slane %v7348, 1
    %v7559 = vsel %vm5986, %v7558, %v7557
    %v7560 = vrot.slane %v5956, 7
    %v7561 = vsel %vm5968, %v7560, %v5954
    %v7562 = vrot.slane %v5958, 6
    %v7563 = vsel %vm5971, %v7562, %v7561
    %v7564 = vrot.slane %v5960, 5
    %v7565 = vsel %vm5974, %v7564, %v7563
    %v7566 = vrot.slane %v5962, 4
    %v7567 = vsel %vm5977, %v7566, %v7565
    %v7568 = vrot.slane %v5964, 3
    %v7569 = vsel %vm5980, %v7568, %v7567
    %v7570 = vrot.slane %v5966, 2
    %v7571 = vsel %vm5983, %v7570, %v7569
    %v7572 = vrot.slane %v7349, 1
    %v7573 = vsel %vm5986, %v7572, %v7571
    %v7574 = vpack.c.b16 %v7391, %v7363
    %v7575 = vpack.c.b16 %v7405, %v7377
    %v7576 = vpack.c.b16 %v7447, %v7419
    %v7577 = vpack.c.b16 %v7461, %v7433
    %v7578 = vpack.c.b16 %v7503, %v7475
    %v7579 = vpack.c.b16 %v7517, %v7489
    %v7580 = vpack.c.b16 %v7559, %v7531
    %v7581 = vpack.c.b16 %v7573, %v7545
    %v7615 = vunpack.c.l.b16 %v7121
    %v7616 = vunpack.c.h.b16 %v7121
    %v7617 = vunpack.c.l.b16 %v7122
    %v7618 = vunpack.c.h.b16 %v7122
    %v7619 = vunpack.c.l.b16 %v7123
    %v7620 = vunpack.c.h.b16 %v7123
    %v7621 = vunpack.c.l.b16 %v7124
    %v7622 = vunpack.c.h.b16 %v7124
    %v7623 = vunpack.c.l.b16 %v7125
    %v7624 = vunpack.c.h.b16 %v7125
    %v7625 = vunpack.c.l.b16 %v7126
    %v7626 = vunpack.c.h.b16 %v7126
    %v7627 = vunpack.c.l.b16 %v7127
    %v7628 = vunpack.c.h.b16 %v7127
    %v7629 = vunpack.c.l.b16 %v7128
    %v7630 = vunpack.c.h.b16 %v7128
    %v7631 = vunpack.c.l.b16 %v7129
    %v7632 = vunpack.c.h.b16 %v7129
    %v7633 = vunpack.c.l.b16 %v7130
    %v7634 = vunpack.c.h.b16 %v7130
    %v7635 = vunpack.c.l.b16 %v7131
    %v7636 = vunpack.c.h.b16 %v7131
    %v7637 = vunpack.c.l.b16 %v7132
    %v7638 = vunpack.c.h.b16 %v7132
    %v7639 = vunpack.c.l.b16 %v7133
    %v7640 = vunpack.c.h.b16 %v7133
    %v7641 = vunpack.c.l.b16 %v7134
    %v7642 = vunpack.c.h.b16 %v7134
    %v7643 = vunpack.c.l.b16 %v7135
    %v7644 = vunpack.c.h.b16 %v7135
    %v7645 = vunpack.c.l.b16 %v7136
    %v7646 = vunpack.c.h.b16 %v7136
    %v7647 = vunpack.c.l.b16 %v7137
    %v7648 = vunpack.c.h.b16 %v7137
    %v7649 = vunpack.c.l.b16 %v7138
    %v7650 = vunpack.c.h.b16 %v7138
    %v7651 = vunpack.c.l.b16 %v7139
    %v7652 = vunpack.c.h.b16 %v7139
    %v7653 = vunpack.c.l.b16 %v7140
    %v7654 = vunpack.c.h.b16 %v7140
    %v7655 = vunpack.c.l.b16 %v7141
    %v7656 = vunpack.c.h.b16 %v7141
    %v7657 = vunpack.c.l.b16 %v7142
    %v7658 = vunpack.c.h.b16 %v7142
    %v7659 = vunpack.c.l.b16 %v7143
    %v7660 = vunpack.c.h.b16 %v7143
    %v7661 = vunpack.c.l.b16 %v7144
    %v7662 = vunpack.c.h.b16 %v7144
    %v7663 = vunpack.c.l.b16 %v7145
    %v7664 = vunpack.c.h.b16 %v7145
    %v7665 = vunpack.c.l.b16 %v7146
    %v7666 = vunpack.c.h.b16 %v7146
    %v7667 = vunpack.c.l.b16 %v7147
    %v7668 = vunpack.c.h.b16 %v7147
    %v7669 = vunpack.c.l.b16 %v7148
    %v7670 = vunpack.c.h.b16 %v7148
    %v7671 = vunpack.c.l.b16 %v7149
    %v7672 = vunpack.c.h.b16 %v7149
    %v7673 = vpack.c.b16 %v7617, %v7615
    %v7674 = vpack.c.b16 %v7618, %v7616
    %v7675 = vpack.c.b16 %v7621, %v7619
    %v7676 = vpack.c.b16 %v7622, %v7620
    %v7677 = vpack.c.b16 %v7625, %v7623
    %v7678 = vpack.c.b16 %v7626, %v7624
    %v7679 = vpack.c.b16 %v7629, %v7627
    %v7680 = vpack.c.b16 %v7630, %v7628
    %v7681 = vpack.c.b16 %v7633, %v7631
    %v7682 = vpack.c.b16 %v7634, %v7632
    %v7683 = vpack.c.b16 %v7637, %v7635
    %v7684 = vpack.c.b16 %v7638, %v7636
    %v7685 = vpack.c.b16 %v7641, %v7639
    %v7686 = vpack.c.b16 %v7642, %v7640
    %v7687 = vpack.c.b16 %v7645, %v7643
    %v7688 = vpack.c.b16 %v7646, %v7644
    %v7689 = vpack.c.b16 %v7649, %v7647
    %v7690 = vpack.c.b16 %v7650, %v7648
    %v7691 = vpack.c.b16 %v7653, %v7651
    %v7692 = vpack.c.b16 %v7654, %v7652
    %v7693 = vpack.c.b16 %v7657, %v7655
    %v7694 = vpack.c.b16 %v7658, %v7656
    %v7695 = vpack.c.b16 %v7661, %v7659
    %v7696 = vpack.c.b16 %v7662, %v7660
    %v7697 = vpack.c.b16 %v7665, %v7663
    %v7698 = vpack.c.b16 %v7666, %v7664
    %v7699 = vpack.c.b16 %v7669, %v7667
    %v7700 = vpack.c.b16 %v7670, %v7668
    %v7701 = vpack.c.b16 %v7671, %v7671
    %v7702 = vpack.c.b16 %v7672, %v7672
    %v7732 = vsel %vm6355, %v7575, 0
    %v7735 = vsel %vm6355, %v7577, 0
    %v7738 = vsel %vm6355, %v7579, 0
    %v7741 = vsel %vm6355, %v7581, 0
    %v7744 = vsel %vm6368, %v7701, 0
    %v7747 = vsel %vm6368, %v7702, 0
    %7749 = vmatprep.subr.bf16.mxu0 %v7674
    %7750 = vmatpush1.bf16.msra.mxu0 %v7673
    %7751 = vmatprep.subr.bf16.mxu0 %v7676
    %7752 = vmatpush1.bf16.msra.mxu0 %v7675
    %7753 = vmatprep.subr.bf16.mxu0 %v7678
    %7754 = vmatpush1.bf16.msra.mxu0 %v7677
    %7755 = vmatprep.subr.bf16.mxu0 %v7680
    %7756 = vmatpush1.bf16.msra.mxu0 %v7679
    %7757 = vmatprep.subr.bf16.mxu0 %v7682
    %7758 = vmatpush1.bf16.msra.mxu0 %v7681
    %7759 = vmatprep.subr.bf16.mxu0 %v7684
    %7760 = vmatpush1.bf16.msra.mxu0 %v7683
    %7761 = vmatprep.subr.bf16.mxu0 %v7686
    %7762 = vmatpush1.bf16.msra.mxu0 %v7685
    %7763 = vmatprep.subr.bf16.mxu0 %v7688
    %7764 = vmatpush1.bf16.msra.mxu0 %v7687
    %7765 = vmatprep.subr.bf16.mxu0 %v7690
    %7766 = vmatpush1.bf16.msra.mxu0 %v7689
    %7767 = vmatprep.subr.bf16.mxu0 %v7692
    %7768 = vmatpush1.bf16.msra.mxu0 %v7691
    %7769 = vmatprep.subr.bf16.mxu0 %v7694
    %7770 = vmatpush1.bf16.msra.mxu0 %v7693
    %7771 = vmatprep.subr.bf16.mxu0 %v7696
    %7772 = vmatpush1.bf16.msra.mxu0 %v7695
    %7773 = vmatprep.subr.bf16.mxu0 %v7698
    %7774 = vmatpush1.bf16.msra.mxu0 %v7697
    %7775 = vmatprep.subr.bf16.mxu0 %v7700
    %7776 = vmatpush1.bf16.msra.mxu0 %v7699
    %7777 = vmatprep.subr.bf16.mxu0 %v7747
    %7778 = vmatpush1.bf16.msra.mxu0 %v7744
    %7779 = vmatprep.subr.bf16.mxu0 0
    %7780 = vmatpush1.bf16.msra.mxu0 0
    %7781 = vmatprep.mubr.bf16.mxu0 %v7732
    %7782 = vmatmul.mubr.bf16.gmra.mrb[0].mxu0 %v7574
    %v7783 = vpop.f32.mrb[0].mxu0
    %v7784 = vadd.f32 0.0, %v7783
    %v7785 = vpop.f32.mrb[0].mxu0
    %v7786 = vadd.f32 0.0, %v7785
    %v7787 = vpop.f32.mrb[0].mxu0
    %v7788 = vadd.f32 0.0, %v7787
    %v7789 = vpop.f32.mrb[0].mxu0
    %v7790 = vadd.f32 0.0, %v7789
    %7791 = vmatprep.mubr.bf16.mxu0 %v7735
    %7792 = vmatmul.mubr.bf16.gmra.mrb[0].mxu0 %v7576
    %v7793 = vpop.f32.mrb[0].mxu0
    %v7794 = vadd.f32 0.0, %v7793
    %v7795 = vpop.f32.mrb[0].mxu0
    %v7796 = vadd.f32 0.0, %v7795
    %v7797 = vpop.f32.mrb[0].mxu0
    %v7798 = vadd.f32 0.0, %v7797
    %v7799 = vpop.f32.mrb[0].mxu0
    %v7800 = vadd.f32 0.0, %v7799
    %7801 = vmatprep.mubr.bf16.mxu0 %v7738
    %7802 = vmatmul.mubr.bf16.gmra.mrb[0].mxu0 %v7578
    %v7803 = vpop.f32.mrb[0].mxu0
    %v7804 = vadd.f32 0.0, %v7803
    %v7805 = vpop.f32.mrb[0].mxu0
    %v7806 = vadd.f32 0.0, %v7805
    %v7807 = vpop.f32.mrb[0].mxu0
    %v7808 = vadd.f32 0.0, %v7807
    %v7809 = vpop.f32.mrb[0].mxu0
    %v7810 = vadd.f32 0.0, %v7809
    %7811 = vmatprep.mubr.bf16.mxu0 %v7741
    %7812 = vmatmul.mubr.bf16.gmra.mrb[0].mxu0 %v7580
    %v7813 = vpop.f32.mrb[0].mxu0
    %v7814 = vadd.f32 0.0, %v7813
    %v7815 = vpop.f32.mrb[0].mxu0
    %v7816 = vadd.f32 0.0, %v7815
    %v7817 = vpop.f32.mrb[0].mxu0
    %v7818 = vadd.f32 0.0, %v7817
    %v7819 = vpop.f32.mrb[0].mxu0
    %v7820 = vadd.f32 0.0, %v7819
    %7821 = vdwg.mxu0
    %v7822 = vadd.f32 %v7082, %v7784
    %v7823 = vadd.f32 %v7084, %v7786
    %v7824 = vadd.f32 %v7086, %v7788
    %v7825 = vadd.f32 %v7088, %v7790
    %v7826 = vadd.f32 %v7092, %v7794
    %v7827 = vadd.f32 %v7094, %v7796
    %v7828 = vadd.f32 %v7096, %v7798
    %v7829 = vadd.f32 %v7098, %v7800
    %v7830 = vadd.f32 %v7102, %v7804
    %v7831 = vadd.f32 %v7104, %v7806
    %v7832 = vadd.f32 %v7106, %v7808
    %v7833 = vadd.f32 %v7108, %v7810
    %v7834 = vadd.f32 %v7112, %v7814
    %v7835 = vadd.f32 %v7114, %v7816
    %v7836 = vadd.f32 %v7116, %v7818
    %v7837 = vadd.f32 %v7118, %v7820
    %s7838 = scalar_lea.vmem %s3, 696
    %v7839 = vld [vmem:[%s7838] sm:$0xff]
    %v7840 = vld [vmem:[%s7838 + $0x8] sm:$0xff]
    %v7841 = vld [vmem:[%s7838 + $0x10] sm:$0xff]
    %v7842 = vld [vmem:[%s7838 + $0x18] sm:$0xff]
    %v7843 = vld [vmem:[%s7838 + $0x20] sm:$0xff]
    %v7844 = vld [vmem:[%s7838 + $0x28] sm:$0xff]
    %v7845 = vld [vmem:[%s7838 + $0x30] sm:$0xff]
    %v7846 = vld [vmem:[%s7838 + $0x38] sm:$0xff]
    %v7847 = vld [vmem:[%s7838 + $0x40] sm:$0xff]
    %v7848 = vld [vmem:[%s7838 + $0x48] sm:$0xff]
    %v7849 = vld [vmem:[%s7838 + $0x50] sm:$0xff]
    %v7850 = vld [vmem:[%s7838 + $0x58] sm:$0xff]
    %v7851 = vld [vmem:[%s7838 + $0x60] sm:$0xff]
    %v7852 = vld [vmem:[%s7838 + $0x68] sm:$0xff]
    %v7853 = vld [vmem:[%s7838 + $0x70] sm:$0xff]
    %v7854 = vld [vmem:[%s7838 + $0x78] sm:$0xff]
    %v7855 = vld [vmem:[%s7838 + $0x80] sm:$0xff]
    %v7856 = vld [vmem:[%s7838 + $0x88] sm:$0xff]
    %v7857 = vld [vmem:[%s7838 + $0x90] sm:$0xff]
    %v7858 = vld [vmem:[%s7838 + $0x98] sm:$0xff]
    %v7859 = vld [vmem:[%s7838 + $0xa0] sm:$0xff]
    %v7860 = vld [vmem:[%s7838 + $0xa8] sm:$0xff]
    %v7861 = vld [vmem:[%s7838 + $0xb0] sm:$0xff]
    %v7862 = vld [vmem:[%s7838 + $0xb8] sm:$0xff]
    %v7863 = vld [vmem:[%s7838 + $0xc0] sm:$0xff]
    %v7864 = vld [vmem:[%s7838 + $0xc8] sm:$0xff]
    %v7865 = vld [vmem:[%s7838 + $0xd0] sm:$0xff]
    %v7866 = vld [vmem:[%s7838 + $0xd8] sm:$0xff]
    %v7867 = vld [vmem:[%s7838 + $0xe0] sm:$0x77]
    %v7877 = vunpack.c.l.s4 1966171168
    %v7878 = vunpack.c.0.s8 %v7877
    %v7879 = vlaneseq
    %v7880 = vshrl.u32 %v7879, 7
    %v7881 = vsub.s32 %v7878, %v7880
    %v7882 = vrot.slane %v4222, %v7881
    %v7883 = vcombine.high %v7882, %v7882
    %v7885 = vunpack.c.l.s4 1966171168
    %v7886 = vunpack.c.0.s8 %v7885
    %v7887 = vlaneseq
    %v7888 = vshrl.u32 %v7887, 7
    %v7889 = vsub.s32 %v7886, %v7888
    %v7890 = vrot.slane %v7882, %v7889
    %v7892 = vunpack.c.l.s4 1966171168
    %v7893 = vunpack.c.0.s8 %v7892
    %v7894 = vlaneseq
    %v7895 = vshrl.u32 %v7894, 7
    %v7896 = vsub.s32 %v7893, %v7895
    %v7897 = vrot.slane %v7883, %v7896
    %v7899 = vunpack.c.l.s4 1966171168
    %v7900 = vunpack.c.0.s8 %v7899
    %v7901 = vlaneseq
    %v7902 = vshrl.u32 %v7901, 7
    %v7903 = vsub.s32 %v7900, %v7902
    %v7904 = vrot.slane %v4234, %v7903
    %v7905 = vcombine.high %v7904, %v7904
    %v7907 = vunpack.c.l.s4 1966171168
    %v7908 = vunpack.c.0.s8 %v7907
    %v7909 = vlaneseq
    %v7910 = vshrl.u32 %v7909, 7
    %v7911 = vsub.s32 %v7908, %v7910
    %v7912 = vrot.slane %v7904, %v7911
    %v7914 = vunpack.c.l.s4 1966171168
    %v7915 = vunpack.c.0.s8 %v7914
    %v7916 = vlaneseq
    %v7917 = vshrl.u32 %v7916, 7
    %v7918 = vsub.s32 %v7915, %v7917
    %v7919 = vrot.slane %v7905, %v7918
    %v7921 = vunpack.c.l.s4 1966171168
    %v7922 = vunpack.c.0.s8 %v7921
    %v7923 = vlaneseq
    %v7924 = vshrl.u32 %v7923, 7
    %v7925 = vsub.s32 %v7922, %v7924
    %v7926 = vrot.slane %v4246, %v7925
    %v7927 = vcombine.high %v7926, %v7926
    %v7929 = vunpack.c.l.s4 1966171168
    %v7930 = vunpack.c.0.s8 %v7929
    %v7931 = vlaneseq
    %v7932 = vshrl.u32 %v7931, 7
    %v7933 = vsub.s32 %v7930, %v7932
    %v7934 = vrot.slane %v7926, %v7933
    %v7936 = vunpack.c.l.s4 1966171168
    %v7937 = vunpack.c.0.s8 %v7936
    %v7938 = vlaneseq
    %v7939 = vshrl.u32 %v7938, 7
    %v7940 = vsub.s32 %v7937, %v7939
    %v7941 = vrot.slane %v7927, %v7940
    %v7943 = vunpack.c.l.s4 1966171168
    %v7944 = vunpack.c.0.s8 %v7943
    %v7945 = vlaneseq
    %v7946 = vshrl.u32 %v7945, 7
    %v7947 = vsub.s32 %v7944, %v7946
    %v7948 = vrot.slane %v4258, %v7947
    %v7949 = vcombine.high %v7948, %v7948
    %v7951 = vunpack.c.l.s4 1966171168
    %v7952 = vunpack.c.0.s8 %v7951
    %v7953 = vlaneseq
    %v7954 = vshrl.u32 %v7953, 7
    %v7955 = vsub.s32 %v7952, %v7954
    %v7956 = vrot.slane %v7948, %v7955
    %v7958 = vunpack.c.l.s4 1966171168
    %v7959 = vunpack.c.0.s8 %v7958
    %v7960 = vlaneseq
    %v7961 = vshrl.u32 %v7960, 7
    %v7962 = vsub.s32 %v7959, %v7961
    %v7963 = vrot.slane %v7949, %v7962
    %v7965 = vunpack.c.l.s4 1966171168
    %v7966 = vunpack.c.0.s8 %v7965
    %v7967 = vlaneseq
    %v7968 = vshrl.u32 %v7967, 7
    %v7969 = vsub.s32 %v7966, %v7968
    %v7970 = vrot.slane %v4270, %v7969
    %v7971 = vcombine.high %v7970, %v7970
    %v7973 = vunpack.c.l.s4 1966171168
    %v7974 = vunpack.c.0.s8 %v7973
    %v7975 = vlaneseq
    %v7976 = vshrl.u32 %v7975, 7
    %v7977 = vsub.s32 %v7974, %v7976
    %v7978 = vrot.slane %v7970, %v7977
    %v7980 = vunpack.c.l.s4 1966171168
    %v7981 = vunpack.c.0.s8 %v7980
    %v7982 = vlaneseq
    %v7983 = vshrl.u32 %v7982, 7
    %v7984 = vsub.s32 %v7981, %v7983
    %v7985 = vrot.slane %v7971, %v7984
    %v7987 = vunpack.c.l.s4 1966171168
    %v7988 = vunpack.c.0.s8 %v7987
    %v7989 = vlaneseq
    %v7990 = vshrl.u32 %v7989, 7
    %v7991 = vsub.s32 %v7988, %v7990
    %v7992 = vrot.slane %v4282, %v7991
    %v7993 = vcombine.high %v7992, %v7992
    %v7995 = vunpack.c.l.s4 1966171168
    %v7996 = vunpack.c.0.s8 %v7995
    %v7997 = vlaneseq
    %v7998 = vshrl.u32 %v7997, 7
    %v7999 = vsub.s32 %v7996, %v7998
    %v8000 = vrot.slane %v7992, %v7999
    %v8002 = vunpack.c.l.s4 1966171168
    %v8003 = vunpack.c.0.s8 %v8002
    %v8004 = vlaneseq
    %v8005 = vshrl.u32 %v8004, 7
    %v8006 = vsub.s32 %v8003, %v8005
    %v8007 = vrot.slane %v7993, %v8006
    %v8009 = vunpack.c.l.s4 1966171168
    %v8010 = vunpack.c.0.s8 %v8009
    %v8011 = vlaneseq
    %v8012 = vshrl.u32 %v8011, 7
    %v8013 = vsub.s32 %v8010, %v8012
    %v8014 = vrot.slane %v4294, %v8013
    %v8015 = vcombine.high %v8014, %v8014
    %v8017 = vunpack.c.l.s4 1966171168
    %v8018 = vunpack.c.0.s8 %v8017
    %v8019 = vlaneseq
    %v8020 = vshrl.u32 %v8019, 7
    %v8021 = vsub.s32 %v8018, %v8020
    %v8022 = vrot.slane %v8014, %v8021
    %v8024 = vunpack.c.l.s4 1966171168
    %v8025 = vunpack.c.0.s8 %v8024
    %v8026 = vlaneseq
    %v8027 = vshrl.u32 %v8026, 7
    %v8028 = vsub.s32 %v8025, %v8027
    %v8029 = vrot.slane %v8015, %v8028
    %v8031 = vunpack.c.l.s4 1966171168
    %v8032 = vunpack.c.0.s8 %v8031
    %v8033 = vlaneseq
    %v8034 = vshrl.u32 %v8033, 7
    %v8035 = vsub.s32 %v8032, %v8034
    %v8036 = vrot.slane %v4306, %v8035
    %v8037 = vcombine.high %v8036, %v8036
    %v8039 = vunpack.c.l.s4 1966171168
    %v8040 = vunpack.c.0.s8 %v8039
    %v8041 = vlaneseq
    %v8042 = vshrl.u32 %v8041, 7
    %v8043 = vsub.s32 %v8040, %v8042
    %v8044 = vrot.slane %v8036, %v8043
    %v8046 = vunpack.c.l.s4 1966171168
    %v8047 = vunpack.c.0.s8 %v8046
    %v8048 = vlaneseq
    %v8049 = vshrl.u32 %v8048, 7
    %v8050 = vsub.s32 %v8047, %v8049
    %v8051 = vrot.slane %v8037, %v8050
    %v8052 = vunpack.c.l.b16 %v7890
    %v8053 = vunpack.c.l.b16 %v7897
    %v8054 = vunpack.c.l.b16 %v7912
    %v8055 = vunpack.c.l.b16 %v7919
    %v8056 = vunpack.c.l.b16 %v7934
    %v8057 = vunpack.c.l.b16 %v7941
    %v8058 = vunpack.c.l.b16 %v7956
    %v8059 = vunpack.c.l.b16 %v7963
    %v8060 = vunpack.c.l.b16 %v7978
    %v8061 = vunpack.c.l.b16 %v7985
    %v8062 = vunpack.c.l.b16 %v8000
    %v8063 = vunpack.c.l.b16 %v8007
    %v8064 = vunpack.c.l.b16 %v8022
    %v8065 = vunpack.c.l.b16 %v8029
    %v8066 = vunpack.c.l.b16 %v8044
    %v8067 = vunpack.c.l.b16 %v8051
    %v8068 = vrot.slane %v5845, 7
    %v8069 = vsel %vm5968, %v8068, %v5843
    %v8070 = vrot.slane %v5847, 6
    %v8071 = vsel %vm5971, %v8070, %v8069
    %v8072 = vrot.slane %v5849, 5
    %v8073 = vsel %vm5974, %v8072, %v8071
    %v8074 = vrot.slane %v5851, 4
    %v8075 = vsel %vm5977, %v8074, %v8073
    %v8076 = vrot.slane %v5853, 3
    %v8077 = vsel %vm5980, %v8076, %v8075
    %v8078 = vrot.slane %v7334, 2
    %v8079 = vsel %vm5983, %v8078, %v8077
    %v8080 = vrot.slane %v8052, 1
    %v8081 = vsel %vm5986, %v8080, %v8079
    %v8082 = vrot.slane %v5846, 7
    %v8083 = vsel %vm5968, %v8082, %v5844
    %v8084 = vrot.slane %v5848, 6
    %v8085 = vsel %vm5971, %v8084, %v8083
    %v8086 = vrot.slane %v5850, 5
    %v8087 = vsel %vm5974, %v8086, %v8085
    %v8088 = vrot.slane %v5852, 4
    %v8089 = vsel %vm5977, %v8088, %v8087
    %v8090 = vrot.slane %v5854, 3
    %v8091 = vsel %vm5980, %v8090, %v8089
    %v8092 = vrot.slane %v7335, 2
    %v8093 = vsel %vm5983, %v8092, %v8091
    %v8094 = vrot.slane %v8053, 1
    %v8095 = vsel %vm5986, %v8094, %v8093
    %v8096 = vrot.slane %v5861, 7
    %v8097 = vsel %vm5968, %v8096, %v5859
    %v8098 = vrot.slane %v5863, 6
    %v8099 = vsel %vm5971, %v8098, %v8097
    %v8100 = vrot.slane %v5865, 5
    %v8101 = vsel %vm5974, %v8100, %v8099
    %v8102 = vrot.slane %v5867, 4
    %v8103 = vsel %vm5977, %v8102, %v8101
    %v8104 = vrot.slane %v5869, 3
    %v8105 = vsel %vm5980, %v8104, %v8103
    %v8106 = vrot.slane %v7336, 2
    %v8107 = vsel %vm5983, %v8106, %v8105
    %v8108 = vrot.slane %v8054, 1
    %v8109 = vsel %vm5986, %v8108, %v8107
    %v8110 = vrot.slane %v5862, 7
    %v8111 = vsel %vm5968, %v8110, %v5860
    %v8112 = vrot.slane %v5864, 6
    %v8113 = vsel %vm5971, %v8112, %v8111
    %v8114 = vrot.slane %v5866, 5
    %v8115 = vsel %vm5974, %v8114, %v8113
    %v8116 = vrot.slane %v5868, 4
    %v8117 = vsel %vm5977, %v8116, %v8115
    %v8118 = vrot.slane %v5870, 3
    %v8119 = vsel %vm5980, %v8118, %v8117
    %v8120 = vrot.slane %v7337, 2
    %v8121 = vsel %vm5983, %v8120, %v8119
    %v8122 = vrot.slane %v8055, 1
    %v8123 = vsel %vm5986, %v8122, %v8121
    %v8124 = vrot.slane %v5877, 7
    %v8125 = vsel %vm5968, %v8124, %v5875
    %v8126 = vrot.slane %v5879, 6
    %v8127 = vsel %vm5971, %v8126, %v8125
    %v8128 = vrot.slane %v5881, 5
    %v8129 = vsel %vm5974, %v8128, %v8127
    %v8130 = vrot.slane %v5883, 4
    %v8131 = vsel %vm5977, %v8130, %v8129
    %v8132 = vrot.slane %v5885, 3
    %v8133 = vsel %vm5980, %v8132, %v8131
    %v8134 = vrot.slane %v7338, 2
    %v8135 = vsel %vm5983, %v8134, %v8133
    %v8136 = vrot.slane %v8056, 1
    %v8137 = vsel %vm5986, %v8136, %v8135
    %v8138 = vrot.slane %v5878, 7
    %v8139 = vsel %vm5968, %v8138, %v5876
    %v8140 = vrot.slane %v5880, 6
    %v8141 = vsel %vm5971, %v8140, %v8139
    %v8142 = vrot.slane %v5882, 5
    %v8143 = vsel %vm5974, %v8142, %v8141
    %v8144 = vrot.slane %v5884, 4
    %v8145 = vsel %vm5977, %v8144, %v8143
    %v8146 = vrot.slane %v5886, 3
    %v8147 = vsel %vm5980, %v8146, %v8145
    %v8148 = vrot.slane %v7339, 2
    %v8149 = vsel %vm5983, %v8148, %v8147
    %v8150 = vrot.slane %v8057, 1
    %v8151 = vsel %vm5986, %v8150, %v8149
    %v8152 = vrot.slane %v5893, 7
    %v8153 = vsel %vm5968, %v8152, %v5891
    %v8154 = vrot.slane %v5895, 6
    %v8155 = vsel %vm5971, %v8154, %v8153
    %v8156 = vrot.slane %v5897, 5
    %v8157 = vsel %vm5974, %v8156, %v8155
    %v8158 = vrot.slane %v5899, 4
    %v8159 = vsel %vm5977, %v8158, %v8157
    %v8160 = vrot.slane %v5901, 3
    %v8161 = vsel %vm5980, %v8160, %v8159
    %v8162 = vrot.slane %v7340, 2
    %v8163 = vsel %vm5983, %v8162, %v8161
    %v8164 = vrot.slane %v8058, 1
    %v8165 = vsel %vm5986, %v8164, %v8163
    %v8166 = vrot.slane %v5894, 7
    %v8167 = vsel %vm5968, %v8166, %v5892
    %v8168 = vrot.slane %v5896, 6
    %v8169 = vsel %vm5971, %v8168, %v8167
    %v8170 = vrot.slane %v5898, 5
    %v8171 = vsel %vm5974, %v8170, %v8169
    %v8172 = vrot.slane %v5900, 4
    %v8173 = vsel %vm5977, %v8172, %v8171
    %v8174 = vrot.slane %v5902, 3
    %v8175 = vsel %vm5980, %v8174, %v8173
    %v8176 = vrot.slane %v7341, 2
    %v8177 = vsel %vm5983, %v8176, %v8175
    %v8178 = vrot.slane %v8059, 1
    %v8179 = vsel %vm5986, %v8178, %v8177
    %v8180 = vrot.slane %v5909, 7
    %v8181 = vsel %vm5968, %v8180, %v5907
    %v8182 = vrot.slane %v5911, 6
    %v8183 = vsel %vm5971, %v8182, %v8181
    %v8184 = vrot.slane %v5913, 5
    %v8185 = vsel %vm5974, %v8184, %v8183
    %v8186 = vrot.slane %v5915, 4
    %v8187 = vsel %vm5977, %v8186, %v8185
    %v8188 = vrot.slane %v5917, 3
    %v8189 = vsel %vm5980, %v8188, %v8187
    %v8190 = vrot.slane %v7342, 2
    %v8191 = vsel %vm5983, %v8190, %v8189
    %v8192 = vrot.slane %v8060, 1
    %v8193 = vsel %vm5986, %v8192, %v8191
    %v8194 = vrot.slane %v5910, 7
    %v8195 = vsel %vm5968, %v8194, %v5908
    %v8196 = vrot.slane %v5912, 6
    %v8197 = vsel %vm5971, %v8196, %v8195
    %v8198 = vrot.slane %v5914, 5
    %v8199 = vsel %vm5974, %v8198, %v8197
    %v8200 = vrot.slane %v5916, 4
    %v8201 = vsel %vm5977, %v8200, %v8199
    %v8202 = vrot.slane %v5918, 3
    %v8203 = vsel %vm5980, %v8202, %v8201
    %v8204 = vrot.slane %v7343, 2
    %v8205 = vsel %vm5983, %v8204, %v8203
    %v8206 = vrot.slane %v8061, 1
    %v8207 = vsel %vm5986, %v8206, %v8205
    %v8208 = vrot.slane %v5925, 7
    %v8209 = vsel %vm5968, %v8208, %v5923
    %v8210 = vrot.slane %v5927, 6
    %v8211 = vsel %vm5971, %v8210, %v8209
    %v8212 = vrot.slane %v5929, 5
    %v8213 = vsel %vm5974, %v8212, %v8211
    %v8214 = vrot.slane %v5931, 4
    %v8215 = vsel %vm5977, %v8214, %v8213
    %v8216 = vrot.slane %v5933, 3
    %v8217 = vsel %vm5980, %v8216, %v8215
    %v8218 = vrot.slane %v7344, 2
    %v8219 = vsel %vm5983, %v8218, %v8217
    %v8220 = vrot.slane %v8062, 1
    %v8221 = vsel %vm5986, %v8220, %v8219
    %v8222 = vrot.slane %v5926, 7
    %v8223 = vsel %vm5968, %v8222, %v5924
    %v8224 = vrot.slane %v5928, 6
    %v8225 = vsel %vm5971, %v8224, %v8223
    %v8226 = vrot.slane %v5930, 5
    %v8227 = vsel %vm5974, %v8226, %v8225
    %v8228 = vrot.slane %v5932, 4
    %v8229 = vsel %vm5977, %v8228, %v8227
    %v8230 = vrot.slane %v5934, 3
    %v8231 = vsel %vm5980, %v8230, %v8229
    %v8232 = vrot.slane %v7345, 2
    %v8233 = vsel %vm5983, %v8232, %v8231
    %v8234 = vrot.slane %v8063, 1
    %v8235 = vsel %vm5986, %v8234, %v8233
    %v8236 = vrot.slane %v5941, 7
    %v8237 = vsel %vm5968, %v8236, %v5939
    %v8238 = vrot.slane %v5943, 6
    %v8239 = vsel %vm5971, %v8238, %v8237
    %v8240 = vrot.slane %v5945, 5
    %v8241 = vsel %vm5974, %v8240, %v8239
    %v8242 = vrot.slane %v5947, 4
    %v8243 = vsel %vm5977, %v8242, %v8241
    %v8244 = vrot.slane %v5949, 3
    %v8245 = vsel %vm5980, %v8244, %v8243
    %v8246 = vrot.slane %v7346, 2
    %v8247 = vsel %vm5983, %v8246, %v8245
    %v8248 = vrot.slane %v8064, 1
    %v8249 = vsel %vm5986, %v8248, %v8247
    %v8250 = vrot.slane %v5942, 7
    %v8251 = vsel %vm5968, %v8250, %v5940
    %v8252 = vrot.slane %v5944, 6
    %v8253 = vsel %vm5971, %v8252, %v8251
    %v8254 = vrot.slane %v5946, 5
    %v8255 = vsel %vm5974, %v8254, %v8253
    %v8256 = vrot.slane %v5948, 4
    %v8257 = vsel %vm5977, %v8256, %v8255
    %v8258 = vrot.slane %v5950, 3
    %v8259 = vsel %vm5980, %v8258, %v8257
    %v8260 = vrot.slane %v7347, 2
    %v8261 = vsel %vm5983, %v8260, %v8259
    %v8262 = vrot.slane %v8065, 1
    %v8263 = vsel %vm5986, %v8262, %v8261
    %v8264 = vrot.slane %v5957, 7
    %v8265 = vsel %vm5968, %v8264, %v5955
    %v8266 = vrot.slane %v5959, 6
    %v8267 = vsel %vm5971, %v8266, %v8265
    %v8268 = vrot.slane %v5961, 5
    %v8269 = vsel %vm5974, %v8268, %v8267
    %v8270 = vrot.slane %v5963, 4
    %v8271 = vsel %vm5977, %v8270, %v8269
    %v8272 = vrot.slane %v5965, 3
    %v8273 = vsel %vm5980, %v8272, %v8271
    %v8274 = vrot.slane %v7348, 2
    %v8275 = vsel %vm5983, %v8274, %v8273
    %v8276 = vrot.slane %v8066, 1
    %v8277 = vsel %vm5986, %v8276, %v8275
    %v8278 = vrot.slane %v5958, 7
    %v8279 = vsel %vm5968, %v8278, %v5956
    %v8280 = vrot.slane %v5960, 6
    %v8281 = vsel %vm5971, %v8280, %v8279
    %v8282 = vrot.slane %v5962, 5
    %v8283 = vsel %vm5974, %v8282, %v8281
    %v8284 = vrot.slane %v5964, 4
    %v8285 = vsel %vm5977, %v8284, %v8283
    %v8286 = vrot.slane %v5966, 3
    %v8287 = vsel %vm5980, %v8286, %v8285
    %v8288 = vrot.slane %v7349, 2
    %v8289 = vsel %vm5983, %v8288, %v8287
    %v8290 = vrot.slane %v8067, 1
    %v8291 = vsel %vm5986, %v8290, %v8289
    %v8292 = vpack.c.b16 %v8109, %v8081
    %v8293 = vpack.c.b16 %v8123, %v8095
    %v8294 = vpack.c.b16 %v8165, %v8137
    %v8295 = vpack.c.b16 %v8179, %v8151
    %v8296 = vpack.c.b16 %v8221, %v8193
    %v8297 = vpack.c.b16 %v8235, %v8207
    %v8298 = vpack.c.b16 %v8277, %v8249
    %v8299 = vpack.c.b16 %v8291, %v8263
    %v8333 = vunpack.c.l.b16 %v7839
    %v8334 = vunpack.c.h.b16 %v7839
    %v8335 = vunpack.c.l.b16 %v7840
    %v8336 = vunpack.c.h.b16 %v7840
    %v8337 = vunpack.c.l.b16 %v7841
    %v8338 = vunpack.c.h.b16 %v7841
    %v8339 = vunpack.c.l.b16 %v7842
    %v8340 = vunpack.c.h.b16 %v7842
    %v8341 = vunpack.c.l.b16 %v7843
    %v8342 = vunpack.c.h.b16 %v7843
    %v8343 = vunpack.c.l.b16 %v7844
    %v8344 = vunpack.c.h.b16 %v7844
    %v8345 = vunpack.c.l.b16 %v7845
    %v8346 = vunpack.c.h.b16 %v7845
    %v8347 = vunpack.c.l.b16 %v7846
    %v8348 = vunpack.c.h.b16 %v7846
    %v8349 = vunpack.c.l.b16 %v7847
    %v8350 = vunpack.c.h.b16 %v7847
    %v8351 = vunpack.c.l.b16 %v7848
    %v8352 = vunpack.c.h.b16 %v7848
    %v8353 = vunpack.c.l.b16 %v7849
    %v8354 = vunpack.c.h.b16 %v7849
    %v8355 = vunpack.c.l.b16 %v7850
    %v8356 = vunpack.c.h.b16 %v7850
    %v8357 = vunpack.c.l.b16 %v7851
    %v8358 = vunpack.c.h.b16 %v7851
    %v8359 = vunpack.c.l.b16 %v7852
    %v8360 = vunpack.c.h.b16 %v7852
    %v8361 = vunpack.c.l.b16 %v7853
    %v8362 = vunpack.c.h.b16 %v7853
    %v8363 = vunpack.c.l.b16 %v7854
    %v8364 = vunpack.c.h.b16 %v7854
    %v8365 = vunpack.c.l.b16 %v7855
    %v8366 = vunpack.c.h.b16 %v7855
    %v8367 = vunpack.c.l.b16 %v7856
    %v8368 = vunpack.c.h.b16 %v7856
    %v8369 = vunpack.c.l.b16 %v7857
    %v8370 = vunpack.c.h.b16 %v7857
    %v8371 = vunpack.c.l.b16 %v7858
    %v8372 = vunpack.c.h.b16 %v7858
    %v8373 = vunpack.c.l.b16 %v7859
    %v8374 = vunpack.c.h.b16 %v7859
    %v8375 = vunpack.c.l.b16 %v7860
    %v8376 = vunpack.c.h.b16 %v7860
    %v8377 = vunpack.c.l.b16 %v7861
    %v8378 = vunpack.c.h.b16 %v7861
    %v8379 = vunpack.c.l.b16 %v7862
    %v8380 = vunpack.c.h.b16 %v7862
    %v8381 = vunpack.c.l.b16 %v7863
    %v8382 = vunpack.c.h.b16 %v7863
    %v8383 = vunpack.c.l.b16 %v7864
    %v8384 = vunpack.c.h.b16 %v7864
    %v8385 = vunpack.c.l.b16 %v7865
    %v8386 = vunpack.c.h.b16 %v7865
    %v8387 = vunpack.c.l.b16 %v7866
    %v8388 = vunpack.c.h.b16 %v7866
    %v8389 = vunpack.c.l.b16 %v7867
    %v8390 = vunpack.c.h.b16 %v7867
    %v8391 = vpack.c.b16 %v8335, %v8333
    %v8392 = vpack.c.b16 %v8336, %v8334
    %v8393 = vpack.c.b16 %v8339, %v8337
    %v8394 = vpack.c.b16 %v8340, %v8338
    %v8395 = vpack.c.b16 %v8343, %v8341
    %v8396 = vpack.c.b16 %v8344, %v8342
    %v8397 = vpack.c.b16 %v8347, %v8345
    %v8398 = vpack.c.b16 %v8348, %v8346
    %v8399 = vpack.c.b16 %v8351, %v8349
    %v8400 = vpack.c.b16 %v8352, %v8350
    %v8401 = vpack.c.b16 %v8355, %v8353
    %v8402 = vpack.c.b16 %v8356, %v8354
    %v8403 = vpack.c.b16 %v8359, %v8357
    %v8404 = vpack.c.b16 %v8360, %v8358
    %v8405 = vpack.c.b16 %v8363, %v8361
    %v8406 = vpack.c.b16 %v8364, %v8362
    %v8407 = vpack.c.b16 %v8367, %v8365
    %v8408 = vpack.c.b16 %v8368, %v8366
    %v8409 = vpack.c.b16 %v8371, %v8369
    %v8410 = vpack.c.b16 %v8372, %v8370
    %v8411 = vpack.c.b16 %v8375, %v8373
    %v8412 = vpack.c.b16 %v8376, %v8374
    %v8413 = vpack.c.b16 %v8379, %v8377
    %v8414 = vpack.c.b16 %v8380, %v8378
    %v8415 = vpack.c.b16 %v8383, %v8381
    %v8416 = vpack.c.b16 %v8384, %v8382
    %v8417 = vpack.c.b16 %v8387, %v8385
    %v8418 = vpack.c.b16 %v8388, %v8386
    %v8419 = vpack.c.b16 %v8389, %v8389
    %v8420 = vpack.c.b16 %v8390, %v8390
    %v8450 = vsel %vm6355, %v8293, 0
    %v8453 = vsel %vm6355, %v8295, 0
    %v8456 = vsel %vm6355, %v8297, 0
    %v8459 = vsel %vm6355, %v8299, 0
    %v8462 = vsel %vm6368, %v8419, 0
    %v8465 = vsel %vm6368, %v8420, 0
    %8467 = vmatprep.subr.bf16.mxu0 %v8392
    %8468 = vmatpush1.bf16.msra.mxu0 %v8391
    %8469 = vmatprep.subr.bf16.mxu0 %v8394
    %8470 = vmatpush1.bf16.msra.mxu0 %v8393
    %8471 = vmatprep.subr.bf16.mxu0 %v8396
    %8472 = vmatpush1.bf16.msra.mxu0 %v8395
    %8473 = vmatprep.subr.bf16.mxu0 %v8398
    %8474 = vmatpush1.bf16.msra.mxu0 %v8397
    %8475 = vmatprep.subr.bf16.mxu0 %v8400
    %8476 = vmatpush1.bf16.msra.mxu0 %v8399
    %8477 = vmatprep.subr.bf16.mxu0 %v8402
    %8478 = vmatpush1.bf16.msra.mxu0 %v8401
    %8479 = vmatprep.subr.bf16.mxu0 %v8404
    %8480 = vmatpush1.bf16.msra.mxu0 %v8403
    %8481 = vmatprep.subr.bf16.mxu0 %v8406
    %8482 = vmatpush1.bf16.msra.mxu0 %v8405
    %8483 = vmatprep.subr.bf16.mxu0 %v8408
    %8484 = vmatpush1.bf16.msra.mxu0 %v8407
    %8485 = vmatprep.subr.bf16.mxu0 %v8410
    %8486 = vmatpush1.bf16.msra.mxu0 %v8409
    %8487 = vmatprep.subr.bf16.mxu0 %v8412
    %8488 = vmatpush1.bf16.msra.mxu0 %v8411
    %8489 = vmatprep.subr.bf16.mxu0 %v8414
    %8490 = vmatpush1.bf16.msra.mxu0 %v8413
    %8491 = vmatprep.subr.bf16.mxu0 %v8416
    %8492 = vmatpush1.bf16.msra.mxu0 %v8415
    %8493 = vmatprep.subr.bf16.mxu0 %v8418
    %8494 = vmatpush1.bf16.msra.mxu0 %v8417
    %8495 = vmatprep.subr.bf16.mxu0 %v8465
    %8496 = vmatpush1.bf16.msra.mxu0 %v8462
    %8497 = vmatprep.subr.bf16.mxu0 0
    %8498 = vmatpush1.bf16.msra.mxu0 0
    %8499 = vmatprep.mubr.bf16.mxu0 %v8450
    %8500 = vmatmul.mubr.bf16.gmra.mrb[0].mxu0 %v8292
    %v8501 = vpop.f32.mrb[0].mxu0
    %v8502 = vadd.f32 0.0, %v8501
    %v8503 = vpop.f32.mrb[0].mxu0
    %v8504 = vadd.f32 0.0, %v8503
    %v8505 = vpop.f32.mrb[0].mxu0
    %v8506 = vadd.f32 0.0, %v8505
    %v8507 = vpop.f32.mrb[0].mxu0
    %v8508 = vadd.f32 0.0, %v8507
    %8509 = vmatprep.mubr.bf16.mxu0 %v8453
    %8510 = vmatmul.mubr.bf16.gmra.mrb[0].mxu0 %v8294
    %v8511 = vpop.f32.mrb[0].mxu0
    %v8512 = vadd.f32 0.0, %v8511
    %v8513 = vpop.f32.mrb[0].mxu0
    %v8514 = vadd.f32 0.0, %v8513
    %v8515 = vpop.f32.mrb[0].mxu0
    %v8516 = vadd.f32 0.0, %v8515
    %v8517 = vpop.f32.mrb[0].mxu0
    %v8518 = vadd.f32 0.0, %v8517
    %8519 = vmatprep.mubr.bf16.mxu0 %v8456
    %8520 = vmatmul.mubr.bf16.gmra.mrb[0].mxu0 %v8296
    %v8521 = vpop.f32.mrb[0].mxu0
    %v8522 = vadd.f32 0.0, %v8521
    %v8523 = vpop.f32.mrb[0].mxu0
    %v8524 = vadd.f32 0.0, %v8523
    %v8525 = vpop.f32.mrb[0].mxu0
    %v8526 = vadd.f32 0.0, %v8525
    %v8527 = vpop.f32.mrb[0].mxu0
    %v8528 = vadd.f32 0.0, %v8527
    %8529 = vmatprep.mubr.bf16.mxu0 %v8459
    %8530 = vmatmul.mubr.bf16.gmra.mrb[0].mxu0 %v8298
    %v8531 = vpop.f32.mrb[0].mxu0
    %v8532 = vadd.f32 0.0, %v8531
    %v8533 = vpop.f32.mrb[0].mxu0
    %v8534 = vadd.f32 0.0, %v8533
    %v8535 = vpop.f32.mrb[0].mxu0
    %v8536 = vadd.f32 0.0, %v8535
    %v8537 = vpop.f32.mrb[0].mxu0
    %v8538 = vadd.f32 0.0, %v8537
    %8539 = vdwg.mxu0
    %v8540 = vadd.f32 %v7822, %v8502
    %v8541 = vadd.f32 %v7823, %v8504
    %v8542 = vadd.f32 %v7824, %v8506
    %v8543 = vadd.f32 %v7825, %v8508
    %v8544 = vadd.f32 %v7826, %v8512
    %v8545 = vadd.f32 %v7827, %v8514
    %v8546 = vadd.f32 %v7828, %v8516
    %v8547 = vadd.f32 %v7829, %v8518
    %v8548 = vadd.f32 %v7830, %v8522
    %v8549 = vadd.f32 %v7831, %v8524
    %v8550 = vadd.f32 %v7832, %v8526
    %v8551 = vadd.f32 %v7833, %v8528
    %v8552 = vadd.f32 %v7834, %v8532
    %v8553 = vadd.f32 %v7835, %v8534
    %v8554 = vadd.f32 %v7836, %v8536
    %v8555 = vadd.f32 %v7837, %v8538
    %s8556 = scalar_lea.vmem %s3, 928
    %v8557 = vld [vmem:[%s8556] sm:$0xff]
    %v8558 = vld [vmem:[%s8556 + $0x8] sm:$0xff]
    %v8559 = vld [vmem:[%s8556 + $0x10] sm:$0xff]
    %v8560 = vld [vmem:[%s8556 + $0x18] sm:$0xff]
    %v8561 = vld [vmem:[%s8556 + $0x20] sm:$0xff]
    %v8562 = vld [vmem:[%s8556 + $0x28] sm:$0xff]
    %v8563 = vld [vmem:[%s8556 + $0x30] sm:$0xff]
    %v8564 = vld [vmem:[%s8556 + $0x38] sm:$0xff]
    %v8565 = vld [vmem:[%s8556 + $0x40] sm:$0xff]
    %v8566 = vld [vmem:[%s8556 + $0x48] sm:$0xff]
    %v8567 = vld [vmem:[%s8556 + $0x50] sm:$0xff]
    %v8568 = vld [vmem:[%s8556 + $0x58] sm:$0xff]
    %v8569 = vld [vmem:[%s8556 + $0x60] sm:$0xff]
    %v8570 = vld [vmem:[%s8556 + $0x68] sm:$0xff]
    %v8571 = vld [vmem:[%s8556 + $0x70] sm:$0xff]
    %v8572 = vld [vmem:[%s8556 + $0x78] sm:$0xff]
    %v8573 = vld [vmem:[%s8556 + $0x80] sm:$0xff]
    %v8574 = vld [vmem:[%s8556 + $0x88] sm:$0xff]
    %v8575 = vld [vmem:[%s8556 + $0x90] sm:$0xff]
    %v8576 = vld [vmem:[%s8556 + $0x98] sm:$0xff]
    %v8577 = vld [vmem:[%s8556 + $0xa0] sm:$0xff]
    %v8578 = vld [vmem:[%s8556 + $0xa8] sm:$0xff]
    %v8579 = vld [vmem:[%s8556 + $0xb0] sm:$0xff]
    %v8580 = vld [vmem:[%s8556 + $0xb8] sm:$0xff]
    %v8581 = vld [vmem:[%s8556 + $0xc0] sm:$0xff]
    %v8582 = vld [vmem:[%s8556 + $0xc8] sm:$0xff]
    %v8583 = vld [vmem:[%s8556 + $0xd0] sm:$0xff]
    %v8584 = vld [vmem:[%s8556 + $0xd8] sm:$0xff]
    %v8585 = vld [vmem:[%s8556 + $0xe0] sm:$0x77]
    %v8595 = vunpack.c.l.s4 1966171168
    %v8596 = vunpack.c.0.s8 %v8595
    %v8597 = vlaneseq
    %v8598 = vshrl.u32 %v8597, 7
    %v8599 = vsub.s32 %v8596, %v8598
    %v8600 = vrot.slane %v4223, %v8599
    %v8601 = vcombine.high %v8600, %v8600
    %v8603 = vunpack.c.l.s4 1966171168
    %v8604 = vunpack.c.0.s8 %v8603
    %v8605 = vlaneseq
    %v8606 = vshrl.u32 %v8605, 7
    %v8607 = vsub.s32 %v8604, %v8606
    %v8608 = vrot.slane %v8600, %v8607
    %v8610 = vunpack.c.l.s4 1966171168
    %v8611 = vunpack.c.0.s8 %v8610
    %v8612 = vlaneseq
    %v8613 = vshrl.u32 %v8612, 7
    %v8614 = vsub.s32 %v8611, %v8613
    %v8615 = vrot.slane %v8601, %v8614
    %v8617 = vunpack.c.l.s4 1966171168
    %v8618 = vunpack.c.0.s8 %v8617
    %v8619 = vlaneseq
    %v8620 = vshrl.u32 %v8619, 7
    %v8621 = vsub.s32 %v8618, %v8620
    %v8622 = vrot.slane %v4235, %v8621
    %v8623 = vcombine.high %v8622, %v8622
    %v8625 = vunpack.c.l.s4 1966171168
    %v8626 = vunpack.c.0.s8 %v8625
    %v8627 = vlaneseq
    %v8628 = vshrl.u32 %v8627, 7
    %v8629 = vsub.s32 %v8626, %v8628
    %v8630 = vrot.slane %v8622, %v8629
    %v8632 = vunpack.c.l.s4 1966171168
    %v8633 = vunpack.c.0.s8 %v8632
    %v8634 = vlaneseq
    %v8635 = vshrl.u32 %v8634, 7
    %v8636 = vsub.s32 %v8633, %v8635
    %v8637 = vrot.slane %v8623, %v8636
    %v8639 = vunpack.c.l.s4 1966171168
    %v8640 = vunpack.c.0.s8 %v8639
    %v8641 = vlaneseq
    %v8642 = vshrl.u32 %v8641, 7
    %v8643 = vsub.s32 %v8640, %v8642
    %v8644 = vrot.slane %v4247, %v8643
    %v8645 = vcombine.high %v8644, %v8644
    %v8647 = vunpack.c.l.s4 1966171168
    %v8648 = vunpack.c.0.s8 %v8647
    %v8649 = vlaneseq
    %v8650 = vshrl.u32 %v8649, 7
    %v8651 = vsub.s32 %v8648, %v8650
    %v8652 = vrot.slane %v8644, %v8651
    %v8654 = vunpack.c.l.s4 1966171168
    %v8655 = vunpack.c.0.s8 %v8654
    %v8656 = vlaneseq
    %v8657 = vshrl.u32 %v8656, 7
    %v8658 = vsub.s32 %v8655, %v8657
    %v8659 = vrot.slane %v8645, %v8658
    %v8661 = vunpack.c.l.s4 1966171168
    %v8662 = vunpack.c.0.s8 %v8661
    %v8663 = vlaneseq
    %v8664 = vshrl.u32 %v8663, 7
    %v8665 = vsub.s32 %v8662, %v8664
    %v8666 = vrot.slane %v4259, %v8665
    %v8667 = vcombine.high %v8666, %v8666
    %v8669 = vunpack.c.l.s4 1966171168
    %v8670 = vunpack.c.0.s8 %v8669
    %v8671 = vlaneseq
    %v8672 = vshrl.u32 %v8671, 7
    %v8673 = vsub.s32 %v8670, %v8672
    %v8674 = vrot.slane %v8666, %v8673
    %v8676 = vunpack.c.l.s4 1966171168
    %v8677 = vunpack.c.0.s8 %v8676
    %v8678 = vlaneseq
    %v8679 = vshrl.u32 %v8678, 7
    %v8680 = vsub.s32 %v8677, %v8679
    %v8681 = vrot.slane %v8667, %v8680
    %v8683 = vunpack.c.l.s4 1966171168
    %v8684 = vunpack.c.0.s8 %v8683
    %v8685 = vlaneseq
    %v8686 = vshrl.u32 %v8685, 7
    %v8687 = vsub.s32 %v8684, %v8686
    %v8688 = vrot.slane %v4271, %v8687
    %v8689 = vcombine.high %v8688, %v8688
    %v8691 = vunpack.c.l.s4 1966171168
    %v8692 = vunpack.c.0.s8 %v8691
    %v8693 = vlaneseq
    %v8694 = vshrl.u32 %v8693, 7
    %v8695 = vsub.s32 %v8692, %v8694
    %v8696 = vrot.slane %v8688, %v8695
    %v8698 = vunpack.c.l.s4 1966171168
    %v8699 = vunpack.c.0.s8 %v8698
    %v8700 = vlaneseq
    %v8701 = vshrl.u32 %v8700, 7
    %v8702 = vsub.s32 %v8699, %v8701
    %v8703 = vrot.slane %v8689, %v8702
    %v8705 = vunpack.c.l.s4 1966171168
    %v8706 = vunpack.c.0.s8 %v8705
    %v8707 = vlaneseq
    %v8708 = vshrl.u32 %v8707, 7
    %v8709 = vsub.s32 %v8706, %v8708
    %v8710 = vrot.slane %v4283, %v8709
    %v8711 = vcombine.high %v8710, %v8710
    %v8713 = vunpack.c.l.s4 1966171168
    %v8714 = vunpack.c.0.s8 %v8713
    %v8715 = vlaneseq
    %v8716 = vshrl.u32 %v8715, 7
    %v8717 = vsub.s32 %v8714, %v8716
    %v8718 = vrot.slane %v8710, %v8717
    %v8720 = vunpack.c.l.s4 1966171168
    %v8721 = vunpack.c.0.s8 %v8720
    %v8722 = vlaneseq
    %v8723 = vshrl.u32 %v8722, 7
    %v8724 = vsub.s32 %v8721, %v8723
    %v8725 = vrot.slane %v8711, %v8724
    %v8727 = vunpack.c.l.s4 1966171168
    %v8728 = vunpack.c.0.s8 %v8727
    %v8729 = vlaneseq
    %v8730 = vshrl.u32 %v8729, 7
    %v8731 = vsub.s32 %v8728, %v8730
    %v8732 = vrot.slane %v4295, %v8731
    %v8733 = vcombine.high %v8732, %v8732
    %v8735 = vunpack.c.l.s4 1966171168
    %v8736 = vunpack.c.0.s8 %v8735
    %v8737 = vlaneseq
    %v8738 = vshrl.u32 %v8737, 7
    %v8739 = vsub.s32 %v8736, %v8738
    %v8740 = vrot.slane %v8732, %v8739
    %v8742 = vunpack.c.l.s4 1966171168
    %v8743 = vunpack.c.0.s8 %v8742
    %v8744 = vlaneseq
    %v8745 = vshrl.u32 %v8744, 7
    %v8746 = vsub.s32 %v8743, %v8745
    %v8747 = vrot.slane %v8733, %v8746
    %v8749 = vunpack.c.l.s4 1966171168
    %v8750 = vunpack.c.0.s8 %v8749
    %v8751 = vlaneseq
    %v8752 = vshrl.u32 %v8751, 7
    %v8753 = vsub.s32 %v8750, %v8752
    %v8754 = vrot.slane %v4307, %v8753
    %v8755 = vcombine.high %v8754, %v8754
    %v8757 = vunpack.c.l.s4 1966171168
    %v8758 = vunpack.c.0.s8 %v8757
    %v8759 = vlaneseq
    %v8760 = vshrl.u32 %v8759, 7
    %v8761 = vsub.s32 %v8758, %v8760
    %v8762 = vrot.slane %v8754, %v8761
    %v8764 = vunpack.c.l.s4 1966171168
    %v8765 = vunpack.c.0.s8 %v8764
    %v8766 = vlaneseq
    %v8767 = vshrl.u32 %v8766, 7
    %v8768 = vsub.s32 %v8765, %v8767
    %v8769 = vrot.slane %v8755, %v8768
    %v8770 = vunpack.c.l.b16 %v8608
    %v8771 = vunpack.c.l.b16 %v8615
    %v8772 = vunpack.c.l.b16 %v8630
    %v8773 = vunpack.c.l.b16 %v8637
    %v8774 = vunpack.c.l.b16 %v8652
    %v8775 = vunpack.c.l.b16 %v8659
    %v8776 = vunpack.c.l.b16 %v8674
    %v8777 = vunpack.c.l.b16 %v8681
    %v8778 = vunpack.c.l.b16 %v8696
    %v8779 = vunpack.c.l.b16 %v8703
    %v8780 = vunpack.c.l.b16 %v8718
    %v8781 = vunpack.c.l.b16 %v8725
    %v8782 = vunpack.c.l.b16 %v8740
    %v8783 = vunpack.c.l.b16 %v8747
    %v8784 = vunpack.c.l.b16 %v8762
    %v8785 = vunpack.c.l.b16 %v8769
    %v8786 = vrot.slane %v5847, 7
    %v8787 = vsel %vm5968, %v8786, %v5845
    %v8788 = vrot.slane %v5849, 6
    %v8789 = vsel %vm5971, %v8788, %v8787
    %v8790 = vrot.slane %v5851, 5
    %v8791 = vsel %vm5974, %v8790, %v8789
    %v8792 = vrot.slane %v5853, 4
    %v8793 = vsel %vm5977, %v8792, %v8791
    %v8794 = vrot.slane %v7334, 3
    %v8795 = vsel %vm5980, %v8794, %v8793
    %v8796 = vrot.slane %v8052, 2
    %v8797 = vsel %vm5983, %v8796, %v8795
    %v8798 = vrot.slane %v8770, 1
    %v8799 = vsel %vm5986, %v8798, %v8797
    %v8800 = vrot.slane %v5848, 7
    %v8801 = vsel %vm5968, %v8800, %v5846
    %v8802 = vrot.slane %v5850, 6
    %v8803 = vsel %vm5971, %v8802, %v8801
    %v8804 = vrot.slane %v5852, 5
    %v8805 = vsel %vm5974, %v8804, %v8803
    %v8806 = vrot.slane %v5854, 4
    %v8807 = vsel %vm5977, %v8806, %v8805
    %v8808 = vrot.slane %v7335, 3
    %v8809 = vsel %vm5980, %v8808, %v8807
    %v8810 = vrot.slane %v8053, 2
    %v8811 = vsel %vm5983, %v8810, %v8809
    %v8812 = vrot.slane %v8771, 1
    %v8813 = vsel %vm5986, %v8812, %v8811
    %v8814 = vrot.slane %v5863, 7
    %v8815 = vsel %vm5968, %v8814, %v5861
    %v8816 = vrot.slane %v5865, 6
    %v8817 = vsel %vm5971, %v8816, %v8815
    %v8818 = vrot.slane %v5867, 5
    %v8819 = vsel %vm5974, %v8818, %v8817
    %v8820 = vrot.slane %v5869, 4
    %v8821 = vsel %vm5977, %v8820, %v8819
    %v8822 = vrot.slane %v7336, 3
    %v8823 = vsel %vm5980, %v8822, %v8821
    %v8824 = vrot.slane %v8054, 2
    %v8825 = vsel %vm5983, %v8824, %v8823
    %v8826 = vrot.slane %v8772, 1
    %v8827 = vsel %vm5986, %v8826, %v8825
    %v8828 = vrot.slane %v5864, 7
    %v8829 = vsel %vm5968, %v8828, %v5862
    %v8830 = vrot.slane %v5866, 6
    %v8831 = vsel %vm5971, %v8830, %v8829
    %v8832 = vrot.slane %v5868, 5
    %v8833 = vsel %vm5974, %v8832, %v8831
    %v8834 = vrot.slane %v5870, 4
    %v8835 = vsel %vm5977, %v8834, %v8833
    %v8836 = vrot.slane %v7337, 3
    %v8837 = vsel %vm5980, %v8836, %v8835
    %v8838 = vrot.slane %v8055, 2
    %v8839 = vsel %vm5983, %v8838, %v8837
    %v8840 = vrot.slane %v8773, 1
    %v8841 = vsel %vm5986, %v8840, %v8839
    %v8842 = vrot.slane %v5879, 7
    %v8843 = vsel %vm5968, %v8842, %v5877
    %v8844 = vrot.slane %v5881, 6
    %v8845 = vsel %vm5971, %v8844, %v8843
    %v8846 = vrot.slane %v5883, 5
    %v8847 = vsel %vm5974, %v8846, %v8845
    %v8848 = vrot.slane %v5885, 4
    %v8849 = vsel %vm5977, %v8848, %v8847
    %v8850 = vrot.slane %v7338, 3
    %v8851 = vsel %vm5980, %v8850, %v8849
    %v8852 = vrot.slane %v8056, 2
    %v8853 = vsel %vm5983, %v8852, %v8851
    %v8854 = vrot.slane %v8774, 1
    %v8855 = vsel %vm5986, %v8854, %v8853
    %v8856 = vrot.slane %v5880, 7
    %v8857 = vsel %vm5968, %v8856, %v5878
    %v8858 = vrot.slane %v5882, 6
    %v8859 = vsel %vm5971, %v8858, %v8857
    %v8860 = vrot.slane %v5884, 5
    %v8861 = vsel %vm5974, %v8860, %v8859
    %v8862 = vrot.slane %v5886, 4
    %v8863 = vsel %vm5977, %v8862, %v8861
    %v8864 = vrot.slane %v7339, 3
    %v8865 = vsel %vm5980, %v8864, %v8863
    %v8866 = vrot.slane %v8057, 2
    %v8867 = vsel %vm5983, %v8866, %v8865
    %v8868 = vrot.slane %v8775, 1
    %v8869 = vsel %vm5986, %v8868, %v8867
    %v8870 = vrot.slane %v5895, 7
    %v8871 = vsel %vm5968, %v8870, %v5893
    %v8872 = vrot.slane %v5897, 6
    %v8873 = vsel %vm5971, %v8872, %v8871
    %v8874 = vrot.slane %v5899, 5
    %v8875 = vsel %vm5974, %v8874, %v8873
    %v8876 = vrot.slane %v5901, 4
    %v8877 = vsel %vm5977, %v8876, %v8875
    %v8878 = vrot.slane %v7340, 3
    %v8879 = vsel %vm5980, %v8878, %v8877
    %v8880 = vrot.slane %v8058, 2
    %v8881 = vsel %vm5983, %v8880, %v8879
    %v8882 = vrot.slane %v8776, 1
    %v8883 = vsel %vm5986, %v8882, %v8881
    %v8884 = vrot.slane %v5896, 7
    %v8885 = vsel %vm5968, %v8884, %v5894
    %v8886 = vrot.slane %v5898, 6
    %v8887 = vsel %vm5971, %v8886, %v8885
    %v8888 = vrot.slane %v5900, 5
    %v8889 = vsel %vm5974, %v8888, %v8887
    %v8890 = vrot.slane %v5902, 4
    %v8891 = vsel %vm5977, %v8890, %v8889
    %v8892 = vrot.slane %v7341, 3
    %v8893 = vsel %vm5980, %v8892, %v8891
    %v8894 = vrot.slane %v8059, 2
    %v8895 = vsel %vm5983, %v8894, %v8893
    %v8896 = vrot.slane %v8777, 1
    %v8897 = vsel %vm5986, %v8896, %v8895
    %v8898 = vrot.slane %v5911, 7
    %v8899 = vsel %vm5968, %v8898, %v5909
    %v8900 = vrot.slane %v5913, 6
    %v8901 = vsel %vm5971, %v8900, %v8899
    %v8902 = vrot.slane %v5915, 5
    %v8903 = vsel %vm5974, %v8902, %v8901
    %v8904 = vrot.slane %v5917, 4
    %v8905 = vsel %vm5977, %v8904, %v8903
    %v8906 = vrot.slane %v7342, 3
    %v8907 = vsel %vm5980, %v8906, %v8905
    %v8908 = vrot.slane %v8060, 2
    %v8909 = vsel %vm5983, %v8908, %v8907
    %v8910 = vrot.slane %v8778, 1
    %v8911 = vsel %vm5986, %v8910, %v8909
    %v8912 = vrot.slane %v5912, 7
    %v8913 = vsel %vm5968, %v8912, %v5910
    %v8914 = vrot.slane %v5914, 6
    %v8915 = vsel %vm5971, %v8914, %v8913
    %v8916 = vrot.slane %v5916, 5
    %v8917 = vsel %vm5974, %v8916, %v8915
    %v8918 = vrot.slane %v5918, 4
    %v8919 = vsel %vm5977, %v8918, %v8917
    %v8920 = vrot.slane %v7343, 3
    %v8921 = vsel %vm5980, %v8920, %v8919
    %v8922 = vrot.slane %v8061, 2
    %v8923 = vsel %vm5983, %v8922, %v8921
    %v8924 = vrot.slane %v8779, 1
    %v8925 = vsel %vm5986, %v8924, %v8923
    %v8926 = vrot.slane %v5927, 7
    %v8927 = vsel %vm5968, %v8926, %v5925
    %v8928 = vrot.slane %v5929, 6
    %v8929 = vsel %vm5971, %v8928, %v8927
    %v8930 = vrot.slane %v5931, 5
    %v8931 = vsel %vm5974, %v8930, %v8929
    %v8932 = vrot.slane %v5933, 4
    %v8933 = vsel %vm5977, %v8932, %v8931
    %v8934 = vrot.slane %v7344, 3
    %v8935 = vsel %vm5980, %v8934, %v8933
    %v8936 = vrot.slane %v8062, 2
    %v8937 = vsel %vm5983, %v8936, %v8935
    %v8938 = vrot.slane %v8780, 1
    %v8939 = vsel %vm5986, %v8938, %v8937
    %v8940 = vrot.slane %v5928, 7
    %v8941 = vsel %vm5968, %v8940, %v5926
    %v8942 = vrot.slane %v5930, 6
    %v8943 = vsel %vm5971, %v8942, %v8941
    %v8944 = vrot.slane %v5932, 5
    %v8945 = vsel %vm5974, %v8944, %v8943
    %v8946 = vrot.slane %v5934, 4
    %v8947 = vsel %vm5977, %v8946, %v8945
    %v8948 = vrot.slane %v7345, 3
    %v8949 = vsel %vm5980, %v8948, %v8947
    %v8950 = vrot.slane %v8063, 2
    %v8951 = vsel %vm5983, %v8950, %v8949
    %v8952 = vrot.slane %v8781, 1
    %v8953 = vsel %vm5986, %v8952, %v8951
    %v8954 = vrot.slane %v5943, 7
    %v8955 = vsel %vm5968, %v8954, %v5941
    %v8956 = vrot.slane %v5945, 6
    %v8957 = vsel %vm5971, %v8956, %v8955
    %v8958 = vrot.slane %v5947, 5
    %v8959 = vsel %vm5974, %v8958, %v8957
    %v8960 = vrot.slane %v5949, 4
    %v8961 = vsel %vm5977, %v8960, %v8959
    %v8962 = vrot.slane %v7346, 3
    %v8963 = vsel %vm5980, %v8962, %v8961
    %v8964 = vrot.slane %v8064, 2
    %v8965 = vsel %vm5983, %v8964, %v8963
    %v8966 = vrot.slane %v8782, 1
    %v8967 = vsel %vm5986, %v8966, %v8965
    %v8968 = vrot.slane %v5944, 7
    %v8969 = vsel %vm5968, %v8968, %v5942
    %v8970 = vrot.slane %v5946, 6
    %v8971 = vsel %vm5971, %v8970, %v8969
    %v8972 = vrot.slane %v5948, 5
    %v8973 = vsel %vm5974, %v8972, %v8971
    %v8974 = vrot.slane %v5950, 4
    %v8975 = vsel %vm5977, %v8974, %v8973
    %v8976 = vrot.slane %v7347, 3
    %v8977 = vsel %vm5980, %v8976, %v8975
    %v8978 = vrot.slane %v8065, 2
    %v8979 = vsel %vm5983, %v8978, %v8977
    %v8980 = vrot.slane %v8783, 1
    %v8981 = vsel %vm5986, %v8980, %v8979
    %v8982 = vrot.slane %v5959, 7
    %v8983 = vsel %vm5968, %v8982, %v5957
    %v8984 = vrot.slane %v5961, 6
    %v8985 = vsel %vm5971, %v8984, %v8983
    %v8986 = vrot.slane %v5963, 5
    %v8987 = vsel %vm5974, %v8986, %v8985
    %v8988 = vrot.slane %v5965, 4
    %v8989 = vsel %vm5977, %v8988, %v8987
    %v8990 = vrot.slane %v7348, 3
    %v8991 = vsel %vm5980, %v8990, %v8989
    %v8992 = vrot.slane %v8066, 2
    %v8993 = vsel %vm5983, %v8992, %v8991
    %v8994 = vrot.slane %v8784, 1
    %v8995 = vsel %vm5986, %v8994, %v8993
    %v8996 = vrot.slane %v5960, 7
    %v8997 = vsel %vm5968, %v8996, %v5958
    %v8998 = vrot.slane %v5962, 6
    %v8999 = vsel %vm5971, %v8998, %v8997
    %v9000 = vrot.slane %v5964, 5
    %v9001 = vsel %vm5974, %v9000, %v8999
    %v9002 = vrot.slane %v5966, 4
    %v9003 = vsel %vm5977, %v9002, %v9001
    %v9004 = vrot.slane %v7349, 3
    %v9005 = vsel %vm5980, %v9004, %v9003
    %v9006 = vrot.slane %v8067, 2
    %v9007 = vsel %vm5983, %v9006, %v9005
    %v9008 = vrot.slane %v8785, 1
    %v9009 = vsel %vm5986, %v9008, %v9007
    %v9010 = vpack.c.b16 %v8827, %v8799
    %v9011 = vpack.c.b16 %v8841, %v8813
    %v9012 = vpack.c.b16 %v8883, %v8855
    %v9013 = vpack.c.b16 %v8897, %v8869
    %v9014 = vpack.c.b16 %v8939, %v8911
    %v9015 = vpack.c.b16 %v8953, %v8925
    %v9016 = vpack.c.b16 %v8995, %v8967
    %v9017 = vpack.c.b16 %v9009, %v8981
    %v9051 = vunpack.c.l.b16 %v8557
    %v9052 = vunpack.c.h.b16 %v8557
    %v9053 = vunpack.c.l.b16 %v8558
    %v9054 = vunpack.c.h.b16 %v8558
    %v9055 = vunpack.c.l.b16 %v8559
    %v9056 = vunpack.c.h.b16 %v8559
    %v9057 = vunpack.c.l.b16 %v8560
    %v9058 = vunpack.c.h.b16 %v8560
    %v9059 = vunpack.c.l.b16 %v8561
    %v9060 = vunpack.c.h.b16 %v8561
    %v9061 = vunpack.c.l.b16 %v8562
    %v9062 = vunpack.c.h.b16 %v8562
    %v9063 = vunpack.c.l.b16 %v8563
    %v9064 = vunpack.c.h.b16 %v8563
    %v9065 = vunpack.c.l.b16 %v8564
    %v9066 = vunpack.c.h.b16 %v8564
    %v9067 = vunpack.c.l.b16 %v8565
    %v9068 = vunpack.c.h.b16 %v8565
    %v9069 = vunpack.c.l.b16 %v8566
    %v9070 = vunpack.c.h.b16 %v8566
    %v9071 = vunpack.c.l.b16 %v8567
    %v9072 = vunpack.c.h.b16 %v8567
    %v9073 = vunpack.c.l.b16 %v8568
    %v9074 = vunpack.c.h.b16 %v8568
    %v9075 = vunpack.c.l.b16 %v8569
    %v9076 = vunpack.c.h.b16 %v8569
    %v9077 = vunpack.c.l.b16 %v8570
    %v9078 = vunpack.c.h.b16 %v8570
    %v9079 = vunpack.c.l.b16 %v8571
    %v9080 = vunpack.c.h.b16 %v8571
    %v9081 = vunpack.c.l.b16 %v8572
    %v9082 = vunpack.c.h.b16 %v8572
    %v9083 = vunpack.c.l.b16 %v8573
    %v9084 = vunpack.c.h.b16 %v8573
    %v9085 = vunpack.c.l.b16 %v8574
    %v9086 = vunpack.c.h.b16 %v8574
    %v9087 = vunpack.c.l.b16 %v8575
    %v9088 = vunpack.c.h.b16 %v8575
    %v9089 = vunpack.c.l.b16 %v8576
    %v9090 = vunpack.c.h.b16 %v8576
    %v9091 = vunpack.c.l.b16 %v8577
    %v9092 = vunpack.c.h.b16 %v8577
    %v9093 = vunpack.c.l.b16 %v8578
    %v9094 = vunpack.c.h.b16 %v8578
    %v9095 = vunpack.c.l.b16 %v8579
    %v9096 = vunpack.c.h.b16 %v8579
    %v9097 = vunpack.c.l.b16 %v8580
    %v9098 = vunpack.c.h.b16 %v8580
    %v9099 = vunpack.c.l.b16 %v8581
    %v9100 = vunpack.c.h.b16 %v8581
    %v9101 = vunpack.c.l.b16 %v8582
    %v9102 = vunpack.c.h.b16 %v8582
    %v9103 = vunpack.c.l.b16 %v8583
    %v9104 = vunpack.c.h.b16 %v8583
    %v9105 = vunpack.c.l.b16 %v8584
    %v9106 = vunpack.c.h.b16 %v8584
    %v9107 = vunpack.c.l.b16 %v8585
    %v9108 = vunpack.c.h.b16 %v8585
    %v9109 = vpack.c.b16 %v9053, %v9051
    %v9110 = vpack.c.b16 %v9054, %v9052
    %v9111 = vpack.c.b16 %v9057, %v9055
    %v9112 = vpack.c.b16 %v9058, %v9056
    %v9113 = vpack.c.b16 %v9061, %v9059
    %v9114 = vpack.c.b16 %v9062, %v9060
    %v9115 = vpack.c.b16 %v9065, %v9063
    %v9116 = vpack.c.b16 %v9066, %v9064
    %v9117 = vpack.c.b16 %v9069, %v9067
    %v9118 = vpack.c.b16 %v9070, %v9068
    %v9119 = vpack.c.b16 %v9073, %v9071
    %v9120 = vpack.c.b16 %v9074, %v9072
    %v9121 = vpack.c.b16 %v9077, %v9075
    %v9122 = vpack.c.b16 %v9078, %v9076
    %v9123 = vpack.c.b16 %v9081, %v9079
    %v9124 = vpack.c.b16 %v9082, %v9080
    %v9125 = vpack.c.b16 %v9085, %v9083
    %v9126 = vpack.c.b16 %v9086, %v9084
    %v9127 = vpack.c.b16 %v9089, %v9087
    %v9128 = vpack.c.b16 %v9090, %v9088
    %v9129 = vpack.c.b16 %v9093, %v9091
    %v9130 = vpack.c.b16 %v9094, %v9092
    %v9131 = vpack.c.b16 %v9097, %v9095
    %v9132 = vpack.c.b16 %v9098, %v9096
    %v9133 = vpack.c.b16 %v9101, %v9099
    %v9134 = vpack.c.b16 %v9102, %v9100
    %v9135 = vpack.c.b16 %v9105, %v9103
    %v9136 = vpack.c.b16 %v9106, %v9104
    %v9137 = vpack.c.b16 %v9107, %v9107
    %v9138 = vpack.c.b16 %v9108, %v9108
    %v9168 = vsel %vm6355, %v9011, 0
    %v9171 = vsel %vm6355, %v9013, 0
    %v9174 = vsel %vm6355, %v9015, 0
    %v9177 = vsel %vm6355, %v9017, 0
    %v9180 = vsel %vm6368, %v9137, 0
    %v9183 = vsel %vm6368, %v9138, 0
    %9185 = vmatprep.subr.bf16.mxu0 %v9110
    %9186 = vmatpush1.bf16.msra.mxu0 %v9109
    %9187 = vmatprep.subr.bf16.mxu0 %v9112
    %9188 = vmatpush1.bf16.msra.mxu0 %v9111
    %9189 = vmatprep.subr.bf16.mxu0 %v9114
    %9190 = vmatpush1.bf16.msra.mxu0 %v9113
    %9191 = vmatprep.subr.bf16.mxu0 %v9116
    %9192 = vmatpush1.bf16.msra.mxu0 %v9115
    %9193 = vmatprep.subr.bf16.mxu0 %v9118
    %9194 = vmatpush1.bf16.msra.mxu0 %v9117
    %9195 = vmatprep.subr.bf16.mxu0 %v9120
    %9196 = vmatpush1.bf16.msra.mxu0 %v9119
    %9197 = vmatprep.subr.bf16.mxu0 %v9122
    %9198 = vmatpush1.bf16.msra.mxu0 %v9121
    %9199 = vmatprep.subr.bf16.mxu0 %v9124
    %9200 = vmatpush1.bf16.msra.mxu0 %v9123
    %9201 = vmatprep.subr.bf16.mxu0 %v9126
    %9202 = vmatpush1.bf16.msra.mxu0 %v9125
    %9203 = vmatprep.subr.bf16.mxu0 %v9128
    %9204 = vmatpush1.bf16.msra.mxu0 %v9127
    %9205 = vmatprep.subr.bf16.mxu0 %v9130
    %9206 = vmatpush1.bf16.msra.mxu0 %v9129
    %9207 = vmatprep.subr.bf16.mxu0 %v9132
    %9208 = vmatpush1.bf16.msra.mxu0 %v9131
    %9209 = vmatprep.subr.bf16.mxu0 %v9134
    %9210 = vmatpush1.bf16.msra.mxu0 %v9133
    %9211 = vmatprep.subr.bf16.mxu0 %v9136
    %9212 = vmatpush1.bf16.msra.mxu0 %v9135
    %9213 = vmatprep.subr.bf16.mxu0 %v9183
    %9214 = vmatpush1.bf16.msra.mxu0 %v9180
    %9215 = vmatprep.subr.bf16.mxu0 0
    %9216 = vmatpush1.bf16.msra.mxu0 0
    %9217 = vmatprep.mubr.bf16.mxu0 %v9168
    %9218 = vmatmul.mubr.bf16.gmra.mrb[0].mxu0 %v9010
    %v9219 = vpop.f32.mrb[0].mxu0
    %v9220 = vadd.f32 0.0, %v9219
    %v9221 = vpop.f32.mrb[0].mxu0
    %v9222 = vadd.f32 0.0, %v9221
    %v9223 = vpop.f32.mrb[0].mxu0
    %v9224 = vadd.f32 0.0, %v9223
    %v9225 = vpop.f32.mrb[0].mxu0
    %v9226 = vadd.f32 0.0, %v9225
    %9227 = vmatprep.mubr.bf16.mxu0 %v9171
    %9228 = vmatmul.mubr.bf16.gmra.mrb[0].mxu0 %v9012
    %v9229 = vpop.f32.mrb[0].mxu0
    %v9230 = vadd.f32 0.0, %v9229
    %v9231 = vpop.f32.mrb[0].mxu0
    %v9232 = vadd.f32 0.0, %v9231
    %v9233 = vpop.f32.mrb[0].mxu0
    %v9234 = vadd.f32 0.0, %v9233
    %v9235 = vpop.f32.mrb[0].mxu0
    %v9236 = vadd.f32 0.0, %v9235
    %9237 = vmatprep.mubr.bf16.mxu0 %v9174
    %9238 = vmatmul.mubr.bf16.gmra.mrb[0].mxu0 %v9014
    %v9239 = vpop.f32.mrb[0].mxu0
    %v9240 = vadd.f32 0.0, %v9239
    %v9241 = vpop.f32.mrb[0].mxu0
    %v9242 = vadd.f32 0.0, %v9241
    %v9243 = vpop.f32.mrb[0].mxu0
    %v9244 = vadd.f32 0.0, %v9243
    %v9245 = vpop.f32.mrb[0].mxu0
    %v9246 = vadd.f32 0.0, %v9245
    %9247 = vmatprep.mubr.bf16.mxu0 %v9177
    %9248 = vmatmul.mubr.bf16.gmra.mrb[0].mxu0 %v9016
    %v9249 = vpop.f32.mrb[0].mxu0
    %v9250 = vadd.f32 0.0, %v9249
    %v9251 = vpop.f32.mrb[0].mxu0
    %v9252 = vadd.f32 0.0, %v9251
    %v9253 = vpop.f32.mrb[0].mxu0
    %v9254 = vadd.f32 0.0, %v9253
    %v9255 = vpop.f32.mrb[0].mxu0
    %v9256 = vadd.f32 0.0, %v9255
    %9257 = vdwg.mxu0
    %v9258 = vadd.f32 %v8540, %v9220
    %v9259 = vadd.f32 %v8541, %v9222
    %v9260 = vadd.f32 %v8542, %v9224
    %v9261 = vadd.f32 %v8543, %v9226
    %v9262 = vadd.f32 %v8544, %v9230
    %v9263 = vadd.f32 %v8545, %v9232
    %v9264 = vadd.f32 %v8546, %v9234
    %v9265 = vadd.f32 %v8547, %v9236
    %v9266 = vadd.f32 %v8548, %v9240
    %v9267 = vadd.f32 %v8549, %v9242
    %v9268 = vadd.f32 %v8550, %v9244
    %v9269 = vadd.f32 %v8551, %v9246
    %v9270 = vadd.f32 %v8552, %v9250
    %v9271 = vadd.f32 %v8553, %v9252
    %v9272 = vadd.f32 %v8554, %v9254
    %v9273 = vadd.f32 %v8555, %v9256
    %v9274 = vld [vmem:[%s4] sm:$0x3]
    %v9276 = vlaneseq
    %v9277 = vshrl.u32 %v9276, 7
    %v9278 = vsub.s32 0, %v9277
    %v9279 = vrot.slane %v9274, %v9278
    %v9280 = vlaneseq
    %v9281 = vshrl.u32 %v9280, 7
    %v9282 = vsub.s32 1, %v9281
    %v9283 = vrot.slane %v9274, %v9282
    %v9286 = vadd.f32 %v9258, %v9279
    %v9287 = vadd.f32 %v9259, %v9283
    %v9288 = vadd.f32 %v9260, %v9279
    %v9289 = vadd.f32 %v9261, %v9283
    %v9290 = vadd.f32 %v9262, %v9279
    %v9291 = vadd.f32 %v9263, %v9283
    %v9292 = vadd.f32 %v9264, %v9279
    %v9293 = vadd.f32 %v9265, %v9283
    %v9294 = vadd.f32 %v9266, %v9279
    %v9295 = vadd.f32 %v9267, %v9283
    %v9296 = vadd.f32 %v9268, %v9279
    %v9297 = vadd.f32 %v9269, %v9283
    %v9298 = vadd.f32 %v9270, %v9279
    %v9299 = vadd.f32 %v9271, %v9283
    %v9300 = vadd.f32 %v9272, %v9279
    %v9301 = vadd.f32 %v9273, %v9283
    %v9302 = vmax.f32 %v9286, 0.0
    %v9303 = vmax.f32 %v9287, 0.0
    %v9304 = vmax.f32 %v9288, 0.0
    %v9305 = vmax.f32 %v9289, 0.0
    %v9306 = vmax.f32 %v9290, 0.0
    %v9307 = vmax.f32 %v9291, 0.0
    %v9308 = vmax.f32 %v9292, 0.0
    %v9309 = vmax.f32 %v9293, 0.0
    %v9310 = vmax.f32 %v9294, 0.0
    %v9311 = vmax.f32 %v9295, 0.0
    %v9312 = vmax.f32 %v9296, 0.0
    %v9313 = vmax.f32 %v9297, 0.0
    %v9314 = vmax.f32 %v9298, 0.0
    %v9315 = vmax.f32 %v9299, 0.0
    %v9316 = vmax.f32 %v9300, 0.0
    %v9317 = vmax.f32 %v9301, 0.0
    %v9318 = vpack.c.bf16 %v9304, %v9302
    %v9319 = vpack.c.bf16 %v9305, %v9303
    %v9320 = vpack.c.bf16 %v9308, %v9306
    %v9321 = vpack.c.bf16 %v9309, %v9307
    %v9322 = vpack.c.bf16 %v9312, %v9310
    %v9323 = vpack.c.bf16 %v9313, %v9311
    %v9324 = vpack.c.bf16 %v9316, %v9314
    %v9325 = vpack.c.bf16 %v9317, %v9315
    %v9334 = vcombine.low %v9318, %v9319
    %v9335 = vcombine.high %v9318, %v9319
    %v9337 = vunpack.c.l.s4 1966171168
    %v9338 = vunpack.c.0.s8 %v9337
    %v9339 = vlaneseq
    %v9340 = vshrl.u32 %v9339, 7
    %v9341 = vsub.s32 %v9338, %v9340
    %v9342 = vrot.slane %v9334, %v9341
    %v9344 = vunpack.c.l.s4 1966171168
    %v9345 = vunpack.c.0.s8 %v9344
    %v9346 = vlaneseq
    %v9347 = vshrl.u32 %v9346, 7
    %v9348 = vsub.s32 %v9345, %v9347
    %v9349 = vrot.slane %v9335, %v9348
    %v9350 = vcombine.high %v9342, %v9342
    %v9351 = vcombine.high %v9349, %v9349
    %v9353 = vunpack.c.l.s4 1966171168
    %v9354 = vunpack.c.0.s8 %v9353
    %v9355 = vlaneseq
    %v9356 = vshrl.u32 %v9355, 7
    %v9357 = vsub.s32 %v9354, %v9356
    %v9358 = vrot.slane %v9342, %v9357
    %v9360 = vunpack.c.l.s4 1966171168
    %v9361 = vunpack.c.0.s8 %v9360
    %v9362 = vlaneseq
    %v9363 = vshrl.u32 %v9362, 7
    %v9364 = vsub.s32 %v9361, %v9363
    %v9365 = vrot.slane %v9349, %v9364
    %v9367 = vunpack.c.l.s4 1966171168
    %v9368 = vunpack.c.0.s8 %v9367
    %v9369 = vlaneseq
    %v9370 = vshrl.u32 %v9369, 7
    %v9371 = vsub.s32 %v9368, %v9370
    %v9372 = vrot.slane %v9350, %v9371
    %v9374 = vunpack.c.l.s4 1966171168
    %v9375 = vunpack.c.0.s8 %v9374
    %v9376 = vlaneseq
    %v9377 = vshrl.u32 %v9376, 7
    %v9378 = vsub.s32 %v9375, %v9377
    %v9379 = vrot.slane %v9351, %v9378
    %v9380 = vcombine.high %v9358, %v9358
    %v9381 = vcombine.high %v9365, %v9365
    %v9382 = vcombine.high %v9372, %v9372
    %v9383 = vcombine.high %v9379, %v9379
    %v9384 = vcombine.low %v9320, %v9321
    %v9385 = vcombine.high %v9320, %v9321
    %v9387 = vunpack.c.l.s4 1966171168
    %v9388 = vunpack.c.0.s8 %v9387
    %v9389 = vlaneseq
    %v9390 = vshrl.u32 %v9389, 7
    %v9391 = vsub.s32 %v9388, %v9390
    %v9392 = vrot.slane %v9384, %v9391
    %v9394 = vunpack.c.l.s4 1966171168
    %v9395 = vunpack.c.0.s8 %v9394
    %v9396 = vlaneseq
    %v9397 = vshrl.u32 %v9396, 7
    %v9398 = vsub.s32 %v9395, %v9397
    %v9399 = vrot.slane %v9385, %v9398
    %v9400 = vcombine.high %v9392, %v9392
    %v9401 = vcombine.high %v9399, %v9399
    %v9403 = vunpack.c.l.s4 1966171168
    %v9404 = vunpack.c.0.s8 %v9403
    %v9405 = vlaneseq
    %v9406 = vshrl.u32 %v9405, 7
    %v9407 = vsub.s32 %v9404, %v9406
    %v9408 = vrot.slane %v9392, %v9407
    %v9410 = vunpack.c.l.s4 1966171168
    %v9411 = vunpack.c.0.s8 %v9410
    %v9412 = vlaneseq
    %v9413 = vshrl.u32 %v9412, 7
    %v9414 = vsub.s32 %v9411, %v9413
    %v9415 = vrot.slane %v9399, %v9414
    %v9417 = vunpack.c.l.s4 1966171168
    %v9418 = vunpack.c.0.s8 %v9417
    %v9419 = vlaneseq
    %v9420 = vshrl.u32 %v9419, 7
    %v9421 = vsub.s32 %v9418, %v9420
    %v9422 = vrot.slane %v9400, %v9421
    %v9424 = vunpack.c.l.s4 1966171168
    %v9425 = vunpack.c.0.s8 %v9424
    %v9426 = vlaneseq
    %v9427 = vshrl.u32 %v9426, 7
    %v9428 = vsub.s32 %v9425, %v9427
    %v9429 = vrot.slane %v9401, %v9428
    %v9430 = vcombine.high %v9408, %v9408
    %v9431 = vcombine.high %v9415, %v9415
    %v9432 = vcombine.high %v9422, %v9422
    %v9433 = vcombine.high %v9429, %v9429
    %v9434 = vcombine.low %v9322, %v9323
    %v9435 = vcombine.high %v9322, %v9323
    %v9437 = vunpack.c.l.s4 1966171168
    %v9438 = vunpack.c.0.s8 %v9437
    %v9439 = vlaneseq
    %v9440 = vshrl.u32 %v9439, 7
    %v9441 = vsub.s32 %v9438, %v9440
    %v9442 = vrot.slane %v9434, %v9441
    %v9444 = vunpack.c.l.s4 1966171168
    %v9445 = vunpack.c.0.s8 %v9444
    %v9446 = vlaneseq
    %v9447 = vshrl.u32 %v9446, 7
    %v9448 = vsub.s32 %v9445, %v9447
    %v9449 = vrot.slane %v9435, %v9448
    %v9450 = vcombine.high %v9442, %v9442
    %v9451 = vcombine.high %v9449, %v9449
    %v9453 = vunpack.c.l.s4 1966171168
    %v9454 = vunpack.c.0.s8 %v9453
    %v9455 = vlaneseq
    %v9456 = vshrl.u32 %v9455, 7
    %v9457 = vsub.s32 %v9454, %v9456
    %v9458 = vrot.slane %v9442, %v9457
    %v9460 = vunpack.c.l.s4 1966171168
    %v9461 = vunpack.c.0.s8 %v9460
    %v9462 = vlaneseq
    %v9463 = vshrl.u32 %v9462, 7
    %v9464 = vsub.s32 %v9461, %v9463
    %v9465 = vrot.slane %v9449, %v9464
    %v9467 = vunpack.c.l.s4 1966171168
    %v9468 = vunpack.c.0.s8 %v9467
    %v9469 = vlaneseq
    %v9470 = vshrl.u32 %v9469, 7
    %v9471 = vsub.s32 %v9468, %v9470
    %v9472 = vrot.slane %v9450, %v9471
    %v9474 = vunpack.c.l.s4 1966171168
    %v9475 = vunpack.c.0.s8 %v9474
    %v9476 = vlaneseq
    %v9477 = vshrl.u32 %v9476, 7
    %v9478 = vsub.s32 %v9475, %v9477
    %v9479 = vrot.slane %v9451, %v9478
    %v9480 = vcombine.high %v9458, %v9458
    %v9481 = vcombine.high %v9465, %v9465
    %v9482 = vcombine.high %v9472, %v9472
    %v9483 = vcombine.high %v9479, %v9479
    %v9484 = vcombine.low %v9324, %v9325
    %v9485 = vcombine.high %v9324, %v9325
    %v9487 = vunpack.c.l.s4 1966171168
    %v9488 = vunpack.c.0.s8 %v9487
    %v9489 = vlaneseq
    %v9490 = vshrl.u32 %v9489, 7
    %v9491 = vsub.s32 %v9488, %v9490
    %v9492 = vrot.slane %v9484, %v9491
    %v9494 = vunpack.c.l.s4 1966171168
    %v9495 = vunpack.c.0.s8 %v9494
    %v9496 = vlaneseq
    %v9497 = vshrl.u32 %v9496, 7
    %v9498 = vsub.s32 %v9495, %v9497
    %v9499 = vrot.slane %v9485, %v9498
    %v9500 = vcombine.high %v9492, %v9492
    %v9501 = vcombine.high %v9499, %v9499
    %v9503 = vunpack.c.l.s4 1966171168
    %v9504 = vunpack.c.0.s8 %v9503
    %v9505 = vlaneseq
    %v9506 = vshrl.u32 %v9505, 7
    %v9507 = vsub.s32 %v9504, %v9506
    %v9508 = vrot.slane %v9492, %v9507
    %v9510 = vunpack.c.l.s4 1966171168
    %v9511 = vunpack.c.0.s8 %v9510
    %v9512 = vlaneseq
    %v9513 = vshrl.u32 %v9512, 7
    %v9514 = vsub.s32 %v9511, %v9513
    %v9515 = vrot.slane %v9499, %v9514
    %v9517 = vunpack.c.l.s4 1966171168
    %v9518 = vunpack.c.0.s8 %v9517
    %v9519 = vlaneseq
    %v9520 = vshrl.u32 %v9519, 7
    %v9521 = vsub.s32 %v9518, %v9520
    %v9522 = vrot.slane %v9500, %v9521
    %v9524 = vunpack.c.l.s4 1966171168
    %v9525 = vunpack.c.0.s8 %v9524
    %v9526 = vlaneseq
    %v9527 = vshrl.u32 %v9526, 7
    %v9528 = vsub.s32 %v9525, %v9527
    %v9529 = vrot.slane %v9501, %v9528
    %v9530 = vcombine.high %v9508, %v9508
    %v9531 = vcombine.high %v9515, %v9515
    %v9532 = vcombine.high %v9522, %v9522
    %v9533 = vcombine.high %v9529, %v9529
    %v9567 = vshrl.u32 %v9358, 16
    %v9569 = vrot.slane %v9567, 7
    %v9570 = vrot.slane %v9569, 1
    %v9572 = vshrl.u32 %v9372, 16
    %v9574 = vrot.slane %v9572, 7
    %v9575 = vrot.slane %v9574, 1
    %v9577 = vshrl.u32 %v9380, 16
    %v9579 = vrot.slane %v9577, 7
    %v9580 = vrot.slane %v9579, 1
    %v9582 = vshrl.u32 %v9382, 16
    %v9584 = vrot.slane %v9582, 7
    %v9585 = vrot.slane %v9584, 1
    %v9587 = vshrl.u32 %v9365, 16
    %v9589 = vrot.slane %v9587, 7
    %v9590 = vrot.slane %v9589, 1
    %v9592 = vshrl.u32 %v9379, 16
    %v9594 = vrot.slane %v9592, 7
    %v9595 = vrot.slane %v9594, 1
    %v9597 = vshrl.u32 %v9381, 16
    %v9599 = vrot.slane %v9597, 7
    %v9600 = vrot.slane %v9599, 1
    %v9602 = vshrl.u32 %v9383, 16
    %v9604 = vrot.slane %v9602, 7
    %v9605 = vrot.slane %v9604, 1
    %v9607 = vshrl.u32 %v9408, 16
    %v9609 = vrot.slane %v9607, 7
    %v9610 = vrot.slane %v9609, 1
    %v9612 = vshrl.u32 %v9422, 16
    %v9614 = vrot.slane %v9612, 7
    %v9615 = vrot.slane %v9614, 1
    %v9617 = vshrl.u32 %v9430, 16
    %v9619 = vrot.slane %v9617, 7
    %v9620 = vrot.slane %v9619, 1
    %v9622 = vshrl.u32 %v9432, 16
    %v9624 = vrot.slane %v9622, 7
    %v9625 = vrot.slane %v9624, 1
    %v9627 = vshrl.u32 %v9415, 16
    %v9629 = vrot.slane %v9627, 7
    %v9630 = vrot.slane %v9629, 1
    %v9632 = vshrl.u32 %v9429, 16
    %v9634 = vrot.slane %v9632, 7
    %v9635 = vrot.slane %v9634, 1
    %v9637 = vshrl.u32 %v9431, 16
    %v9639 = vrot.slane %v9637, 7
    %v9640 = vrot.slane %v9639, 1
    %v9642 = vshrl.u32 %v9433, 16
    %v9644 = vrot.slane %v9642, 7
    %v9645 = vrot.slane %v9644, 1
    %v9647 = vshrl.u32 %v9458, 16
    %v9649 = vrot.slane %v9647, 7
    %v9650 = vrot.slane %v9649, 1
    %v9652 = vshrl.u32 %v9472, 16
    %v9654 = vrot.slane %v9652, 7
    %v9655 = vrot.slane %v9654, 1
    %v9657 = vshrl.u32 %v9480, 16
    %v9659 = vrot.slane %v9657, 7
    %v9660 = vrot.slane %v9659, 1
    %v9662 = vshrl.u32 %v9482, 16
    %v9664 = vrot.slane %v9662, 7
    %v9665 = vrot.slane %v9664, 1
    %v9667 = vshrl.u32 %v9465, 16
    %v9669 = vrot.slane %v9667, 7
    %v9670 = vrot.slane %v9669, 1
    %v9672 = vshrl.u32 %v9479, 16
    %v9674 = vrot.slane %v9672, 7
    %v9675 = vrot.slane %v9674, 1
    %v9677 = vshrl.u32 %v9481, 16
    %v9679 = vrot.slane %v9677, 7
    %v9680 = vrot.slane %v9679, 1
    %v9682 = vshrl.u32 %v9483, 16
    %v9684 = vrot.slane %v9682, 7
    %v9685 = vrot.slane %v9684, 1
    %v9687 = vshrl.u32 %v9508, 16
    %v9689 = vrot.slane %v9687, 7
    %v9690 = vrot.slane %v9689, 1
    %v9692 = vshrl.u32 %v9522, 16
    %v9694 = vrot.slane %v9692, 7
    %v9695 = vrot.slane %v9694, 1
    %v9697 = vshrl.u32 %v9530, 16
    %v9699 = vrot.slane %v9697, 7
    %v9700 = vrot.slane %v9699, 1
    %v9702 = vshrl.u32 %v9532, 16
    %v9704 = vrot.slane %v9702, 7
    %v9705 = vrot.slane %v9704, 1
    %v9707 = vshrl.u32 %v9515, 16
    %v9709 = vrot.slane %v9707, 7
    %v9710 = vrot.slane %v9709, 1
    %v9712 = vshrl.u32 %v9529, 16
    %v9714 = vrot.slane %v9712, 7
    %v9715 = vrot.slane %v9714, 1
    %v9717 = vshrl.u32 %v9531, 16
    %v9719 = vrot.slane %v9717, 7
    %v9720 = vrot.slane %v9719, 1
    %v9722 = vshrl.u32 %v9533, 16
    %v9724 = vrot.slane %v9722, 7
    %v9725 = vrot.slane %v9724, 1
    %v9758 = vmax.bf16 %v9358, %v9570
    %v9759 = vmax.bf16 %v9372, %v9575
    %v9760 = vmax.bf16 %v9380, %v9580
    %v9761 = vmax.bf16 %v9382, %v9585
    %v9762 = vmax.bf16 %v9365, %v9590
    %v9763 = vmax.bf16 %v9379, %v9595
    %v9764 = vmax.bf16 %v9381, %v9600
    %v9765 = vmax.bf16 %v9383, %v9605
    %v9766 = vmax.bf16 %v9408, %v9610
    %v9767 = vmax.bf16 %v9422, %v9615
    %v9768 = vmax.bf16 %v9430, %v9620
    %v9769 = vmax.bf16 %v9432, %v9625
    %v9770 = vmax.bf16 %v9415, %v9630
    %v9771 = vmax.bf16 %v9429, %v9635
    %v9772 = vmax.bf16 %v9431, %v9640
    %v9773 = vmax.bf16 %v9433, %v9645
    %v9774 = vmax.bf16 %v9458, %v9650
    %v9775 = vmax.bf16 %v9472, %v9655
    %v9776 = vmax.bf16 %v9480, %v9660
    %v9777 = vmax.bf16 %v9482, %v9665
    %v9778 = vmax.bf16 %v9465, %v9670
    %v9779 = vmax.bf16 %v9479, %v9675
    %v9780 = vmax.bf16 %v9481, %v9680
    %v9781 = vmax.bf16 %v9483, %v9685
    %v9782 = vmax.bf16 %v9508, %v9690
    %v9783 = vmax.bf16 %v9522, %v9695
    %v9784 = vmax.bf16 %v9530, %v9700
    %v9785 = vmax.bf16 %v9532, %v9705
    %v9786 = vmax.bf16 %v9515, %v9710
    %v9787 = vmax.bf16 %v9529, %v9715
    %v9788 = vmax.bf16 %v9531, %v9720
    %v9789 = vmax.bf16 %v9533, %v9725
    %9822 = vrot.lane.b32.xlu0 %v9758, 108
    %v9823 = vpop.permute.xlu0 %9822
    %9824 = vrot.lane.b32.xlu0 %v9759, 108
    %v9825 = vpop.permute.xlu0 %9824
    %9826 = vrot.lane.b32.xlu0 %v9760, 108
    %v9827 = vpop.permute.xlu0 %9826
    %9828 = vrot.lane.b32.xlu0 %v9761, 108
    %v9829 = vpop.permute.xlu0 %9828
    %9830 = vrot.lane.b32.xlu0 %v9762, 108
    %v9831 = vpop.permute.xlu0 %9830
    %9832 = vrot.lane.b32.xlu0 %v9763, 108
    %v9833 = vpop.permute.xlu0 %9832
    %9834 = vrot.lane.b32.xlu0 %v9764, 108
    %v9835 = vpop.permute.xlu0 %9834
    %9836 = vrot.lane.b32.xlu0 %v9765, 108
    %v9837 = vpop.permute.xlu0 %9836
    %9838 = vrot.lane.b32.xlu0 %v9766, 108
    %v9839 = vpop.permute.xlu0 %9838
    %9840 = vrot.lane.b32.xlu0 %v9767, 108
    %v9841 = vpop.permute.xlu0 %9840
    %9842 = vrot.lane.b32.xlu0 %v9768, 108
    %v9843 = vpop.permute.xlu0 %9842
    %9844 = vrot.lane.b32.xlu0 %v9769, 108
    %v9845 = vpop.permute.xlu0 %9844
    %9846 = vrot.lane.b32.xlu0 %v9770, 108
    %v9847 = vpop.permute.xlu0 %9846
    %9848 = vrot.lane.b32.xlu0 %v9771, 108
    %v9849 = vpop.permute.xlu0 %9848
    %9850 = vrot.lane.b32.xlu0 %v9772, 108
    %v9851 = vpop.permute.xlu0 %9850
    %9852 = vrot.lane.b32.xlu0 %v9773, 108
    %v9853 = vpop.permute.xlu0 %9852
    %9854 = vrot.lane.b32.xlu0 %v9774, 108
    %v9855 = vpop.permute.xlu0 %9854
    %9856 = vrot.lane.b32.xlu0 %v9775, 108
    %v9857 = vpop.permute.xlu0 %9856
    %9858 = vrot.lane.b32.xlu0 %v9776, 108
    %v9859 = vpop.permute.xlu0 %9858
    %9860 = vrot.lane.b32.xlu0 %v9777, 108
    %v9861 = vpop.permute.xlu0 %9860
    %9862 = vrot.lane.b32.xlu0 %v9778, 108
    %v9863 = vpop.permute.xlu0 %9862
    %9864 = vrot.lane.b32.xlu0 %v9779, 108
    %v9865 = vpop.permute.xlu0 %9864
    %9866 = vrot.lane.b32.xlu0 %v9780, 108
    %v9867 = vpop.permute.xlu0 %9866
    %9868 = vrot.lane.b32.xlu0 %v9781, 108
    %v9869 = vpop.permute.xlu0 %9868
    %9870 = vrot.lane.b32.xlu0 %v9782, 108
    %v9871 = vpop.permute.xlu0 %9870
    %9872 = vrot.lane.b32.xlu0 %v9783, 108
    %v9873 = vpop.permute.xlu0 %9872
    %9874 = vrot.lane.b32.xlu0 %v9784, 108
    %v9875 = vpop.permute.xlu0 %9874
    %9876 = vrot.lane.b32.xlu0 %v9785, 108
    %v9877 = vpop.permute.xlu0 %9876
    %9878 = vrot.lane.b32.xlu0 %v9786, 108
    %v9879 = vpop.permute.xlu0 %9878
    %9880 = vrot.lane.b32.xlu0 %v9787, 108
    %v9881 = vpop.permute.xlu0 %9880
    %9882 = vrot.lane.b32.xlu0 %v9788, 108
    %v9883 = vpop.permute.xlu0 %9882
    %9884 = vrot.lane.b32.xlu0 %v9789, 108
    %v9885 = vpop.permute.xlu0 %9884
    %v9886 = vrot.slane %v9823, 1
    %v9887 = vrot.slane %v9825, 1
    %v9888 = vrot.slane %v9827, 1
    %v9889 = vrot.slane %v9829, 1
    %v9890 = vrot.slane %v9831, 1
    %v9891 = vrot.slane %v9833, 1
    %v9892 = vrot.slane %v9835, 1
    %v9893 = vrot.slane %v9837, 1
    %v9894 = vrot.slane %v9839, 1
    %v9895 = vrot.slane %v9841, 1
    %v9896 = vrot.slane %v9843, 1
    %v9897 = vrot.slane %v9845, 1
    %v9898 = vrot.slane %v9847, 1
    %v9899 = vrot.slane %v9849, 1
    %v9900 = vrot.slane %v9851, 1
    %v9901 = vrot.slane %v9853, 1
    %v9902 = vrot.slane %v9855, 1
    %v9903 = vrot.slane %v9857, 1
    %v9904 = vrot.slane %v9859, 1
    %v9905 = vrot.slane %v9861, 1
    %v9906 = vrot.slane %v9863, 1
    %v9907 = vrot.slane %v9865, 1
    %v9908 = vrot.slane %v9867, 1
    %v9909 = vrot.slane %v9869, 1
    %v9910 = vrot.slane %v9871, 1
    %v9911 = vrot.slane %v9873, 1
    %v9912 = vrot.slane %v9875, 1
    %v9913 = vrot.slane %v9877, 1
    %v9914 = vrot.slane %v9879, 1
    %v9915 = vrot.slane %v9881, 1
    %v9916 = vrot.slane %v9883, 1
    %v9917 = vrot.slane %v9885, 1
    %vm9918 = vcmask 883712
    %v9919 = vsel %vm9918, %v9823, %v9886
    %v9920 = vsel %vm9918, %v9825, %v9887
    %v9921 = vsel %vm9918, %v9827, %v9888
    %v9922 = vsel %vm9918, %v9829, %v9889
    %v9923 = vsel %vm9918, %v9831, %v9890
    %v9924 = vsel %vm9918, %v9833, %v9891
    %v9925 = vsel %vm9918, %v9835, %v9892
    %v9926 = vsel %vm9918, %v9837, %v9893
    %v9927 = vsel %vm9918, %v9839, %v9894
    %v9928 = vsel %vm9918, %v9841, %v9895
    %v9929 = vsel %vm9918, %v9843, %v9896
    %v9930 = vsel %vm9918, %v9845, %v9897
    %v9931 = vsel %vm9918, %v9847, %v9898
    %v9932 = vsel %vm9918, %v9849, %v9899
    %v9933 = vsel %vm9918, %v9851, %v9900
    %v9934 = vsel %vm9918, %v9853, %v9901
    %v9935 = vsel %vm9918, %v9855, %v9902
    %v9936 = vsel %vm9918, %v9857, %v9903
    %v9937 = vsel %vm9918, %v9859, %v9904
    %v9938 = vsel %vm9918, %v9861, %v9905
    %v9939 = vsel %vm9918, %v9863, %v9906
    %v9940 = vsel %vm9918, %v9865, %v9907
    %v9941 = vsel %vm9918, %v9867, %v9908
    %v9942 = vsel %vm9918, %v9869, %v9909
    %v9943 = vsel %vm9918, %v9871, %v9910
    %v9944 = vsel %vm9918, %v9873, %v9911
    %v9945 = vsel %vm9918, %v9875, %v9912
    %v9946 = vsel %vm9918, %v9877, %v9913
    %v9947 = vsel %vm9918, %v9879, %v9914
    %v9948 = vsel %vm9918, %v9881, %v9915
    %v9949 = vsel %vm9918, %v9883, %v9916
    %v9950 = vsel %vm9918, %v9885, %v9917
    %v9983 = vmax.bf16 %v9758, %v9919
    %v9984 = vmax.bf16 %v9759, %v9920
    %v9985 = vmax.bf16 %v9760, %v9921
    %v9986 = vmax.bf16 %v9761, %v9922
    %v9987 = vmax.bf16 %v9762, %v9923
    %v9988 = vmax.bf16 %v9763, %v9924
    %v9989 = vmax.bf16 %v9764, %v9925
    %v9990 = vmax.bf16 %v9765, %v9926
    %v9991 = vmax.bf16 %v9766, %v9927
    %v9992 = vmax.bf16 %v9767, %v9928
    %v9993 = vmax.bf16 %v9768, %v9929
    %v9994 = vmax.bf16 %v9769, %v9930
    %v9995 = vmax.bf16 %v9770, %v9931
    %v9996 = vmax.bf16 %v9771, %v9932
    %v9997 = vmax.bf16 %v9772, %v9933
    %v9998 = vmax.bf16 %v9773, %v9934
    %v9999 = vmax.bf16 %v9774, %v9935
    %v10000 = vmax.bf16 %v9775, %v9936
    %v10001 = vmax.bf16 %v9776, %v9937
    %v10002 = vmax.bf16 %v9777, %v9938
    %v10003 = vmax.bf16 %v9778, %v9939
    %v10004 = vmax.bf16 %v9779, %v9940
    %v10005 = vmax.bf16 %v9780, %v9941
    %v10006 = vmax.bf16 %v9781, %v9942
    %v10007 = vmax.bf16 %v9782, %v9943
    %v10008 = vmax.bf16 %v9783, %v9944
    %v10009 = vmax.bf16 %v9784, %v9945
    %v10010 = vmax.bf16 %v9785, %v9946
    %v10011 = vmax.bf16 %v9786, %v9947
    %v10012 = vmax.bf16 %v9787, %v9948
    %v10013 = vmax.bf16 %v9788, %v9949
    %v10014 = vmax.bf16 %v9789, %v9950
    %v10015 = vld [vmem:[%s5] sm:$0xf]
    %v10016 = vld [vmem:[%s5 + $0x4] sm:$0xf]
    %v10017 = vld [vmem:[%s5 + $0x8] sm:$0xf]
    %v10018 = vld [vmem:[%s5 + $0xc] sm:$0xf]
    %v10019 = vld [vmem:[%s5 + $0x10] sm:$0xf]
    %v10020 = vld [vmem:[%s5 + $0x14] sm:$0xf]
    %v10021 = vld [vmem:[%s5 + $0x18] sm:$0xf]
    %v10022 = vld [vmem:[%s5 + $0x1c] sm:$0xf]
    %v10023 = vld [vmem:[%s5 + $0x20] sm:$0xf]
    %v10024 = vld [vmem:[%s5 + $0x24] sm:$0xf]
    %v10025 = vld [vmem:[%s5 + $0x28] sm:$0xf]
    %v10026 = vld [vmem:[%s5 + $0x2c] sm:$0xf]
    %v10027 = vld [vmem:[%s5 + $0x30] sm:$0xf]
    %v10028 = vld [vmem:[%s5 + $0x34] sm:$0xf]
    %v10029 = vld [vmem:[%s5 + $0x38] sm:$0xf]
    %v10030 = vld [vmem:[%s5 + $0x3c] sm:$0xf]
    %v10031 = vld [vmem:[%s5 + $0x40] sm:$0xf]
    %v10032 = vld [vmem:[%s5 + $0x44] sm:$0x3]
    %s10033 = scalar_lea.vmem %s5, 72
    %v10034 = vld [vmem:[%s10033] sm:$0xf]
    %v10035 = vld [vmem:[%s10033 + $0x4] sm:$0xf]
    %v10036 = vld [vmem:[%s10033 + $0x8] sm:$0xf]
    %v10037 = vld [vmem:[%s10033 + $0xc] sm:$0xf]
    %v10038 = vld [vmem:[%s10033 + $0x10] sm:$0xf]
    %v10039 = vld [vmem:[%s10033 + $0x14] sm:$0xf]
    %v10040 = vld [vmem:[%s10033 + $0x18] sm:$0xf]
    %v10041 = vld [vmem:[%s10033 + $0x1c] sm:$0xf]
    %v10042 = vld [vmem:[%s10033 + $0x20] sm:$0xf]
    %v10043 = vld [vmem:[%s10033 + $0x24] sm:$0xf]
    %v10044 = vld [vmem:[%s10033 + $0x28] sm:$0xf]
    %v10045 = vld [vmem:[%s10033 + $0x2c] sm:$0xf]
    %v10046 = vld [vmem:[%s10033 + $0x30] sm:$0xf]
    %v10047 = vld [vmem:[%s10033 + $0x34] sm:$0xf]
    %v10048 = vld [vmem:[%s10033 + $0x38] sm:$0xf]
    %v10049 = vld [vmem:[%s10033 + $0x3c] sm:$0xf]
    %v10050 = vld [vmem:[%s10033 + $0x40] sm:$0xf]
    %v10051 = vld [vmem:[%s10033 + $0x44] sm:$0x3]
    %v10061 = vunpack.c.l.s4 1966171168
    %v10062 = vunpack.c.0.s8 %v10061
    %v10063 = vlaneseq
    %v10064 = vshrl.u32 %v10063, 7
    %v10065 = vsub.s32 %v10062, %v10064
    %v10066 = vrot.slane %v9984, %v10065
    %v10067 = vcombine.high %v10066, %v10066
    %v10069 = vunpack.c.l.s4 1966171168
    %v10070 = vunpack.c.0.s8 %v10069
    %v10071 = vlaneseq
    %v10072 = vshrl.u32 %v10071, 7
    %v10073 = vsub.s32 %v10070, %v10072
    %v10074 = vrot.slane %v10066, %v10073
    %v10076 = vunpack.c.l.s4 1966171168
    %v10077 = vunpack.c.0.s8 %v10076
    %v10078 = vlaneseq
    %v10079 = vshrl.u32 %v10078, 7
    %v10080 = vsub.s32 %v10077, %v10079
    %v10081 = vrot.slane %v10067, %v10080
    %v10083 = vunpack.c.l.s4 1966171168
    %v10084 = vunpack.c.0.s8 %v10083
    %v10085 = vlaneseq
    %v10086 = vshrl.u32 %v10085, 7
    %v10087 = vsub.s32 %v10084, %v10086
    %v10088 = vrot.slane %v9988, %v10087
    %v10089 = vcombine.high %v10088, %v10088
    %v10091 = vunpack.c.l.s4 1966171168
    %v10092 = vunpack.c.0.s8 %v10091
    %v10093 = vlaneseq
    %v10094 = vshrl.u32 %v10093, 7
    %v10095 = vsub.s32 %v10092, %v10094
    %v10096 = vrot.slane %v10088, %v10095
    %v10098 = vunpack.c.l.s4 1966171168
    %v10099 = vunpack.c.0.s8 %v10098
    %v10100 = vlaneseq
    %v10101 = vshrl.u32 %v10100, 7
    %v10102 = vsub.s32 %v10099, %v10101
    %v10103 = vrot.slane %v10089, %v10102
    %v10105 = vunpack.c.l.s4 1966171168
    %v10106 = vunpack.c.0.s8 %v10105
    %v10107 = vlaneseq
    %v10108 = vshrl.u32 %v10107, 7
    %v10109 = vsub.s32 %v10106, %v10108
    %v10110 = vrot.slane %v9992, %v10109
    %v10111 = vcombine.high %v10110, %v10110
    %v10113 = vunpack.c.l.s4 1966171168
    %v10114 = vunpack.c.0.s8 %v10113
    %v10115 = vlaneseq
    %v10116 = vshrl.u32 %v10115, 7
    %v10117 = vsub.s32 %v10114, %v10116
    %v10118 = vrot.slane %v10110, %v10117
    %v10120 = vunpack.c.l.s4 1966171168
    %v10121 = vunpack.c.0.s8 %v10120
    %v10122 = vlaneseq
    %v10123 = vshrl.u32 %v10122, 7
    %v10124 = vsub.s32 %v10121, %v10123
    %v10125 = vrot.slane %v10111, %v10124
    %v10127 = vunpack.c.l.s4 1966171168
    %v10128 = vunpack.c.0.s8 %v10127
    %v10129 = vlaneseq
    %v10130 = vshrl.u32 %v10129, 7
    %v10131 = vsub.s32 %v10128, %v10130
    %v10132 = vrot.slane %v9996, %v10131
    %v10133 = vcombine.high %v10132, %v10132
    %v10135 = vunpack.c.l.s4 1966171168
    %v10136 = vunpack.c.0.s8 %v10135
    %v10137 = vlaneseq
    %v10138 = vshrl.u32 %v10137, 7
    %v10139 = vsub.s32 %v10136, %v10138
    %v10140 = vrot.slane %v10132, %v10139
    %v10142 = vunpack.c.l.s4 1966171168
    %v10143 = vunpack.c.0.s8 %v10142
    %v10144 = vlaneseq
    %v10145 = vshrl.u32 %v10144, 7
    %v10146 = vsub.s32 %v10143, %v10145
    %v10147 = vrot.slane %v10133, %v10146
    %v10149 = vunpack.c.l.s4 1966171168
    %v10150 = vunpack.c.0.s8 %v10149
    %v10151 = vlaneseq
    %v10152 = vshrl.u32 %v10151, 7
    %v10153 = vsub.s32 %v10150, %v10152
    %v10154 = vrot.slane %v10000, %v10153
    %v10155 = vcombine.high %v10154, %v10154
    %v10157 = vunpack.c.l.s4 1966171168
    %v10158 = vunpack.c.0.s8 %v10157
    %v10159 = vlaneseq
    %v10160 = vshrl.u32 %v10159, 7
    %v10161 = vsub.s32 %v10158, %v10160
    %v10162 = vrot.slane %v10154, %v10161
    %v10164 = vunpack.c.l.s4 1966171168
    %v10165 = vunpack.c.0.s8 %v10164
    %v10166 = vlaneseq
    %v10167 = vshrl.u32 %v10166, 7
    %v10168 = vsub.s32 %v10165, %v10167
    %v10169 = vrot.slane %v10155, %v10168
    %v10171 = vunpack.c.l.s4 1966171168
    %v10172 = vunpack.c.0.s8 %v10171
    %v10173 = vlaneseq
    %v10174 = vshrl.u32 %v10173, 7
    %v10175 = vsub.s32 %v10172, %v10174
    %v10176 = vrot.slane %v10004, %v10175
    %v10177 = vcombine.high %v10176, %v10176
    %v10179 = vunpack.c.l.s4 1966171168
    %v10180 = vunpack.c.0.s8 %v10179
    %v10181 = vlaneseq
    %v10182 = vshrl.u32 %v10181, 7
    %v10183 = vsub.s32 %v10180, %v10182
    %v10184 = vrot.slane %v10176, %v10183
    %v10186 = vunpack.c.l.s4 1966171168
    %v10187 = vunpack.c.0.s8 %v10186
    %v10188 = vlaneseq
    %v10189 = vshrl.u32 %v10188, 7
    %v10190 = vsub.s32 %v10187, %v10189
    %v10191 = vrot.slane %v10177, %v10190
    %v10193 = vunpack.c.l.s4 1966171168
    %v10194 = vunpack.c.0.s8 %v10193
    %v10195 = vlaneseq
    %v10196 = vshrl.u32 %v10195, 7
    %v10197 = vsub.s32 %v10194, %v10196
    %v10198 = vrot.slane %v10008, %v10197
    %v10199 = vcombine.high %v10198, %v10198
    %v10201 = vunpack.c.l.s4 1966171168
    %v10202 = vunpack.c.0.s8 %v10201
    %v10203 = vlaneseq
    %v10204 = vshrl.u32 %v10203, 7
    %v10205 = vsub.s32 %v10202, %v10204
    %v10206 = vrot.slane %v10198, %v10205
    %v10208 = vunpack.c.l.s4 1966171168
    %v10209 = vunpack.c.0.s8 %v10208
    %v10210 = vlaneseq
    %v10211 = vshrl.u32 %v10210, 7
    %v10212 = vsub.s32 %v10209, %v10211
    %v10213 = vrot.slane %v10199, %v10212
    %v10215 = vunpack.c.l.s4 1966171168
    %v10216 = vunpack.c.0.s8 %v10215
    %v10217 = vlaneseq
    %v10218 = vshrl.u32 %v10217, 7
    %v10219 = vsub.s32 %v10216, %v10218
    %v10220 = vrot.slane %v10012, %v10219
    %v10221 = vcombine.high %v10220, %v10220
    %v10223 = vunpack.c.l.s4 1966171168
    %v10224 = vunpack.c.0.s8 %v10223
    %v10225 = vlaneseq
    %v10226 = vshrl.u32 %v10225, 7
    %v10227 = vsub.s32 %v10224, %v10226
    %v10228 = vrot.slane %v10220, %v10227
    %v10230 = vunpack.c.l.s4 1966171168
    %v10231 = vunpack.c.0.s8 %v10230
    %v10232 = vlaneseq
    %v10233 = vshrl.u32 %v10232, 7
    %v10234 = vsub.s32 %v10231, %v10233
    %v10235 = vrot.slane %v10221, %v10234
    %v10236 = vunpack.c.l.b16 %v10074
    %v10237 = vunpack.c.l.b16 %v10081
    %v10238 = vunpack.c.l.b16 %v10096
    %v10239 = vunpack.c.l.b16 %v10103
    %v10240 = vunpack.c.l.b16 %v10118
    %v10241 = vunpack.c.l.b16 %v10125
    %v10242 = vunpack.c.l.b16 %v10140
    %v10243 = vunpack.c.l.b16 %v10147
    %v10244 = vunpack.c.l.b16 %v10162
    %v10245 = vunpack.c.l.b16 %v10169
    %v10246 = vunpack.c.l.b16 %v10184
    %v10247 = vunpack.c.l.b16 %v10191
    %v10248 = vunpack.c.l.b16 %v10206
    %v10249 = vunpack.c.l.b16 %v10213
    %v10250 = vunpack.c.l.b16 %v10228
    %v10251 = vunpack.c.l.b16 %v10235
    %v10252 = vrot.slane %v10238, 7
    %v10253 = vsel %vm5968, %v10252, %v10236
    %v10254 = vrot.slane %v10240, 6
    %v10255 = vsel %vm5971, %v10254, %v10253
    %v10256 = vrot.slane %v10242, 5
    %v10257 = vsel %vm5974, %v10256, %v10255
    %v10258 = vrot.slane %v10244, 4
    %v10259 = vsel %vm5977, %v10258, %v10257
    %v10260 = vrot.slane %v10246, 3
    %v10261 = vsel %vm5980, %v10260, %v10259
    %v10262 = vrot.slane %v10248, 2
    %v10263 = vsel %vm5983, %v10262, %v10261
    %v10264 = vrot.slane %v10250, 1
    %v10265 = vsel %vm5986, %v10264, %v10263
    %v10266 = vrot.slane %v10239, 7
    %v10267 = vsel %vm5968, %v10266, %v10237
    %v10268 = vrot.slane %v10241, 6
    %v10269 = vsel %vm5971, %v10268, %v10267
    %v10270 = vrot.slane %v10243, 5
    %v10271 = vsel %vm5974, %v10270, %v10269
    %v10272 = vrot.slane %v10245, 4
    %v10273 = vsel %vm5977, %v10272, %v10271
    %v10274 = vrot.slane %v10247, 3
    %v10275 = vsel %vm5980, %v10274, %v10273
    %v10276 = vrot.slane %v10249, 2
    %v10277 = vsel %vm5983, %v10276, %v10275
    %v10278 = vrot.slane %v10251, 1
    %v10279 = vsel %vm5986, %v10278, %v10277
    %v10280 = vpack.c.b16 %v10265, %v10265
    %v10281 = vpack.c.b16 %v10279, %v10279
    %v10301 = vunpack.c.l.b16 %v10034
    %v10302 = vunpack.c.l.b16 %v10035
    %v10303 = vunpack.c.l.b16 %v10036
    %v10304 = vunpack.c.l.b16 %v10037
    %v10305 = vunpack.c.l.b16 %v10038
    %v10306 = vunpack.c.l.b16 %v10039
    %v10307 = vunpack.c.l.b16 %v10040
    %v10308 = vunpack.c.l.b16 %v10041
    %v10309 = vunpack.c.l.b16 %v10042
    %v10310 = vunpack.c.l.b16 %v10043
    %v10311 = vunpack.c.l.b16 %v10044
    %v10312 = vunpack.c.l.b16 %v10045
    %v10313 = vunpack.c.l.b16 %v10046
    %v10314 = vunpack.c.l.b16 %v10047
    %v10315 = vunpack.c.l.b16 %v10048
    %v10316 = vunpack.c.l.b16 %v10049
    %v10317 = vunpack.c.l.b16 %v10050
    %v10318 = vunpack.c.l.b16 %v10051
    %v10319 = vpack.c.b16 %v10302, %v10301
    %v10320 = vpack.c.b16 %v10304, %v10303
    %v10321 = vpack.c.b16 %v10306, %v10305
    %v10322 = vpack.c.b16 %v10308, %v10307
    %v10323 = vpack.c.b16 %v10310, %v10309
    %v10324 = vpack.c.b16 %v10312, %v10311
    %v10325 = vpack.c.b16 %v10314, %v10313
    %v10326 = vpack.c.b16 %v10316, %v10315
    %v10327 = vpack.c.b16 %v10318, %v10317
    %vm10336 = vcmask 97280
    %v10338 = vsel %vm10336, %v10281, 0
    %v10341 = vsel %vm435, %v10327, 0
    %10343 = vmatprep.subr.bf16.mxu0 0
    %10344 = vmatpush1.bf16.msra.mxu0 %v10319
    %10345 = vmatprep.subr.bf16.mxu0 0
    %10346 = vmatpush1.bf16.msra.mxu0 %v10320
    %10347 = vmatprep.subr.bf16.mxu0 0
    %10348 = vmatpush1.bf16.msra.mxu0 %v10321
    %10349 = vmatprep.subr.bf16.mxu0 0
    %10350 = vmatpush1.bf16.msra.mxu0 %v10322
    %10351 = vmatprep.subr.bf16.mxu0 0
    %10352 = vmatpush1.bf16.msra.mxu0 %v10323
    %10353 = vmatprep.subr.bf16.mxu0 0
    %10354 = vmatpush1.bf16.msra.mxu0 %v10324
    %10355 = vmatprep.subr.bf16.mxu0 0
    %10356 = vmatpush1.bf16.msra.mxu0 %v10325
    %10357 = vmatprep.subr.bf16.mxu0 0
    %10358 = vmatpush1.bf16.msra.mxu0 %v10326
    %10359 = vmatprep.subr.bf16.mxu0 0
    %10360 = vmatpush1.bf16.msra.mxu0 %v10341
    %10361 = vmatprep.subr.bf16.mxu0 0
    %10362 = vmatpush1.bf16.msra.mxu0 0
    %10363 = vmatprep.subr.bf16.mxu0 0
    %10364 = vmatpush1.bf16.msra.mxu0 0
    %10365 = vmatprep.subr.bf16.mxu0 0
    %10366 = vmatpush1.bf16.msra.mxu0 0
    %10367 = vmatprep.subr.bf16.mxu0 0
    %10368 = vmatpush1.bf16.msra.mxu0 0
    %10369 = vmatprep.subr.bf16.mxu0 0
    %10370 = vmatpush1.bf16.msra.mxu0 0
    %10371 = vmatprep.subr.bf16.mxu0 0
    %10372 = vmatpush1.bf16.msra.mxu0 0
    %10373 = vmatprep.subr.bf16.mxu0 0
    %10374 = vmatpush1.bf16.msra.mxu0 0
    %10375 = vmatprep.mubr.bf16.mxu0 %v10338
    %10376 = vmatmul.mubr.bf16.gmra.mrb[0].mxu0 %v10280
    %v10377 = vpop.f32.mrb[0].mxu0
    %v10378 = vadd.f32 0.0, %v10377
    %v10379 = vpop.f32.mrb[0].mxu0
    %v10380 = vpop.f32.mrb[0].mxu0
    %v10381 = vpop.f32.mrb[0].mxu0
    %10382 = vdwg.mxu0
    %v10392 = vunpack.c.l.s4 1966171168
    %v10393 = vunpack.c.0.s8 %v10392
    %v10394 = vlaneseq
    %v10395 = vshrl.u32 %v10394, 7
    %v10396 = vsub.s32 %v10393, %v10395
    %v10397 = vrot.slane %v9983, %v10396
    %v10398 = vcombine.high %v10397, %v10397
    %v10400 = vunpack.c.l.s4 1966171168
    %v10401 = vunpack.c.0.s8 %v10400
    %v10402 = vlaneseq
    %v10403 = vshrl.u32 %v10402, 7
    %v10404 = vsub.s32 %v10401, %v10403
    %v10405 = vrot.slane %v10397, %v10404
    %v10407 = vunpack.c.l.s4 1966171168
    %v10408 = vunpack.c.0.s8 %v10407
    %v10409 = vlaneseq
    %v10410 = vshrl.u32 %v10409, 7
    %v10411 = vsub.s32 %v10408, %v10410
    %v10412 = vrot.slane %v10398, %v10411
    %v10414 = vunpack.c.l.s4 1966171168
    %v10415 = vunpack.c.0.s8 %v10414
    %v10416 = vlaneseq
    %v10417 = vshrl.u32 %v10416, 7
    %v10418 = vsub.s32 %v10415, %v10417
    %v10419 = vrot.slane %v9987, %v10418
    %v10420 = vcombine.high %v10419, %v10419
    %v10422 = vunpack.c.l.s4 1966171168
    %v10423 = vunpack.c.0.s8 %v10422
    %v10424 = vlaneseq
    %v10425 = vshrl.u32 %v10424, 7
    %v10426 = vsub.s32 %v10423, %v10425
    %v10427 = vrot.slane %v10419, %v10426
    %v10429 = vunpack.c.l.s4 1966171168
    %v10430 = vunpack.c.0.s8 %v10429
    %v10431 = vlaneseq
    %v10432 = vshrl.u32 %v10431, 7
    %v10433 = vsub.s32 %v10430, %v10432
    %v10434 = vrot.slane %v10420, %v10433
    %v10436 = vunpack.c.l.s4 1966171168
    %v10437 = vunpack.c.0.s8 %v10436
    %v10438 = vlaneseq
    %v10439 = vshrl.u32 %v10438, 7
    %v10440 = vsub.s32 %v10437, %v10439
    %v10441 = vrot.slane %v9991, %v10440
    %v10442 = vcombine.high %v10441, %v10441
    %v10444 = vunpack.c.l.s4 1966171168
    %v10445 = vunpack.c.0.s8 %v10444
    %v10446 = vlaneseq
    %v10447 = vshrl.u32 %v10446, 7
    %v10448 = vsub.s32 %v10445, %v10447
    %v10449 = vrot.slane %v10441, %v10448
    %v10451 = vunpack.c.l.s4 1966171168
    %v10452 = vunpack.c.0.s8 %v10451
    %v10453 = vlaneseq
    %v10454 = vshrl.u32 %v10453, 7
    %v10455 = vsub.s32 %v10452, %v10454
    %v10456 = vrot.slane %v10442, %v10455
    %v10458 = vunpack.c.l.s4 1966171168
    %v10459 = vunpack.c.0.s8 %v10458
    %v10460 = vlaneseq
    %v10461 = vshrl.u32 %v10460, 7
    %v10462 = vsub.s32 %v10459, %v10461
    %v10463 = vrot.slane %v9995, %v10462
    %v10464 = vcombine.high %v10463, %v10463
    %v10466 = vunpack.c.l.s4 1966171168
    %v10467 = vunpack.c.0.s8 %v10466
    %v10468 = vlaneseq
    %v10469 = vshrl.u32 %v10468, 7
    %v10470 = vsub.s32 %v10467, %v10469
    %v10471 = vrot.slane %v10463, %v10470
    %v10473 = vunpack.c.l.s4 1966171168
    %v10474 = vunpack.c.0.s8 %v10473
    %v10475 = vlaneseq
    %v10476 = vshrl.u32 %v10475, 7
    %v10477 = vsub.s32 %v10474, %v10476
    %v10478 = vrot.slane %v10464, %v10477
    %v10480 = vunpack.c.l.s4 1966171168
    %v10481 = vunpack.c.0.s8 %v10480
    %v10482 = vlaneseq
    %v10483 = vshrl.u32 %v10482, 7
    %v10484 = vsub.s32 %v10481, %v10483
    %v10485 = vrot.slane %v9999, %v10484
    %v10486 = vcombine.high %v10485, %v10485
    %v10488 = vunpack.c.l.s4 1966171168
    %v10489 = vunpack.c.0.s8 %v10488
    %v10490 = vlaneseq
    %v10491 = vshrl.u32 %v10490, 7
    %v10492 = vsub.s32 %v10489, %v10491
    %v10493 = vrot.slane %v10485, %v10492
    %v10495 = vunpack.c.l.s4 1966171168
    %v10496 = vunpack.c.0.s8 %v10495
    %v10497 = vlaneseq
    %v10498 = vshrl.u32 %v10497, 7
    %v10499 = vsub.s32 %v10496, %v10498
    %v10500 = vrot.slane %v10486, %v10499
    %v10502 = vunpack.c.l.s4 1966171168
    %v10503 = vunpack.c.0.s8 %v10502
    %v10504 = vlaneseq
    %v10505 = vshrl.u32 %v10504, 7
    %v10506 = vsub.s32 %v10503, %v10505
    %v10507 = vrot.slane %v10003, %v10506
    %v10508 = vcombine.high %v10507, %v10507
    %v10510 = vunpack.c.l.s4 1966171168
    %v10511 = vunpack.c.0.s8 %v10510
    %v10512 = vlaneseq
    %v10513 = vshrl.u32 %v10512, 7
    %v10514 = vsub.s32 %v10511, %v10513
    %v10515 = vrot.slane %v10507, %v10514
    %v10517 = vunpack.c.l.s4 1966171168
    %v10518 = vunpack.c.0.s8 %v10517
    %v10519 = vlaneseq
    %v10520 = vshrl.u32 %v10519, 7
    %v10521 = vsub.s32 %v10518, %v10520
    %v10522 = vrot.slane %v10508, %v10521
    %v10524 = vunpack.c.l.s4 1966171168
    %v10525 = vunpack.c.0.s8 %v10524
    %v10526 = vlaneseq
    %v10527 = vshrl.u32 %v10526, 7
    %v10528 = vsub.s32 %v10525, %v10527
    %v10529 = vrot.slane %v10007, %v10528
    %v10530 = vcombine.high %v10529, %v10529
    %v10532 = vunpack.c.l.s4 1966171168
    %v10533 = vunpack.c.0.s8 %v10532
    %v10534 = vlaneseq
    %v10535 = vshrl.u32 %v10534, 7
    %v10536 = vsub.s32 %v10533, %v10535
    %v10537 = vrot.slane %v10529, %v10536
    %v10539 = vunpack.c.l.s4 1966171168
    %v10540 = vunpack.c.0.s8 %v10539
    %v10541 = vlaneseq
    %v10542 = vshrl.u32 %v10541, 7
    %v10543 = vsub.s32 %v10540, %v10542
    %v10544 = vrot.slane %v10530, %v10543
    %v10546 = vunpack.c.l.s4 1966171168
    %v10547 = vunpack.c.0.s8 %v10546
    %v10548 = vlaneseq
    %v10549 = vshrl.u32 %v10548, 7
    %v10550 = vsub.s32 %v10547, %v10549
    %v10551 = vrot.slane %v10011, %v10550
    %v10552 = vcombine.high %v10551, %v10551
    %v10554 = vunpack.c.l.s4 1966171168
    %v10555 = vunpack.c.0.s8 %v10554
    %v10556 = vlaneseq
    %v10557 = vshrl.u32 %v10556, 7
    %v10558 = vsub.s32 %v10555, %v10557
    %v10559 = vrot.slane %v10551, %v10558
    %v10561 = vunpack.c.l.s4 1966171168
    %v10562 = vunpack.c.0.s8 %v10561
    %v10563 = vlaneseq
    %v10564 = vshrl.u32 %v10563, 7
    %v10565 = vsub.s32 %v10562, %v10564
    %v10566 = vrot.slane %v10552, %v10565
    %v10567 = vunpack.c.l.b16 %v10405
    %v10568 = vunpack.c.l.b16 %v10412
    %v10569 = vunpack.c.l.b16 %v10427
    %v10570 = vunpack.c.l.b16 %v10434
    %v10571 = vunpack.c.l.b16 %v10449
    %v10572 = vunpack.c.l.b16 %v10456
    %v10573 = vunpack.c.l.b16 %v10471
    %v10574 = vunpack.c.l.b16 %v10478
    %v10575 = vunpack.c.l.b16 %v10493
    %v10576 = vunpack.c.l.b16 %v10500
    %v10577 = vunpack.c.l.b16 %v10515
    %v10578 = vunpack.c.l.b16 %v10522
    %v10579 = vunpack.c.l.b16 %v10537
    %v10580 = vunpack.c.l.b16 %v10544
    %v10581 = vunpack.c.l.b16 %v10559
    %v10582 = vunpack.c.l.b16 %v10566
    %v10583 = vrot.slane %v10569, 7
    %v10584 = vsel %vm5968, %v10583, %v10567
    %v10585 = vrot.slane %v10571, 6
    %v10586 = vsel %vm5971, %v10585, %v10584
    %v10587 = vrot.slane %v10573, 5
    %v10588 = vsel %vm5974, %v10587, %v10586
    %v10589 = vrot.slane %v10575, 4
    %v10590 = vsel %vm5977, %v10589, %v10588
    %v10591 = vrot.slane %v10577, 3
    %v10592 = vsel %vm5980, %v10591, %v10590
    %v10593 = vrot.slane %v10579, 2
    %v10594 = vsel %vm5983, %v10593, %v10592
    %v10595 = vrot.slane %v10581, 1
    %v10596 = vsel %vm5986, %v10595, %v10594
    %v10597 = vrot.slane %v10570, 7
    %v10598 = vsel %vm5968, %v10597, %v10568
    %v10599 = vrot.slane %v10572, 6
    %v10600 = vsel %vm5971, %v10599, %v10598
    %v10601 = vrot.slane %v10574, 5
    %v10602 = vsel %vm5974, %v10601, %v10600
    %v10603 = vrot.slane %v10576, 4
    %v10604 = vsel %vm5977, %v10603, %v10602
    %v10605 = vrot.slane %v10578, 3
    %v10606 = vsel %vm5980, %v10605, %v10604
    %v10607 = vrot.slane %v10580, 2
    %v10608 = vsel %vm5983, %v10607, %v10606
    %v10609 = vrot.slane %v10582, 1
    %v10610 = vsel %vm5986, %v10609, %v10608
    %v10611 = vpack.c.b16 %v10596, %v10596
    %v10612 = vpack.c.b16 %v10610, %v10610
    %v10632 = vunpack.c.l.b16 %v10015
    %v10633 = vunpack.c.l.b16 %v10016
    %v10634 = vunpack.c.l.b16 %v10017
    %v10635 = vunpack.c.l.b16 %v10018
    %v10636 = vunpack.c.l.b16 %v10019
    %v10637 = vunpack.c.l.b16 %v10020
    %v10638 = vunpack.c.l.b16 %v10021
    %v10639 = vunpack.c.l.b16 %v10022
    %v10640 = vunpack.c.l.b16 %v10023
    %v10641 = vunpack.c.l.b16 %v10024
    %v10642 = vunpack.c.l.b16 %v10025
    %v10643 = vunpack.c.l.b16 %v10026
    %v10644 = vunpack.c.l.b16 %v10027
    %v10645 = vunpack.c.l.b16 %v10028
    %v10646 = vunpack.c.l.b16 %v10029
    %v10647 = vunpack.c.l.b16 %v10030
    %v10648 = vunpack.c.l.b16 %v10031
    %v10649 = vunpack.c.l.b16 %v10032
    %v10650 = vpack.c.b16 %v10633, %v10632
    %v10651 = vpack.c.b16 %v10635, %v10634
    %v10652 = vpack.c.b16 %v10637, %v10636
    %v10653 = vpack.c.b16 %v10639, %v10638
    %v10654 = vpack.c.b16 %v10641, %v10640
    %v10655 = vpack.c.b16 %v10643, %v10642
    %v10656 = vpack.c.b16 %v10645, %v10644
    %v10657 = vpack.c.b16 %v10647, %v10646
    %v10658 = vpack.c.b16 %v10649, %v10648
    %v10668 = vsel %vm10336, %v10612, 0
    %v10671 = vsel %vm435, %v10658, 0
    %10673 = vmatprep.subr.bf16.mxu0 0
    %10674 = vmatpush1.bf16.msra.mxu0 %v10650
    %10675 = vmatprep.subr.bf16.mxu0 0
    %10676 = vmatpush1.bf16.msra.mxu0 %v10651
    %10677 = vmatprep.subr.bf16.mxu0 0
    %10678 = vmatpush1.bf16.msra.mxu0 %v10652
    %10679 = vmatprep.subr.bf16.mxu0 0
    %10680 = vmatpush1.bf16.msra.mxu0 %v10653
    %10681 = vmatprep.subr.bf16.mxu0 0
    %10682 = vmatpush1.bf16.msra.mxu0 %v10654
    %10683 = vmatprep.subr.bf16.mxu0 0
    %10684 = vmatpush1.bf16.msra.mxu0 %v10655
    %10685 = vmatprep.subr.bf16.mxu0 0
    %10686 = vmatpush1.bf16.msra.mxu0 %v10656
    %10687 = vmatprep.subr.bf16.mxu0 0
    %10688 = vmatpush1.bf16.msra.mxu0 %v10657
    %10689 = vmatprep.subr.bf16.mxu0 0
    %10690 = vmatpush1.bf16.msra.mxu0 %v10671
    %10691 = vmatprep.subr.bf16.mxu0 0
    %10692 = vmatpush1.bf16.msra.mxu0 0
    %10693 = vmatprep.subr.bf16.mxu0 0
    %10694 = vmatpush1.bf16.msra.mxu0 0
    %10695 = vmatprep.subr.bf16.mxu0 0
    %10696 = vmatpush1.bf16.msra.mxu0 0
    %10697 = vmatprep.subr.bf16.mxu0 0
    %10698 = vmatpush1.bf16.msra.mxu0 0
    %10699 = vmatprep.subr.bf16.mxu0 0
    %10700 = vmatpush1.bf16.msra.mxu0 0
    %10701 = vmatprep.subr.bf16.mxu0 0
    %10702 = vmatpush1.bf16.msra.mxu0 0
    %10703 = vmatprep.subr.bf16.mxu0 0
    %10704 = vmatpush1.bf16.msra.mxu0 0
    %10705 = vmatprep.mubr.bf16.mxu0 %v10668
    %10706 = vmatmul.mubr.bf16.gmra.mrb[0].mxu0 %v10611
    %v10707 = vpop.f32.mrb[0].mxu0
    %v10708 = vadd.f32 %v10378, %v10707
    %v10709 = vpop.f32.mrb[0].mxu0
    %v10710 = vpop.f32.mrb[0].mxu0
    %v10711 = vpop.f32.mrb[0].mxu0
    %10712 = vdwg.mxu0
    %s10713 = scalar_lea.vmem %s5, 144
    %v10714 = vld [vmem:[%s10713] sm:$0xf]
    %v10715 = vld [vmem:[%s10713 + $0x4] sm:$0xf]
    %v10716 = vld [vmem:[%s10713 + $0x8] sm:$0xf]
    %v10717 = vld [vmem:[%s10713 + $0xc] sm:$0xf]
    %v10718 = vld [vmem:[%s10713 + $0x10] sm:$0xf]
    %v10719 = vld [vmem:[%s10713 + $0x14] sm:$0xf]
    %v10720 = vld [vmem:[%s10713 + $0x18] sm:$0xf]
    %v10721 = vld [vmem:[%s10713 + $0x1c] sm:$0xf]
    %v10722 = vld [vmem:[%s10713 + $0x20] sm:$0xf]
    %v10723 = vld [vmem:[%s10713 + $0x24] sm:$0xf]
    %v10724 = vld [vmem:[%s10713 + $0x28] sm:$0xf]
    %v10725 = vld [vmem:[%s10713 + $0x2c] sm:$0xf]
    %v10726 = vld [vmem:[%s10713 + $0x30] sm:$0xf]
    %v10727 = vld [vmem:[%s10713 + $0x34] sm:$0xf]
    %v10728 = vld [vmem:[%s10713 + $0x38] sm:$0xf]
    %v10729 = vld [vmem:[%s10713 + $0x3c] sm:$0xf]
    %v10730 = vld [vmem:[%s10713 + $0x40] sm:$0xf]
    %v10731 = vld [vmem:[%s10713 + $0x44] sm:$0x3]
    %v10741 = vunpack.c.l.s4 1966171168
    %v10742 = vunpack.c.0.s8 %v10741
    %v10743 = vlaneseq
    %v10744 = vshrl.u32 %v10743, 7
    %v10745 = vsub.s32 %v10742, %v10744
    %v10746 = vrot.slane %v9985, %v10745
    %v10747 = vcombine.high %v10746, %v10746
    %v10749 = vunpack.c.l.s4 1966171168
    %v10750 = vunpack.c.0.s8 %v10749
    %v10751 = vlaneseq
    %v10752 = vshrl.u32 %v10751, 7
    %v10753 = vsub.s32 %v10750, %v10752
    %v10754 = vrot.slane %v10746, %v10753
    %v10756 = vunpack.c.l.s4 1966171168
    %v10757 = vunpack.c.0.s8 %v10756
    %v10758 = vlaneseq
    %v10759 = vshrl.u32 %v10758, 7
    %v10760 = vsub.s32 %v10757, %v10759
    %v10761 = vrot.slane %v10747, %v10760
    %v10763 = vunpack.c.l.s4 1966171168
    %v10764 = vunpack.c.0.s8 %v10763
    %v10765 = vlaneseq
    %v10766 = vshrl.u32 %v10765, 7
    %v10767 = vsub.s32 %v10764, %v10766
    %v10768 = vrot.slane %v9989, %v10767
    %v10769 = vcombine.high %v10768, %v10768
    %v10771 = vunpack.c.l.s4 1966171168
    %v10772 = vunpack.c.0.s8 %v10771
    %v10773 = vlaneseq
    %v10774 = vshrl.u32 %v10773, 7
    %v10775 = vsub.s32 %v10772, %v10774
    %v10776 = vrot.slane %v10768, %v10775
    %v10778 = vunpack.c.l.s4 1966171168
    %v10779 = vunpack.c.0.s8 %v10778
    %v10780 = vlaneseq
    %v10781 = vshrl.u32 %v10780, 7
    %v10782 = vsub.s32 %v10779, %v10781
    %v10783 = vrot.slane %v10769, %v10782
    %v10785 = vunpack.c.l.s4 1966171168
    %v10786 = vunpack.c.0.s8 %v10785
    %v10787 = vlaneseq
    %v10788 = vshrl.u32 %v10787, 7
    %v10789 = vsub.s32 %v10786, %v10788
    %v10790 = vrot.slane %v9993, %v10789
    %v10791 = vcombine.high %v10790, %v10790
    %v10793 = vunpack.c.l.s4 1966171168
    %v10794 = vunpack.c.0.s8 %v10793
    %v10795 = vlaneseq
    %v10796 = vshrl.u32 %v10795, 7
    %v10797 = vsub.s32 %v10794, %v10796
    %v10798 = vrot.slane %v10790, %v10797
    %v10800 = vunpack.c.l.s4 1966171168
    %v10801 = vunpack.c.0.s8 %v10800
    %v10802 = vlaneseq
    %v10803 = vshrl.u32 %v10802, 7
    %v10804 = vsub.s32 %v10801, %v10803
    %v10805 = vrot.slane %v10791, %v10804
    %v10807 = vunpack.c.l.s4 1966171168
    %v10808 = vunpack.c.0.s8 %v10807
    %v10809 = vlaneseq
    %v10810 = vshrl.u32 %v10809, 7
    %v10811 = vsub.s32 %v10808, %v10810
    %v10812 = vrot.slane %v9997, %v10811
    %v10813 = vcombine.high %v10812, %v10812
    %v10815 = vunpack.c.l.s4 1966171168
    %v10816 = vunpack.c.0.s8 %v10815
    %v10817 = vlaneseq
    %v10818 = vshrl.u32 %v10817, 7
    %v10819 = vsub.s32 %v10816, %v10818
    %v10820 = vrot.slane %v10812, %v10819
    %v10822 = vunpack.c.l.s4 1966171168
    %v10823 = vunpack.c.0.s8 %v10822
    %v10824 = vlaneseq
    %v10825 = vshrl.u32 %v10824, 7
    %v10826 = vsub.s32 %v10823, %v10825
    %v10827 = vrot.slane %v10813, %v10826
    %v10829 = vunpack.c.l.s4 1966171168
    %v10830 = vunpack.c.0.s8 %v10829
    %v10831 = vlaneseq
    %v10832 = vshrl.u32 %v10831, 7
    %v10833 = vsub.s32 %v10830, %v10832
    %v10834 = vrot.slane %v10001, %v10833
    %v10835 = vcombine.high %v10834, %v10834
    %v10837 = vunpack.c.l.s4 1966171168
    %v10838 = vunpack.c.0.s8 %v10837
    %v10839 = vlaneseq
    %v10840 = vshrl.u32 %v10839, 7
    %v10841 = vsub.s32 %v10838, %v10840
    %v10842 = vrot.slane %v10834, %v10841
    %v10844 = vunpack.c.l.s4 1966171168
    %v10845 = vunpack.c.0.s8 %v10844
    %v10846 = vlaneseq
    %v10847 = vshrl.u32 %v10846, 7
    %v10848 = vsub.s32 %v10845, %v10847
    %v10849 = vrot.slane %v10835, %v10848
    %v10851 = vunpack.c.l.s4 1966171168
    %v10852 = vunpack.c.0.s8 %v10851
    %v10853 = vlaneseq
    %v10854 = vshrl.u32 %v10853, 7
    %v10855 = vsub.s32 %v10852, %v10854
    %v10856 = vrot.slane %v10005, %v10855
    %v10857 = vcombine.high %v10856, %v10856
    %v10859 = vunpack.c.l.s4 1966171168
    %v10860 = vunpack.c.0.s8 %v10859
    %v10861 = vlaneseq
    %v10862 = vshrl.u32 %v10861, 7
    %v10863 = vsub.s32 %v10860, %v10862
    %v10864 = vrot.slane %v10856, %v10863
    %v10866 = vunpack.c.l.s4 1966171168
    %v10867 = vunpack.c.0.s8 %v10866
    %v10868 = vlaneseq
    %v10869 = vshrl.u32 %v10868, 7
    %v10870 = vsub.s32 %v10867, %v10869
    %v10871 = vrot.slane %v10857, %v10870
    %v10873 = vunpack.c.l.s4 1966171168
    %v10874 = vunpack.c.0.s8 %v10873
    %v10875 = vlaneseq
    %v10876 = vshrl.u32 %v10875, 7
    %v10877 = vsub.s32 %v10874, %v10876
    %v10878 = vrot.slane %v10009, %v10877
    %v10879 = vcombine.high %v10878, %v10878
    %v10881 = vunpack.c.l.s4 1966171168
    %v10882 = vunpack.c.0.s8 %v10881
    %v10883 = vlaneseq
    %v10884 = vshrl.u32 %v10883, 7
    %v10885 = vsub.s32 %v10882, %v10884
    %v10886 = vrot.slane %v10878, %v10885
    %v10888 = vunpack.c.l.s4 1966171168
    %v10889 = vunpack.c.0.s8 %v10888
    %v10890 = vlaneseq
    %v10891 = vshrl.u32 %v10890, 7
    %v10892 = vsub.s32 %v10889, %v10891
    %v10893 = vrot.slane %v10879, %v10892
    %v10895 = vunpack.c.l.s4 1966171168
    %v10896 = vunpack.c.0.s8 %v10895
    %v10897 = vlaneseq
    %v10898 = vshrl.u32 %v10897, 7
    %v10899 = vsub.s32 %v10896, %v10898
    %v10900 = vrot.slane %v10013, %v10899
    %v10901 = vcombine.high %v10900, %v10900
    %v10903 = vunpack.c.l.s4 1966171168
    %v10904 = vunpack.c.0.s8 %v10903
    %v10905 = vlaneseq
    %v10906 = vshrl.u32 %v10905, 7
    %v10907 = vsub.s32 %v10904, %v10906
    %v10908 = vrot.slane %v10900, %v10907
    %v10910 = vunpack.c.l.s4 1966171168
    %v10911 = vunpack.c.0.s8 %v10910
    %v10912 = vlaneseq
    %v10913 = vshrl.u32 %v10912, 7
    %v10914 = vsub.s32 %v10911, %v10913
    %v10915 = vrot.slane %v10901, %v10914
    %v10916 = vunpack.c.l.b16 %v10754
    %v10917 = vunpack.c.l.b16 %v10761
    %v10918 = vunpack.c.l.b16 %v10776
    %v10919 = vunpack.c.l.b16 %v10783
    %v10920 = vunpack.c.l.b16 %v10798
    %v10921 = vunpack.c.l.b16 %v10805
    %v10922 = vunpack.c.l.b16 %v10820
    %v10923 = vunpack.c.l.b16 %v10827
    %v10924 = vunpack.c.l.b16 %v10842
    %v10925 = vunpack.c.l.b16 %v10849
    %v10926 = vunpack.c.l.b16 %v10864
    %v10927 = vunpack.c.l.b16 %v10871
    %v10928 = vunpack.c.l.b16 %v10886
    %v10929 = vunpack.c.l.b16 %v10893
    %v10930 = vunpack.c.l.b16 %v10908
    %v10931 = vunpack.c.l.b16 %v10915
    %v10932 = vrot.slane %v10918, 7
    %v10933 = vsel %vm5968, %v10932, %v10916
    %v10934 = vrot.slane %v10920, 6
    %v10935 = vsel %vm5971, %v10934, %v10933
    %v10936 = vrot.slane %v10922, 5
    %v10937 = vsel %vm5974, %v10936, %v10935
    %v10938 = vrot.slane %v10924, 4
    %v10939 = vsel %vm5977, %v10938, %v10937
    %v10940 = vrot.slane %v10926, 3
    %v10941 = vsel %vm5980, %v10940, %v10939
    %v10942 = vrot.slane %v10928, 2
    %v10943 = vsel %vm5983, %v10942, %v10941
    %v10944 = vrot.slane %v10930, 1
    %v10945 = vsel %vm5986, %v10944, %v10943
    %v10946 = vrot.slane %v10919, 7
    %v10947 = vsel %vm5968, %v10946, %v10917
    %v10948 = vrot.slane %v10921, 6
    %v10949 = vsel %vm5971, %v10948, %v10947
    %v10950 = vrot.slane %v10923, 5
    %v10951 = vsel %vm5974, %v10950, %v10949
    %v10952 = vrot.slane %v10925, 4
    %v10953 = vsel %vm5977, %v10952, %v10951
    %v10954 = vrot.slane %v10927, 3
    %v10955 = vsel %vm5980, %v10954, %v10953
    %v10956 = vrot.slane %v10929, 2
    %v10957 = vsel %vm5983, %v10956, %v10955
    %v10958 = vrot.slane %v10931, 1
    %v10959 = vsel %vm5986, %v10958, %v10957
    %v10960 = vpack.c.b16 %v10945, %v10945
    %v10961 = vpack.c.b16 %v10959, %v10959
    %v10981 = vunpack.c.l.b16 %v10714
    %v10982 = vunpack.c.l.b16 %v10715
    %v10983 = vunpack.c.l.b16 %v10716
    %v10984 = vunpack.c.l.b16 %v10717
    %v10985 = vunpack.c.l.b16 %v10718
    %v10986 = vunpack.c.l.b16 %v10719
    %v10987 = vunpack.c.l.b16 %v10720
    %v10988 = vunpack.c.l.b16 %v10721
    %v10989 = vunpack.c.l.b16 %v10722
    %v10990 = vunpack.c.l.b16 %v10723
    %v10991 = vunpack.c.l.b16 %v10724
    %v10992 = vunpack.c.l.b16 %v10725
    %v10993 = vunpack.c.l.b16 %v10726
    %v10994 = vunpack.c.l.b16 %v10727
    %v10995 = vunpack.c.l.b16 %v10728
    %v10996 = vunpack.c.l.b16 %v10729
    %v10997 = vunpack.c.l.b16 %v10730
    %v10998 = vunpack.c.l.b16 %v10731
    %v10999 = vpack.c.b16 %v10982, %v10981
    %v11000 = vpack.c.b16 %v10984, %v10983
    %v11001 = vpack.c.b16 %v10986, %v10985
    %v11002 = vpack.c.b16 %v10988, %v10987
    %v11003 = vpack.c.b16 %v10990, %v10989
    %v11004 = vpack.c.b16 %v10992, %v10991
    %v11005 = vpack.c.b16 %v10994, %v10993
    %v11006 = vpack.c.b16 %v10996, %v10995
    %v11007 = vpack.c.b16 %v10998, %v10997
    %v11017 = vsel %vm10336, %v10961, 0
    %v11020 = vsel %vm435, %v11007, 0
    %11022 = vmatprep.subr.bf16.mxu0 0
    %11023 = vmatpush1.bf16.msra.mxu0 %v10999
    %11024 = vmatprep.subr.bf16.mxu0 0
    %11025 = vmatpush1.bf16.msra.mxu0 %v11000
    %11026 = vmatprep.subr.bf16.mxu0 0
    %11027 = vmatpush1.bf16.msra.mxu0 %v11001
    %11028 = vmatprep.subr.bf16.mxu0 0
    %11029 = vmatpush1.bf16.msra.mxu0 %v11002
    %11030 = vmatprep.subr.bf16.mxu0 0
    %11031 = vmatpush1.bf16.msra.mxu0 %v11003
    %11032 = vmatprep.subr.bf16.mxu0 0
    %11033 = vmatpush1.bf16.msra.mxu0 %v11004
    %11034 = vmatprep.subr.bf16.mxu0 0
    %11035 = vmatpush1.bf16.msra.mxu0 %v11005
    %11036 = vmatprep.subr.bf16.mxu0 0
    %11037 = vmatpush1.bf16.msra.mxu0 %v11006
    %11038 = vmatprep.subr.bf16.mxu0 0
    %11039 = vmatpush1.bf16.msra.mxu0 %v11020
    %11040 = vmatprep.subr.bf16.mxu0 0
    %11041 = vmatpush1.bf16.msra.mxu0 0
    %11042 = vmatprep.subr.bf16.mxu0 0
    %11043 = vmatpush1.bf16.msra.mxu0 0
    %11044 = vmatprep.subr.bf16.mxu0 0
    %11045 = vmatpush1.bf16.msra.mxu0 0
    %11046 = vmatprep.subr.bf16.mxu0 0
    %11047 = vmatpush1.bf16.msra.mxu0 0
    %11048 = vmatprep.subr.bf16.mxu0 0
    %11049 = vmatpush1.bf16.msra.mxu0 0
    %11050 = vmatprep.subr.bf16.mxu0 0
    %11051 = vmatpush1.bf16.msra.mxu0 0
    %11052 = vmatprep.subr.bf16.mxu0 0
    %11053 = vmatpush1.bf16.msra.mxu0 0
    %11054 = vmatprep.mubr.bf16.mxu0 %v11017
    %11055 = vmatmul.mubr.bf16.gmra.mrb[0].mxu0 %v10960
    %v11056 = vpop.f32.mrb[0].mxu0
    %v11057 = vadd.f32 0.0, %v11056
    %v11058 = vpop.f32.mrb[0].mxu0
    %v11059 = vpop.f32.mrb[0].mxu0
    %v11060 = vpop.f32.mrb[0].mxu0
    %11061 = vdwg.mxu0
    %v11062 = vadd.f32 %v10708, %v11057
    %s11063 = scalar_lea.vmem %s5, 216
    %v11064 = vld [vmem:[%s11063] sm:$0xf]
    %v11065 = vld [vmem:[%s11063 + $0x4] sm:$0xf]
    %v11066 = vld [vmem:[%s11063 + $0x8] sm:$0xf]
    %v11067 = vld [vmem:[%s11063 + $0xc] sm:$0xf]
    %v11068 = vld [vmem:[%s11063 + $0x10] sm:$0xf]
    %v11069 = vld [vmem:[%s11063 + $0x14] sm:$0xf]
    %v11070 = vld [vmem:[%s11063 + $0x18] sm:$0xf]
    %v11071 = vld [vmem:[%s11063 + $0x1c] sm:$0xf]
    %v11072 = vld [vmem:[%s11063 + $0x20] sm:$0xf]
    %v11073 = vld [vmem:[%s11063 + $0x24] sm:$0xf]
    %v11074 = vld [vmem:[%s11063 + $0x28] sm:$0xf]
    %v11075 = vld [vmem:[%s11063 + $0x2c] sm:$0xf]
    %v11076 = vld [vmem:[%s11063 + $0x30] sm:$0xf]
    %v11077 = vld [vmem:[%s11063 + $0x34] sm:$0xf]
    %v11078 = vld [vmem:[%s11063 + $0x38] sm:$0xf]
    %v11079 = vld [vmem:[%s11063 + $0x3c] sm:$0xf]
    %v11080 = vld [vmem:[%s11063 + $0x40] sm:$0xf]
    %v11081 = vld [vmem:[%s11063 + $0x44] sm:$0x3]
    %v11091 = vunpack.c.l.s4 1966171168
    %v11092 = vunpack.c.0.s8 %v11091
    %v11093 = vlaneseq
    %v11094 = vshrl.u32 %v11093, 7
    %v11095 = vsub.s32 %v11092, %v11094
    %v11096 = vrot.slane %v9986, %v11095
    %v11097 = vcombine.high %v11096, %v11096
    %v11099 = vunpack.c.l.s4 1966171168
    %v11100 = vunpack.c.0.s8 %v11099
    %v11101 = vlaneseq
    %v11102 = vshrl.u32 %v11101, 7
    %v11103 = vsub.s32 %v11100, %v11102
    %v11104 = vrot.slane %v11096, %v11103
    %v11106 = vunpack.c.l.s4 1966171168
    %v11107 = vunpack.c.0.s8 %v11106
    %v11108 = vlaneseq
    %v11109 = vshrl.u32 %v11108, 7
    %v11110 = vsub.s32 %v11107, %v11109
    %v11111 = vrot.slane %v11097, %v11110
    %v11113 = vunpack.c.l.s4 1966171168
    %v11114 = vunpack.c.0.s8 %v11113
    %v11115 = vlaneseq
    %v11116 = vshrl.u32 %v11115, 7
    %v11117 = vsub.s32 %v11114, %v11116
    %v11118 = vrot.slane %v9990, %v11117
    %v11119 = vcombine.high %v11118, %v11118
    %v11121 = vunpack.c.l.s4 1966171168
    %v11122 = vunpack.c.0.s8 %v11121
    %v11123 = vlaneseq
    %v11124 = vshrl.u32 %v11123, 7
    %v11125 = vsub.s32 %v11122, %v11124
    %v11126 = vrot.slane %v11118, %v11125
    %v11128 = vunpack.c.l.s4 1966171168
    %v11129 = vunpack.c.0.s8 %v11128
    %v11130 = vlaneseq
    %v11131 = vshrl.u32 %v11130, 7
    %v11132 = vsub.s32 %v11129, %v11131
    %v11133 = vrot.slane %v11119, %v11132
    %v11135 = vunpack.c.l.s4 1966171168
    %v11136 = vunpack.c.0.s8 %v11135
    %v11137 = vlaneseq
    %v11138 = vshrl.u32 %v11137, 7
    %v11139 = vsub.s32 %v11136, %v11138
    %v11140 = vrot.slane %v9994, %v11139
    %v11141 = vcombine.high %v11140, %v11140
    %v11143 = vunpack.c.l.s4 1966171168
    %v11144 = vunpack.c.0.s8 %v11143
    %v11145 = vlaneseq
    %v11146 = vshrl.u32 %v11145, 7
    %v11147 = vsub.s32 %v11144, %v11146
    %v11148 = vrot.slane %v11140, %v11147
    %v11150 = vunpack.c.l.s4 1966171168
    %v11151 = vunpack.c.0.s8 %v11150
    %v11152 = vlaneseq
    %v11153 = vshrl.u32 %v11152, 7
    %v11154 = vsub.s32 %v11151, %v11153
    %v11155 = vrot.slane %v11141, %v11154
    %v11157 = vunpack.c.l.s4 1966171168
    %v11158 = vunpack.c.0.s8 %v11157
    %v11159 = vlaneseq
    %v11160 = vshrl.u32 %v11159, 7
    %v11161 = vsub.s32 %v11158, %v11160
    %v11162 = vrot.slane %v9998, %v11161
    %v11163 = vcombine.high %v11162, %v11162
    %v11165 = vunpack.c.l.s4 1966171168
    %v11166 = vunpack.c.0.s8 %v11165
    %v11167 = vlaneseq
    %v11168 = vshrl.u32 %v11167, 7
    %v11169 = vsub.s32 %v11166, %v11168
    %v11170 = vrot.slane %v11162, %v11169
    %v11172 = vunpack.c.l.s4 1966171168
    %v11173 = vunpack.c.0.s8 %v11172
    %v11174 = vlaneseq
    %v11175 = vshrl.u32 %v11174, 7
    %v11176 = vsub.s32 %v11173, %v11175
    %v11177 = vrot.slane %v11163, %v11176
    %v11179 = vunpack.c.l.s4 1966171168
    %v11180 = vunpack.c.0.s8 %v11179
    %v11181 = vlaneseq
    %v11182 = vshrl.u32 %v11181, 7
    %v11183 = vsub.s32 %v11180, %v11182
    %v11184 = vrot.slane %v10002, %v11183
    %v11185 = vcombine.high %v11184, %v11184
    %v11187 = vunpack.c.l.s4 1966171168
    %v11188 = vunpack.c.0.s8 %v11187
    %v11189 = vlaneseq
    %v11190 = vshrl.u32 %v11189, 7
    %v11191 = vsub.s32 %v11188, %v11190
    %v11192 = vrot.slane %v11184, %v11191
    %v11194 = vunpack.c.l.s4 1966171168
    %v11195 = vunpack.c.0.s8 %v11194
    %v11196 = vlaneseq
    %v11197 = vshrl.u32 %v11196, 7
    %v11198 = vsub.s32 %v11195, %v11197
    %v11199 = vrot.slane %v11185, %v11198
    %v11201 = vunpack.c.l.s4 1966171168
    %v11202 = vunpack.c.0.s8 %v11201
    %v11203 = vlaneseq
    %v11204 = vshrl.u32 %v11203, 7
    %v11205 = vsub.s32 %v11202, %v11204
    %v11206 = vrot.slane %v10006, %v11205
    %v11207 = vcombine.high %v11206, %v11206
    %v11209 = vunpack.c.l.s4 1966171168
    %v11210 = vunpack.c.0.s8 %v11209
    %v11211 = vlaneseq
    %v11212 = vshrl.u32 %v11211, 7
    %v11213 = vsub.s32 %v11210, %v11212
    %v11214 = vrot.slane %v11206, %v11213
    %v11216 = vunpack.c.l.s4 1966171168
    %v11217 = vunpack.c.0.s8 %v11216
    %v11218 = vlaneseq
    %v11219 = vshrl.u32 %v11218, 7
    %v11220 = vsub.s32 %v11217, %v11219
    %v11221 = vrot.slane %v11207, %v11220
    %v11223 = vunpack.c.l.s4 1966171168
    %v11224 = vunpack.c.0.s8 %v11223
    %v11225 = vlaneseq
    %v11226 = vshrl.u32 %v11225, 7
    %v11227 = vsub.s32 %v11224, %v11226
    %v11228 = vrot.slane %v10010, %v11227
    %v11229 = vcombine.high %v11228, %v11228
    %v11231 = vunpack.c.l.s4 1966171168
    %v11232 = vunpack.c.0.s8 %v11231
    %v11233 = vlaneseq
    %v11234 = vshrl.u32 %v11233, 7
    %v11235 = vsub.s32 %v11232, %v11234
    %v11236 = vrot.slane %v11228, %v11235
    %v11238 = vunpack.c.l.s4 1966171168
    %v11239 = vunpack.c.0.s8 %v11238
    %v11240 = vlaneseq
    %v11241 = vshrl.u32 %v11240, 7
    %v11242 = vsub.s32 %v11239, %v11241
    %v11243 = vrot.slane %v11229, %v11242
    %v11245 = vunpack.c.l.s4 1966171168
    %v11246 = vunpack.c.0.s8 %v11245
    %v11247 = vlaneseq
    %v11248 = vshrl.u32 %v11247, 7
    %v11249 = vsub.s32 %v11246, %v11248
    %v11250 = vrot.slane %v10014, %v11249
    %v11251 = vcombine.high %v11250, %v11250
    %v11253 = vunpack.c.l.s4 1966171168
    %v11254 = vunpack.c.0.s8 %v11253
    %v11255 = vlaneseq
    %v11256 = vshrl.u32 %v11255, 7
    %v11257 = vsub.s32 %v11254, %v11256
    %v11258 = vrot.slane %v11250, %v11257
    %v11260 = vunpack.c.l.s4 1966171168
    %v11261 = vunpack.c.0.s8 %v11260
    %v11262 = vlaneseq
    %v11263 = vshrl.u32 %v11262, 7
    %v11264 = vsub.s32 %v11261, %v11263
    %v11265 = vrot.slane %v11251, %v11264
    %v11266 = vunpack.c.l.b16 %v11104
    %v11267 = vunpack.c.l.b16 %v11111
    %v11268 = vunpack.c.l.b16 %v11126
    %v11269 = vunpack.c.l.b16 %v11133
    %v11270 = vunpack.c.l.b16 %v11148
    %v11271 = vunpack.c.l.b16 %v11155
    %v11272 = vunpack.c.l.b16 %v11170
    %v11273 = vunpack.c.l.b16 %v11177
    %v11274 = vunpack.c.l.b16 %v11192
    %v11275 = vunpack.c.l.b16 %v11199
    %v11276 = vunpack.c.l.b16 %v11214
    %v11277 = vunpack.c.l.b16 %v11221
    %v11278 = vunpack.c.l.b16 %v11236
    %v11279 = vunpack.c.l.b16 %v11243
    %v11280 = vunpack.c.l.b16 %v11258
    %v11281 = vunpack.c.l.b16 %v11265
    %v11282 = vrot.slane %v11268, 7
    %v11283 = vsel %vm5968, %v11282, %v11266
    %v11284 = vrot.slane %v11270, 6
    %v11285 = vsel %vm5971, %v11284, %v11283
    %v11286 = vrot.slane %v11272, 5
    %v11287 = vsel %vm5974, %v11286, %v11285
    %v11288 = vrot.slane %v11274, 4
    %v11289 = vsel %vm5977, %v11288, %v11287
    %v11290 = vrot.slane %v11276, 3
    %v11291 = vsel %vm5980, %v11290, %v11289
    %v11292 = vrot.slane %v11278, 2
    %v11293 = vsel %vm5983, %v11292, %v11291
    %v11294 = vrot.slane %v11280, 1
    %v11295 = vsel %vm5986, %v11294, %v11293
    %v11296 = vrot.slane %v11269, 7
    %v11297 = vsel %vm5968, %v11296, %v11267
    %v11298 = vrot.slane %v11271, 6
    %v11299 = vsel %vm5971, %v11298, %v11297
    %v11300 = vrot.slane %v11273, 5
    %v11301 = vsel %vm5974, %v11300, %v11299
    %v11302 = vrot.slane %v11275, 4
    %v11303 = vsel %vm5977, %v11302, %v11301
    %v11304 = vrot.slane %v11277, 3
    %v11305 = vsel %vm5980, %v11304, %v11303
    %v11306 = vrot.slane %v11279, 2
    %v11307 = vsel %vm5983, %v11306, %v11305
    %v11308 = vrot.slane %v11281, 1
    %v11309 = vsel %vm5986, %v11308, %v11307
    %v11310 = vpack.c.b16 %v11295, %v11295
    %v11311 = vpack.c.b16 %v11309, %v11309
    %v11331 = vunpack.c.l.b16 %v11064
    %v11332 = vunpack.c.l.b16 %v11065
    %v11333 = vunpack.c.l.b16 %v11066
    %v11334 = vunpack.c.l.b16 %v11067
    %v11335 = vunpack.c.l.b16 %v11068
    %v11336 = vunpack.c.l.b16 %v11069
    %v11337 = vunpack.c.l.b16 %v11070
    %v11338 = vunpack.c.l.b16 %v11071
    %v11339 = vunpack.c.l.b16 %v11072
    %v11340 = vunpack.c.l.b16 %v11073
    %v11341 = vunpack.c.l.b16 %v11074
    %v11342 = vunpack.c.l.b16 %v11075
    %v11343 = vunpack.c.l.b16 %v11076
    %v11344 = vunpack.c.l.b16 %v11077
    %v11345 = vunpack.c.l.b16 %v11078
    %v11346 = vunpack.c.l.b16 %v11079
    %v11347 = vunpack.c.l.b16 %v11080
    %v11348 = vunpack.c.l.b16 %v11081
    %v11349 = vpack.c.b16 %v11332, %v11331
    %v11350 = vpack.c.b16 %v11334, %v11333
    %v11351 = vpack.c.b16 %v11336, %v11335
    %v11352 = vpack.c.b16 %v11338, %v11337
    %v11353 = vpack.c.b16 %v11340, %v11339
    %v11354 = vpack.c.b16 %v11342, %v11341
    %v11355 = vpack.c.b16 %v11344, %v11343
    %v11356 = vpack.c.b16 %v11346, %v11345
    %v11357 = vpack.c.b16 %v11348, %v11347
    %v11367 = vsel %vm10336, %v11311, 0
    %v11370 = vsel %vm435, %v11357, 0
    %11372 = vmatprep.subr.bf16.mxu0 0
    %11373 = vmatpush1.bf16.msra.mxu0 %v11349
    %11374 = vmatprep.subr.bf16.mxu0 0
    %11375 = vmatpush1.bf16.msra.mxu0 %v11350
    %11376 = vmatprep.subr.bf16.mxu0 0
    %11377 = vmatpush1.bf16.msra.mxu0 %v11351
    %11378 = vmatprep.subr.bf16.mxu0 0
    %11379 = vmatpush1.bf16.msra.mxu0 %v11352
    %11380 = vmatprep.subr.bf16.mxu0 0
    %11381 = vmatpush1.bf16.msra.mxu0 %v11353
    %11382 = vmatprep.subr.bf16.mxu0 0
    %11383 = vmatpush1.bf16.msra.mxu0 %v11354
    %11384 = vmatprep.subr.bf16.mxu0 0
    %11385 = vmatpush1.bf16.msra.mxu0 %v11355
    %11386 = vmatprep.subr.bf16.mxu0 0
    %11387 = vmatpush1.bf16.msra.mxu0 %v11356
    %11388 = vmatprep.subr.bf16.mxu0 0
    %11389 = vmatpush1.bf16.msra.mxu0 %v11370
    %11390 = vmatprep.subr.bf16.mxu0 0
    %11391 = vmatpush1.bf16.msra.mxu0 0
    %11392 = vmatprep.subr.bf16.mxu0 0
    %11393 = vmatpush1.bf16.msra.mxu0 0
    %11394 = vmatprep.subr.bf16.mxu0 0
    %11395 = vmatpush1.bf16.msra.mxu0 0
    %11396 = vmatprep.subr.bf16.mxu0 0
    %11397 = vmatpush1.bf16.msra.mxu0 0
    %11398 = vmatprep.subr.bf16.mxu0 0
    %11399 = vmatpush1.bf16.msra.mxu0 0
    %11400 = vmatprep.subr.bf16.mxu0 0
    %11401 = vmatpush1.bf16.msra.mxu0 0
    %11402 = vmatprep.subr.bf16.mxu0 0
    %11403 = vmatpush1.bf16.msra.mxu0 0
    %11404 = vmatprep.mubr.bf16.mxu0 %v11367
    %11405 = vmatmul.mubr.bf16.gmra.mrb[0].mxu0 %v11310
    %v11406 = vpop.f32.mrb[0].mxu0
    %v11407 = vadd.f32 0.0, %v11406
    %v11408 = vpop.f32.mrb[0].mxu0
    %v11409 = vpop.f32.mrb[0].mxu0
    %v11410 = vpop.f32.mrb[0].mxu0
    %11411 = vdwg.mxu0
    %v11412 = vadd.f32 %v11062, %v11407
    %v11413 = vld [vmem:[%s6] sm:$0x1]
    %v11415 = vlaneseq
    %v11416 = vshrl.u32 %v11415, 7
    %v11417 = vsub.s32 0, %v11416
    %v11418 = vrot.slane %v11413, %v11417
    %v11420 = vadd.f32 %v11412, %v11418
    %11421 = vst [vmem:[#allocation2] sm:$0xff] %v11420
    // Predicated region
    $region30: #{tpu_custom_call.1} parent=1 // pred_check
      _
    $region31: #{tpu_custom_call.1} parent=1 // pred_check_branch
      %11423 = sbr.rel (0) target = $region33
    $region32: #{tpu_custom_call.1} parent=1 // pred_region
      %s11425 = ssub.s32 128, 128
      %11426 = vsyncadd [#allocation3], %s11425
      %s11428 = sshll.u32 [#allocation2], 4
      %s11429 = int_to_ptr.vmem [resolvable:$true] %s11428
      %11431 = dma.vmem_to_hbm [thread:$0]  %s11429, 128, %s7, [#allocation3]
    $region33: #{tpu_custom_call.1} parent=1 // pred_fallthru
      _
    // Predicated region
    $region34: #{tpu_custom_call.1} parent=1 // pred_check
      _
    $region35: #{tpu_custom_call.1} parent=1 // pred_check_branch
      %11433 = sbr.rel (0) target = $region37
    $region36: #{tpu_custom_call.1} parent=1 // pred_region
      %11434 = dma.done [#allocation3], 128
    $region37: #{tpu_custom_call.1} parent=1 // pred_fallthru
      _
    %11435 = vsyncpa [#allocation3], 1

</llo_original>
